<compile_context>
chip_gen: v7x
topology: tpu7x:2x2x1
jax: 0.10.0
libtpu: 0.0.40
codegen_flags: <defaults>
</compile_context>

<pallas_src>
import jax
import jax.numpy as jnp
from jax import lax
from jax.experimental import pallas as pl
from jax.experimental.pallas import tpu as pltpu


# -----------------------------------------------------------------------------
# Weight restructuring helpers (plain JAX, tiny; outer products only -> exact)
# -----------------------------------------------------------------------------
def _deconv_matrix(wt, w):
    """ConvTranspose2d(k=2, s=2) as one [W*Cin, 2*(2W*Cout)] matrix (paired-row output).

    Input row i (lane = w*Cin+ci) @ M gives output rows 2i | 2i+1 concatenated in lanes
    (lane = dy*(2W*Cout) + w2*Cout + co).
    """
    cin, cout = wt.shape[0], wt.shape[1]
    blk = jnp.transpose(wt, (2, 0, 3, 1)).astype(jnp.float32)        # [dy, ci, dx, co]
    eye_w = jnp.eye(w, dtype=jnp.float32)
    m6 = jnp.einsum("jk,dcxo->jcdkxo", eye_w, blk)                   # [W, Cin, 2, W, 2, Cout]
    return m6.reshape(w * cin, 2 * (2 * w) * cout)


def _band_matrices(w_hwio, wo):
    """3x3 'SAME' conv as 3 banded matrices over the flat (width, channel) axis.

    band[ky][w'*Ci+ci, w*Co+co] = w_hwio[ky, kx, ci, co] with w' = w + kx - 1 (in range),
    so out_row(h) = sum_ky in_row(h + ky - 1) @ band[ky]  (width zero-padding baked in).
    """
    kh, kw, ci, co = w_hwio.shape
    mats = []
    for ky in range(kh):
        m = jnp.zeros((wo, ci, wo, co), jnp.float32)
        for kx in range(kw):
            sel = jnp.eye(wo, wo, k=1 - kx, dtype=jnp.float32)       # sel[w', w]=1 iff w'=w+kx-1
            m = m + jnp.einsum("ab,io->aibo", sel, w_hwio[ky, kx].astype(jnp.float32))
        mats.append(m.reshape(wo * ci, wo * co))
    return jnp.stack(mats, axis=0)                                   # [3, wo*Ci, wo*Co]


def _pair_band_stacked(w_hwio, w2):
    """3x3 'SAME' conv as ONE K-stacked matrix in paired-row space.

    Paired-row layout: pair-row i holds image rows (2i, 2i+1) side by side in lanes.
    Returns M of shape [3 * 2*Kr, 2*Nr] (Kr = w2*Ci, Nr = w2*Co) such that
        out_pair(i) = concat_p( in_pair_padded(i + p - 1) ) @ M,   p in {0, 1, 2},
    with one zero pair-row of height padding above/below each image.
    """
    band = _band_matrices(w_hwio, w2)                                # [3, Kr, Nr]
    kr, nr = band.shape[1], band.shape[2]
    z = jnp.zeros((kr, nr), jnp.float32)
    # pair(i-1): its odd row (2i-1) feeds tap ky=0 of out row 2i (output half 0)
    m_m1 = jnp.concatenate([jnp.concatenate([z, z], axis=1),
                            jnp.concatenate([band[0], z], axis=1)], axis=0)
    # pair(i): rows 2i / 2i+1 feed taps (1,2) of out row 2i and taps (0,1) of out row 2i+1
    m_0 = jnp.concatenate([jnp.concatenate([band[1], band[0]], axis=1),
                           jnp.concatenate([band[2], band[1]], axis=1)], axis=0)
    # pair(i+1): its even row (2i+2) feeds tap ky=2 of out row 2i+1 (output half 1)
    m_p1 = jnp.concatenate([jnp.concatenate([z, band[2]], axis=1),
                            jnp.concatenate([z, z], axis=1)], axis=0)
    return jnp.concatenate([m_m1, m_0, m_p1], axis=0)                # [6*Kr, 2*Nr]


# -----------------------------------------------------------------------------
# The fused kernel: deconv+ReLU+BN0 -> conv3x3+ReLU+BN1 -> conv3x3+ReLU+BN2
# -----------------------------------------------------------------------------
def _make_fused_kernel(b_sz, h_pairs, count, eps, cdt):
    inv_count = 1.0 / float(count)
    stats_prec = lax.Precision.HIGHEST                 # BN stats stay f32-exact in all modes
    mxu_prec = (lax.Precision.HIGHEST
                if jnp.dtype(cdt) == jnp.dtype(jnp.float32) else lax.Precision.DEFAULT)

    def stack_taps(t):
        # t: [B*H, K] f32 paired-row activation -> [B*H, 3*K]; lane-block p holds the
        # per-image zero-padded pair-row (i + p - 1).  The three height taps (and, for
        # conv1, the channel concat) thus collapse into a single K-stacked matmul.
        k = t.shape[1]
        z = jnp.zeros((1, k), t.dtype)
        imgs = []
        for b in range(b_sz):
            pad = jnp.concatenate([z, t[b * h_pairs:(b + 1) * h_pairs], z], axis=0)
            imgs.append(jnp.concatenate(
                [pad[0:h_pairs], pad[1:h_pairs + 1], pad[2:h_pairs + 2]], axis=1))
        return jnp.concatenate(imgs, axis=0)

    def batchnorm(y, gamma, beta, proj, proj_t):
        # Training-mode BatchNorm (biased variance) fully in-kernel.
        # y: [B*H, 2L] post-ReLU f32; gamma/beta: [1, Cout]; proj: [2L, Cout] is 0/1.
        colsums = jnp.concatenate([jnp.sum(y, axis=0, keepdims=True),
                                   jnp.sum(y * y, axis=0, keepdims=True)], axis=0)
        ch = jnp.dot(colsums, proj, preferred_element_type=jnp.float32,
                     precision=stats_prec) * inv_count                        # [2, Cout]
        mean = ch[0:1]
        var = ch[1:2] - mean * mean
        scale = gamma * lax.rsqrt(var + eps)
        shift = beta - mean * scale
        aff = jnp.dot(jnp.concatenate([scale, shift], axis=0), proj_t,
                      preferred_element_type=jnp.float32, precision=stats_prec)  # [2, 2L]
        return y * aff[0:1] + aff[1:2]

    def kernel(x_ref, d_ref, mup_ref, w1_ref, w2_ref, proj_ref, projt_ref, gb_ref, o_ref):
        proj, proj_t, gb = proj_ref[...], projt_ref[...], gb_ref[...]
        # Stage 0: ConvTranspose2d(k=2, s=2) -> ReLU -> BN0   (single MXU matmul,
        # paired-row output so the stride-2 subpixel interleave is free).
        y0 = jnp.dot(x_ref[...], mup_ref[...],
                     preferred_element_type=jnp.float32, precision=mxu_prec)
        a0 = batchnorm(jnp.maximum(y0, 0.0), gb[0:1], gb[1:2], proj, proj_t)
        # Stage 1: conv3x3 over concat([up, skip]) -> ReLU -> BN1.  One matmul with
        # K = 3*(2L + 2Ld): height taps + channel concat folded into the contraction.
        op1 = jnp.concatenate([stack_taps(a0), stack_taps(d_ref[...])], axis=1).astype(cdt)
        y1 = jnp.dot(op1, w1_ref[...],
                     preferred_element_type=jnp.float32, precision=mxu_prec)
        a1 = batchnorm(jnp.maximum(y1, 0.0), gb[2:3], gb[3:4], proj, proj_t)
        # Stage 2: conv3x3 -> ReLU -> BN2 (one matmul, K = 3*2L), final affine fused here.
        op2 = stack_taps(a1).astype(cdt)
        y2 = jnp.dot(op2, w2_ref[...],
                     preferred_element_type=jnp.float32, precision=mxu_prec)
        o_ref[...] = batchnorm(jnp.maximum(y2, 0.0), gb[4:5], gb[5:6], proj, proj_t)

    return kernel


# -----------------------------------------------------------------------------
# Parameters (deterministic synthetic init; shapes follow the nn.Module __init__)
# -----------------------------------------------------------------------------
def init_params(key, in_channel, out_channel):
    k1, k2, k3 = jax.random.split(key, 3)
    # ConvTranspose2d weight: (in, out, 2, 2)
    wt = 0.1 * jax.random.normal(k1, (in_channel, out_channel, 2, 2), jnp.float32)
    # Conv2d weights (out, in, 3, 3) -> HWIO
    w1_oihw = 0.1 * jax.random.normal(k2, (out_channel, in_channel, 3, 3), jnp.float32)
    w2_oihw = 0.1 * jax.random.normal(k3, (out_channel, out_channel, 3, 3), jnp.float32)
    w1 = jnp.transpose(w1_oihw, (2, 3, 1, 0))
    w2 = jnp.transpose(w2_oihw, (2, 3, 1, 0))
    ones = jnp.ones((out_channel,), jnp.float32)
    zeros = jnp.zeros((out_channel,), jnp.float32)
    return dict(wt=wt, w1=w1, w2=w2,
                g0=ones, b0=zeros, g1=ones, b1=zeros, g2=ones, b2=zeros)


# -----------------------------------------------------------------------------
# Forward pass: one fused Pallas kernel + layout-only glue outside
# -----------------------------------------------------------------------------
def upsampling_forward(in_lyr, down_lyr, params, *, compute_dtype=jnp.bfloat16):
    B, Cin, H, W = in_lyr.shape
    Cskip = down_lyr.shape[1]
    Cout = params["wt"].shape[1]
    H2, W2 = 2 * H, 2 * W
    L = W2 * Cout                       # lanes per image row of post-upsample tensors
    Ld = W2 * Cskip
    f32 = jnp.float32
    eps = 1e-5
    count = B * H2 * W2                 # BatchNorm reduction count over (N, H, W)

    # Paired-row activation layout [B*H, 2*lanes]: row (b, i) = image rows 2i | 2i+1.
    # 2*L = 2*Ld = 128 at these sizes -> lane-dense stores everywhere in the kernel.
    x = jnp.transpose(in_lyr, (0, 2, 3, 1)).reshape(B * H, W * Cin).astype(compute_dtype)
    d = jnp.transpose(down_lyr, (0, 2, 3, 1)).reshape(B * H, 2 * Ld).astype(f32)

    # Weights restructured for big, lane-dense matmuls (bf16 MXU operands by default).
    m_up = _deconv_matrix(params["wt"], W).astype(compute_dtype)               # [W*Cin, 2L]
    w1f = jnp.concatenate(
        [_pair_band_stacked(params["w1"][:, :, :Cout, :], W2),                 # up channels
         _pair_band_stacked(params["w1"][:, :, Cout:, :], W2)],                # skip channels
        axis=0).astype(compute_dtype)                                          # [3*(2L+2Ld), 2L]
    w2f = _pair_band_stacked(params["w2"], W2).astype(compute_dtype)           # [3*2L, 2L]

    # Per-channel fold / broadcast projection for the in-kernel BatchNorm (0/1, f32).
    proj = jnp.tile(jnp.eye(Cout, dtype=f32), (2 * W2, 1))                     # [2L, Cout]
    gb = jnp.stack([params["g0"], params["b0"], params["g1"], params["b1"],
                    params["g2"], params["b2"]], axis=0).astype(f32)           # [6, Cout]

    kernel = _make_fused_kernel(B, H, count, eps, compute_dtype)
    vmem = pl.BlockSpec(memory_space=pltpu.MemorySpace.VMEM)  # whole problem VMEM-resident
    out_pair = pl.pallas_call(
        kernel,
        out_shape=jax.ShapeDtypeStruct((B * H, 2 * L), f32),
        in_specs=[vmem] * 8,
        out_specs=vmem,
    )(x, d, m_up, w1f, w2f, proj, proj.T, gb)

    # Paired rows -> NHWC (row-major metadata reshape) -> NCHW (unavoidable transpose).
    return jnp.transpose(out_pair.reshape(B, H2, W2, Cout), (0, 3, 1, 2))


# -----------------------------------------------------------------------------
# Pure-JAX reference (XLA convs at HIGHEST precision) for correctness check
# -----------------------------------------------------------------------------
def reference_forward(in_lyr, down_lyr, params):
    B, Cin, H, W = in_lyr.shape
    Cout = params["wt"].shape[1]
    hi = lax.Precision.HIGHEST
    x = jnp.transpose(in_lyr, (0, 2, 3, 1)).astype(jnp.float32)
    d = jnp.transpose(down_lyr, (0, 2, 3, 1)).astype(jnp.float32)

    def bn(t, g, b):
        m = jnp.mean(t, axis=(0, 1, 2), keepdims=True)
        v = jnp.mean((t - m) ** 2, axis=(0, 1, 2), keepdims=True)
        return (t - m) * lax.rsqrt(v + 1e-5) * g[None, None, None, :] + b[None, None, None, :]

    u = jnp.einsum("bijc,copq->bipjqo", x, params["wt"],
                   precision=hi).reshape(B, 2 * H, 2 * W, Cout)
    u = bn(jax.nn.relu(u), params["g0"], params["b0"])
    cat = jnp.concatenate([u, d], axis=-1)
    dn = ("NHWC", "HWIO", "NHWC")
    z = lax.conv_general_dilated(cat, params["w1"], (1, 1), "SAME",
                                 dimension_numbers=dn, precision=hi)
    z = bn(jax.nn.relu(z), params["g1"], params["b1"])
    z = lax.conv_general_dilated(z, params["w2"], (1, 1), "SAME",
                                 dimension_numbers=dn, precision=hi)
    z = bn(jax.nn.relu(z), params["g2"], params["b2"])
    return jnp.transpose(z, (0, 3, 1, 2))


if __name__ == "__main__":
    IN_C, OUT_C = 8, 4           # UNet-style: skip carries IN_C - OUT_C = 4 channels
    B, H, W = 2, 8, 8            # in_lyr 8x8 -> upsampled / output 16x16

    key = jax.random.PRNGKey(0)
    kx, kd, kp = jax.random.split(key, 3)
    in_lyr = jax.random.normal(kx, (B, IN_C, H, W), jnp.float32)
    down_lyr = jax.random.normal(kd, (B, IN_C - OUT_C, 2 * H, 2 * W), jnp.float32)
    params = init_params(kp, IN_C, OUT_C)

    ref = reference_forward(in_lyr, down_lyr, params)

    # f32 MXU mode: validates the pair-band / stacked-tap / in-kernel-BN algebra tightly.
    fwd_f32 = jax.jit(lambda a, s, p: upsampling_forward(a, s, p, compute_dtype=jnp.float32))
    out_f32 = jax.block_until_ready(fwd_f32(in_lyr, down_lyr, params))

    # bf16 MXU mode (default / fast path): looser tolerance — outputs are BatchNorm-
    # normalized to ~unit scale, so bf16 operand rounding shows up at the 1e-2 level.
    fwd = jax.jit(upsampling_forward)
    out = jax.block_until_ready(fwd(in_lyr, down_lyr, params))

    assert out.shape == (B, OUT_C, 2 * H, 2 * W), out.shape
    err_f32 = float(jnp.max(jnp.abs(out_f32 - ref)))
    err_bf16 = float(jnp.max(jnp.abs(out - ref)))
    if not (err_f32 < 2e-3):
        raise AssertionError(f"f32 path mismatch vs reference: max abs err = {err_f32}")
    if not (err_bf16 < 8e-2):
        raise AssertionError(f"bf16 path mismatch vs reference: max abs err = {err_bf16}")
    print("KERNEL_OK")
</pallas_src>

<mosaic_0001>
module attributes {stable_mosaic.version = 11 : i64} {
  func.func @kernel(%arg0: memref<16x64xf32, #tpu.memory_space<vmem>>, %arg1: memref<16x128xf32, #tpu.memory_space<vmem>>, %arg2: memref<64x128xf32, #tpu.memory_space<vmem>>, %arg3: memref<768x128xf32, #tpu.memory_space<vmem>>, %arg4: memref<384x128xf32, #tpu.memory_space<vmem>>, %arg5: memref<128x4xf32, #tpu.memory_space<vmem>>, %arg6: memref<4x128xf32, #tpu.memory_space<vmem>>, %arg7: memref<6x4xf32, #tpu.memory_space<vmem>>, %arg8: memref<16x128xf32, #tpu.memory_space<vmem>>) attributes {dimension_semantics = [], scalar_prefetch = 0 : i64, scratch_operands = 0 : i64, tpu.core_type = #tpu.core_type<tc>} {
    %c0 = arith.constant 0 : index
    %c0_0 = arith.constant 0 : index
    %0 = vector.load %arg5[%c0, %c0_0] : memref<128x4xf32, #tpu.memory_space<vmem>>, vector<128x4xf32>
    %c0_1 = arith.constant 0 : index
    %c0_2 = arith.constant 0 : index
    %1 = vector.load %arg6[%c0_1, %c0_2] : memref<4x128xf32, #tpu.memory_space<vmem>>, vector<4x128xf32>
    %c0_3 = arith.constant 0 : index
    %c0_4 = arith.constant 0 : index
    %2 = vector.load %arg7[%c0_3, %c0_4] : memref<6x4xf32, #tpu.memory_space<vmem>>, vector<6x4xf32>
    %c0_5 = arith.constant 0 : index
    %c0_6 = arith.constant 0 : index
    %3 = vector.load %arg0[%c0_5, %c0_6] : memref<16x64xf32, #tpu.memory_space<vmem>>, vector<16x64xf32>
    %c0_7 = arith.constant 0 : index
    %c0_8 = arith.constant 0 : index
    %4 = vector.load %arg2[%c0_7, %c0_8] : memref<64x128xf32, #tpu.memory_space<vmem>>, vector<64x128xf32>
    %cst = arith.constant dense<0.000000e+00> : vector<16x128xf32>
    %5 = tpu.matmul %3, %4, %cst {dimension_numbers = #tpu.dot_dimension_numbers<[1], [0], [0], [1], [0, 0, 1, 1], [], []>, precision = #tpu.contract_precision<fp32>} : vector<16x64xf32>, vector<64x128xf32>, vector<16x128xf32> -> vector<16x128xf32>
    %cst_9 = arith.constant 0.000000e+00 : f32
    %6 = vector.broadcast %cst_9 : f32 to vector<16x128xf32>
    %7 = arith.maximumf %5, %6 : vector<16x128xf32>
    %8 = vector.extract_strided_slice %2 {offsets = [0, 0], sizes = [1, 4], strides = [1, 1]} : vector<6x4xf32> to vector<1x4xf32>
    %9 = vector.extract_strided_slice %2 {offsets = [1, 0], sizes = [1, 4], strides = [1, 1]} : vector<6x4xf32> to vector<1x4xf32>
    %cst_10 = arith.constant dense<0.000000e+00> : vector<128xf32>
    %10 = vector.multi_reduction <add>, %7, %cst_10 [0] : vector<16x128xf32> to vector<128xf32>
    %11 = vector.shape_cast %10 : vector<128xf32> to vector<1x128xf32>
    %12 = arith.mulf %7, %7 : vector<16x128xf32>
    %cst_11 = arith.constant dense<0.000000e+00> : vector<128xf32>
    %13 = vector.multi_reduction <add>, %12, %cst_11 [0] : vector<16x128xf32> to vector<128xf32>
    %14 = vector.shape_cast %13 : vector<128xf32> to vector<1x128xf32>
    %15 = tpu.concatenate %11, %14 in 0 : vector<1x128xf32>, vector<1x128xf32> -> vector<2x128xf32>
    %cst_12 = arith.constant dense<0.000000e+00> : vector<2x4xf32>
    %16 = tpu.matmul %15, %0, %cst_12 {dimension_numbers = #tpu.dot_dimension_numbers<[1], [0], [0], [1], [0, 0, 1, 1], [], []>, precision = #tpu.contract_precision<fp32>} : vector<2x128xf32>, vector<128x4xf32>, vector<2x4xf32> -> vector<2x4xf32>
    %cst_13 = arith.constant 0.001953125 : f32
    %17 = vector.broadcast %cst_13 : f32 to vector<2x4xf32>
    %18 = arith.mulf %16, %17 : vector<2x4xf32>
    %19 = vector.extract_strided_slice %18 {offsets = [0, 0], sizes = [1, 4], strides = [1, 1]} : vector<2x4xf32> to vector<1x4xf32>
    %20 = vector.extract_strided_slice %18 {offsets = [1, 0], sizes = [1, 4], strides = [1, 1]} : vector<2x4xf32> to vector<1x4xf32>
    %21 = arith.mulf %19, %19 : vector<1x4xf32>
    %22 = arith.subf %20, %21 : vector<1x4xf32>
    %cst_14 = arith.constant 9.99999974E-6 : f32
    %23 = vector.broadcast %cst_14 : f32 to vector<1x4xf32>
    %24 = arith.addf %22, %23 : vector<1x4xf32>
    %25 = math.rsqrt %24 : vector<1x4xf32>
    %26 = arith.mulf %8, %25 : vector<1x4xf32>
    %27 = arith.mulf %19, %26 : vector<1x4xf32>
    %28 = arith.subf %9, %27 : vector<1x4xf32>
    %29 = tpu.concatenate %26, %28 in 0 : vector<1x4xf32>, vector<1x4xf32> -> vector<2x4xf32>
    %cst_15 = arith.constant dense<0.000000e+00> : vector<2x128xf32>
    %30 = tpu.matmul %29, %1, %cst_15 {dimension_numbers = #tpu.dot_dimension_numbers<[1], [0], [0], [1], [0, 0, 1, 1], [], []>, precision = #tpu.contract_precision<fp32>} : vector<2x4xf32>, vector<4x128xf32>, vector<2x128xf32> -> vector<2x128xf32>
    %31 = vector.extract_strided_slice %30 {offsets = [0, 0], sizes = [1, 128], strides = [1, 1]} : vector<2x128xf32> to vector<1x128xf32>
    %32 = vector.broadcast %31 : vector<1x128xf32> to vector<16x128xf32>
    %33 = arith.mulf %7, %32 : vector<16x128xf32>
    %34 = vector.extract_strided_slice %30 {offsets = [1, 0], sizes = [1, 128], strides = [1, 1]} : vector<2x128xf32> to vector<1x128xf32>
    %35 = vector.broadcast %34 : vector<1x128xf32> to vector<16x128xf32>
    %36 = arith.addf %33, %35 : vector<16x128xf32>
    %cst_16 = arith.constant 0.000000e+00 : f32
    %37 = vector.broadcast %cst_16 : f32 to vector<1x128xf32>
    %38 = vector.extract_strided_slice %36 {offsets = [0, 0], sizes = [8, 128], strides = [1, 1]} : vector<16x128xf32> to vector<8x128xf32>
    %39 = tpu.concatenate %37, %38, %37 in 0 : vector<1x128xf32>, vector<8x128xf32>, vector<1x128xf32> -> vector<10x128xf32>
    %40 = vector.extract_strided_slice %39 {offsets = [0, 0], sizes = [8, 128], strides = [1, 1]} : vector<10x128xf32> to vector<8x128xf32>
    %41 = vector.extract_strided_slice %39 {offsets = [1, 0], sizes = [8, 128], strides = [1, 1]} : vector<10x128xf32> to vector<8x128xf32>
    %42 = vector.extract_strided_slice %39 {offsets = [2, 0], sizes = [8, 128], strides = [1, 1]} : vector<10x128xf32> to vector<8x128xf32>
    %43 = tpu.concatenate %40, %41, %42 in 1 : vector<8x128xf32>, vector<8x128xf32>, vector<8x128xf32> -> vector<8x384xf32>
    %44 = vector.extract_strided_slice %36 {offsets = [8, 0], sizes = [8, 128], strides = [1, 1]} : vector<16x128xf32> to vector<8x128xf32>
    %45 = tpu.concatenate %37, %44, %37 in 0 : vector<1x128xf32>, vector<8x128xf32>, vector<1x128xf32> -> vector<10x128xf32>
    %46 = vector.extract_strided_slice %45 {offsets = [0, 0], sizes = [8, 128], strides = [1, 1]} : vector<10x128xf32> to vector<8x128xf32>
    %47 = vector.extract_strided_slice %45 {offsets = [1, 0], sizes = [8, 128], strides = [1, 1]} : vector<10x128xf32> to vector<8x128xf32>
    %48 = vector.extract_strided_slice %45 {offsets = [2, 0], sizes = [8, 128], strides = [1, 1]} : vector<10x128xf32> to vector<8x128xf32>
    %49 = tpu.concatenate %46, %47, %48 in 1 : vector<8x128xf32>, vector<8x128xf32>, vector<8x128xf32> -> vector<8x384xf32>
    %50 = tpu.concatenate %43, %49 in 0 : vector<8x384xf32>, vector<8x384xf32> -> vector<16x384xf32>
    %c0_17 = arith.constant 0 : index
    %c0_18 = arith.constant 0 : index
    %51 = vector.load %arg1[%c0_17, %c0_18] : memref<16x128xf32, #tpu.memory_space<vmem>>, vector<16x128xf32>
    %cst_19 = arith.constant 0.000000e+00 : f32
    %52 = vector.broadcast %cst_19 : f32 to vector<1x128xf32>
    %53 = vector.extract_strided_slice %51 {offsets = [0, 0], sizes = [8, 128], strides = [1, 1]} : vector<16x128xf32> to vector<8x128xf32>
    %54 = tpu.concatenate %52, %53, %52 in 0 : vector<1x128xf32>, vector<8x128xf32>, vector<1x128xf32> -> vector<10x128xf32>
    %55 = vector.extract_strided_slice %54 {offsets = [0, 0], sizes = [8, 128], strides = [1, 1]} : vector<10x128xf32> to vector<8x128xf32>
    %56 = vector.extract_strided_slice %54 {offsets = [1, 0], sizes = [8, 128], strides = [1, 1]} : vector<10x128xf32> to vector<8x128xf32>
    %57 = vector.extract_strided_slice %54 {offsets = [2, 0], sizes = [8, 128], strides = [1, 1]} : vector<10x128xf32> to vector<8x128xf32>
    %58 = tpu.concatenate %55, %56, %57 in 1 : vector<8x128xf32>, vector<8x128xf32>, vector<8x128xf32> -> vector<8x384xf32>
    %59 = vector.extract_strided_slice %51 {offsets = [8, 0], sizes = [8, 128], strides = [1, 1]} : vector<16x128xf32> to vector<8x128xf32>
    %60 = tpu.concatenate %52, %59, %52 in 0 : vector<1x128xf32>, vector<8x128xf32>, vector<1x128xf32> -> vector<10x128xf32>
    %61 = vector.extract_strided_slice %60 {offsets = [0, 0], sizes = [8, 128], strides = [1, 1]} : vector<10x128xf32> to vector<8x128xf32>
    %62 = vector.extract_strided_slice %60 {offsets = [1, 0], sizes = [8, 128], strides = [1, 1]} : vector<10x128xf32> to vector<8x128xf32>
    %63 = vector.extract_strided_slice %60 {offsets = [2, 0], sizes = [8, 128], strides = [1, 1]} : vector<10x128xf32> to vector<8x128xf32>
    %64 = tpu.concatenate %61, %62, %63 in 1 : vector<8x128xf32>, vector<8x128xf32>, vector<8x128xf32> -> vector<8x384xf32>
    %65 = tpu.concatenate %58, %64 in 0 : vector<8x384xf32>, vector<8x384xf32> -> vector<16x384xf32>
    %66 = tpu.concatenate %50, %65 in 1 : vector<16x384xf32>, vector<16x384xf32> -> vector<16x768xf32>
    %c0_20 = arith.constant 0 : index
    %c0_21 = arith.constant 0 : index
    %67 = vector.load %arg3[%c0_20, %c0_21] : memref<768x128xf32, #tpu.memory_space<vmem>>, vector<768x128xf32>
    %cst_22 = arith.constant dense<0.000000e+00> : vector<16x128xf32>
    %68 = tpu.matmul %66, %67, %cst_22 {dimension_numbers = #tpu.dot_dimension_numbers<[1], [0], [0], [1], [0, 0, 1, 1], [], []>, precision = #tpu.contract_precision<fp32>} : vector<16x768xf32>, vector<768x128xf32>, vector<16x128xf32> -> vector<16x128xf32>
    %cst_23 = arith.constant 0.000000e+00 : f32
    %69 = vector.broadcast %cst_23 : f32 to vector<16x128xf32>
    %70 = arith.maximumf %68, %69 : vector<16x128xf32>
    %71 = vector.extract_strided_slice %2 {offsets = [2, 0], sizes = [1, 4], strides = [1, 1]} : vector<6x4xf32> to vector<1x4xf32>
    %72 = vector.extract_strided_slice %2 {offsets = [3, 0], sizes = [1, 4], strides = [1, 1]} : vector<6x4xf32> to vector<1x4xf32>
    %cst_24 = arith.constant dense<0.000000e+00> : vector<128xf32>
    %73 = vector.multi_reduction <add>, %70, %cst_24 [0] : vector<16x128xf32> to vector<128xf32>
    %74 = vector.shape_cast %73 : vector<128xf32> to vector<1x128xf32>
    %75 = arith.mulf %70, %70 : vector<16x128xf32>
    %cst_25 = arith.constant dense<0.000000e+00> : vector<128xf32>
    %76 = vector.multi_reduction <add>, %75, %cst_25 [0] : vector<16x128xf32> to vector<128xf32>
    %77 = vector.shape_cast %76 : vector<128xf32> to vector<1x128xf32>
    %78 = tpu.concatenate %74, %77 in 0 : vector<1x128xf32>, vector<1x128xf32> -> vector<2x128xf32>
    %cst_26 = arith.constant dense<0.000000e+00> : vector<2x4xf32>
    %79 = tpu.matmul %78, %0, %cst_26 {dimension_numbers = #tpu.dot_dimension_numbers<[1], [0], [0], [1], [0, 0, 1, 1], [], []>, precision = #tpu.contract_precision<fp32>} : vector<2x128xf32>, vector<128x4xf32>, vector<2x4xf32> -> vector<2x4xf32>
    %cst_27 = arith.constant 0.001953125 : f32
    %80 = vector.broadcast %cst_27 : f32 to vector<2x4xf32>
    %81 = arith.mulf %79, %80 : vector<2x4xf32>
    %82 = vector.extract_strided_slice %81 {offsets = [0, 0], sizes = [1, 4], strides = [1, 1]} : vector<2x4xf32> to vector<1x4xf32>
    %83 = vector.extract_strided_slice %81 {offsets = [1, 0], sizes = [1, 4], strides = [1, 1]} : vector<2x4xf32> to vector<1x4xf32>
    %84 = arith.mulf %82, %82 : vector<1x4xf32>
    %85 = arith.subf %83, %84 : vector<1x4xf32>
    %cst_28 = arith.constant 9.99999974E-6 : f32
    %86 = vector.broadcast %cst_28 : f32 to vector<1x4xf32>
    %87 = arith.addf %85, %86 : vector<1x4xf32>
    %88 = math.rsqrt %87 : vector<1x4xf32>
    %89 = arith.mulf %71, %88 : vector<1x4xf32>
    %90 = arith.mulf %82, %89 : vector<1x4xf32>
    %91 = arith.subf %72, %90 : vector<1x4xf32>
    %92 = tpu.concatenate %89, %91 in 0 : vector<1x4xf32>, vector<1x4xf32> -> vector<2x4xf32>
    %cst_29 = arith.constant dense<0.000000e+00> : vector<2x128xf32>
    %93 = tpu.matmul %92, %1, %cst_29 {dimension_numbers = #tpu.dot_dimension_numbers<[1], [0], [0], [1], [0, 0, 1, 1], [], []>, precision = #tpu.contract_precision<fp32>} : vector<2x4xf32>, vector<4x128xf32>, vector<2x128xf32> -> vector<2x128xf32>
    %94 = vector.extract_strided_slice %93 {offsets = [0, 0], sizes = [1, 128], strides = [1, 1]} : vector<2x128xf32> to vector<1x128xf32>
    %95 = vector.broadcast %94 : vector<1x128xf32> to vector<16x128xf32>
    %96 = arith.mulf %70, %95 : vector<16x128xf32>
    %97 = vector.extract_strided_slice %93 {offsets = [1, 0], sizes = [1, 128], strides = [1, 1]} : vector<2x128xf32> to vector<1x128xf32>
    %98 = vector.broadcast %97 : vector<1x128xf32> to vector<16x128xf32>
    %99 = arith.addf %96, %98 : vector<16x128xf32>
    %cst_30 = arith.constant 0.000000e+00 : f32
    %100 = vector.broadcast %cst_30 : f32 to vector<1x128xf32>
    %101 = vector.extract_strided_slice %99 {offsets = [0, 0], sizes = [8, 128], strides = [1, 1]} : vector<16x128xf32> to vector<8x128xf32>
    %102 = tpu.concatenate %100, %101, %100 in 0 : vector<1x128xf32>, vector<8x128xf32>, vector<1x128xf32> -> vector<10x128xf32>
    %103 = vector.extract_strided_slice %102 {offsets = [0, 0], sizes = [8, 128], strides = [1, 1]} : vector<10x128xf32> to vector<8x128xf32>
    %104 = vector.extract_strided_slice %102 {offsets = [1, 0], sizes = [8, 128], strides = [1, 1]} : vector<10x128xf32> to vector<8x128xf32>
    %105 = vector.extract_strided_slice %102 {offsets = [2, 0], sizes = [8, 128], strides = [1, 1]} : vector<10x128xf32> to vector<8x128xf32>
    %106 = tpu.concatenate %103, %104, %105 in 1 : vector<8x128xf32>, vector<8x128xf32>, vector<8x128xf32> -> vector<8x384xf32>
    %107 = vector.extract_strided_slice %99 {offsets = [8, 0], sizes = [8, 128], strides = [1, 1]} : vector<16x128xf32> to vector<8x128xf32>
    %108 = tpu.concatenate %100, %107, %100 in 0 : vector<1x128xf32>, vector<8x128xf32>, vector<1x128xf32> -> vector<10x128xf32>
    %109 = vector.extract_strided_slice %108 {offsets = [0, 0], sizes = [8, 128], strides = [1, 1]} : vector<10x128xf32> to vector<8x128xf32>
    %110 = vector.extract_strided_slice %108 {offsets = [1, 0], sizes = [8, 128], strides = [1, 1]} : vector<10x128xf32> to vector<8x128xf32>
    %111 = vector.extract_strided_slice %108 {offsets = [2, 0], sizes = [8, 128], strides = [1, 1]} : vector<10x128xf32> to vector<8x128xf32>
    %112 = tpu.concatenate %109, %110, %111 in 1 : vector<8x128xf32>, vector<8x128xf32>, vector<8x128xf32> -> vector<8x384xf32>
    %113 = tpu.concatenate %106, %112 in 0 : vector<8x384xf32>, vector<8x384xf32> -> vector<16x384xf32>
    %c0_31 = arith.constant 0 : index
    %c0_32 = arith.constant 0 : index
    %114 = vector.load %arg4[%c0_31, %c0_32] : memref<384x128xf32, #tpu.memory_space<vmem>>, vector<384x128xf32>
    %cst_33 = arith.constant dense<0.000000e+00> : vector<16x128xf32>
    %115 = tpu.matmul %113, %114, %cst_33 {dimension_numbers = #tpu.dot_dimension_numbers<[1], [0], [0], [1], [0, 0, 1, 1], [], []>, precision = #tpu.contract_precision<fp32>} : vector<16x384xf32>, vector<384x128xf32>, vector<16x128xf32> -> vector<16x128xf32>
    %cst_34 = arith.constant 0.000000e+00 : f32
    %116 = vector.broadcast %cst_34 : f32 to vector<16x128xf32>
    %117 = arith.maximumf %115, %116 : vector<16x128xf32>
    %118 = vector.extract_strided_slice %2 {offsets = [4, 0], sizes = [1, 4], strides = [1, 1]} : vector<6x4xf32> to vector<1x4xf32>
    %119 = vector.extract_strided_slice %2 {offsets = [5, 0], sizes = [1, 4], strides = [1, 1]} : vector<6x4xf32> to vector<1x4xf32>
    %cst_35 = arith.constant dense<0.000000e+00> : vector<128xf32>
    %120 = vector.multi_reduction <add>, %117, %cst_35 [0] : vector<16x128xf32> to vector<128xf32>
    %121 = vector.shape_cast %120 : vector<128xf32> to vector<1x128xf32>
    %122 = arith.mulf %117, %117 : vector<16x128xf32>
    %cst_36 = arith.constant dense<0.000000e+00> : vector<128xf32>
    %123 = vector.multi_reduction <add>, %122, %cst_36 [0] : vector<16x128xf32> to vector<128xf32>
    %124 = vector.shape_cast %123 : vector<128xf32> to vector<1x128xf32>
    %125 = tpu.concatenate %121, %124 in 0 : vector<1x128xf32>, vector<1x128xf32> -> vector<2x128xf32>
    %cst_37 = arith.constant dense<0.000000e+00> : vector<2x4xf32>
    %126 = tpu.matmul %125, %0, %cst_37 {dimension_numbers = #tpu.dot_dimension_numbers<[1], [0], [0], [1], [0, 0, 1, 1], [], []>, precision = #tpu.contract_precision<fp32>} : vector<2x128xf32>, vector<128x4xf32>, vector<2x4xf32> -> vector<2x4xf32>
    %cst_38 = arith.constant 0.001953125 : f32
    %127 = vector.broadcast %cst_38 : f32 to vector<2x4xf32>
    %128 = arith.mulf %126, %127 : vector<2x4xf32>
    %129 = vector.extract_strided_slice %128 {offsets = [0, 0], sizes = [1, 4], strides = [1, 1]} : vector<2x4xf32> to vector<1x4xf32>
    %130 = vector.extract_strided_slice %128 {offsets = [1, 0], sizes = [1, 4], strides = [1, 1]} : vector<2x4xf32> to vector<1x4xf32>
    %131 = arith.mulf %129, %129 : vector<1x4xf32>
    %132 = arith.subf %130, %131 : vector<1x4xf32>
    %cst_39 = arith.constant 9.99999974E-6 : f32
    %133 = vector.broadcast %cst_39 : f32 to vector<1x4xf32>
    %134 = arith.addf %132, %133 : vector<1x4xf32>
    %135 = math.rsqrt %134 : vector<1x4xf32>
    %136 = arith.mulf %118, %135 : vector<1x4xf32>
    %137 = arith.mulf %129, %136 : vector<1x4xf32>
    %138 = arith.subf %119, %137 : vector<1x4xf32>
    %139 = tpu.concatenate %136, %138 in 0 : vector<1x4xf32>, vector<1x4xf32> -> vector<2x4xf32>
    %cst_40 = arith.constant dense<0.000000e+00> : vector<2x128xf32>
    %140 = tpu.matmul %139, %1, %cst_40 {dimension_numbers = #tpu.dot_dimension_numbers<[1], [0], [0], [1], [0, 0, 1, 1], [], []>, precision = #tpu.contract_precision<fp32>} : vector<2x4xf32>, vector<4x128xf32>, vector<2x128xf32> -> vector<2x128xf32>
    %141 = vector.extract_strided_slice %140 {offsets = [0, 0], sizes = [1, 128], strides = [1, 1]} : vector<2x128xf32> to vector<1x128xf32>
    %142 = vector.broadcast %141 : vector<1x128xf32> to vector<16x128xf32>
    %143 = arith.mulf %117, %142 : vector<16x128xf32>
    %144 = vector.extract_strided_slice %140 {offsets = [1, 0], sizes = [1, 128], strides = [1, 1]} : vector<2x128xf32> to vector<1x128xf32>
    %145 = vector.broadcast %144 : vector<1x128xf32> to vector<16x128xf32>
    %146 = arith.addf %143, %145 : vector<16x128xf32>
    %c0_41 = arith.constant 0 : index
    %c0_42 = arith.constant 0 : index
    %147 = vector.load %arg8[%c0_41, %c0_42] : memref<16x128xf32, #tpu.memory_space<vmem>>, vector<16x128xf32>
    tpu.vector_store %arg8[%c0_41, %c0_42], %146 {strides = array<i32>} : memref<16x128xf32, #tpu.memory_space<vmem>>, vector<16x128xf32>,
    return
  }
}

</mosaic_0001>

<llo_original>
// kernel: tile.9
$region0: #{tile.9}
  %s0 = inlined_call_operand.vmem [shape: f32[32,4,4], index: 0, kind: input, shape index: {}]
  %s1 = inlined_call_operand.vmem [shape: f32[128,4], index: 1, kind: output, shape index: {}]
  $region1: #{tile.9} parent=0
    #allocation0 [shape = 'u8[4096]{0}', space=vmem, size = 0x1000, scoped, tag = 'scoped mem for output reshape']
    %v2 = vld [vmem:[%s0] sm:$0x1]
    %s3 = scalar_lea.vmem %s0, 31
    %v4 = vld [vmem:[%s3] sm:$0x2]
    %vm5 = vcmask 1041409
    %v6 = vsel %vm5, %v4, %v2
    %s7 = scalar_lea.vmem %s0, 62
    %v8 = vld [vmem:[%s7] sm:$0x4]
    %vm9 = vcmask 1042434
    %v10 = vsel %vm9, %v8, %v6
    %s11 = scalar_lea.vmem %s0, 93
    %v12 = vld [vmem:[%s11] sm:$0x8]
    %vm13 = vcmask 1043459
    %v14 = vsel %vm13, %v12, %v10
    %vm15 = vcmask 31744
    %16 = vst.msk [vmem:[#allocation0] sm:$0xf] %vm15, %v14
    %s17 = scalar_lea.vmem %s0, 31
    %v18 = vld [vmem:[%s17] sm:$0x1]
    %s19 = scalar_lea.vmem %s0, 62
    %v20 = vld [vmem:[%s19] sm:$0x2]
    %vm21 = vcmask 1041409
    %v22 = vsel %vm21, %v20, %v18
    %s23 = scalar_lea.vmem %s0, 93
    %v24 = vld [vmem:[%s23] sm:$0x4]
    %vm25 = vcmask 1042434
    %v26 = vsel %vm25, %v24, %v22
    %s27 = scalar_lea.vmem %s0, 124
    %v28 = vld [vmem:[%s27] sm:$0x8]
    %vm29 = vcmask 1043459
    %v30 = vsel %vm29, %v28, %v26
    %31 = vrot.lane.b32.xlu0 %v30, 124
    %v32 = vpop.permute.xlu0 %31
    %vm33 = vcmask 1048544
    %34 = vst.msk [vmem:[#allocation0] sm:$0xf] %vm33, %v32
    %s35 = scalar_lea.vmem %s0, 30
    %v36 = vld [vmem:[%s35] sm:$0x1]
    %s37 = scalar_lea.vmem %s0, 61
    %v38 = vld [vmem:[%s37] sm:$0x2]
    %vm39 = vcmask 1041409
    %v40 = vsel %vm39, %v38, %v36
    %s41 = scalar_lea.vmem %s0, 92
    %v42 = vld [vmem:[%s41] sm:$0x4]
    %vm43 = vcmask 1042434
    %v44 = vsel %vm43, %v42, %v40
    %s45 = scalar_lea.vmem %s0, 123
    %v46 = vld [vmem:[%s45] sm:$0x8]
    %vm47 = vcmask 1043459
    %v48 = vsel %vm47, %v46, %v44
    %49 = vrot.lane.b32.xlu0 %v48, 120
    %v50 = vpop.permute.xlu0 %49
    %vm51 = vcmask 1015744
    %52 = vst.msk [vmem:[#allocation0] sm:$0xf] %vm51, %v50
    %s53 = scalar_lea.vmem %s0, 29
    %v54 = vld [vmem:[%s53] sm:$0x1]
    %s55 = scalar_lea.vmem %s0, 60
    %v56 = vld [vmem:[%s55] sm:$0x2]
    %vm57 = vcmask 1041409
    %v58 = vsel %vm57, %v56, %v54
    %s59 = scalar_lea.vmem %s0, 91
    %v60 = vld [vmem:[%s59] sm:$0x4]
    %vm61 = vcmask 1042434
    %v62 = vsel %vm61, %v60, %v58
    %s63 = scalar_lea.vmem %s0, 122
    %v64 = vld [vmem:[%s63] sm:$0x8]
    %vm65 = vcmask 1043459
    %v66 = vsel %vm65, %v64, %v62
    %67 = vrot.lane.b32.xlu0 %v66, 116
    %v68 = vpop.permute.xlu0 %67
    %vm69 = vcmask 982944
    %70 = vst.msk [vmem:[#allocation0] sm:$0xf] %vm69, %v68
    %s71 = scalar_lea.vmem %s0, 28
    %v72 = vld [vmem:[%s71] sm:$0x1]
    %s73 = scalar_lea.vmem %s0, 59
    %v74 = vld [vmem:[%s73] sm:$0x2]
    %vm75 = vcmask 1041409
    %v76 = vsel %vm75, %v74, %v72
    %s77 = scalar_lea.vmem %s0, 90
    %v78 = vld [vmem:[%s77] sm:$0x4]
    %vm79 = vcmask 1042434
    %v80 = vsel %vm79, %v78, %v76
    %s81 = scalar_lea.vmem %s0, 121
    %v82 = vld [vmem:[%s81] sm:$0x8]
    %vm83 = vcmask 1043459
    %v84 = vsel %vm83, %v82, %v80
    %85 = vrot.lane.b32.xlu0 %v84, 112
    %v86 = vpop.permute.xlu0 %85
    %vm87 = vcmask 950144
    %88 = vst.msk [vmem:[#allocation0] sm:$0xf] %vm87, %v86
    %s89 = scalar_lea.vmem %s0, 27
    %v90 = vld [vmem:[%s89] sm:$0x1]
    %s91 = scalar_lea.vmem %s0, 58
    %v92 = vld [vmem:[%s91] sm:$0x2]
    %vm93 = vcmask 1041409
    %v94 = vsel %vm93, %v92, %v90
    %s95 = scalar_lea.vmem %s0, 89
    %v96 = vld [vmem:[%s95] sm:$0x4]
    %vm97 = vcmask 1042434
    %v98 = vsel %vm97, %v96, %v94
    %s99 = scalar_lea.vmem %s0, 120
    %v100 = vld [vmem:[%s99] sm:$0x8]
    %vm101 = vcmask 1043459
    %v102 = vsel %vm101, %v100, %v98
    %103 = vrot.lane.b32.xlu0 %v102, 108
    %v104 = vpop.permute.xlu0 %103
    %vm105 = vcmask 917344
    %106 = vst.msk [vmem:[#allocation0] sm:$0xf] %vm105, %v104
    %s107 = scalar_lea.vmem %s0, 26
    %v108 = vld [vmem:[%s107] sm:$0x1]
    %s109 = scalar_lea.vmem %s0, 57
    %v110 = vld [vmem:[%s109] sm:$0x2]
    %vm111 = vcmask 1041409
    %v112 = vsel %vm111, %v110, %v108
    %s113 = scalar_lea.vmem %s0, 88
    %v114 = vld [vmem:[%s113] sm:$0x4]
    %vm115 = vcmask 1042434
    %v116 = vsel %vm115, %v114, %v112
    %s117 = scalar_lea.vmem %s0, 119
    %v118 = vld [vmem:[%s117] sm:$0x8]
    %vm119 = vcmask 1043459
    %v120 = vsel %vm119, %v118, %v116
    %121 = vrot.lane.b32.xlu0 %v120, 104
    %v122 = vpop.permute.xlu0 %121
    %vm123 = vcmask 884544
    %124 = vst.msk [vmem:[#allocation0] sm:$0xf] %vm123, %v122
    %s125 = scalar_lea.vmem %s0, 25
    %v126 = vld [vmem:[%s125] sm:$0x1]
    %s127 = scalar_lea.vmem %s0, 56
    %v128 = vld [vmem:[%s127] sm:$0x2]
    %vm129 = vcmask 1041409
    %v130 = vsel %vm129, %v128, %v126
    %s131 = scalar_lea.vmem %s0, 87
    %v132 = vld [vmem:[%s131] sm:$0x4]
    %vm133 = vcmask 1042434
    %v134 = vsel %vm133, %v132, %v130
    %s135 = scalar_lea.vmem %s0, 118
    %v136 = vld [vmem:[%s135] sm:$0x8]
    %vm137 = vcmask 1043459
    %v138 = vsel %vm137, %v136, %v134
    %139 = vrot.lane.b32.xlu0 %v138, 100
    %v140 = vpop.permute.xlu0 %139
    %vm141 = vcmask 851744
    %142 = vst.msk [vmem:[#allocation0] sm:$0xf] %vm141, %v140
    %s143 = scalar_lea.vmem %s0, 24
    %v144 = vld [vmem:[%s143] sm:$0x1]
    %s145 = scalar_lea.vmem %s0, 55
    %v146 = vld [vmem:[%s145] sm:$0x2]
    %vm147 = vcmask 1041409
    %v148 = vsel %vm147, %v146, %v144
    %s149 = scalar_lea.vmem %s0, 86
    %v150 = vld [vmem:[%s149] sm:$0x4]
    %vm151 = vcmask 1042434
    %v152 = vsel %vm151, %v150, %v148
    %s153 = scalar_lea.vmem %s0, 117
    %v154 = vld [vmem:[%s153] sm:$0x8]
    %vm155 = vcmask 1043459
    %v156 = vsel %vm155, %v154, %v152
    %157 = vrot.lane.b32.xlu0 %v156, 96
    %v158 = vpop.permute.xlu0 %157
    %vm159 = vcmask 818944
    %160 = vst.msk [vmem:[#allocation0] sm:$0xf] %vm159, %v158
    %s161 = scalar_lea.vmem %s0, 23
    %v162 = vld [vmem:[%s161] sm:$0x1]
    %s163 = scalar_lea.vmem %s0, 54
    %v164 = vld [vmem:[%s163] sm:$0x2]
    %vm165 = vcmask 1041409
    %v166 = vsel %vm165, %v164, %v162
    %s167 = scalar_lea.vmem %s0, 85
    %v168 = vld [vmem:[%s167] sm:$0x4]
    %vm169 = vcmask 1042434
    %v170 = vsel %vm169, %v168, %v166
    %s171 = scalar_lea.vmem %s0, 116
    %v172 = vld [vmem:[%s171] sm:$0x8]
    %vm173 = vcmask 1043459
    %v174 = vsel %vm173, %v172, %v170
    %175 = vrot.lane.b32.xlu0 %v174, 92
    %v176 = vpop.permute.xlu0 %175
    %vm177 = vcmask 786144
    %178 = vst.msk [vmem:[#allocation0] sm:$0xf] %vm177, %v176
    %s179 = scalar_lea.vmem %s0, 22
    %v180 = vld [vmem:[%s179] sm:$0x1]
    %s181 = scalar_lea.vmem %s0, 53
    %v182 = vld [vmem:[%s181] sm:$0x2]
    %vm183 = vcmask 1041409
    %v184 = vsel %vm183, %v182, %v180
    %s185 = scalar_lea.vmem %s0, 84
    %v186 = vld [vmem:[%s185] sm:$0x4]
    %vm187 = vcmask 1042434
    %v188 = vsel %vm187, %v186, %v184
    %s189 = scalar_lea.vmem %s0, 115
    %v190 = vld [vmem:[%s189] sm:$0x8]
    %vm191 = vcmask 1043459
    %v192 = vsel %vm191, %v190, %v188
    %193 = vrot.lane.b32.xlu0 %v192, 88
    %v194 = vpop.permute.xlu0 %193
    %vm195 = vcmask 753344
    %196 = vst.msk [vmem:[#allocation0] sm:$0xf] %vm195, %v194
    %s197 = scalar_lea.vmem %s0, 21
    %v198 = vld [vmem:[%s197] sm:$0x1]
    %s199 = scalar_lea.vmem %s0, 52
    %v200 = vld [vmem:[%s199] sm:$0x2]
    %vm201 = vcmask 1041409
    %v202 = vsel %vm201, %v200, %v198
    %s203 = scalar_lea.vmem %s0, 83
    %v204 = vld [vmem:[%s203] sm:$0x4]
    %vm205 = vcmask 1042434
    %v206 = vsel %vm205, %v204, %v202
    %s207 = scalar_lea.vmem %s0, 114
    %v208 = vld [vmem:[%s207] sm:$0x8]
    %vm209 = vcmask 1043459
    %v210 = vsel %vm209, %v208, %v206
    %211 = vrot.lane.b32.xlu0 %v210, 84
    %v212 = vpop.permute.xlu0 %211
    %vm213 = vcmask 720544
    %214 = vst.msk [vmem:[#allocation0] sm:$0xf] %vm213, %v212
    %s215 = scalar_lea.vmem %s0, 20
    %v216 = vld [vmem:[%s215] sm:$0x1]
    %s217 = scalar_lea.vmem %s0, 51
    %v218 = vld [vmem:[%s217] sm:$0x2]
    %vm219 = vcmask 1041409
    %v220 = vsel %vm219, %v218, %v216
    %s221 = scalar_lea.vmem %s0, 82
    %v222 = vld [vmem:[%s221] sm:$0x4]
    %vm223 = vcmask 1042434
    %v224 = vsel %vm223, %v222, %v220
    %s225 = scalar_lea.vmem %s0, 113
    %v226 = vld [vmem:[%s225] sm:$0x8]
    %vm227 = vcmask 1043459
    %v228 = vsel %vm227, %v226, %v224
    %229 = vrot.lane.b32.xlu0 %v228, 80
    %v230 = vpop.permute.xlu0 %229
    %vm231 = vcmask 687744
    %232 = vst.msk [vmem:[#allocation0] sm:$0xf] %vm231, %v230
    %s233 = scalar_lea.vmem %s0, 19
    %v234 = vld [vmem:[%s233] sm:$0x1]
    %s235 = scalar_lea.vmem %s0, 50
    %v236 = vld [vmem:[%s235] sm:$0x2]
    %vm237 = vcmask 1041409
    %v238 = vsel %vm237, %v236, %v234
    %s239 = scalar_lea.vmem %s0, 81
    %v240 = vld [vmem:[%s239] sm:$0x4]
    %vm241 = vcmask 1042434
    %v242 = vsel %vm241, %v240, %v238
    %s243 = scalar_lea.vmem %s0, 112
    %v244 = vld [vmem:[%s243] sm:$0x8]
    %vm245 = vcmask 1043459
    %v246 = vsel %vm245, %v244, %v242
    %247 = vrot.lane.b32.xlu0 %v246, 76
    %v248 = vpop.permute.xlu0 %247
    %vm249 = vcmask 654944
    %250 = vst.msk [vmem:[#allocation0] sm:$0xf] %vm249, %v248
    %s251 = scalar_lea.vmem %s0, 18
    %v252 = vld [vmem:[%s251] sm:$0x1]
    %s253 = scalar_lea.vmem %s0, 49
    %v254 = vld [vmem:[%s253] sm:$0x2]
    %vm255 = vcmask 1041409
    %v256 = vsel %vm255, %v254, %v252
    %s257 = scalar_lea.vmem %s0, 80
    %v258 = vld [vmem:[%s257] sm:$0x4]
    %vm259 = vcmask 1042434
    %v260 = vsel %vm259, %v258, %v256
    %s261 = scalar_lea.vmem %s0, 111
    %v262 = vld [vmem:[%s261] sm:$0x8]
    %vm263 = vcmask 1043459
    %v264 = vsel %vm263, %v262, %v260
    %265 = vrot.lane.b32.xlu0 %v264, 72
    %v266 = vpop.permute.xlu0 %265
    %vm267 = vcmask 622144
    %268 = vst.msk [vmem:[#allocation0] sm:$0xf] %vm267, %v266
    %s269 = scalar_lea.vmem %s0, 17
    %v270 = vld [vmem:[%s269] sm:$0x1]
    %s271 = scalar_lea.vmem %s0, 48
    %v272 = vld [vmem:[%s271] sm:$0x2]
    %vm273 = vcmask 1041409
    %v274 = vsel %vm273, %v272, %v270
    %s275 = scalar_lea.vmem %s0, 79
    %v276 = vld [vmem:[%s275] sm:$0x4]
    %vm277 = vcmask 1042434
    %v278 = vsel %vm277, %v276, %v274
    %s279 = scalar_lea.vmem %s0, 110
    %v280 = vld [vmem:[%s279] sm:$0x8]
    %vm281 = vcmask 1043459
    %v282 = vsel %vm281, %v280, %v278
    %283 = vrot.lane.b32.xlu0 %v282, 68
    %v284 = vpop.permute.xlu0 %283
    %vm285 = vcmask 589344
    %286 = vst.msk [vmem:[#allocation0] sm:$0xf] %vm285, %v284
    %s287 = scalar_lea.vmem %s0, 16
    %v288 = vld [vmem:[%s287] sm:$0x1]
    %s289 = scalar_lea.vmem %s0, 47
    %v290 = vld [vmem:[%s289] sm:$0x2]
    %vm291 = vcmask 1041409
    %v292 = vsel %vm291, %v290, %v288
    %s293 = scalar_lea.vmem %s0, 78
    %v294 = vld [vmem:[%s293] sm:$0x4]
    %vm295 = vcmask 1042434
    %v296 = vsel %vm295, %v294, %v292
    %s297 = scalar_lea.vmem %s0, 109
    %v298 = vld [vmem:[%s297] sm:$0x8]
    %vm299 = vcmask 1043459
    %v300 = vsel %vm299, %v298, %v296
    %301 = vrot.lane.b32.xlu0 %v300, 64
    %v302 = vpop.permute.xlu0 %301
    %vm303 = vcmask 556544
    %304 = vst.msk [vmem:[#allocation0] sm:$0xf] %vm303, %v302
    %s305 = scalar_lea.vmem %s0, 15
    %v306 = vld [vmem:[%s305] sm:$0x1]
    %s307 = scalar_lea.vmem %s0, 46
    %v308 = vld [vmem:[%s307] sm:$0x2]
    %vm309 = vcmask 1041409
    %v310 = vsel %vm309, %v308, %v306
    %s311 = scalar_lea.vmem %s0, 77
    %v312 = vld [vmem:[%s311] sm:$0x4]
    %vm313 = vcmask 1042434
    %v314 = vsel %vm313, %v312, %v310
    %s315 = scalar_lea.vmem %s0, 108
    %v316 = vld [vmem:[%s315] sm:$0x8]
    %vm317 = vcmask 1043459
    %v318 = vsel %vm317, %v316, %v314
    %319 = vrot.lane.b32.xlu0 %v318, 60
    %v320 = vpop.permute.xlu0 %319
    %vm321 = vcmask 523744
    %322 = vst.msk [vmem:[#allocation0] sm:$0xf] %vm321, %v320
    %s323 = scalar_lea.vmem %s0, 14
    %v324 = vld [vmem:[%s323] sm:$0x1]
    %s325 = scalar_lea.vmem %s0, 45
    %v326 = vld [vmem:[%s325] sm:$0x2]
    %vm327 = vcmask 1041409
    %v328 = vsel %vm327, %v326, %v324
    %s329 = scalar_lea.vmem %s0, 76
    %v330 = vld [vmem:[%s329] sm:$0x4]
    %vm331 = vcmask 1042434
    %v332 = vsel %vm331, %v330, %v328
    %s333 = scalar_lea.vmem %s0, 107
    %v334 = vld [vmem:[%s333] sm:$0x8]
    %vm335 = vcmask 1043459
    %v336 = vsel %vm335, %v334, %v332
    %337 = vrot.lane.b32.xlu0 %v336, 56
    %v338 = vpop.permute.xlu0 %337
    %vm339 = vcmask 490944
    %340 = vst.msk [vmem:[#allocation0] sm:$0xf] %vm339, %v338
    %s341 = scalar_lea.vmem %s0, 13
    %v342 = vld [vmem:[%s341] sm:$0x1]
    %s343 = scalar_lea.vmem %s0, 44
    %v344 = vld [vmem:[%s343] sm:$0x2]
    %vm345 = vcmask 1041409
    %v346 = vsel %vm345, %v344, %v342
    %s347 = scalar_lea.vmem %s0, 75
    %v348 = vld [vmem:[%s347] sm:$0x4]
    %vm349 = vcmask 1042434
    %v350 = vsel %vm349, %v348, %v346
    %s351 = scalar_lea.vmem %s0, 106
    %v352 = vld [vmem:[%s351] sm:$0x8]
    %vm353 = vcmask 1043459
    %v354 = vsel %vm353, %v352, %v350
    %355 = vrot.lane.b32.xlu0 %v354, 52
    %v356 = vpop.permute.xlu0 %355
    %vm357 = vcmask 458144
    %358 = vst.msk [vmem:[#allocation0] sm:$0xf] %vm357, %v356
    %s359 = scalar_lea.vmem %s0, 12
    %v360 = vld [vmem:[%s359] sm:$0x1]
    %s361 = scalar_lea.vmem %s0, 43
    %v362 = vld [vmem:[%s361] sm:$0x2]
    %vm363 = vcmask 1041409
    %v364 = vsel %vm363, %v362, %v360
    %s365 = scalar_lea.vmem %s0, 74
    %v366 = vld [vmem:[%s365] sm:$0x4]
    %vm367 = vcmask 1042434
    %v368 = vsel %vm367, %v366, %v364
    %s369 = scalar_lea.vmem %s0, 105
    %v370 = vld [vmem:[%s369] sm:$0x8]
    %vm371 = vcmask 1043459
    %v372 = vsel %vm371, %v370, %v368
    %373 = vrot.lane.b32.xlu0 %v372, 48
    %v374 = vpop.permute.xlu0 %373
    %vm375 = vcmask 425344
    %376 = vst.msk [vmem:[#allocation0] sm:$0xf] %vm375, %v374
    %s377 = scalar_lea.vmem %s0, 11
    %v378 = vld [vmem:[%s377] sm:$0x1]
    %s379 = scalar_lea.vmem %s0, 42
    %v380 = vld [vmem:[%s379] sm:$0x2]
    %vm381 = vcmask 1041409
    %v382 = vsel %vm381, %v380, %v378
    %s383 = scalar_lea.vmem %s0, 73
    %v384 = vld [vmem:[%s383] sm:$0x4]
    %vm385 = vcmask 1042434
    %v386 = vsel %vm385, %v384, %v382
    %s387 = scalar_lea.vmem %s0, 104
    %v388 = vld [vmem:[%s387] sm:$0x8]
    %vm389 = vcmask 1043459
    %v390 = vsel %vm389, %v388, %v386
    %391 = vrot.lane.b32.xlu0 %v390, 44
    %v392 = vpop.permute.xlu0 %391
    %vm393 = vcmask 392544
    %394 = vst.msk [vmem:[#allocation0] sm:$0xf] %vm393, %v392
    %s395 = scalar_lea.vmem %s0, 10
    %v396 = vld [vmem:[%s395] sm:$0x1]
    %s397 = scalar_lea.vmem %s0, 41
    %v398 = vld [vmem:[%s397] sm:$0x2]
    %vm399 = vcmask 1041409
    %v400 = vsel %vm399, %v398, %v396
    %s401 = scalar_lea.vmem %s0, 72
    %v402 = vld [vmem:[%s401] sm:$0x4]
    %vm403 = vcmask 1042434
    %v404 = vsel %vm403, %v402, %v400
    %s405 = scalar_lea.vmem %s0, 103
    %v406 = vld [vmem:[%s405] sm:$0x8]
    %vm407 = vcmask 1043459
    %v408 = vsel %vm407, %v406, %v404
    %409 = vrot.lane.b32.xlu0 %v408, 40
    %v410 = vpop.permute.xlu0 %409
    %vm411 = vcmask 359744
    %412 = vst.msk [vmem:[#allocation0] sm:$0xf] %vm411, %v410
    %s413 = scalar_lea.vmem %s0, 9
    %v414 = vld [vmem:[%s413] sm:$0x1]
    %s415 = scalar_lea.vmem %s0, 40
    %v416 = vld [vmem:[%s415] sm:$0x2]
    %vm417 = vcmask 1041409
    %v418 = vsel %vm417, %v416, %v414
    %s419 = scalar_lea.vmem %s0, 71
    %v420 = vld [vmem:[%s419] sm:$0x4]
    %vm421 = vcmask 1042434
    %v422 = vsel %vm421, %v420, %v418
    %s423 = scalar_lea.vmem %s0, 102
    %v424 = vld [vmem:[%s423] sm:$0x8]
    %vm425 = vcmask 1043459
    %v426 = vsel %vm425, %v424, %v422
    %427 = vrot.lane.b32.xlu0 %v426, 36
    %v428 = vpop.permute.xlu0 %427
    %vm429 = vcmask 326944
    %430 = vst.msk [vmem:[#allocation0] sm:$0xf] %vm429, %v428
    %s431 = scalar_lea.vmem %s0, 8
    %v432 = vld [vmem:[%s431] sm:$0x1]
    %s433 = scalar_lea.vmem %s0, 39
    %v434 = vld [vmem:[%s433] sm:$0x2]
    %vm435 = vcmask 1041409
    %v436 = vsel %vm435, %v434, %v432
    %s437 = scalar_lea.vmem %s0, 70
    %v438 = vld [vmem:[%s437] sm:$0x4]
    %vm439 = vcmask 1042434
    %v440 = vsel %vm439, %v438, %v436
    %s441 = scalar_lea.vmem %s0, 101
    %v442 = vld [vmem:[%s441] sm:$0x8]
    %vm443 = vcmask 1043459
    %v444 = vsel %vm443, %v442, %v440
    %445 = vrot.lane.b32.xlu0 %v444, 32
    %v446 = vpop.permute.xlu0 %445
    %vm447 = vcmask 294144
    %448 = vst.msk [vmem:[#allocation0] sm:$0xf] %vm447, %v446
    %s449 = scalar_lea.vmem %s0, 7
    %v450 = vld [vmem:[%s449] sm:$0x1]
    %s451 = scalar_lea.vmem %s0, 38
    %v452 = vld [vmem:[%s451] sm:$0x2]
    %vm453 = vcmask 1041409
    %v454 = vsel %vm453, %v452, %v450
    %s455 = scalar_lea.vmem %s0, 69
    %v456 = vld [vmem:[%s455] sm:$0x4]
    %vm457 = vcmask 1042434
    %v458 = vsel %vm457, %v456, %v454
    %s459 = scalar_lea.vmem %s0, 100
    %v460 = vld [vmem:[%s459] sm:$0x8]
    %vm461 = vcmask 1043459
    %v462 = vsel %vm461, %v460, %v458
    %463 = vrot.lane.b32.xlu0 %v462, 28
    %v464 = vpop.permute.xlu0 %463
    %vm465 = vcmask 261344
    %466 = vst.msk [vmem:[#allocation0] sm:$0xf] %vm465, %v464
    %s467 = scalar_lea.vmem %s0, 6
    %v468 = vld [vmem:[%s467] sm:$0x1]
    %s469 = scalar_lea.vmem %s0, 37
    %v470 = vld [vmem:[%s469] sm:$0x2]
    %vm471 = vcmask 1041409
    %v472 = vsel %vm471, %v470, %v468
    %s473 = scalar_lea.vmem %s0, 68
    %v474 = vld [vmem:[%s473] sm:$0x4]
    %vm475 = vcmask 1042434
    %v476 = vsel %vm475, %v474, %v472
    %s477 = scalar_lea.vmem %s0, 99
    %v478 = vld [vmem:[%s477] sm:$0x8]
    %vm479 = vcmask 1043459
    %v480 = vsel %vm479, %v478, %v476
    %481 = vrot.lane.b32.xlu0 %v480, 24
    %v482 = vpop.permute.xlu0 %481
    %vm483 = vcmask 228544
    %484 = vst.msk [vmem:[#allocation0] sm:$0xf] %vm483, %v482
    %s485 = scalar_lea.vmem %s0, 5
    %v486 = vld [vmem:[%s485] sm:$0x1]
    %s487 = scalar_lea.vmem %s0, 36
    %v488 = vld [vmem:[%s487] sm:$0x2]
    %vm489 = vcmask 1041409
    %v490 = vsel %vm489, %v488, %v486
    %s491 = scalar_lea.vmem %s0, 67
    %v492 = vld [vmem:[%s491] sm:$0x4]
    %vm493 = vcmask 1042434
    %v494 = vsel %vm493, %v492, %v490
    %s495 = scalar_lea.vmem %s0, 98
    %v496 = vld [vmem:[%s495] sm:$0x8]
    %vm497 = vcmask 1043459
    %v498 = vsel %vm497, %v496, %v494
    %499 = vrot.lane.b32.xlu0 %v498, 20
    %v500 = vpop.permute.xlu0 %499
    %vm501 = vcmask 195744
    %502 = vst.msk [vmem:[#allocation0] sm:$0xf] %vm501, %v500
    %s503 = scalar_lea.vmem %s0, 4
    %v504 = vld [vmem:[%s503] sm:$0x1]
    %s505 = scalar_lea.vmem %s0, 35
    %v506 = vld [vmem:[%s505] sm:$0x2]
    %vm507 = vcmask 1041409
    %v508 = vsel %vm507, %v506, %v504
    %s509 = scalar_lea.vmem %s0, 66
    %v510 = vld [vmem:[%s509] sm:$0x4]
    %vm511 = vcmask 1042434
    %v512 = vsel %vm511, %v510, %v508
    %s513 = scalar_lea.vmem %s0, 97
    %v514 = vld [vmem:[%s513] sm:$0x8]
    %vm515 = vcmask 1043459
    %v516 = vsel %vm515, %v514, %v512
    %517 = vrot.lane.b32.xlu0 %v516, 16
    %v518 = vpop.permute.xlu0 %517
    %vm519 = vcmask 162944
    %520 = vst.msk [vmem:[#allocation0] sm:$0xf] %vm519, %v518
    %s521 = scalar_lea.vmem %s0, 3
    %v522 = vld [vmem:[%s521] sm:$0x1]
    %s523 = scalar_lea.vmem %s0, 34
    %v524 = vld [vmem:[%s523] sm:$0x2]
    %vm525 = vcmask 1041409
    %v526 = vsel %vm525, %v524, %v522
    %s527 = scalar_lea.vmem %s0, 65
    %v528 = vld [vmem:[%s527] sm:$0x4]
    %vm529 = vcmask 1042434
    %v530 = vsel %vm529, %v528, %v526
    %s531 = scalar_lea.vmem %s0, 96
    %v532 = vld [vmem:[%s531] sm:$0x8]
    %vm533 = vcmask 1043459
    %v534 = vsel %vm533, %v532, %v530
    %535 = vrot.lane.b32.xlu0 %v534, 12
    %v536 = vpop.permute.xlu0 %535
    %vm537 = vcmask 130144
    %538 = vst.msk [vmem:[#allocation0] sm:$0xf] %vm537, %v536
    %s539 = scalar_lea.vmem %s0, 2
    %v540 = vld [vmem:[%s539] sm:$0x1]
    %s541 = scalar_lea.vmem %s0, 33
    %v542 = vld [vmem:[%s541] sm:$0x2]
    %vm543 = vcmask 1041409
    %v544 = vsel %vm543, %v542, %v540
    %s545 = scalar_lea.vmem %s0, 64
    %v546 = vld [vmem:[%s545] sm:$0x4]
    %vm547 = vcmask 1042434
    %v548 = vsel %vm547, %v546, %v544
    %s549 = scalar_lea.vmem %s0, 95
    %v550 = vld [vmem:[%s549] sm:$0x8]
    %vm551 = vcmask 1043459
    %v552 = vsel %vm551, %v550, %v548
    %553 = vrot.lane.b32.xlu0 %v552, 8
    %v554 = vpop.permute.xlu0 %553
    %vm555 = vcmask 97344
    %556 = vst.msk [vmem:[#allocation0] sm:$0xf] %vm555, %v554
    %s557 = scalar_lea.vmem %s0, 1
    %v558 = vld [vmem:[%s557] sm:$0x1]
    %s559 = scalar_lea.vmem %s0, 32
    %v560 = vld [vmem:[%s559] sm:$0x2]
    %vm561 = vcmask 1041409
    %v562 = vsel %vm561, %v560, %v558
    %s563 = scalar_lea.vmem %s0, 63
    %v564 = vld [vmem:[%s563] sm:$0x4]
    %vm565 = vcmask 1042434
    %v566 = vsel %vm565, %v564, %v562
    %s567 = scalar_lea.vmem %s0, 94
    %v568 = vld [vmem:[%s567] sm:$0x8]
    %vm569 = vcmask 1043459
    %v570 = vsel %vm569, %v568, %v566
    %571 = vrot.lane.b32.xlu0 %v570, 4
    %v572 = vpop.permute.xlu0 %571
    %vm573 = vcmask 64544
    %574 = vst.msk [vmem:[#allocation0] sm:$0xf] %vm573, %v572
    %s576 = sshllo.u32 0, 4
    %v578 = vld [vmem:[#allocation0] sm:%s576]
    %s579 = sshllo.u32 0, 4
    %580 = vst [vmem:[%s1] sm:%s579] %v578

// kernel: _lambda_.1
$region0: #{_lambda_.1}
  #allocation0 [shape = 'u32[]', space=smem, size = 0x4, offset = 0x4, fixed_abs, tag = 'smem constant byte address 0x4 - core index']
  #allocation1 [shape = 'u32[144,128]{1,0:T(1,128)}', space=vmem, size = 0x12000, scoped, tag = 'internal scratch']
  %s0 = inlined_call_operand.vmem [shape: f32[16,64], index: 0, kind: input, shape index: {}]
  %s1 = inlined_call_operand.vmem [shape: f32[16,128], index: 1, kind: input, shape index: {}]
  %s2 = inlined_call_operand.vmem [shape: f32[64,128], index: 2, kind: input, shape index: {}]
  %s3 = inlined_call_operand.vmem [shape: f32[768,128], index: 3, kind: input, shape index: {}]
  %s4 = inlined_call_operand.vmem [shape: f32[384,128], index: 4, kind: input, shape index: {}]
  %s5 = inlined_call_operand.vmem [shape: f32[128,4], index: 5, kind: input, shape index: {}]
  %s6 = inlined_call_operand.vmem [shape: f32[4,128], index: 6, kind: input, shape index: {}]
  %s7 = inlined_call_operand.vmem [shape: f32[6,4], index: 7, kind: input, shape index: {}]
  %s8 = inlined_call_operand.vmem [shape: f32[16,128], index: 8, kind: output, shape index: {}]
  %s9 = sld [smem:[#allocation0]]
  $region42: #{_lambda_.1} parent=0
    _
  %s11 = ssub.s32 1, %s9
  %s12 = scalar_select 0, %s11, %s9
  // Predicated region
  $region2: #{_lambda_.1} parent=0 // pred_check
    _
  $region3: #{_lambda_.1} parent=0 // pred_check_branch
    %14 = sbr.rel (0) target = $region5
  $region4: #{_lambda_.1} parent=0 // pred_region
    _
  $region5: #{_lambda_.1} parent=0 // pred_fallthru
    _
  // Predicated region
  $region6: #{_lambda_.1} parent=0 // pred_check
    _
  $region7: #{_lambda_.1} parent=0 // pred_check_branch
    %16 = sbr.rel (0) target = $region9
  $region8: #{_lambda_.1} parent=0 // pred_region
    _
  $region9: #{_lambda_.1} parent=0 // pred_fallthru
    _
  // Predicated region
  $region10: #{_lambda_.1} parent=0 // pred_check
    _
  $region11: #{_lambda_.1} parent=0 // pred_check_branch
    %18 = sbr.rel (0) target = $region13
  $region12: #{_lambda_.1} parent=0 // pred_region
    _
  $region13: #{_lambda_.1} parent=0 // pred_fallthru
    _
  // Predicated region
  $region14: #{_lambda_.1} parent=0 // pred_check
    _
  $region15: #{_lambda_.1} parent=0 // pred_check_branch
    %20 = sbr.rel (0) target = $region17
  $region16: #{_lambda_.1} parent=0 // pred_region
    _
  $region17: #{_lambda_.1} parent=0 // pred_fallthru
    _
  // Predicated region
  $region18: #{_lambda_.1} parent=0 // pred_check
    _
  $region19: #{_lambda_.1} parent=0 // pred_check_branch
    %22 = sbr.rel (0) target = $region21
  $region20: #{_lambda_.1} parent=0 // pred_region
    _
  $region21: #{_lambda_.1} parent=0 // pred_fallthru
    _
  // Predicated region
  $region22: #{_lambda_.1} parent=0 // pred_check
    _
  $region23: #{_lambda_.1} parent=0 // pred_check_branch
    %24 = sbr.rel (0) target = $region25
  $region24: #{_lambda_.1} parent=0 // pred_region
    _
  $region25: #{_lambda_.1} parent=0 // pred_fallthru
    _
  // Predicated region
  $region26: #{_lambda_.1} parent=0 // pred_check
    _
  $region27: #{_lambda_.1} parent=0 // pred_check_branch
    %26 = sbr.rel (0) target = $region29
  $region28: #{_lambda_.1} parent=0 // pred_region
    _
  $region29: #{_lambda_.1} parent=0 // pred_fallthru
    _
  // Predicated region
  $region30: #{_lambda_.1} parent=0 // pred_check
    _
  $region31: #{_lambda_.1} parent=0 // pred_check_branch
    %28 = sbr.rel (0) target = $region33
  $region32: #{_lambda_.1} parent=0 // pred_region
    _
  $region33: #{_lambda_.1} parent=0 // pred_fallthru
    _
  %v29 = vld [vmem:[%s5] sm:$0xff]
  %v30 = vld [vmem:[%s5 + $0x8] sm:$0xff]
  %v31 = vld [vmem:[%s5 + $0x10] sm:$0xff]
  %v32 = vld [vmem:[%s5 + $0x18] sm:$0xff]
  %v33 = vld [vmem:[%s5 + $0x20] sm:$0xff]
  %v34 = vld [vmem:[%s5 + $0x28] sm:$0xff]
  %v35 = vld [vmem:[%s5 + $0x30] sm:$0xff]
  %v36 = vld [vmem:[%s5 + $0x38] sm:$0xff]
  %v37 = vld [vmem:[%s5 + $0x40] sm:$0xff]
  %v38 = vld [vmem:[%s5 + $0x48] sm:$0xff]
  %v39 = vld [vmem:[%s5 + $0x50] sm:$0xff]
  %v40 = vld [vmem:[%s5 + $0x58] sm:$0xff]
  %v41 = vld [vmem:[%s5 + $0x60] sm:$0xff]
  %v42 = vld [vmem:[%s5 + $0x68] sm:$0xff]
  %v43 = vld [vmem:[%s5 + $0x70] sm:$0xff]
  %v44 = vld [vmem:[%s5 + $0x78] sm:$0xff]
  %v45 = vld [vmem:[%s6] sm:$0xf]
  %v46 = vld [vmem:[%s7] sm:$0x3f]
  %v47 = vld [vmem:[%s0] sm:$0xff]
  %v48 = vld [vmem:[%s0 + $0x8] sm:$0xff]
  %v49 = vld [vmem:[%s2] sm:$0xff]
  %v50 = vld [vmem:[%s2 + $0x8] sm:$0xff]
  %v51 = vld [vmem:[%s2 + $0x10] sm:$0xff]
  %v52 = vld [vmem:[%s2 + $0x18] sm:$0xff]
  %v53 = vld [vmem:[%s2 + $0x20] sm:$0xff]
  %v54 = vld [vmem:[%s2 + $0x28] sm:$0xff]
  %v55 = vld [vmem:[%s2 + $0x30] sm:$0xff]
  %v56 = vld [vmem:[%s2 + $0x38] sm:$0xff]
  %vm57 = vcmask 523264
  %v59 = vsel %vm57, %v47, 0
  %v62 = vsel %vm57, %v48, 0
  %64 = vmatprep.subr.mxu0 0.0
  %v65 = vand.u32 %v49, 4294901760
  %66 = vmatpush1.msra.mxu0 %v65
  %67 = vmatprep.subr.mxu0 0.0
  %v68 = vand.u32 %v50, 4294901760
  %69 = vmatpush1.msra.mxu0 %v68
  %70 = vmatprep.subr.mxu0 0.0
  %v71 = vand.u32 %v51, 4294901760
  %72 = vmatpush1.msra.mxu0 %v71
  %73 = vmatprep.subr.mxu0 0.0
  %v74 = vand.u32 %v52, 4294901760
  %75 = vmatpush1.msra.mxu0 %v74
  %76 = vmatprep.subr.mxu0 0.0
  %v77 = vand.u32 %v53, 4294901760
  %78 = vmatpush1.msra.mxu0 %v77
  %79 = vmatprep.subr.mxu0 0.0
  %v80 = vand.u32 %v54, 4294901760
  %81 = vmatpush1.msra.mxu0 %v80
  %82 = vmatprep.subr.mxu0 0.0
  %v83 = vand.u32 %v55, 4294901760
  %84 = vmatpush1.msra.mxu0 %v83
  %85 = vmatprep.subr.mxu0 0.0
  %v86 = vand.u32 %v56, 4294901760
  %87 = vmatpush1.msra.mxu0 %v86
  %88 = vmatprep.subr.mxu0 0.0
  %89 = vmatpush1.msra.mxu0 0.0
  %90 = vmatprep.subr.mxu0 0.0
  %91 = vmatpush1.msra.mxu0 0.0
  %92 = vmatprep.subr.mxu0 0.0
  %93 = vmatpush1.msra.mxu0 0.0
  %94 = vmatprep.subr.mxu0 0.0
  %95 = vmatpush1.msra.mxu0 0.0
  %96 = vmatprep.subr.mxu0 0.0
  %97 = vmatpush1.msra.mxu0 0.0
  %98 = vmatprep.subr.mxu0 0.0
  %99 = vmatpush1.msra.mxu0 0.0
  %100 = vmatprep.subr.mxu0 0.0
  %101 = vmatpush1.msra.mxu0 0.0
  %102 = vmatprep.subr.mxu0 0.0
  %103 = vmatpush1.msra.mxu0 0.0
  %104 = vmatprep.subr.mxu0 0.0
  %105 = vmatpush1.msra.mxu0 0.0
  %106 = vmatprep.subr.mxu0 0.0
  %107 = vmatpush1.msra.mxu0 0.0
  %108 = vmatprep.subr.mxu0 0.0
  %109 = vmatpush1.msra.mxu0 0.0
  %110 = vmatprep.subr.mxu0 0.0
  %111 = vmatpush1.msra.mxu0 0.0
  %112 = vmatprep.subr.mxu0 0.0
  %113 = vmatpush1.msra.mxu0 0.0
  %114 = vmatprep.subr.mxu0 0.0
  %115 = vmatpush1.msra.mxu0 0.0
  %116 = vmatprep.subr.mxu0 0.0
  %117 = vmatpush1.msra.mxu0 0.0
  %118 = vmatprep.subr.mxu0 0.0
  %119 = vmatpush1.msra.mxu0 0.0
  %120 = vmatprep.subr.mxu0 0.0
  %121 = vmatpush1.msra.mxu0 0.0
  %122 = vmatprep.subr.mxu0 0.0
  %123 = vmatpush1.msra.mxu0 0.0
  %124 = vmatprep.subr.mxu0 0.0
  %125 = vmatpush1.msra.mxu0 0.0
  %126 = vmatprep.subr.mxu0 0.0
  %127 = vmatpush1.msra.mxu0 0.0
  %128 = vmatprep.subr.mxu0 0.0
  %129 = vmatpush1.msra.mxu0 0.0
  %130 = vmatprep.subr.mxu0 0.0
  %131 = vmatpush1.msra.mxu0 0.0
  %132 = vmatprep.subr.mxu0 0.0
  %133 = vmatpush1.msra.mxu0 0.0
  %134 = vmatprep.subr.mxu0 0.0
  %135 = vmatpush1.msra.mxu0 0.0
  %136 = vmatprep.mubr.f32.mxu0 0.0
  %v137 = vand.u32 %v59, 4294901760
  %v138 = vsub.f32 %v59, %v137
  %v139 = vand.u32 %v138, 4294901760
  %v140 = vsub.f32 %v138, %v139
  %v141 = vand.u32 %v140, 4294901760
  %142 = vmatmul.mubr.f32.gmra.mrb[0].mxu0 %v141
  %v143 = vpop.f32.mrb[0].mxu0
  %v144 = vadd.f32 0.0, %v143
  %v145 = vpop.f32.mrb[0].mxu0
  %146 = vmatprep.mubr.f32.mxu0 0.0
  %v147 = vand.u32 %v62, 4294901760
  %v148 = vsub.f32 %v62, %v147
  %v149 = vand.u32 %v148, 4294901760
  %v150 = vsub.f32 %v148, %v149
  %v151 = vand.u32 %v150, 4294901760
  %152 = vmatmul.mubr.f32.gmra.mrb[0].mxu0 %v151
  %v153 = vpop.f32.mrb[0].mxu0
  %v154 = vadd.f32 0.0, %v153
  %v155 = vpop.f32.mrb[0].mxu0
  %156 = vdwg.mxu0
  %157 = vmatprep.subr.mxu0 0.0
  %v158 = vand.u32 %v49, 4294901760
  %v159 = vsub.f32 %v49, %v158
  %v160 = vand.u32 %v159, 4294901760
  %v161 = vsub.f32 %v159, %v160
  %v162 = vand.u32 %v161, 4294901760
  %163 = vmatpush1.msra.mxu0 %v162
  %164 = vmatprep.subr.mxu0 0.0
  %v165 = vand.u32 %v50, 4294901760
  %v166 = vsub.f32 %v50, %v165
  %v167 = vand.u32 %v166, 4294901760
  %v168 = vsub.f32 %v166, %v167
  %v169 = vand.u32 %v168, 4294901760
  %170 = vmatpush1.msra.mxu0 %v169
  %171 = vmatprep.subr.mxu0 0.0
  %v172 = vand.u32 %v51, 4294901760
  %v173 = vsub.f32 %v51, %v172
  %v174 = vand.u32 %v173, 4294901760
  %v175 = vsub.f32 %v173, %v174
  %v176 = vand.u32 %v175, 4294901760
  %177 = vmatpush1.msra.mxu0 %v176
  %178 = vmatprep.subr.mxu0 0.0
  %v179 = vand.u32 %v52, 4294901760
  %v180 = vsub.f32 %v52, %v179
  %v181 = vand.u32 %v180, 4294901760
  %v182 = vsub.f32 %v180, %v181
  %v183 = vand.u32 %v182, 4294901760
  %184 = vmatpush1.msra.mxu0 %v183
  %185 = vmatprep.subr.mxu0 0.0
  %v186 = vand.u32 %v53, 4294901760
  %v187 = vsub.f32 %v53, %v186
  %v188 = vand.u32 %v187, 4294901760
  %v189 = vsub.f32 %v187, %v188
  %v190 = vand.u32 %v189, 4294901760
  %191 = vmatpush1.msra.mxu0 %v190
  %192 = vmatprep.subr.mxu0 0.0
  %v193 = vand.u32 %v54, 4294901760
  %v194 = vsub.f32 %v54, %v193
  %v195 = vand.u32 %v194, 4294901760
  %v196 = vsub.f32 %v194, %v195
  %v197 = vand.u32 %v196, 4294901760
  %198 = vmatpush1.msra.mxu0 %v197
  %199 = vmatprep.subr.mxu0 0.0
  %v200 = vand.u32 %v55, 4294901760
  %v201 = vsub.f32 %v55, %v200
  %v202 = vand.u32 %v201, 4294901760
  %v203 = vsub.f32 %v201, %v202
  %v204 = vand.u32 %v203, 4294901760
  %205 = vmatpush1.msra.mxu0 %v204
  %206 = vmatprep.subr.mxu0 0.0
  %v207 = vand.u32 %v56, 4294901760
  %v208 = vsub.f32 %v56, %v207
  %v209 = vand.u32 %v208, 4294901760
  %v210 = vsub.f32 %v208, %v209
  %v211 = vand.u32 %v210, 4294901760
  %212 = vmatpush1.msra.mxu0 %v211
  %213 = vmatprep.subr.mxu0 0.0
  %214 = vmatpush1.msra.mxu0 0.0
  %215 = vmatprep.subr.mxu0 0.0
  %216 = vmatpush1.msra.mxu0 0.0
  %217 = vmatprep.subr.mxu0 0.0
  %218 = vmatpush1.msra.mxu0 0.0
  %219 = vmatprep.subr.mxu0 0.0
  %220 = vmatpush1.msra.mxu0 0.0
  %221 = vmatprep.subr.mxu0 0.0
  %222 = vmatpush1.msra.mxu0 0.0
  %223 = vmatprep.subr.mxu0 0.0
  %224 = vmatpush1.msra.mxu0 0.0
  %225 = vmatprep.subr.mxu0 0.0
  %226 = vmatpush1.msra.mxu0 0.0
  %227 = vmatprep.subr.mxu0 0.0
  %228 = vmatpush1.msra.mxu0 0.0
  %229 = vmatprep.subr.mxu0 0.0
  %230 = vmatpush1.msra.mxu0 0.0
  %231 = vmatprep.subr.mxu0 0.0
  %232 = vmatpush1.msra.mxu0 0.0
  %233 = vmatprep.subr.mxu0 0.0
  %234 = vmatpush1.msra.mxu0 0.0
  %235 = vmatprep.subr.mxu0 0.0
  %236 = vmatpush1.msra.mxu0 0.0
  %237 = vmatprep.subr.mxu0 0.0
  %238 = vmatpush1.msra.mxu0 0.0
  %239 = vmatprep.subr.mxu0 0.0
  %240 = vmatpush1.msra.mxu0 0.0
  %241 = vmatprep.subr.mxu0 0.0
  %242 = vmatpush1.msra.mxu0 0.0
  %243 = vmatprep.subr.mxu0 0.0
  %244 = vmatpush1.msra.mxu0 0.0
  %245 = vmatprep.subr.mxu0 0.0
  %246 = vmatpush1.msra.mxu0 0.0
  %247 = vmatprep.subr.mxu0 0.0
  %248 = vmatpush1.msra.mxu0 0.0
  %249 = vmatprep.subr.mxu0 0.0
  %250 = vmatpush1.msra.mxu0 0.0
  %251 = vmatprep.subr.mxu0 0.0
  %252 = vmatpush1.msra.mxu0 0.0
  %253 = vmatprep.subr.mxu0 0.0
  %254 = vmatpush1.msra.mxu0 0.0
  %255 = vmatprep.subr.mxu0 0.0
  %256 = vmatpush1.msra.mxu0 0.0
  %257 = vmatprep.subr.mxu0 0.0
  %258 = vmatpush1.msra.mxu0 0.0
  %259 = vmatprep.subr.mxu0 0.0
  %260 = vmatpush1.msra.mxu0 0.0
  %261 = vmatprep.mubr.f32.mxu0 0.0
  %v262 = vand.u32 %v59, 4294901760
  %263 = vmatmul.mubr.f32.gmra.mrb[0].mxu0 %v262
  %v264 = vpop.f32.mrb[0].mxu0
  %v265 = vadd.f32 %v144, %v264
  %v266 = vpop.f32.mrb[0].mxu0
  %267 = vmatprep.mubr.f32.mxu0 0.0
  %v268 = vand.u32 %v62, 4294901760
  %269 = vmatmul.mubr.f32.gmra.mrb[0].mxu0 %v268
  %v270 = vpop.f32.mrb[0].mxu0
  %v271 = vadd.f32 %v154, %v270
  %v272 = vpop.f32.mrb[0].mxu0
  %273 = vdwg.mxu0
  %274 = vmatprep.subr.mxu0 0.0
  %v275 = vand.u32 %v49, 4294901760
  %v276 = vsub.f32 %v49, %v275
  %277 = vmatpush1.msra.mxu0 %v276
  %278 = vmatprep.subr.mxu0 0.0
  %v279 = vand.u32 %v50, 4294901760
  %v280 = vsub.f32 %v50, %v279
  %281 = vmatpush1.msra.mxu0 %v280
  %282 = vmatprep.subr.mxu0 0.0
  %v283 = vand.u32 %v51, 4294901760
  %v284 = vsub.f32 %v51, %v283
  %285 = vmatpush1.msra.mxu0 %v284
  %286 = vmatprep.subr.mxu0 0.0
  %v287 = vand.u32 %v52, 4294901760
  %v288 = vsub.f32 %v52, %v287
  %289 = vmatpush1.msra.mxu0 %v288
  %290 = vmatprep.subr.mxu0 0.0
  %v291 = vand.u32 %v53, 4294901760
  %v292 = vsub.f32 %v53, %v291
  %293 = vmatpush1.msra.mxu0 %v292
  %294 = vmatprep.subr.mxu0 0.0
  %v295 = vand.u32 %v54, 4294901760
  %v296 = vsub.f32 %v54, %v295
  %297 = vmatpush1.msra.mxu0 %v296
  %298 = vmatprep.subr.mxu0 0.0
  %v299 = vand.u32 %v55, 4294901760
  %v300 = vsub.f32 %v55, %v299
  %301 = vmatpush1.msra.mxu0 %v300
  %302 = vmatprep.subr.mxu0 0.0
  %v303 = vand.u32 %v56, 4294901760
  %v304 = vsub.f32 %v56, %v303
  %305 = vmatpush1.msra.mxu0 %v304
  %306 = vmatprep.subr.mxu0 0.0
  %307 = vmatpush1.msra.mxu0 0.0
  %308 = vmatprep.subr.mxu0 0.0
  %309 = vmatpush1.msra.mxu0 0.0
  %310 = vmatprep.subr.mxu0 0.0
  %311 = vmatpush1.msra.mxu0 0.0
  %312 = vmatprep.subr.mxu0 0.0
  %313 = vmatpush1.msra.mxu0 0.0
  %314 = vmatprep.subr.mxu0 0.0
  %315 = vmatpush1.msra.mxu0 0.0
  %316 = vmatprep.subr.mxu0 0.0
  %317 = vmatpush1.msra.mxu0 0.0
  %318 = vmatprep.subr.mxu0 0.0
  %319 = vmatpush1.msra.mxu0 0.0
  %320 = vmatprep.subr.mxu0 0.0
  %321 = vmatpush1.msra.mxu0 0.0
  %322 = vmatprep.subr.mxu0 0.0
  %323 = vmatpush1.msra.mxu0 0.0
  %324 = vmatprep.subr.mxu0 0.0
  %325 = vmatpush1.msra.mxu0 0.0
  %326 = vmatprep.subr.mxu0 0.0
  %327 = vmatpush1.msra.mxu0 0.0
  %328 = vmatprep.subr.mxu0 0.0
  %329 = vmatpush1.msra.mxu0 0.0
  %330 = vmatprep.subr.mxu0 0.0
  %331 = vmatpush1.msra.mxu0 0.0
  %332 = vmatprep.subr.mxu0 0.0
  %333 = vmatpush1.msra.mxu0 0.0
  %334 = vmatprep.subr.mxu0 0.0
  %335 = vmatpush1.msra.mxu0 0.0
  %336 = vmatprep.subr.mxu0 0.0
  %337 = vmatpush1.msra.mxu0 0.0
  %338 = vmatprep.subr.mxu0 0.0
  %339 = vmatpush1.msra.mxu0 0.0
  %340 = vmatprep.subr.mxu0 0.0
  %341 = vmatpush1.msra.mxu0 0.0
  %342 = vmatprep.subr.mxu0 0.0
  %343 = vmatpush1.msra.mxu0 0.0
  %344 = vmatprep.subr.mxu0 0.0
  %345 = vmatpush1.msra.mxu0 0.0
  %346 = vmatprep.subr.mxu0 0.0
  %347 = vmatpush1.msra.mxu0 0.0
  %348 = vmatprep.subr.mxu0 0.0
  %349 = vmatpush1.msra.mxu0 0.0
  %350 = vmatprep.subr.mxu0 0.0
  %351 = vmatpush1.msra.mxu0 0.0
  %352 = vmatprep.subr.mxu0 0.0
  %353 = vmatpush1.msra.mxu0 0.0
  %354 = vmatprep.mubr.f32.mxu0 0.0
  %v355 = vand.u32 %v59, 4294901760
  %v356 = vsub.f32 %v59, %v355
  %357 = vmatmul.mubr.f32.gmra.mrb[0].mxu0 %v356
  %v358 = vpop.f32.mrb[0].mxu0
  %v359 = vadd.f32 %v265, %v358
  %v360 = vpop.f32.mrb[0].mxu0
  %361 = vmatprep.mubr.f32.mxu0 0.0
  %v362 = vand.u32 %v62, 4294901760
  %v363 = vsub.f32 %v62, %v362
  %364 = vmatmul.mubr.f32.gmra.mrb[0].mxu0 %v363
  %v365 = vpop.f32.mrb[0].mxu0
  %v366 = vadd.f32 %v271, %v365
  %v367 = vpop.f32.mrb[0].mxu0
  %368 = vdwg.mxu0
  %369 = vmatprep.subr.mxu0 0.0
  %v370 = vand.u32 %v49, 4294901760
  %371 = vmatpush1.msra.mxu0 %v370
  %372 = vmatprep.subr.mxu0 0.0
  %v373 = vand.u32 %v50, 4294901760
  %374 = vmatpush1.msra.mxu0 %v373
  %375 = vmatprep.subr.mxu0 0.0
  %v376 = vand.u32 %v51, 4294901760
  %377 = vmatpush1.msra.mxu0 %v376
  %378 = vmatprep.subr.mxu0 0.0
  %v379 = vand.u32 %v52, 4294901760
  %380 = vmatpush1.msra.mxu0 %v379
  %381 = vmatprep.subr.mxu0 0.0
  %v382 = vand.u32 %v53, 4294901760
  %383 = vmatpush1.msra.mxu0 %v382
  %384 = vmatprep.subr.mxu0 0.0
  %v385 = vand.u32 %v54, 4294901760
  %386 = vmatpush1.msra.mxu0 %v385
  %387 = vmatprep.subr.mxu0 0.0
  %v388 = vand.u32 %v55, 4294901760
  %389 = vmatpush1.msra.mxu0 %v388
  %390 = vmatprep.subr.mxu0 0.0
  %v391 = vand.u32 %v56, 4294901760
  %392 = vmatpush1.msra.mxu0 %v391
  %393 = vmatprep.subr.mxu0 0.0
  %394 = vmatpush1.msra.mxu0 0.0
  %395 = vmatprep.subr.mxu0 0.0
  %396 = vmatpush1.msra.mxu0 0.0
  %397 = vmatprep.subr.mxu0 0.0
  %398 = vmatpush1.msra.mxu0 0.0
  %399 = vmatprep.subr.mxu0 0.0
  %400 = vmatpush1.msra.mxu0 0.0
  %401 = vmatprep.subr.mxu0 0.0
  %402 = vmatpush1.msra.mxu0 0.0
  %403 = vmatprep.subr.mxu0 0.0
  %404 = vmatpush1.msra.mxu0 0.0
  %405 = vmatprep.subr.mxu0 0.0
  %406 = vmatpush1.msra.mxu0 0.0
  %407 = vmatprep.subr.mxu0 0.0
  %408 = vmatpush1.msra.mxu0 0.0
  %409 = vmatprep.subr.mxu0 0.0
  %410 = vmatpush1.msra.mxu0 0.0
  %411 = vmatprep.subr.mxu0 0.0
  %412 = vmatpush1.msra.mxu0 0.0
  %413 = vmatprep.subr.mxu0 0.0
  %414 = vmatpush1.msra.mxu0 0.0
  %415 = vmatprep.subr.mxu0 0.0
  %416 = vmatpush1.msra.mxu0 0.0
  %417 = vmatprep.subr.mxu0 0.0
  %418 = vmatpush1.msra.mxu0 0.0
  %419 = vmatprep.subr.mxu0 0.0
  %420 = vmatpush1.msra.mxu0 0.0
  %421 = vmatprep.subr.mxu0 0.0
  %422 = vmatpush1.msra.mxu0 0.0
  %423 = vmatprep.subr.mxu0 0.0
  %424 = vmatpush1.msra.mxu0 0.0
  %425 = vmatprep.subr.mxu0 0.0
  %426 = vmatpush1.msra.mxu0 0.0
  %427 = vmatprep.subr.mxu0 0.0
  %428 = vmatpush1.msra.mxu0 0.0
  %429 = vmatprep.subr.mxu0 0.0
  %430 = vmatpush1.msra.mxu0 0.0
  %431 = vmatprep.subr.mxu0 0.0
  %432 = vmatpush1.msra.mxu0 0.0
  %433 = vmatprep.subr.mxu0 0.0
  %434 = vmatpush1.msra.mxu0 0.0
  %435 = vmatprep.subr.mxu0 0.0
  %436 = vmatpush1.msra.mxu0 0.0
  %437 = vmatprep.subr.mxu0 0.0
  %438 = vmatpush1.msra.mxu0 0.0
  %439 = vmatprep.subr.mxu0 0.0
  %440 = vmatpush1.msra.mxu0 0.0
  %441 = vmatprep.mubr.f32.mxu0 0.0
  %v442 = vand.u32 %v59, 4294901760
  %v443 = vsub.f32 %v59, %v442
  %v444 = vand.u32 %v443, 4294901760
  %445 = vmatmul.mubr.f32.gmra.mrb[0].mxu0 %v444
  %v446 = vpop.f32.mrb[0].mxu0
  %v447 = vadd.f32 %v359, %v446
  %v448 = vpop.f32.mrb[0].mxu0
  %449 = vmatprep.mubr.f32.mxu0 0.0
  %v450 = vand.u32 %v62, 4294901760
  %v451 = vsub.f32 %v62, %v450
  %v452 = vand.u32 %v451, 4294901760
  %453 = vmatmul.mubr.f32.gmra.mrb[0].mxu0 %v452
  %v454 = vpop.f32.mrb[0].mxu0
  %v455 = vadd.f32 %v366, %v454
  %v456 = vpop.f32.mrb[0].mxu0
  %457 = vdwg.mxu0
  %458 = vmatprep.subr.mxu0 0.0
  %v459 = vand.u32 %v49, 4294901760
  %v460 = vsub.f32 %v49, %v459
  %v461 = vand.u32 %v460, 4294901760
  %462 = vmatpush1.msra.mxu0 %v461
  %463 = vmatprep.subr.mxu0 0.0
  %v464 = vand.u32 %v50, 4294901760
  %v465 = vsub.f32 %v50, %v464
  %v466 = vand.u32 %v465, 4294901760
  %467 = vmatpush1.msra.mxu0 %v466
  %468 = vmatprep.subr.mxu0 0.0
  %v469 = vand.u32 %v51, 4294901760
  %v470 = vsub.f32 %v51, %v469
  %v471 = vand.u32 %v470, 4294901760
  %472 = vmatpush1.msra.mxu0 %v471
  %473 = vmatprep.subr.mxu0 0.0
  %v474 = vand.u32 %v52, 4294901760
  %v475 = vsub.f32 %v52, %v474
  %v476 = vand.u32 %v475, 4294901760
  %477 = vmatpush1.msra.mxu0 %v476
  %478 = vmatprep.subr.mxu0 0.0
  %v479 = vand.u32 %v53, 4294901760
  %v480 = vsub.f32 %v53, %v479
  %v481 = vand.u32 %v480, 4294901760
  %482 = vmatpush1.msra.mxu0 %v481
  %483 = vmatprep.subr.mxu0 0.0
  %v484 = vand.u32 %v54, 4294901760
  %v485 = vsub.f32 %v54, %v484
  %v486 = vand.u32 %v485, 4294901760
  %487 = vmatpush1.msra.mxu0 %v486
  %488 = vmatprep.subr.mxu0 0.0
  %v489 = vand.u32 %v55, 4294901760
  %v490 = vsub.f32 %v55, %v489
  %v491 = vand.u32 %v490, 4294901760
  %492 = vmatpush1.msra.mxu0 %v491
  %493 = vmatprep.subr.mxu0 0.0
  %v494 = vand.u32 %v56, 4294901760
  %v495 = vsub.f32 %v56, %v494
  %v496 = vand.u32 %v495, 4294901760
  %497 = vmatpush1.msra.mxu0 %v496
  %498 = vmatprep.subr.mxu0 0.0
  %499 = vmatpush1.msra.mxu0 0.0
  %500 = vmatprep.subr.mxu0 0.0
  %501 = vmatpush1.msra.mxu0 0.0
  %502 = vmatprep.subr.mxu0 0.0
  %503 = vmatpush1.msra.mxu0 0.0
  %504 = vmatprep.subr.mxu0 0.0
  %505 = vmatpush1.msra.mxu0 0.0
  %506 = vmatprep.subr.mxu0 0.0
  %507 = vmatpush1.msra.mxu0 0.0
  %508 = vmatprep.subr.mxu0 0.0
  %509 = vmatpush1.msra.mxu0 0.0
  %510 = vmatprep.subr.mxu0 0.0
  %511 = vmatpush1.msra.mxu0 0.0
  %512 = vmatprep.subr.mxu0 0.0
  %513 = vmatpush1.msra.mxu0 0.0
  %514 = vmatprep.subr.mxu0 0.0
  %515 = vmatpush1.msra.mxu0 0.0
  %516 = vmatprep.subr.mxu0 0.0
  %517 = vmatpush1.msra.mxu0 0.0
  %518 = vmatprep.subr.mxu0 0.0
  %519 = vmatpush1.msra.mxu0 0.0
  %520 = vmatprep.subr.mxu0 0.0
  %521 = vmatpush1.msra.mxu0 0.0
  %522 = vmatprep.subr.mxu0 0.0
  %523 = vmatpush1.msra.mxu0 0.0
  %524 = vmatprep.subr.mxu0 0.0
  %525 = vmatpush1.msra.mxu0 0.0
  %526 = vmatprep.subr.mxu0 0.0
  %527 = vmatpush1.msra.mxu0 0.0
  %528 = vmatprep.subr.mxu0 0.0
  %529 = vmatpush1.msra.mxu0 0.0
  %530 = vmatprep.subr.mxu0 0.0
  %531 = vmatpush1.msra.mxu0 0.0
  %532 = vmatprep.subr.mxu0 0.0
  %533 = vmatpush1.msra.mxu0 0.0
  %534 = vmatprep.subr.mxu0 0.0
  %535 = vmatpush1.msra.mxu0 0.0
  %536 = vmatprep.subr.mxu0 0.0
  %537 = vmatpush1.msra.mxu0 0.0
  %538 = vmatprep.subr.mxu0 0.0
  %539 = vmatpush1.msra.mxu0 0.0
  %540 = vmatprep.subr.mxu0 0.0
  %541 = vmatpush1.msra.mxu0 0.0
  %542 = vmatprep.subr.mxu0 0.0
  %543 = vmatpush1.msra.mxu0 0.0
  %544 = vmatprep.subr.mxu0 0.0
  %545 = vmatpush1.msra.mxu0 0.0
  %546 = vmatprep.mubr.f32.mxu0 0.0
  %v547 = vand.u32 %v59, 4294901760
  %548 = vmatmul.mubr.f32.gmra.mrb[0].mxu0 %v547
  %v549 = vpop.f32.mrb[0].mxu0
  %v550 = vadd.f32 %v447, %v549
  %v551 = vpop.f32.mrb[0].mxu0
  %552 = vmatprep.mubr.f32.mxu0 0.0
  %v553 = vand.u32 %v62, 4294901760
  %554 = vmatmul.mubr.f32.gmra.mrb[0].mxu0 %v553
  %v555 = vpop.f32.mrb[0].mxu0
  %v556 = vadd.f32 %v455, %v555
  %v557 = vpop.f32.mrb[0].mxu0
  %558 = vdwg.mxu0
  %559 = vmatprep.subr.mxu0 0.0
  %v560 = vand.u32 %v49, 4294901760
  %561 = vmatpush1.msra.mxu0 %v560
  %562 = vmatprep.subr.mxu0 0.0
  %v563 = vand.u32 %v50, 4294901760
  %564 = vmatpush1.msra.mxu0 %v563
  %565 = vmatprep.subr.mxu0 0.0
  %v566 = vand.u32 %v51, 4294901760
  %567 = vmatpush1.msra.mxu0 %v566
  %568 = vmatprep.subr.mxu0 0.0
  %v569 = vand.u32 %v52, 4294901760
  %570 = vmatpush1.msra.mxu0 %v569
  %571 = vmatprep.subr.mxu0 0.0
  %v572 = vand.u32 %v53, 4294901760
  %573 = vmatpush1.msra.mxu0 %v572
  %574 = vmatprep.subr.mxu0 0.0
  %v575 = vand.u32 %v54, 4294901760
  %576 = vmatpush1.msra.mxu0 %v575
  %577 = vmatprep.subr.mxu0 0.0
  %v578 = vand.u32 %v55, 4294901760
  %579 = vmatpush1.msra.mxu0 %v578
  %580 = vmatprep.subr.mxu0 0.0
  %v581 = vand.u32 %v56, 4294901760
  %582 = vmatpush1.msra.mxu0 %v581
  %583 = vmatprep.subr.mxu0 0.0
  %584 = vmatpush1.msra.mxu0 0.0
  %585 = vmatprep.subr.mxu0 0.0
  %586 = vmatpush1.msra.mxu0 0.0
  %587 = vmatprep.subr.mxu0 0.0
  %588 = vmatpush1.msra.mxu0 0.0
  %589 = vmatprep.subr.mxu0 0.0
  %590 = vmatpush1.msra.mxu0 0.0
  %591 = vmatprep.subr.mxu0 0.0
  %592 = vmatpush1.msra.mxu0 0.0
  %593 = vmatprep.subr.mxu0 0.0
  %594 = vmatpush1.msra.mxu0 0.0
  %595 = vmatprep.subr.mxu0 0.0
  %596 = vmatpush1.msra.mxu0 0.0
  %597 = vmatprep.subr.mxu0 0.0
  %598 = vmatpush1.msra.mxu0 0.0
  %599 = vmatprep.subr.mxu0 0.0
  %600 = vmatpush1.msra.mxu0 0.0
  %601 = vmatprep.subr.mxu0 0.0
  %602 = vmatpush1.msra.mxu0 0.0
  %603 = vmatprep.subr.mxu0 0.0
  %604 = vmatpush1.msra.mxu0 0.0
  %605 = vmatprep.subr.mxu0 0.0
  %606 = vmatpush1.msra.mxu0 0.0
  %607 = vmatprep.subr.mxu0 0.0
  %608 = vmatpush1.msra.mxu0 0.0
  %609 = vmatprep.subr.mxu0 0.0
  %610 = vmatpush1.msra.mxu0 0.0
  %611 = vmatprep.subr.mxu0 0.0
  %612 = vmatpush1.msra.mxu0 0.0
  %613 = vmatprep.subr.mxu0 0.0
  %614 = vmatpush1.msra.mxu0 0.0
  %615 = vmatprep.subr.mxu0 0.0
  %616 = vmatpush1.msra.mxu0 0.0
  %617 = vmatprep.subr.mxu0 0.0
  %618 = vmatpush1.msra.mxu0 0.0
  %619 = vmatprep.subr.mxu0 0.0
  %620 = vmatpush1.msra.mxu0 0.0
  %621 = vmatprep.subr.mxu0 0.0
  %622 = vmatpush1.msra.mxu0 0.0
  %623 = vmatprep.subr.mxu0 0.0
  %624 = vmatpush1.msra.mxu0 0.0
  %625 = vmatprep.subr.mxu0 0.0
  %626 = vmatpush1.msra.mxu0 0.0
  %627 = vmatprep.subr.mxu0 0.0
  %628 = vmatpush1.msra.mxu0 0.0
  %629 = vmatprep.subr.mxu0 0.0
  %630 = vmatpush1.msra.mxu0 0.0
  %631 = vmatprep.mubr.f32.mxu0 0.0
  %v632 = vand.u32 %v59, 4294901760
  %633 = vmatmul.mubr.f32.gmra.mrb[0].mxu0 %v632
  %v634 = vpop.f32.mrb[0].mxu0
  %v635 = vadd.f32 %v550, %v634
  %v636 = vpop.f32.mrb[0].mxu0
  %637 = vmatprep.mubr.f32.mxu0 0.0
  %v638 = vand.u32 %v62, 4294901760
  %639 = vmatmul.mubr.f32.gmra.mrb[0].mxu0 %v638
  %v640 = vpop.f32.mrb[0].mxu0
  %v641 = vadd.f32 %v556, %v640
  %v642 = vpop.f32.mrb[0].mxu0
  %643 = vdwg.mxu0
  %v644 = vmax.f32 %v635, 0.0
  %v645 = vmax.f32 %v641, 0.0
  %v646 = vadd.f32 %v644, %v645
  %v647 = vrot.slane %v646, 4
  %v648 = vadd.f32 %v646, %v647
  %v649 = vrot.slane %v648, 2
  %v650 = vadd.f32 %v648, %v649
  %v651 = vrot.slane %v650, 1
  %v652 = vadd.f32 %v650, %v651
  %v653 = vmul.f32 %v644, %v644
  %v654 = vmul.f32 %v645, %v645
  %v655 = vadd.f32 %v653, %v654
  %v656 = vrot.slane %v655, 4
  %v657 = vadd.f32 %v655, %v656
  %v658 = vrot.slane %v657, 2
  %v659 = vadd.f32 %v657, %v658
  %v660 = vrot.slane %v659, 1
  %v661 = vadd.f32 %v659, %v660
  %vm662 = vcmask 1040384
  %v663 = vsel %vm662, %v652, %v661
  %664 = vmatprep.subr.mxu0 0.0
  %v665 = vand.u32 %v29, 4294901760
  %666 = vmatpush1.msra.mxu0 %v665
  %667 = vmatprep.subr.mxu0 0.0
  %v668 = vand.u32 %v30, 4294901760
  %669 = vmatpush1.msra.mxu0 %v668
  %670 = vmatprep.subr.mxu0 0.0
  %v671 = vand.u32 %v31, 4294901760
  %672 = vmatpush1.msra.mxu0 %v671
  %673 = vmatprep.subr.mxu0 0.0
  %v674 = vand.u32 %v32, 4294901760
  %675 = vmatpush1.msra.mxu0 %v674
  %676 = vmatprep.subr.mxu0 0.0
  %v677 = vand.u32 %v33, 4294901760
  %678 = vmatpush1.msra.mxu0 %v677
  %679 = vmatprep.subr.mxu0 0.0
  %v680 = vand.u32 %v34, 4294901760
  %681 = vmatpush1.msra.mxu0 %v680
  %682 = vmatprep.subr.mxu0 0.0
  %v683 = vand.u32 %v35, 4294901760
  %684 = vmatpush1.msra.mxu0 %v683
  %685 = vmatprep.subr.mxu0 0.0
  %v686 = vand.u32 %v36, 4294901760
  %687 = vmatpush1.msra.mxu0 %v686
  %688 = vmatprep.subr.mxu0 0.0
  %v689 = vand.u32 %v37, 4294901760
  %690 = vmatpush1.msra.mxu0 %v689
  %691 = vmatprep.subr.mxu0 0.0
  %v692 = vand.u32 %v38, 4294901760
  %693 = vmatpush1.msra.mxu0 %v692
  %694 = vmatprep.subr.mxu0 0.0
  %v695 = vand.u32 %v39, 4294901760
  %696 = vmatpush1.msra.mxu0 %v695
  %697 = vmatprep.subr.mxu0 0.0
  %v698 = vand.u32 %v40, 4294901760
  %699 = vmatpush1.msra.mxu0 %v698
  %700 = vmatprep.subr.mxu0 0.0
  %v701 = vand.u32 %v41, 4294901760
  %702 = vmatpush1.msra.mxu0 %v701
  %703 = vmatprep.subr.mxu0 0.0
  %v704 = vand.u32 %v42, 4294901760
  %705 = vmatpush1.msra.mxu0 %v704
  %706 = vmatprep.subr.mxu0 0.0
  %v707 = vand.u32 %v43, 4294901760
  %708 = vmatpush1.msra.mxu0 %v707
  %709 = vmatprep.subr.mxu0 0.0
  %v710 = vand.u32 %v44, 4294901760
  %711 = vmatpush1.msra.mxu0 %v710
  %712 = vmatprep.subr.mxu0 0.0
  %713 = vmatpush1.msra.mxu0 0.0
  %714 = vmatprep.subr.mxu0 0.0
  %715 = vmatpush1.msra.mxu0 0.0
  %716 = vmatprep.subr.mxu0 0.0
  %717 = vmatpush1.msra.mxu0 0.0
  %718 = vmatprep.subr.mxu0 0.0
  %719 = vmatpush1.msra.mxu0 0.0
  %720 = vmatprep.subr.mxu0 0.0
  %721 = vmatpush1.msra.mxu0 0.0
  %722 = vmatprep.subr.mxu0 0.0
  %723 = vmatpush1.msra.mxu0 0.0
  %724 = vmatprep.subr.mxu0 0.0
  %725 = vmatpush1.msra.mxu0 0.0
  %726 = vmatprep.subr.mxu0 0.0
  %727 = vmatpush1.msra.mxu0 0.0
  %728 = vmatprep.subr.mxu0 0.0
  %729 = vmatpush1.msra.mxu0 0.0
  %730 = vmatprep.subr.mxu0 0.0
  %731 = vmatpush1.msra.mxu0 0.0
  %732 = vmatprep.subr.mxu0 0.0
  %733 = vmatpush1.msra.mxu0 0.0
  %734 = vmatprep.subr.mxu0 0.0
  %735 = vmatpush1.msra.mxu0 0.0
  %736 = vmatprep.subr.mxu0 0.0
  %737 = vmatpush1.msra.mxu0 0.0
  %738 = vmatprep.subr.mxu0 0.0
  %739 = vmatpush1.msra.mxu0 0.0
  %740 = vmatprep.subr.mxu0 0.0
  %741 = vmatpush1.msra.mxu0 0.0
  %742 = vmatprep.subr.mxu0 0.0
  %743 = vmatpush1.msra.mxu0 0.0
  %744 = vmatprep.mubr.f32.mxu0 0.0
  %v745 = vand.u32 %v663, 4294901760
  %v746 = vsub.f32 %v663, %v745
  %v747 = vand.u32 %v746, 4294901760
  %v748 = vsub.f32 %v746, %v747
  %v749 = vand.u32 %v748, 4294901760
  %750 = vmatmul.mubr.f32.gmra.mrb[0].mxu0 %v749
  %v751 = vpop.f32.mrb[0].mxu0
  %v752 = vadd.f32 0.0, %v751
  %v753 = vpop.f32.mrb[0].mxu0
  %754 = vdwg.mxu0
  %755 = vmatprep.subr.mxu0 0.0
  %v756 = vand.u32 %v29, 4294901760
  %v757 = vsub.f32 %v29, %v756
  %v758 = vand.u32 %v757, 4294901760
  %v759 = vsub.f32 %v757, %v758
  %v760 = vand.u32 %v759, 4294901760
  %761 = vmatpush1.msra.mxu0 %v760
  %762 = vmatprep.subr.mxu0 0.0
  %v763 = vand.u32 %v30, 4294901760
  %v764 = vsub.f32 %v30, %v763
  %v765 = vand.u32 %v764, 4294901760
  %v766 = vsub.f32 %v764, %v765
  %v767 = vand.u32 %v766, 4294901760
  %768 = vmatpush1.msra.mxu0 %v767
  %769 = vmatprep.subr.mxu0 0.0
  %v770 = vand.u32 %v31, 4294901760
  %v771 = vsub.f32 %v31, %v770
  %v772 = vand.u32 %v771, 4294901760
  %v773 = vsub.f32 %v771, %v772
  %v774 = vand.u32 %v773, 4294901760
  %775 = vmatpush1.msra.mxu0 %v774
  %776 = vmatprep.subr.mxu0 0.0
  %v777 = vand.u32 %v32, 4294901760
  %v778 = vsub.f32 %v32, %v777
  %v779 = vand.u32 %v778, 4294901760
  %v780 = vsub.f32 %v778, %v779
  %v781 = vand.u32 %v780, 4294901760
  %782 = vmatpush1.msra.mxu0 %v781
  %783 = vmatprep.subr.mxu0 0.0
  %v784 = vand.u32 %v33, 4294901760
  %v785 = vsub.f32 %v33, %v784
  %v786 = vand.u32 %v785, 4294901760
  %v787 = vsub.f32 %v785, %v786
  %v788 = vand.u32 %v787, 4294901760
  %789 = vmatpush1.msra.mxu0 %v788
  %790 = vmatprep.subr.mxu0 0.0
  %v791 = vand.u32 %v34, 4294901760
  %v792 = vsub.f32 %v34, %v791
  %v793 = vand.u32 %v792, 4294901760
  %v794 = vsub.f32 %v792, %v793
  %v795 = vand.u32 %v794, 4294901760
  %796 = vmatpush1.msra.mxu0 %v795
  %797 = vmatprep.subr.mxu0 0.0
  %v798 = vand.u32 %v35, 4294901760
  %v799 = vsub.f32 %v35, %v798
  %v800 = vand.u32 %v799, 4294901760
  %v801 = vsub.f32 %v799, %v800
  %v802 = vand.u32 %v801, 4294901760
  %803 = vmatpush1.msra.mxu0 %v802
  %804 = vmatprep.subr.mxu0 0.0
  %v805 = vand.u32 %v36, 4294901760
  %v806 = vsub.f32 %v36, %v805
  %v807 = vand.u32 %v806, 4294901760
  %v808 = vsub.f32 %v806, %v807
  %v809 = vand.u32 %v808, 4294901760
  %810 = vmatpush1.msra.mxu0 %v809
  %811 = vmatprep.subr.mxu0 0.0
  %v812 = vand.u32 %v37, 4294901760
  %v813 = vsub.f32 %v37, %v812
  %v814 = vand.u32 %v813, 4294901760
  %v815 = vsub.f32 %v813, %v814
  %v816 = vand.u32 %v815, 4294901760
  %817 = vmatpush1.msra.mxu0 %v816
  %818 = vmatprep.subr.mxu0 0.0
  %v819 = vand.u32 %v38, 4294901760
  %v820 = vsub.f32 %v38, %v819
  %v821 = vand.u32 %v820, 4294901760
  %v822 = vsub.f32 %v820, %v821
  %v823 = vand.u32 %v822, 4294901760
  %824 = vmatpush1.msra.mxu0 %v823
  %825 = vmatprep.subr.mxu0 0.0
  %v826 = vand.u32 %v39, 4294901760
  %v827 = vsub.f32 %v39, %v826
  %v828 = vand.u32 %v827, 4294901760
  %v829 = vsub.f32 %v827, %v828
  %v830 = vand.u32 %v829, 4294901760
  %831 = vmatpush1.msra.mxu0 %v830
  %832 = vmatprep.subr.mxu0 0.0
  %v833 = vand.u32 %v40, 4294901760
  %v834 = vsub.f32 %v40, %v833
  %v835 = vand.u32 %v834, 4294901760
  %v836 = vsub.f32 %v834, %v835
  %v837 = vand.u32 %v836, 4294901760
  %838 = vmatpush1.msra.mxu0 %v837
  %839 = vmatprep.subr.mxu0 0.0
  %v840 = vand.u32 %v41, 4294901760
  %v841 = vsub.f32 %v41, %v840
  %v842 = vand.u32 %v841, 4294901760
  %v843 = vsub.f32 %v841, %v842
  %v844 = vand.u32 %v843, 4294901760
  %845 = vmatpush1.msra.mxu0 %v844
  %846 = vmatprep.subr.mxu0 0.0
  %v847 = vand.u32 %v42, 4294901760
  %v848 = vsub.f32 %v42, %v847
  %v849 = vand.u32 %v848, 4294901760
  %v850 = vsub.f32 %v848, %v849
  %v851 = vand.u32 %v850, 4294901760
  %852 = vmatpush1.msra.mxu0 %v851
  %853 = vmatprep.subr.mxu0 0.0
  %v854 = vand.u32 %v43, 4294901760
  %v855 = vsub.f32 %v43, %v854
  %v856 = vand.u32 %v855, 4294901760
  %v857 = vsub.f32 %v855, %v856
  %v858 = vand.u32 %v857, 4294901760
  %859 = vmatpush1.msra.mxu0 %v858
  %860 = vmatprep.subr.mxu0 0.0
  %v861 = vand.u32 %v44, 4294901760
  %v862 = vsub.f32 %v44, %v861
  %v863 = vand.u32 %v862, 4294901760
  %v864 = vsub.f32 %v862, %v863
  %v865 = vand.u32 %v864, 4294901760
  %866 = vmatpush1.msra.mxu0 %v865
  %867 = vmatprep.subr.mxu0 0.0
  %868 = vmatpush1.msra.mxu0 0.0
  %869 = vmatprep.subr.mxu0 0.0
  %870 = vmatpush1.msra.mxu0 0.0
  %871 = vmatprep.subr.mxu0 0.0
  %872 = vmatpush1.msra.mxu0 0.0
  %873 = vmatprep.subr.mxu0 0.0
  %874 = vmatpush1.msra.mxu0 0.0
  %875 = vmatprep.subr.mxu0 0.0
  %876 = vmatpush1.msra.mxu0 0.0
  %877 = vmatprep.subr.mxu0 0.0
  %878 = vmatpush1.msra.mxu0 0.0
  %879 = vmatprep.subr.mxu0 0.0
  %880 = vmatpush1.msra.mxu0 0.0
  %881 = vmatprep.subr.mxu0 0.0
  %882 = vmatpush1.msra.mxu0 0.0
  %883 = vmatprep.subr.mxu0 0.0
  %884 = vmatpush1.msra.mxu0 0.0
  %885 = vmatprep.subr.mxu0 0.0
  %886 = vmatpush1.msra.mxu0 0.0
  %887 = vmatprep.subr.mxu0 0.0
  %888 = vmatpush1.msra.mxu0 0.0
  %889 = vmatprep.subr.mxu0 0.0
  %890 = vmatpush1.msra.mxu0 0.0
  %891 = vmatprep.subr.mxu0 0.0
  %892 = vmatpush1.msra.mxu0 0.0
  %893 = vmatprep.subr.mxu0 0.0
  %894 = vmatpush1.msra.mxu0 0.0
  %895 = vmatprep.subr.mxu0 0.0
  %896 = vmatpush1.msra.mxu0 0.0
  %897 = vmatprep.subr.mxu0 0.0
  %898 = vmatpush1.msra.mxu0 0.0
  %899 = vmatprep.mubr.f32.mxu0 0.0
  %v900 = vand.u32 %v663, 4294901760
  %901 = vmatmul.mubr.f32.gmra.mrb[0].mxu0 %v900
  %v902 = vpop.f32.mrb[0].mxu0
  %v903 = vadd.f32 %v752, %v902
  %v904 = vpop.f32.mrb[0].mxu0
  %905 = vdwg.mxu0
  %906 = vmatprep.subr.mxu0 0.0
  %v907 = vand.u32 %v29, 4294901760
  %v908 = vsub.f32 %v29, %v907
  %909 = vmatpush1.msra.mxu0 %v908
  %910 = vmatprep.subr.mxu0 0.0
  %v911 = vand.u32 %v30, 4294901760
  %v912 = vsub.f32 %v30, %v911
  %913 = vmatpush1.msra.mxu0 %v912
  %914 = vmatprep.subr.mxu0 0.0
  %v915 = vand.u32 %v31, 4294901760
  %v916 = vsub.f32 %v31, %v915
  %917 = vmatpush1.msra.mxu0 %v916
  %918 = vmatprep.subr.mxu0 0.0
  %v919 = vand.u32 %v32, 4294901760
  %v920 = vsub.f32 %v32, %v919
  %921 = vmatpush1.msra.mxu0 %v920
  %922 = vmatprep.subr.mxu0 0.0
  %v923 = vand.u32 %v33, 4294901760
  %v924 = vsub.f32 %v33, %v923
  %925 = vmatpush1.msra.mxu0 %v924
  %926 = vmatprep.subr.mxu0 0.0
  %v927 = vand.u32 %v34, 4294901760
  %v928 = vsub.f32 %v34, %v927
  %929 = vmatpush1.msra.mxu0 %v928
  %930 = vmatprep.subr.mxu0 0.0
  %v931 = vand.u32 %v35, 4294901760
  %v932 = vsub.f32 %v35, %v931
  %933 = vmatpush1.msra.mxu0 %v932
  %934 = vmatprep.subr.mxu0 0.0
  %v935 = vand.u32 %v36, 4294901760
  %v936 = vsub.f32 %v36, %v935
  %937 = vmatpush1.msra.mxu0 %v936
  %938 = vmatprep.subr.mxu0 0.0
  %v939 = vand.u32 %v37, 4294901760
  %v940 = vsub.f32 %v37, %v939
  %941 = vmatpush1.msra.mxu0 %v940
  %942 = vmatprep.subr.mxu0 0.0
  %v943 = vand.u32 %v38, 4294901760
  %v944 = vsub.f32 %v38, %v943
  %945 = vmatpush1.msra.mxu0 %v944
  %946 = vmatprep.subr.mxu0 0.0
  %v947 = vand.u32 %v39, 4294901760
  %v948 = vsub.f32 %v39, %v947
  %949 = vmatpush1.msra.mxu0 %v948
  %950 = vmatprep.subr.mxu0 0.0
  %v951 = vand.u32 %v40, 4294901760
  %v952 = vsub.f32 %v40, %v951
  %953 = vmatpush1.msra.mxu0 %v952
  %954 = vmatprep.subr.mxu0 0.0
  %v955 = vand.u32 %v41, 4294901760
  %v956 = vsub.f32 %v41, %v955
  %957 = vmatpush1.msra.mxu0 %v956
  %958 = vmatprep.subr.mxu0 0.0
  %v959 = vand.u32 %v42, 4294901760
  %v960 = vsub.f32 %v42, %v959
  %961 = vmatpush1.msra.mxu0 %v960
  %962 = vmatprep.subr.mxu0 0.0
  %v963 = vand.u32 %v43, 4294901760
  %v964 = vsub.f32 %v43, %v963
  %965 = vmatpush1.msra.mxu0 %v964
  %966 = vmatprep.subr.mxu0 0.0
  %v967 = vand.u32 %v44, 4294901760
  %v968 = vsub.f32 %v44, %v967
  %969 = vmatpush1.msra.mxu0 %v968
  %970 = vmatprep.subr.mxu0 0.0
  %971 = vmatpush1.msra.mxu0 0.0
  %972 = vmatprep.subr.mxu0 0.0
  %973 = vmatpush1.msra.mxu0 0.0
  %974 = vmatprep.subr.mxu0 0.0
  %975 = vmatpush1.msra.mxu0 0.0
  %976 = vmatprep.subr.mxu0 0.0
  %977 = vmatpush1.msra.mxu0 0.0
  %978 = vmatprep.subr.mxu0 0.0
  %979 = vmatpush1.msra.mxu0 0.0
  %980 = vmatprep.subr.mxu0 0.0
  %981 = vmatpush1.msra.mxu0 0.0
  %982 = vmatprep.subr.mxu0 0.0
  %983 = vmatpush1.msra.mxu0 0.0
  %984 = vmatprep.subr.mxu0 0.0
  %985 = vmatpush1.msra.mxu0 0.0
  %986 = vmatprep.subr.mxu0 0.0
  %987 = vmatpush1.msra.mxu0 0.0
  %988 = vmatprep.subr.mxu0 0.0
  %989 = vmatpush1.msra.mxu0 0.0
  %990 = vmatprep.subr.mxu0 0.0
  %991 = vmatpush1.msra.mxu0 0.0
  %992 = vmatprep.subr.mxu0 0.0
  %993 = vmatpush1.msra.mxu0 0.0
  %994 = vmatprep.subr.mxu0 0.0
  %995 = vmatpush1.msra.mxu0 0.0
  %996 = vmatprep.subr.mxu0 0.0
  %997 = vmatpush1.msra.mxu0 0.0
  %998 = vmatprep.subr.mxu0 0.0
  %999 = vmatpush1.msra.mxu0 0.0
  %1000 = vmatprep.subr.mxu0 0.0
  %1001 = vmatpush1.msra.mxu0 0.0
  %1002 = vmatprep.mubr.f32.mxu0 0.0
  %v1003 = vand.u32 %v663, 4294901760
  %v1004 = vsub.f32 %v663, %v1003
  %1005 = vmatmul.mubr.f32.gmra.mrb[0].mxu0 %v1004
  %v1006 = vpop.f32.mrb[0].mxu0
  %v1007 = vadd.f32 %v903, %v1006
  %v1008 = vpop.f32.mrb[0].mxu0
  %1009 = vdwg.mxu0
  %1010 = vmatprep.subr.mxu0 0.0
  %v1011 = vand.u32 %v29, 4294901760
  %1012 = vmatpush1.msra.mxu0 %v1011
  %1013 = vmatprep.subr.mxu0 0.0
  %v1014 = vand.u32 %v30, 4294901760
  %1015 = vmatpush1.msra.mxu0 %v1014
  %1016 = vmatprep.subr.mxu0 0.0
  %v1017 = vand.u32 %v31, 4294901760
  %1018 = vmatpush1.msra.mxu0 %v1017
  %1019 = vmatprep.subr.mxu0 0.0
  %v1020 = vand.u32 %v32, 4294901760
  %1021 = vmatpush1.msra.mxu0 %v1020
  %1022 = vmatprep.subr.mxu0 0.0
  %v1023 = vand.u32 %v33, 4294901760
  %1024 = vmatpush1.msra.mxu0 %v1023
  %1025 = vmatprep.subr.mxu0 0.0
  %v1026 = vand.u32 %v34, 4294901760
  %1027 = vmatpush1.msra.mxu0 %v1026
  %1028 = vmatprep.subr.mxu0 0.0
  %v1029 = vand.u32 %v35, 4294901760
  %1030 = vmatpush1.msra.mxu0 %v1029
  %1031 = vmatprep.subr.mxu0 0.0
  %v1032 = vand.u32 %v36, 4294901760
  %1033 = vmatpush1.msra.mxu0 %v1032
  %1034 = vmatprep.subr.mxu0 0.0
  %v1035 = vand.u32 %v37, 4294901760
  %1036 = vmatpush1.msra.mxu0 %v1035
  %1037 = vmatprep.subr.mxu0 0.0
  %v1038 = vand.u32 %v38, 4294901760
  %1039 = vmatpush1.msra.mxu0 %v1038
  %1040 = vmatprep.subr.mxu0 0.0
  %v1041 = vand.u32 %v39, 4294901760
  %1042 = vmatpush1.msra.mxu0 %v1041
  %1043 = vmatprep.subr.mxu0 0.0
  %v1044 = vand.u32 %v40, 4294901760
  %1045 = vmatpush1.msra.mxu0 %v1044
  %1046 = vmatprep.subr.mxu0 0.0
  %v1047 = vand.u32 %v41, 4294901760
  %1048 = vmatpush1.msra.mxu0 %v1047
  %1049 = vmatprep.subr.mxu0 0.0
  %v1050 = vand.u32 %v42, 4294901760
  %1051 = vmatpush1.msra.mxu0 %v1050
  %1052 = vmatprep.subr.mxu0 0.0
  %v1053 = vand.u32 %v43, 4294901760
  %1054 = vmatpush1.msra.mxu0 %v1053
  %1055 = vmatprep.subr.mxu0 0.0
  %v1056 = vand.u32 %v44, 4294901760
  %1057 = vmatpush1.msra.mxu0 %v1056
  %1058 = vmatprep.subr.mxu0 0.0
  %1059 = vmatpush1.msra.mxu0 0.0
  %1060 = vmatprep.subr.mxu0 0.0
  %1061 = vmatpush1.msra.mxu0 0.0
  %1062 = vmatprep.subr.mxu0 0.0
  %1063 = vmatpush1.msra.mxu0 0.0
  %1064 = vmatprep.subr.mxu0 0.0
  %1065 = vmatpush1.msra.mxu0 0.0
  %1066 = vmatprep.subr.mxu0 0.0
  %1067 = vmatpush1.msra.mxu0 0.0
  %1068 = vmatprep.subr.mxu0 0.0
  %1069 = vmatpush1.msra.mxu0 0.0
  %1070 = vmatprep.subr.mxu0 0.0
  %1071 = vmatpush1.msra.mxu0 0.0
  %1072 = vmatprep.subr.mxu0 0.0
  %1073 = vmatpush1.msra.mxu0 0.0
  %1074 = vmatprep.subr.mxu0 0.0
  %1075 = vmatpush1.msra.mxu0 0.0
  %1076 = vmatprep.subr.mxu0 0.0
  %1077 = vmatpush1.msra.mxu0 0.0
  %1078 = vmatprep.subr.mxu0 0.0
  %1079 = vmatpush1.msra.mxu0 0.0
  %1080 = vmatprep.subr.mxu0 0.0
  %1081 = vmatpush1.msra.mxu0 0.0
  %1082 = vmatprep.subr.mxu0 0.0
  %1083 = vmatpush1.msra.mxu0 0.0
  %1084 = vmatprep.subr.mxu0 0.0
  %1085 = vmatpush1.msra.mxu0 0.0
  %1086 = vmatprep.subr.mxu0 0.0
  %1087 = vmatpush1.msra.mxu0 0.0
  %1088 = vmatprep.subr.mxu0 0.0
  %1089 = vmatpush1.msra.mxu0 0.0
  %1090 = vmatprep.mubr.f32.mxu0 0.0
  %v1091 = vand.u32 %v663, 4294901760
  %v1092 = vsub.f32 %v663, %v1091
  %v1093 = vand.u32 %v1092, 4294901760
  %1094 = vmatmul.mubr.f32.gmra.mrb[0].mxu0 %v1093
  %v1095 = vpop.f32.mrb[0].mxu0
  %v1096 = vadd.f32 %v1007, %v1095
  %v1097 = vpop.f32.mrb[0].mxu0
  %1098 = vdwg.mxu0
  %1099 = vmatprep.subr.mxu0 0.0
  %v1100 = vand.u32 %v29, 4294901760
  %v1101 = vsub.f32 %v29, %v1100
  %v1102 = vand.u32 %v1101, 4294901760
  %1103 = vmatpush1.msra.mxu0 %v1102
  %1104 = vmatprep.subr.mxu0 0.0
  %v1105 = vand.u32 %v30, 4294901760
  %v1106 = vsub.f32 %v30, %v1105
  %v1107 = vand.u32 %v1106, 4294901760
  %1108 = vmatpush1.msra.mxu0 %v1107
  %1109 = vmatprep.subr.mxu0 0.0
  %v1110 = vand.u32 %v31, 4294901760
  %v1111 = vsub.f32 %v31, %v1110
  %v1112 = vand.u32 %v1111, 4294901760
  %1113 = vmatpush1.msra.mxu0 %v1112
  %1114 = vmatprep.subr.mxu0 0.0
  %v1115 = vand.u32 %v32, 4294901760
  %v1116 = vsub.f32 %v32, %v1115
  %v1117 = vand.u32 %v1116, 4294901760
  %1118 = vmatpush1.msra.mxu0 %v1117
  %1119 = vmatprep.subr.mxu0 0.0
  %v1120 = vand.u32 %v33, 4294901760
  %v1121 = vsub.f32 %v33, %v1120
  %v1122 = vand.u32 %v1121, 4294901760
  %1123 = vmatpush1.msra.mxu0 %v1122
  %1124 = vmatprep.subr.mxu0 0.0
  %v1125 = vand.u32 %v34, 4294901760
  %v1126 = vsub.f32 %v34, %v1125
  %v1127 = vand.u32 %v1126, 4294901760
  %1128 = vmatpush1.msra.mxu0 %v1127
  %1129 = vmatprep.subr.mxu0 0.0
  %v1130 = vand.u32 %v35, 4294901760
  %v1131 = vsub.f32 %v35, %v1130
  %v1132 = vand.u32 %v1131, 4294901760
  %1133 = vmatpush1.msra.mxu0 %v1132
  %1134 = vmatprep.subr.mxu0 0.0
  %v1135 = vand.u32 %v36, 4294901760
  %v1136 = vsub.f32 %v36, %v1135
  %v1137 = vand.u32 %v1136, 4294901760
  %1138 = vmatpush1.msra.mxu0 %v1137
  %1139 = vmatprep.subr.mxu0 0.0
  %v1140 = vand.u32 %v37, 4294901760
  %v1141 = vsub.f32 %v37, %v1140
  %v1142 = vand.u32 %v1141, 4294901760
  %1143 = vmatpush1.msra.mxu0 %v1142
  %1144 = vmatprep.subr.mxu0 0.0
  %v1145 = vand.u32 %v38, 4294901760
  %v1146 = vsub.f32 %v38, %v1145
  %v1147 = vand.u32 %v1146, 4294901760
  %1148 = vmatpush1.msra.mxu0 %v1147
  %1149 = vmatprep.subr.mxu0 0.0
  %v1150 = vand.u32 %v39, 4294901760
  %v1151 = vsub.f32 %v39, %v1150
  %v1152 = vand.u32 %v1151, 4294901760
  %1153 = vmatpush1.msra.mxu0 %v1152
  %1154 = vmatprep.subr.mxu0 0.0
  %v1155 = vand.u32 %v40, 4294901760
  %v1156 = vsub.f32 %v40, %v1155
  %v1157 = vand.u32 %v1156, 4294901760
  %1158 = vmatpush1.msra.mxu0 %v1157
  %1159 = vmatprep.subr.mxu0 0.0
  %v1160 = vand.u32 %v41, 4294901760
  %v1161 = vsub.f32 %v41, %v1160
  %v1162 = vand.u32 %v1161, 4294901760
  %1163 = vmatpush1.msra.mxu0 %v1162
  %1164 = vmatprep.subr.mxu0 0.0
  %v1165 = vand.u32 %v42, 4294901760
  %v1166 = vsub.f32 %v42, %v1165
  %v1167 = vand.u32 %v1166, 4294901760
  %1168 = vmatpush1.msra.mxu0 %v1167
  %1169 = vmatprep.subr.mxu0 0.0
  %v1170 = vand.u32 %v43, 4294901760
  %v1171 = vsub.f32 %v43, %v1170
  %v1172 = vand.u32 %v1171, 4294901760
  %1173 = vmatpush1.msra.mxu0 %v1172
  %1174 = vmatprep.subr.mxu0 0.0
  %v1175 = vand.u32 %v44, 4294901760
  %v1176 = vsub.f32 %v44, %v1175
  %v1177 = vand.u32 %v1176, 4294901760
  %1178 = vmatpush1.msra.mxu0 %v1177
  %1179 = vmatprep.subr.mxu0 0.0
  %1180 = vmatpush1.msra.mxu0 0.0
  %1181 = vmatprep.subr.mxu0 0.0
  %1182 = vmatpush1.msra.mxu0 0.0
  %1183 = vmatprep.subr.mxu0 0.0
  %1184 = vmatpush1.msra.mxu0 0.0
  %1185 = vmatprep.subr.mxu0 0.0
  %1186 = vmatpush1.msra.mxu0 0.0
  %1187 = vmatprep.subr.mxu0 0.0
  %1188 = vmatpush1.msra.mxu0 0.0
  %1189 = vmatprep.subr.mxu0 0.0
  %1190 = vmatpush1.msra.mxu0 0.0
  %1191 = vmatprep.subr.mxu0 0.0
  %1192 = vmatpush1.msra.mxu0 0.0
  %1193 = vmatprep.subr.mxu0 0.0
  %1194 = vmatpush1.msra.mxu0 0.0
  %1195 = vmatprep.subr.mxu0 0.0
  %1196 = vmatpush1.msra.mxu0 0.0
  %1197 = vmatprep.subr.mxu0 0.0
  %1198 = vmatpush1.msra.mxu0 0.0
  %1199 = vmatprep.subr.mxu0 0.0
  %1200 = vmatpush1.msra.mxu0 0.0
  %1201 = vmatprep.subr.mxu0 0.0
  %1202 = vmatpush1.msra.mxu0 0.0
  %1203 = vmatprep.subr.mxu0 0.0
  %1204 = vmatpush1.msra.mxu0 0.0
  %1205 = vmatprep.subr.mxu0 0.0
  %1206 = vmatpush1.msra.mxu0 0.0
  %1207 = vmatprep.subr.mxu0 0.0
  %1208 = vmatpush1.msra.mxu0 0.0
  %1209 = vmatprep.subr.mxu0 0.0
  %1210 = vmatpush1.msra.mxu0 0.0
  %1211 = vmatprep.mubr.f32.mxu0 0.0
  %v1212 = vand.u32 %v663, 4294901760
  %1213 = vmatmul.mubr.f32.gmra.mrb[0].mxu0 %v1212
  %v1214 = vpop.f32.mrb[0].mxu0
  %v1215 = vadd.f32 %v1096, %v1214
  %v1216 = vpop.f32.mrb[0].mxu0
  %1217 = vdwg.mxu0
  %1218 = vmatprep.subr.mxu0 0.0
  %v1219 = vand.u32 %v29, 4294901760
  %1220 = vmatpush1.msra.mxu0 %v1219
  %1221 = vmatprep.subr.mxu0 0.0
  %v1222 = vand.u32 %v30, 4294901760
  %1223 = vmatpush1.msra.mxu0 %v1222
  %1224 = vmatprep.subr.mxu0 0.0
  %v1225 = vand.u32 %v31, 4294901760
  %1226 = vmatpush1.msra.mxu0 %v1225
  %1227 = vmatprep.subr.mxu0 0.0
  %v1228 = vand.u32 %v32, 4294901760
  %1229 = vmatpush1.msra.mxu0 %v1228
  %1230 = vmatprep.subr.mxu0 0.0
  %v1231 = vand.u32 %v33, 4294901760
  %1232 = vmatpush1.msra.mxu0 %v1231
  %1233 = vmatprep.subr.mxu0 0.0
  %v1234 = vand.u32 %v34, 4294901760
  %1235 = vmatpush1.msra.mxu0 %v1234
  %1236 = vmatprep.subr.mxu0 0.0
  %v1237 = vand.u32 %v35, 4294901760
  %1238 = vmatpush1.msra.mxu0 %v1237
  %1239 = vmatprep.subr.mxu0 0.0
  %v1240 = vand.u32 %v36, 4294901760
  %1241 = vmatpush1.msra.mxu0 %v1240
  %1242 = vmatprep.subr.mxu0 0.0
  %v1243 = vand.u32 %v37, 4294901760
  %1244 = vmatpush1.msra.mxu0 %v1243
  %1245 = vmatprep.subr.mxu0 0.0
  %v1246 = vand.u32 %v38, 4294901760
  %1247 = vmatpush1.msra.mxu0 %v1246
  %1248 = vmatprep.subr.mxu0 0.0
  %v1249 = vand.u32 %v39, 4294901760
  %1250 = vmatpush1.msra.mxu0 %v1249
  %1251 = vmatprep.subr.mxu0 0.0
  %v1252 = vand.u32 %v40, 4294901760
  %1253 = vmatpush1.msra.mxu0 %v1252
  %1254 = vmatprep.subr.mxu0 0.0
  %v1255 = vand.u32 %v41, 4294901760
  %1256 = vmatpush1.msra.mxu0 %v1255
  %1257 = vmatprep.subr.mxu0 0.0
  %v1258 = vand.u32 %v42, 4294901760
  %1259 = vmatpush1.msra.mxu0 %v1258
  %1260 = vmatprep.subr.mxu0 0.0
  %v1261 = vand.u32 %v43, 4294901760
  %1262 = vmatpush1.msra.mxu0 %v1261
  %1263 = vmatprep.subr.mxu0 0.0
  %v1264 = vand.u32 %v44, 4294901760
  %1265 = vmatpush1.msra.mxu0 %v1264
  %1266 = vmatprep.subr.mxu0 0.0
  %1267 = vmatpush1.msra.mxu0 0.0
  %1268 = vmatprep.subr.mxu0 0.0
  %1269 = vmatpush1.msra.mxu0 0.0
  %1270 = vmatprep.subr.mxu0 0.0
  %1271 = vmatpush1.msra.mxu0 0.0
  %1272 = vmatprep.subr.mxu0 0.0
  %1273 = vmatpush1.msra.mxu0 0.0
  %1274 = vmatprep.subr.mxu0 0.0
  %1275 = vmatpush1.msra.mxu0 0.0
  %1276 = vmatprep.subr.mxu0 0.0
  %1277 = vmatpush1.msra.mxu0 0.0
  %1278 = vmatprep.subr.mxu0 0.0
  %1279 = vmatpush1.msra.mxu0 0.0
  %1280 = vmatprep.subr.mxu0 0.0
  %1281 = vmatpush1.msra.mxu0 0.0
  %1282 = vmatprep.subr.mxu0 0.0
  %1283 = vmatpush1.msra.mxu0 0.0
  %1284 = vmatprep.subr.mxu0 0.0
  %1285 = vmatpush1.msra.mxu0 0.0
  %1286 = vmatprep.subr.mxu0 0.0
  %1287 = vmatpush1.msra.mxu0 0.0
  %1288 = vmatprep.subr.mxu0 0.0
  %1289 = vmatpush1.msra.mxu0 0.0
  %1290 = vmatprep.subr.mxu0 0.0
  %1291 = vmatpush1.msra.mxu0 0.0
  %1292 = vmatprep.subr.mxu0 0.0
  %1293 = vmatpush1.msra.mxu0 0.0
  %1294 = vmatprep.subr.mxu0 0.0
  %1295 = vmatpush1.msra.mxu0 0.0
  %1296 = vmatprep.subr.mxu0 0.0
  %1297 = vmatpush1.msra.mxu0 0.0
  %1298 = vmatprep.mubr.f32.mxu0 0.0
  %v1299 = vand.u32 %v663, 4294901760
  %1300 = vmatmul.mubr.f32.gmra.mrb[0].mxu0 %v1299
  %v1301 = vpop.f32.mrb[0].mxu0
  %v1302 = vadd.f32 %v1215, %v1301
  %v1303 = vpop.f32.mrb[0].mxu0
  %1304 = vdwg.mxu0
  %v1305 = vmul.f32 %v1302, 0.001953125
  %v1306 = vmul.f32 %v1305, %v1305
  %v1308 = vrot.slane %v1306, 7
  %v1310 = vsub.f32 %v1305, %v1308
  %v1311 = vadd.f32 %v1310, 1e-05
  %v1312 = vrsqrt.pop %v1311
  %v1314 = vrot.slane %v1312, 1
  %v1316 = vmul.f32 %v46, %v1314
  %v1317 = vmul.f32 %v1305, %v1316
  %v1319 = vrot.slane %v1317, 7
  %v1321 = vsub.f32 %v46, %v1319
  %v1322 = vsel %vm662, %v1316, %v1321
  %vm1323 = vcmask 31744
  %v1325 = vsel %vm1323, %v1322, 0
  %vm1327 = vcmask 1043456
  %v1329 = vsel %vm1327, %v45, 0
  %1331 = vmatprep.subr.mxu0 0.0
  %v1332 = vand.u32 %v1329, 4294901760
  %1333 = vmatpush1.msra.mxu0 %v1332
  %1334 = vmatprep.subr.mxu0 0.0
  %1335 = vmatpush1.msra.mxu0 0.0
  %1336 = vmatprep.subr.mxu0 0.0
  %1337 = vmatpush1.msra.mxu0 0.0
  %1338 = vmatprep.subr.mxu0 0.0
  %1339 = vmatpush1.msra.mxu0 0.0
  %1340 = vmatprep.subr.mxu0 0.0
  %1341 = vmatpush1.msra.mxu0 0.0
  %1342 = vmatprep.subr.mxu0 0.0
  %1343 = vmatpush1.msra.mxu0 0.0
  %1344 = vmatprep.subr.mxu0 0.0
  %1345 = vmatpush1.msra.mxu0 0.0
  %1346 = vmatprep.subr.mxu0 0.0
  %1347 = vmatpush1.msra.mxu0 0.0
  %1348 = vmatprep.subr.mxu0 0.0
  %1349 = vmatpush1.msra.mxu0 0.0
  %1350 = vmatprep.subr.mxu0 0.0
  %1351 = vmatpush1.msra.mxu0 0.0
  %1352 = vmatprep.subr.mxu0 0.0
  %1353 = vmatpush1.msra.mxu0 0.0
  %1354 = vmatprep.subr.mxu0 0.0
  %1355 = vmatpush1.msra.mxu0 0.0
  %1356 = vmatprep.subr.mxu0 0.0
  %1357 = vmatpush1.msra.mxu0 0.0
  %1358 = vmatprep.subr.mxu0 0.0
  %1359 = vmatpush1.msra.mxu0 0.0
  %1360 = vmatprep.subr.mxu0 0.0
  %1361 = vmatpush1.msra.mxu0 0.0
  %1362 = vmatprep.subr.mxu0 0.0
  %1363 = vmatpush1.msra.mxu0 0.0
  %1364 = vmatprep.subr.mxu0 0.0
  %1365 = vmatpush1.msra.mxu0 0.0
  %1366 = vmatprep.subr.mxu0 0.0
  %1367 = vmatpush1.msra.mxu0 0.0
  %1368 = vmatprep.subr.mxu0 0.0
  %1369 = vmatpush1.msra.mxu0 0.0
  %1370 = vmatprep.subr.mxu0 0.0
  %1371 = vmatpush1.msra.mxu0 0.0
  %1372 = vmatprep.subr.mxu0 0.0
  %1373 = vmatpush1.msra.mxu0 0.0
  %1374 = vmatprep.subr.mxu0 0.0
  %1375 = vmatpush1.msra.mxu0 0.0
  %1376 = vmatprep.subr.mxu0 0.0
  %1377 = vmatpush1.msra.mxu0 0.0
  %1378 = vmatprep.subr.mxu0 0.0
  %1379 = vmatpush1.msra.mxu0 0.0
  %1380 = vmatprep.subr.mxu0 0.0
  %1381 = vmatpush1.msra.mxu0 0.0
  %1382 = vmatprep.subr.mxu0 0.0
  %1383 = vmatpush1.msra.mxu0 0.0
  %1384 = vmatprep.subr.mxu0 0.0
  %1385 = vmatpush1.msra.mxu0 0.0
  %1386 = vmatprep.subr.mxu0 0.0
  %1387 = vmatpush1.msra.mxu0 0.0
  %1388 = vmatprep.subr.mxu0 0.0
  %1389 = vmatpush1.msra.mxu0 0.0
  %1390 = vmatprep.subr.mxu0 0.0
  %1391 = vmatpush1.msra.mxu0 0.0
  %1392 = vmatprep.subr.mxu0 0.0
  %1393 = vmatpush1.msra.mxu0 0.0
  %1394 = vmatprep.subr.mxu0 0.0
  %1395 = vmatpush1.msra.mxu0 0.0
  %1396 = vmatprep.mubr.f32.mxu0 0.0
  %v1397 = vand.u32 %v1325, 4294901760
  %v1398 = vsub.f32 %v1325, %v1397
  %v1399 = vand.u32 %v1398, 4294901760
  %v1400 = vsub.f32 %v1398, %v1399
  %v1401 = vand.u32 %v1400, 4294901760
  %1402 = vmatmul.mubr.f32.gmra.mrb[0].mxu0 %v1401
  %v1403 = vpop.f32.mrb[0].mxu0
  %v1404 = vadd.f32 0.0, %v1403
  %v1405 = vpop.f32.mrb[0].mxu0
  %1406 = vdwg.mxu0
  %1407 = vmatprep.subr.mxu0 0.0
  %v1408 = vand.u32 %v1329, 4294901760
  %v1409 = vsub.f32 %v1329, %v1408
  %v1410 = vand.u32 %v1409, 4294901760
  %v1411 = vsub.f32 %v1409, %v1410
  %v1412 = vand.u32 %v1411, 4294901760
  %1413 = vmatpush1.msra.mxu0 %v1412
  %1414 = vmatprep.subr.mxu0 0.0
  %1415 = vmatpush1.msra.mxu0 0.0
  %1416 = vmatprep.subr.mxu0 0.0
  %1417 = vmatpush1.msra.mxu0 0.0
  %1418 = vmatprep.subr.mxu0 0.0
  %1419 = vmatpush1.msra.mxu0 0.0
  %1420 = vmatprep.subr.mxu0 0.0
  %1421 = vmatpush1.msra.mxu0 0.0
  %1422 = vmatprep.subr.mxu0 0.0
  %1423 = vmatpush1.msra.mxu0 0.0
  %1424 = vmatprep.subr.mxu0 0.0
  %1425 = vmatpush1.msra.mxu0 0.0
  %1426 = vmatprep.subr.mxu0 0.0
  %1427 = vmatpush1.msra.mxu0 0.0
  %1428 = vmatprep.subr.mxu0 0.0
  %1429 = vmatpush1.msra.mxu0 0.0
  %1430 = vmatprep.subr.mxu0 0.0
  %1431 = vmatpush1.msra.mxu0 0.0
  %1432 = vmatprep.subr.mxu0 0.0
  %1433 = vmatpush1.msra.mxu0 0.0
  %1434 = vmatprep.subr.mxu0 0.0
  %1435 = vmatpush1.msra.mxu0 0.0
  %1436 = vmatprep.subr.mxu0 0.0
  %1437 = vmatpush1.msra.mxu0 0.0
  %1438 = vmatprep.subr.mxu0 0.0
  %1439 = vmatpush1.msra.mxu0 0.0
  %1440 = vmatprep.subr.mxu0 0.0
  %1441 = vmatpush1.msra.mxu0 0.0
  %1442 = vmatprep.subr.mxu0 0.0
  %1443 = vmatpush1.msra.mxu0 0.0
  %1444 = vmatprep.subr.mxu0 0.0
  %1445 = vmatpush1.msra.mxu0 0.0
  %1446 = vmatprep.subr.mxu0 0.0
  %1447 = vmatpush1.msra.mxu0 0.0
  %1448 = vmatprep.subr.mxu0 0.0
  %1449 = vmatpush1.msra.mxu0 0.0
  %1450 = vmatprep.subr.mxu0 0.0
  %1451 = vmatpush1.msra.mxu0 0.0
  %1452 = vmatprep.subr.mxu0 0.0
  %1453 = vmatpush1.msra.mxu0 0.0
  %1454 = vmatprep.subr.mxu0 0.0
  %1455 = vmatpush1.msra.mxu0 0.0
  %1456 = vmatprep.subr.mxu0 0.0
  %1457 = vmatpush1.msra.mxu0 0.0
  %1458 = vmatprep.subr.mxu0 0.0
  %1459 = vmatpush1.msra.mxu0 0.0
  %1460 = vmatprep.subr.mxu0 0.0
  %1461 = vmatpush1.msra.mxu0 0.0
  %1462 = vmatprep.subr.mxu0 0.0
  %1463 = vmatpush1.msra.mxu0 0.0
  %1464 = vmatprep.subr.mxu0 0.0
  %1465 = vmatpush1.msra.mxu0 0.0
  %1466 = vmatprep.subr.mxu0 0.0
  %1467 = vmatpush1.msra.mxu0 0.0
  %1468 = vmatprep.subr.mxu0 0.0
  %1469 = vmatpush1.msra.mxu0 0.0
  %1470 = vmatprep.subr.mxu0 0.0
  %1471 = vmatpush1.msra.mxu0 0.0
  %1472 = vmatprep.subr.mxu0 0.0
  %1473 = vmatpush1.msra.mxu0 0.0
  %1474 = vmatprep.subr.mxu0 0.0
  %1475 = vmatpush1.msra.mxu0 0.0
  %1476 = vmatprep.mubr.f32.mxu0 0.0
  %v1477 = vand.u32 %v1325, 4294901760
  %1478 = vmatmul.mubr.f32.gmra.mrb[0].mxu0 %v1477
  %v1479 = vpop.f32.mrb[0].mxu0
  %v1480 = vadd.f32 %v1404, %v1479
  %v1481 = vpop.f32.mrb[0].mxu0
  %1482 = vdwg.mxu0
  %1483 = vmatprep.subr.mxu0 0.0
  %v1484 = vand.u32 %v1329, 4294901760
  %v1485 = vsub.f32 %v1329, %v1484
  %1486 = vmatpush1.msra.mxu0 %v1485
  %1487 = vmatprep.subr.mxu0 0.0
  %1488 = vmatpush1.msra.mxu0 0.0
  %1489 = vmatprep.subr.mxu0 0.0
  %1490 = vmatpush1.msra.mxu0 0.0
  %1491 = vmatprep.subr.mxu0 0.0
  %1492 = vmatpush1.msra.mxu0 0.0
  %1493 = vmatprep.subr.mxu0 0.0
  %1494 = vmatpush1.msra.mxu0 0.0
  %1495 = vmatprep.subr.mxu0 0.0
  %1496 = vmatpush1.msra.mxu0 0.0
  %1497 = vmatprep.subr.mxu0 0.0
  %1498 = vmatpush1.msra.mxu0 0.0
  %1499 = vmatprep.subr.mxu0 0.0
  %1500 = vmatpush1.msra.mxu0 0.0
  %1501 = vmatprep.subr.mxu0 0.0
  %1502 = vmatpush1.msra.mxu0 0.0
  %1503 = vmatprep.subr.mxu0 0.0
  %1504 = vmatpush1.msra.mxu0 0.0
  %1505 = vmatprep.subr.mxu0 0.0
  %1506 = vmatpush1.msra.mxu0 0.0
  %1507 = vmatprep.subr.mxu0 0.0
  %1508 = vmatpush1.msra.mxu0 0.0
  %1509 = vmatprep.subr.mxu0 0.0
  %1510 = vmatpush1.msra.mxu0 0.0
  %1511 = vmatprep.subr.mxu0 0.0
  %1512 = vmatpush1.msra.mxu0 0.0
  %1513 = vmatprep.subr.mxu0 0.0
  %1514 = vmatpush1.msra.mxu0 0.0
  %1515 = vmatprep.subr.mxu0 0.0
  %1516 = vmatpush1.msra.mxu0 0.0
  %1517 = vmatprep.subr.mxu0 0.0
  %1518 = vmatpush1.msra.mxu0 0.0
  %1519 = vmatprep.subr.mxu0 0.0
  %1520 = vmatpush1.msra.mxu0 0.0
  %1521 = vmatprep.subr.mxu0 0.0
  %1522 = vmatpush1.msra.mxu0 0.0
  %1523 = vmatprep.subr.mxu0 0.0
  %1524 = vmatpush1.msra.mxu0 0.0
  %1525 = vmatprep.subr.mxu0 0.0
  %1526 = vmatpush1.msra.mxu0 0.0
  %1527 = vmatprep.subr.mxu0 0.0
  %1528 = vmatpush1.msra.mxu0 0.0
  %1529 = vmatprep.subr.mxu0 0.0
  %1530 = vmatpush1.msra.mxu0 0.0
  %1531 = vmatprep.subr.mxu0 0.0
  %1532 = vmatpush1.msra.mxu0 0.0
  %1533 = vmatprep.subr.mxu0 0.0
  %1534 = vmatpush1.msra.mxu0 0.0
  %1535 = vmatprep.subr.mxu0 0.0
  %1536 = vmatpush1.msra.mxu0 0.0
  %1537 = vmatprep.subr.mxu0 0.0
  %1538 = vmatpush1.msra.mxu0 0.0
  %1539 = vmatprep.subr.mxu0 0.0
  %1540 = vmatpush1.msra.mxu0 0.0
  %1541 = vmatprep.subr.mxu0 0.0
  %1542 = vmatpush1.msra.mxu0 0.0
  %1543 = vmatprep.subr.mxu0 0.0
  %1544 = vmatpush1.msra.mxu0 0.0
  %1545 = vmatprep.subr.mxu0 0.0
  %1546 = vmatpush1.msra.mxu0 0.0
  %1547 = vmatprep.subr.mxu0 0.0
  %1548 = vmatpush1.msra.mxu0 0.0
  %1549 = vmatprep.mubr.f32.mxu0 0.0
  %v1550 = vand.u32 %v1325, 4294901760
  %v1551 = vsub.f32 %v1325, %v1550
  %1552 = vmatmul.mubr.f32.gmra.mrb[0].mxu0 %v1551
  %v1553 = vpop.f32.mrb[0].mxu0
  %v1554 = vadd.f32 %v1480, %v1553
  %v1555 = vpop.f32.mrb[0].mxu0
  %1556 = vdwg.mxu0
  %1557 = vmatprep.subr.mxu0 0.0
  %v1558 = vand.u32 %v1329, 4294901760
  %1559 = vmatpush1.msra.mxu0 %v1558
  %1560 = vmatprep.subr.mxu0 0.0
  %1561 = vmatpush1.msra.mxu0 0.0
  %1562 = vmatprep.subr.mxu0 0.0
  %1563 = vmatpush1.msra.mxu0 0.0
  %1564 = vmatprep.subr.mxu0 0.0
  %1565 = vmatpush1.msra.mxu0 0.0
  %1566 = vmatprep.subr.mxu0 0.0
  %1567 = vmatpush1.msra.mxu0 0.0
  %1568 = vmatprep.subr.mxu0 0.0
  %1569 = vmatpush1.msra.mxu0 0.0
  %1570 = vmatprep.subr.mxu0 0.0
  %1571 = vmatpush1.msra.mxu0 0.0
  %1572 = vmatprep.subr.mxu0 0.0
  %1573 = vmatpush1.msra.mxu0 0.0
  %1574 = vmatprep.subr.mxu0 0.0
  %1575 = vmatpush1.msra.mxu0 0.0
  %1576 = vmatprep.subr.mxu0 0.0
  %1577 = vmatpush1.msra.mxu0 0.0
  %1578 = vmatprep.subr.mxu0 0.0
  %1579 = vmatpush1.msra.mxu0 0.0
  %1580 = vmatprep.subr.mxu0 0.0
  %1581 = vmatpush1.msra.mxu0 0.0
  %1582 = vmatprep.subr.mxu0 0.0
  %1583 = vmatpush1.msra.mxu0 0.0
  %1584 = vmatprep.subr.mxu0 0.0
  %1585 = vmatpush1.msra.mxu0 0.0
  %1586 = vmatprep.subr.mxu0 0.0
  %1587 = vmatpush1.msra.mxu0 0.0
  %1588 = vmatprep.subr.mxu0 0.0
  %1589 = vmatpush1.msra.mxu0 0.0
  %1590 = vmatprep.subr.mxu0 0.0
  %1591 = vmatpush1.msra.mxu0 0.0
  %1592 = vmatprep.subr.mxu0 0.0
  %1593 = vmatpush1.msra.mxu0 0.0
  %1594 = vmatprep.subr.mxu0 0.0
  %1595 = vmatpush1.msra.mxu0 0.0
  %1596 = vmatprep.subr.mxu0 0.0
  %1597 = vmatpush1.msra.mxu0 0.0
  %1598 = vmatprep.subr.mxu0 0.0
  %1599 = vmatpush1.msra.mxu0 0.0
  %1600 = vmatprep.subr.mxu0 0.0
  %1601 = vmatpush1.msra.mxu0 0.0
  %1602 = vmatprep.subr.mxu0 0.0
  %1603 = vmatpush1.msra.mxu0 0.0
  %1604 = vmatprep.subr.mxu0 0.0
  %1605 = vmatpush1.msra.mxu0 0.0
  %1606 = vmatprep.subr.mxu0 0.0
  %1607 = vmatpush1.msra.mxu0 0.0
  %1608 = vmatprep.subr.mxu0 0.0
  %1609 = vmatpush1.msra.mxu0 0.0
  %1610 = vmatprep.subr.mxu0 0.0
  %1611 = vmatpush1.msra.mxu0 0.0
  %1612 = vmatprep.subr.mxu0 0.0
  %1613 = vmatpush1.msra.mxu0 0.0
  %1614 = vmatprep.subr.mxu0 0.0
  %1615 = vmatpush1.msra.mxu0 0.0
  %1616 = vmatprep.subr.mxu0 0.0
  %1617 = vmatpush1.msra.mxu0 0.0
  %1618 = vmatprep.subr.mxu0 0.0
  %1619 = vmatpush1.msra.mxu0 0.0
  %1620 = vmatprep.subr.mxu0 0.0
  %1621 = vmatpush1.msra.mxu0 0.0
  %1622 = vmatprep.mubr.f32.mxu0 0.0
  %v1623 = vand.u32 %v1325, 4294901760
  %v1624 = vsub.f32 %v1325, %v1623
  %v1625 = vand.u32 %v1624, 4294901760
  %1626 = vmatmul.mubr.f32.gmra.mrb[0].mxu0 %v1625
  %v1627 = vpop.f32.mrb[0].mxu0
  %v1628 = vadd.f32 %v1554, %v1627
  %v1629 = vpop.f32.mrb[0].mxu0
  %1630 = vdwg.mxu0
  %1631 = vmatprep.subr.mxu0 0.0
  %v1632 = vand.u32 %v1329, 4294901760
  %v1633 = vsub.f32 %v1329, %v1632
  %v1634 = vand.u32 %v1633, 4294901760
  %1635 = vmatpush1.msra.mxu0 %v1634
  %1636 = vmatprep.subr.mxu0 0.0
  %1637 = vmatpush1.msra.mxu0 0.0
  %1638 = vmatprep.subr.mxu0 0.0
  %1639 = vmatpush1.msra.mxu0 0.0
  %1640 = vmatprep.subr.mxu0 0.0
  %1641 = vmatpush1.msra.mxu0 0.0
  %1642 = vmatprep.subr.mxu0 0.0
  %1643 = vmatpush1.msra.mxu0 0.0
  %1644 = vmatprep.subr.mxu0 0.0
  %1645 = vmatpush1.msra.mxu0 0.0
  %1646 = vmatprep.subr.mxu0 0.0
  %1647 = vmatpush1.msra.mxu0 0.0
  %1648 = vmatprep.subr.mxu0 0.0
  %1649 = vmatpush1.msra.mxu0 0.0
  %1650 = vmatprep.subr.mxu0 0.0
  %1651 = vmatpush1.msra.mxu0 0.0
  %1652 = vmatprep.subr.mxu0 0.0
  %1653 = vmatpush1.msra.mxu0 0.0
  %1654 = vmatprep.subr.mxu0 0.0
  %1655 = vmatpush1.msra.mxu0 0.0
  %1656 = vmatprep.subr.mxu0 0.0
  %1657 = vmatpush1.msra.mxu0 0.0
  %1658 = vmatprep.subr.mxu0 0.0
  %1659 = vmatpush1.msra.mxu0 0.0
  %1660 = vmatprep.subr.mxu0 0.0
  %1661 = vmatpush1.msra.mxu0 0.0
  %1662 = vmatprep.subr.mxu0 0.0
  %1663 = vmatpush1.msra.mxu0 0.0
  %1664 = vmatprep.subr.mxu0 0.0
  %1665 = vmatpush1.msra.mxu0 0.0
  %1666 = vmatprep.subr.mxu0 0.0
  %1667 = vmatpush1.msra.mxu0 0.0
  %1668 = vmatprep.subr.mxu0 0.0
  %1669 = vmatpush1.msra.mxu0 0.0
  %1670 = vmatprep.subr.mxu0 0.0
  %1671 = vmatpush1.msra.mxu0 0.0
  %1672 = vmatprep.subr.mxu0 0.0
  %1673 = vmatpush1.msra.mxu0 0.0
  %1674 = vmatprep.subr.mxu0 0.0
  %1675 = vmatpush1.msra.mxu0 0.0
  %1676 = vmatprep.subr.mxu0 0.0
  %1677 = vmatpush1.msra.mxu0 0.0
  %1678 = vmatprep.subr.mxu0 0.0
  %1679 = vmatpush1.msra.mxu0 0.0
  %1680 = vmatprep.subr.mxu0 0.0
  %1681 = vmatpush1.msra.mxu0 0.0
  %1682 = vmatprep.subr.mxu0 0.0
  %1683 = vmatpush1.msra.mxu0 0.0
  %1684 = vmatprep.subr.mxu0 0.0
  %1685 = vmatpush1.msra.mxu0 0.0
  %1686 = vmatprep.subr.mxu0 0.0
  %1687 = vmatpush1.msra.mxu0 0.0
  %1688 = vmatprep.subr.mxu0 0.0
  %1689 = vmatpush1.msra.mxu0 0.0
  %1690 = vmatprep.subr.mxu0 0.0
  %1691 = vmatpush1.msra.mxu0 0.0
  %1692 = vmatprep.subr.mxu0 0.0
  %1693 = vmatpush1.msra.mxu0 0.0
  %1694 = vmatprep.subr.mxu0 0.0
  %1695 = vmatpush1.msra.mxu0 0.0
  %1696 = vmatprep.subr.mxu0 0.0
  %1697 = vmatpush1.msra.mxu0 0.0
  %1698 = vmatprep.mubr.f32.mxu0 0.0
  %v1699 = vand.u32 %v1325, 4294901760
  %1700 = vmatmul.mubr.f32.gmra.mrb[0].mxu0 %v1699
  %v1701 = vpop.f32.mrb[0].mxu0
  %v1702 = vadd.f32 %v1628, %v1701
  %v1703 = vpop.f32.mrb[0].mxu0
  %1704 = vdwg.mxu0
  %1705 = vmatprep.subr.mxu0 0.0
  %v1706 = vand.u32 %v1329, 4294901760
  %1707 = vmatpush1.msra.mxu0 %v1706
  %1708 = vmatprep.subr.mxu0 0.0
  %1709 = vmatpush1.msra.mxu0 0.0
  %1710 = vmatprep.subr.mxu0 0.0
  %1711 = vmatpush1.msra.mxu0 0.0
  %1712 = vmatprep.subr.mxu0 0.0
  %1713 = vmatpush1.msra.mxu0 0.0
  %1714 = vmatprep.subr.mxu0 0.0
  %1715 = vmatpush1.msra.mxu0 0.0
  %1716 = vmatprep.subr.mxu0 0.0
  %1717 = vmatpush1.msra.mxu0 0.0
  %1718 = vmatprep.subr.mxu0 0.0
  %1719 = vmatpush1.msra.mxu0 0.0
  %1720 = vmatprep.subr.mxu0 0.0
  %1721 = vmatpush1.msra.mxu0 0.0
  %1722 = vmatprep.subr.mxu0 0.0
  %1723 = vmatpush1.msra.mxu0 0.0
  %1724 = vmatprep.subr.mxu0 0.0
  %1725 = vmatpush1.msra.mxu0 0.0
  %1726 = vmatprep.subr.mxu0 0.0
  %1727 = vmatpush1.msra.mxu0 0.0
  %1728 = vmatprep.subr.mxu0 0.0
  %1729 = vmatpush1.msra.mxu0 0.0
  %1730 = vmatprep.subr.mxu0 0.0
  %1731 = vmatpush1.msra.mxu0 0.0
  %1732 = vmatprep.subr.mxu0 0.0
  %1733 = vmatpush1.msra.mxu0 0.0
  %1734 = vmatprep.subr.mxu0 0.0
  %1735 = vmatpush1.msra.mxu0 0.0
  %1736 = vmatprep.subr.mxu0 0.0
  %1737 = vmatpush1.msra.mxu0 0.0
  %1738 = vmatprep.subr.mxu0 0.0
  %1739 = vmatpush1.msra.mxu0 0.0
  %1740 = vmatprep.subr.mxu0 0.0
  %1741 = vmatpush1.msra.mxu0 0.0
  %1742 = vmatprep.subr.mxu0 0.0
  %1743 = vmatpush1.msra.mxu0 0.0
  %1744 = vmatprep.subr.mxu0 0.0
  %1745 = vmatpush1.msra.mxu0 0.0
  %1746 = vmatprep.subr.mxu0 0.0
  %1747 = vmatpush1.msra.mxu0 0.0
  %1748 = vmatprep.subr.mxu0 0.0
  %1749 = vmatpush1.msra.mxu0 0.0
  %1750 = vmatprep.subr.mxu0 0.0
  %1751 = vmatpush1.msra.mxu0 0.0
  %1752 = vmatprep.subr.mxu0 0.0
  %1753 = vmatpush1.msra.mxu0 0.0
  %1754 = vmatprep.subr.mxu0 0.0
  %1755 = vmatpush1.msra.mxu0 0.0
  %1756 = vmatprep.subr.mxu0 0.0
  %1757 = vmatpush1.msra.mxu0 0.0
  %1758 = vmatprep.subr.mxu0 0.0
  %1759 = vmatpush1.msra.mxu0 0.0
  %1760 = vmatprep.subr.mxu0 0.0
  %1761 = vmatpush1.msra.mxu0 0.0
  %1762 = vmatprep.subr.mxu0 0.0
  %1763 = vmatpush1.msra.mxu0 0.0
  %1764 = vmatprep.subr.mxu0 0.0
  %1765 = vmatpush1.msra.mxu0 0.0
  %1766 = vmatprep.subr.mxu0 0.0
  %1767 = vmatpush1.msra.mxu0 0.0
  %1768 = vmatprep.subr.mxu0 0.0
  %1769 = vmatpush1.msra.mxu0 0.0
  %1770 = vmatprep.mubr.f32.mxu0 0.0
  %v1771 = vand.u32 %v1325, 4294901760
  %1772 = vmatmul.mubr.f32.gmra.mrb[0].mxu0 %v1771
  %v1773 = vpop.f32.mrb[0].mxu0
  %v1774 = vadd.f32 %v1702, %v1773
  %v1775 = vpop.f32.mrb[0].mxu0
  %1776 = vdwg.mxu0
  %v1777 = vlaneseq
  %v1778 = vshrl.u32 %v1777, 7
  %v1779 = vsub.s32 0, %v1778
  %v1780 = vrot.slane %v1774, %v1779
  %v1781 = vmul.f32 %v644, %v1780
  %v1782 = vmul.f32 %v645, %v1780
  %v1783 = vlaneseq
  %v1784 = vshrl.u32 %v1783, 7
  %v1785 = vsub.s32 1, %v1784
  %v1786 = vrot.slane %v1774, %v1785
  %v1787 = vadd.f32 %v1781, %v1786
  %v1788 = vadd.f32 %v1782, %v1786
  %v1790 = vrot.slane %v1787, 7
  %v1792 = vsel %vm662, 0.0, %v1790
  %v1793 = vsel %vm662, %v1790, 0.0
  %vm1796 = vcmask 1046528
  %v1797 = vrot.slane %v1792, 1
  %v1798 = vrot.slane %v1793, 1
  %v1799 = vsel %vm1796, %v1797, %v1798
  %vm1801 = vcmask 1045504
  %v1802 = vrot.slane %v1792, 2
  %v1803 = vrot.slane %v1793, 2
  %v1804 = vsel %vm1801, %v1802, %v1803
  %v1807 = vrot.slane %v1788, 7
  %v1809 = vsel %vm662, 0.0, %v1807
  %v1810 = vsel %vm662, %v1807, 0.0
  %v1813 = vrot.slane %v1809, 1
  %v1814 = vrot.slane %v1810, 1
  %v1815 = vsel %vm1796, %v1813, %v1814
  %v1817 = vrot.slane %v1809, 2
  %v1818 = vrot.slane %v1810, 2
  %v1819 = vsel %vm1801, %v1817, %v1818
  %v1821 = vld [vmem:[%s1] sm:$0xff]
  %v1822 = vld [vmem:[%s1 + $0x8] sm:$0xff]
  %v1824 = vrot.slane %v1821, 7
  %v1826 = vsel %vm662, 0.0, %v1824
  %v1827 = vsel %vm662, %v1824, 0.0
  %v1830 = vrot.slane %v1826, 1
  %v1831 = vrot.slane %v1827, 1
  %v1832 = vsel %vm1796, %v1830, %v1831
  %v1834 = vrot.slane %v1826, 2
  %v1835 = vrot.slane %v1827, 2
  %v1836 = vsel %vm1801, %v1834, %v1835
  %v1839 = vrot.slane %v1822, 7
  %v1841 = vsel %vm662, 0.0, %v1839
  %v1842 = vsel %vm662, %v1839, 0.0
  %v1845 = vrot.slane %v1841, 1
  %v1846 = vrot.slane %v1842, 1
  %v1847 = vsel %vm1796, %v1845, %v1846
  %v1849 = vrot.slane %v1841, 2
  %v1850 = vrot.slane %v1842, 2
  %v1851 = vsel %vm1801, %v1849, %v1850
  %v1853 = vld [vmem:[%s3] sm:$0xff]
  %v1854 = vld [vmem:[%s3 + $0x8] sm:$0xff]
  %v1855 = vld [vmem:[%s3 + $0x10] sm:$0xff]
  %v1856 = vld [vmem:[%s3 + $0x18] sm:$0xff]
  %v1857 = vld [vmem:[%s3 + $0x20] sm:$0xff]
  %v1858 = vld [vmem:[%s3 + $0x28] sm:$0xff]
  %v1859 = vld [vmem:[%s3 + $0x30] sm:$0xff]
  %v1860 = vld [vmem:[%s3 + $0x38] sm:$0xff]
  %v1861 = vld [vmem:[%s3 + $0x40] sm:$0xff]
  %v1862 = vld [vmem:[%s3 + $0x48] sm:$0xff]
  %v1863 = vld [vmem:[%s3 + $0x50] sm:$0xff]
  %v1864 = vld [vmem:[%s3 + $0x58] sm:$0xff]
  %v1865 = vld [vmem:[%s3 + $0x60] sm:$0xff]
  %v1866 = vld [vmem:[%s3 + $0x68] sm:$0xff]
  %v1867 = vld [vmem:[%s3 + $0x70] sm:$0xff]
  %v1868 = vld [vmem:[%s3 + $0x78] sm:$0xff]
  %v1869 = vld [vmem:[%s3 + $0x80] sm:$0xff]
  %v1870 = vld [vmem:[%s3 + $0x88] sm:$0xff]
  %v1871 = vld [vmem:[%s3 + $0x90] sm:$0xff]
  %v1872 = vld [vmem:[%s3 + $0x98] sm:$0xff]
  %v1873 = vld [vmem:[%s3 + $0xa0] sm:$0xff]
  %v1874 = vld [vmem:[%s3 + $0xa8] sm:$0xff]
  %v1875 = vld [vmem:[%s3 + $0xb0] sm:$0xff]
  %v1876 = vld [vmem:[%s3 + $0xb8] sm:$0xff]
  %v1877 = vld [vmem:[%s3 + $0xc0] sm:$0xff]
  %v1878 = vld [vmem:[%s3 + $0xc8] sm:$0xff]
  %v1879 = vld [vmem:[%s3 + $0xd0] sm:$0xff]
  %v1880 = vld [vmem:[%s3 + $0xd8] sm:$0xff]
  %v1881 = vld [vmem:[%s3 + $0xe0] sm:$0xff]
  %v1882 = vld [vmem:[%s3 + $0xe8] sm:$0xff]
  %v1883 = vld [vmem:[%s3 + $0xf0] sm:$0xff]
  %v1884 = vld [vmem:[%s3 + $0xf8] sm:$0xff]
  %v1885 = vld [vmem:[%s3 + $0x100] sm:$0xff]
  %v1886 = vld [vmem:[%s3 + $0x108] sm:$0xff]
  %v1887 = vld [vmem:[%s3 + $0x110] sm:$0xff]
  %v1888 = vld [vmem:[%s3 + $0x118] sm:$0xff]
  %v1889 = vld [vmem:[%s3 + $0x120] sm:$0xff]
  %v1890 = vld [vmem:[%s3 + $0x128] sm:$0xff]
  %v1891 = vld [vmem:[%s3 + $0x130] sm:$0xff]
  %v1892 = vld [vmem:[%s3 + $0x138] sm:$0xff]
  %v1893 = vld [vmem:[%s3 + $0x140] sm:$0xff]
  %v1894 = vld [vmem:[%s3 + $0x148] sm:$0xff]
  %v1895 = vld [vmem:[%s3 + $0x150] sm:$0xff]
  %v1896 = vld [vmem:[%s3 + $0x158] sm:$0xff]
  %v1897 = vld [vmem:[%s3 + $0x160] sm:$0xff]
  %v1898 = vld [vmem:[%s3 + $0x168] sm:$0xff]
  %v1899 = vld [vmem:[%s3 + $0x170] sm:$0xff]
  %v1900 = vld [vmem:[%s3 + $0x178] sm:$0xff]
  %v1901 = vld [vmem:[%s3 + $0x180] sm:$0xff]
  %v1902 = vld [vmem:[%s3 + $0x188] sm:$0xff]
  %v1903 = vld [vmem:[%s3 + $0x190] sm:$0xff]
  %v1904 = vld [vmem:[%s3 + $0x198] sm:$0xff]
  %v1905 = vld [vmem:[%s3 + $0x1a0] sm:$0xff]
  %v1906 = vld [vmem:[%s3 + $0x1a8] sm:$0xff]
  %v1907 = vld [vmem:[%s3 + $0x1b0] sm:$0xff]
  %v1908 = vld [vmem:[%s3 + $0x1b8] sm:$0xff]
  %v1909 = vld [vmem:[%s3 + $0x1c0] sm:$0xff]
  %v1910 = vld [vmem:[%s3 + $0x1c8] sm:$0xff]
  %v1911 = vld [vmem:[%s3 + $0x1d0] sm:$0xff]
  %v1912 = vld [vmem:[%s3 + $0x1d8] sm:$0xff]
  %v1913 = vld [vmem:[%s3 + $0x1e0] sm:$0xff]
  %v1914 = vld [vmem:[%s3 + $0x1e8] sm:$0xff]
  %v1915 = vld [vmem:[%s3 + $0x1f0] sm:$0xff]
  %v1916 = vld [vmem:[%s3 + $0x1f8] sm:$0xff]
  %v1917 = vld [vmem:[%s3 + $0x200] sm:$0xff]
  %v1918 = vld [vmem:[%s3 + $0x208] sm:$0xff]
  %v1919 = vld [vmem:[%s3 + $0x210] sm:$0xff]
  %v1920 = vld [vmem:[%s3 + $0x218] sm:$0xff]
  %v1921 = vld [vmem:[%s3 + $0x220] sm:$0xff]
  %v1922 = vld [vmem:[%s3 + $0x228] sm:$0xff]
  %v1923 = vld [vmem:[%s3 + $0x230] sm:$0xff]
  %v1924 = vld [vmem:[%s3 + $0x238] sm:$0xff]
  %v1925 = vld [vmem:[%s3 + $0x240] sm:$0xff]
  %v1926 = vld [vmem:[%s3 + $0x248] sm:$0xff]
  %v1927 = vld [vmem:[%s3 + $0x250] sm:$0xff]
  %v1928 = vld [vmem:[%s3 + $0x258] sm:$0xff]
  %v1929 = vld [vmem:[%s3 + $0x260] sm:$0xff]
  %v1930 = vld [vmem:[%s3 + $0x268] sm:$0xff]
  %v1931 = vld [vmem:[%s3 + $0x270] sm:$0xff]
  %v1932 = vld [vmem:[%s3 + $0x278] sm:$0xff]
  %v1933 = vld [vmem:[%s3 + $0x280] sm:$0xff]
  %v1934 = vld [vmem:[%s3 + $0x288] sm:$0xff]
  %v1935 = vld [vmem:[%s3 + $0x290] sm:$0xff]
  %v1936 = vld [vmem:[%s3 + $0x298] sm:$0xff]
  %v1937 = vld [vmem:[%s3 + $0x2a0] sm:$0xff]
  %v1938 = vld [vmem:[%s3 + $0x2a8] sm:$0xff]
  %v1939 = vld [vmem:[%s3 + $0x2b0] sm:$0xff]
  %v1940 = vld [vmem:[%s3 + $0x2b8] sm:$0xff]
  %v1941 = vld [vmem:[%s3 + $0x2c0] sm:$0xff]
  %v1942 = vld [vmem:[%s3 + $0x2c8] sm:$0xff]
  %v1943 = vld [vmem:[%s3 + $0x2d0] sm:$0xff]
  %v1944 = vld [vmem:[%s3 + $0x2d8] sm:$0xff]
  %v1945 = vld [vmem:[%s3 + $0x2e0] sm:$0xff]
  %v1946 = vld [vmem:[%s3 + $0x2e8] sm:$0xff]
  %v1947 = vld [vmem:[%s3 + $0x2f0] sm:$0xff]
  %v1948 = vld [vmem:[%s3 + $0x2f8] sm:$0xff]
  %1949 = vmatprep.subr.mxu0 0.0
  %v1950 = vand.u32 %v1853, 4294901760
  %1951 = vmatpush1.msra.mxu0 %v1950
  %1952 = vmatprep.subr.mxu0 0.0
  %v1953 = vand.u32 %v1854, 4294901760
  %1954 = vmatpush1.msra.mxu0 %v1953
  %1955 = vmatprep.subr.mxu0 0.0
  %v1956 = vand.u32 %v1855, 4294901760
  %1957 = vmatpush1.msra.mxu0 %v1956
  %1958 = vmatprep.subr.mxu0 0.0
  %v1959 = vand.u32 %v1856, 4294901760
  %1960 = vmatpush1.msra.mxu0 %v1959
  %1961 = vmatprep.subr.mxu0 0.0
  %v1962 = vand.u32 %v1857, 4294901760
  %1963 = vmatpush1.msra.mxu0 %v1962
  %1964 = vmatprep.subr.mxu0 0.0
  %v1965 = vand.u32 %v1858, 4294901760
  %1966 = vmatpush1.msra.mxu0 %v1965
  %1967 = vmatprep.subr.mxu0 0.0
  %v1968 = vand.u32 %v1859, 4294901760
  %1969 = vmatpush1.msra.mxu0 %v1968
  %1970 = vmatprep.subr.mxu0 0.0
  %v1971 = vand.u32 %v1860, 4294901760
  %1972 = vmatpush1.msra.mxu0 %v1971
  %1973 = vmatprep.subr.mxu0 0.0
  %v1974 = vand.u32 %v1861, 4294901760
  %1975 = vmatpush1.msra.mxu0 %v1974
  %1976 = vmatprep.subr.mxu0 0.0
  %v1977 = vand.u32 %v1862, 4294901760
  %1978 = vmatpush1.msra.mxu0 %v1977
  %1979 = vmatprep.subr.mxu0 0.0
  %v1980 = vand.u32 %v1863, 4294901760
  %1981 = vmatpush1.msra.mxu0 %v1980
  %1982 = vmatprep.subr.mxu0 0.0
  %v1983 = vand.u32 %v1864, 4294901760
  %1984 = vmatpush1.msra.mxu0 %v1983
  %1985 = vmatprep.subr.mxu0 0.0
  %v1986 = vand.u32 %v1865, 4294901760
  %1987 = vmatpush1.msra.mxu0 %v1986
  %1988 = vmatprep.subr.mxu0 0.0
  %v1989 = vand.u32 %v1866, 4294901760
  %1990 = vmatpush1.msra.mxu0 %v1989
  %1991 = vmatprep.subr.mxu0 0.0
  %v1992 = vand.u32 %v1867, 4294901760
  %1993 = vmatpush1.msra.mxu0 %v1992
  %1994 = vmatprep.subr.mxu0 0.0
  %v1995 = vand.u32 %v1868, 4294901760
  %1996 = vmatpush1.msra.mxu0 %v1995
  %1997 = vmatprep.subr.mxu0 0.0
  %v1998 = vand.u32 %v1869, 4294901760
  %1999 = vmatpush1.msra.mxu0 %v1998
  %2000 = vmatprep.subr.mxu0 0.0
  %v2001 = vand.u32 %v1870, 4294901760
  %2002 = vmatpush1.msra.mxu0 %v2001
  %2003 = vmatprep.subr.mxu0 0.0
  %v2004 = vand.u32 %v1871, 4294901760
  %2005 = vmatpush1.msra.mxu0 %v2004
  %2006 = vmatprep.subr.mxu0 0.0
  %v2007 = vand.u32 %v1872, 4294901760
  %2008 = vmatpush1.msra.mxu0 %v2007
  %2009 = vmatprep.subr.mxu0 0.0
  %v2010 = vand.u32 %v1873, 4294901760
  %2011 = vmatpush1.msra.mxu0 %v2010
  %2012 = vmatprep.subr.mxu0 0.0
  %v2013 = vand.u32 %v1874, 4294901760
  %2014 = vmatpush1.msra.mxu0 %v2013
  %2015 = vmatprep.subr.mxu0 0.0
  %v2016 = vand.u32 %v1875, 4294901760
  %2017 = vmatpush1.msra.mxu0 %v2016
  %2018 = vmatprep.subr.mxu0 0.0
  %v2019 = vand.u32 %v1876, 4294901760
  %2020 = vmatpush1.msra.mxu0 %v2019
  %2021 = vmatprep.subr.mxu0 0.0
  %v2022 = vand.u32 %v1877, 4294901760
  %2023 = vmatpush1.msra.mxu0 %v2022
  %2024 = vmatprep.subr.mxu0 0.0
  %v2025 = vand.u32 %v1878, 4294901760
  %2026 = vmatpush1.msra.mxu0 %v2025
  %2027 = vmatprep.subr.mxu0 0.0
  %v2028 = vand.u32 %v1879, 4294901760
  %2029 = vmatpush1.msra.mxu0 %v2028
  %2030 = vmatprep.subr.mxu0 0.0
  %v2031 = vand.u32 %v1880, 4294901760
  %2032 = vmatpush1.msra.mxu0 %v2031
  %2033 = vmatprep.subr.mxu0 0.0
  %v2034 = vand.u32 %v1881, 4294901760
  %2035 = vmatpush1.msra.mxu0 %v2034
  %2036 = vmatprep.subr.mxu0 0.0
  %v2037 = vand.u32 %v1882, 4294901760
  %2038 = vmatpush1.msra.mxu0 %v2037
  %2039 = vmatprep.subr.mxu0 0.0
  %v2040 = vand.u32 %v1883, 4294901760
  %2041 = vmatpush1.msra.mxu0 %v2040
  %2042 = vmatprep.subr.mxu0 0.0
  %v2043 = vand.u32 %v1884, 4294901760
  %2044 = vmatpush1.msra.mxu0 %v2043
  %v2045 = vand.u32 %v1799, 4294901760
  %v2046 = vsub.f32 %v1799, %v2045
  %v2047 = vand.u32 %v2046, 4294901760
  %v2048 = vsub.f32 %v2046, %v2047
  %v2049 = vand.u32 %v2048, 4294901760
  %2050 = vmatprep.mubr.f32.mxu0 %v2049
  %v2051 = vand.u32 %v1792, 4294901760
  %v2052 = vsub.f32 %v1792, %v2051
  %v2053 = vand.u32 %v2052, 4294901760
  %v2054 = vsub.f32 %v2052, %v2053
  %v2055 = vand.u32 %v2054, 4294901760
  %2056 = vmatmul.mubr.f32.gmra.mrb[0].mxu0 %v2055
  %v2057 = vpop.f32.mrb[0].mxu0
  %v2058 = vadd.f32 0.0, %v2057
  %v2059 = vpop.f32.mrb[0].mxu0
  %v2060 = vand.u32 %v1815, 4294901760
  %v2061 = vsub.f32 %v1815, %v2060
  %v2062 = vand.u32 %v2061, 4294901760
  %v2063 = vsub.f32 %v2061, %v2062
  %v2064 = vand.u32 %v2063, 4294901760
  %2065 = vmatprep.mubr.f32.mxu0 %v2064
  %v2066 = vand.u32 %v1809, 4294901760
  %v2067 = vsub.f32 %v1809, %v2066
  %v2068 = vand.u32 %v2067, 4294901760
  %v2069 = vsub.f32 %v2067, %v2068
  %v2070 = vand.u32 %v2069, 4294901760
  %2071 = vmatmul.mubr.f32.gmra.mrb[0].mxu0 %v2070
  %v2072 = vpop.f32.mrb[0].mxu0
  %v2073 = vadd.f32 0.0, %v2072
  %v2074 = vpop.f32.mrb[0].mxu0
  %2075 = vdwg.mxu0
  %2076 = vmatprep.subr.mxu0 0.0
  %v2077 = vand.u32 %v1853, 4294901760
  %v2078 = vsub.f32 %v1853, %v2077
  %v2079 = vand.u32 %v2078, 4294901760
  %v2080 = vsub.f32 %v2078, %v2079
  %v2081 = vand.u32 %v2080, 4294901760
  %2082 = vmatpush1.msra.mxu0 %v2081
  %2083 = vmatprep.subr.mxu0 0.0
  %v2084 = vand.u32 %v1854, 4294901760
  %v2085 = vsub.f32 %v1854, %v2084
  %v2086 = vand.u32 %v2085, 4294901760
  %v2087 = vsub.f32 %v2085, %v2086
  %v2088 = vand.u32 %v2087, 4294901760
  %2089 = vmatpush1.msra.mxu0 %v2088
  %2090 = vmatprep.subr.mxu0 0.0
  %v2091 = vand.u32 %v1855, 4294901760
  %v2092 = vsub.f32 %v1855, %v2091
  %v2093 = vand.u32 %v2092, 4294901760
  %v2094 = vsub.f32 %v2092, %v2093
  %v2095 = vand.u32 %v2094, 4294901760
  %2096 = vmatpush1.msra.mxu0 %v2095
  %2097 = vmatprep.subr.mxu0 0.0
  %v2098 = vand.u32 %v1856, 4294901760
  %v2099 = vsub.f32 %v1856, %v2098
  %v2100 = vand.u32 %v2099, 4294901760
  %v2101 = vsub.f32 %v2099, %v2100
  %v2102 = vand.u32 %v2101, 4294901760
  %2103 = vmatpush1.msra.mxu0 %v2102
  %2104 = vmatprep.subr.mxu0 0.0
  %v2105 = vand.u32 %v1857, 4294901760
  %v2106 = vsub.f32 %v1857, %v2105
  %v2107 = vand.u32 %v2106, 4294901760
  %v2108 = vsub.f32 %v2106, %v2107
  %v2109 = vand.u32 %v2108, 4294901760
  %2110 = vmatpush1.msra.mxu0 %v2109
  %2111 = vmatprep.subr.mxu0 0.0
  %v2112 = vand.u32 %v1858, 4294901760
  %v2113 = vsub.f32 %v1858, %v2112
  %v2114 = vand.u32 %v2113, 4294901760
  %v2115 = vsub.f32 %v2113, %v2114
  %v2116 = vand.u32 %v2115, 4294901760
  %2117 = vmatpush1.msra.mxu0 %v2116
  %2118 = vmatprep.subr.mxu0 0.0
  %v2119 = vand.u32 %v1859, 4294901760
  %v2120 = vsub.f32 %v1859, %v2119
  %v2121 = vand.u32 %v2120, 4294901760
  %v2122 = vsub.f32 %v2120, %v2121
  %v2123 = vand.u32 %v2122, 4294901760
  %2124 = vmatpush1.msra.mxu0 %v2123
  %2125 = vmatprep.subr.mxu0 0.0
  %v2126 = vand.u32 %v1860, 4294901760
  %v2127 = vsub.f32 %v1860, %v2126
  %v2128 = vand.u32 %v2127, 4294901760
  %v2129 = vsub.f32 %v2127, %v2128
  %v2130 = vand.u32 %v2129, 4294901760
  %2131 = vmatpush1.msra.mxu0 %v2130
  %2132 = vmatprep.subr.mxu0 0.0
  %v2133 = vand.u32 %v1861, 4294901760
  %v2134 = vsub.f32 %v1861, %v2133
  %v2135 = vand.u32 %v2134, 4294901760
  %v2136 = vsub.f32 %v2134, %v2135
  %v2137 = vand.u32 %v2136, 4294901760
  %2138 = vmatpush1.msra.mxu0 %v2137
  %2139 = vmatprep.subr.mxu0 0.0
  %v2140 = vand.u32 %v1862, 4294901760
  %v2141 = vsub.f32 %v1862, %v2140
  %v2142 = vand.u32 %v2141, 4294901760
  %v2143 = vsub.f32 %v2141, %v2142
  %v2144 = vand.u32 %v2143, 4294901760
  %2145 = vmatpush1.msra.mxu0 %v2144
  %2146 = vmatprep.subr.mxu0 0.0
  %v2147 = vand.u32 %v1863, 4294901760
  %v2148 = vsub.f32 %v1863, %v2147
  %v2149 = vand.u32 %v2148, 4294901760
  %v2150 = vsub.f32 %v2148, %v2149
  %v2151 = vand.u32 %v2150, 4294901760
  %2152 = vmatpush1.msra.mxu0 %v2151
  %2153 = vmatprep.subr.mxu0 0.0
  %v2154 = vand.u32 %v1864, 4294901760
  %v2155 = vsub.f32 %v1864, %v2154
  %v2156 = vand.u32 %v2155, 4294901760
  %v2157 = vsub.f32 %v2155, %v2156
  %v2158 = vand.u32 %v2157, 4294901760
  %2159 = vmatpush1.msra.mxu0 %v2158
  %2160 = vmatprep.subr.mxu0 0.0
  %v2161 = vand.u32 %v1865, 4294901760
  %v2162 = vsub.f32 %v1865, %v2161
  %v2163 = vand.u32 %v2162, 4294901760
  %v2164 = vsub.f32 %v2162, %v2163
  %v2165 = vand.u32 %v2164, 4294901760
  %2166 = vmatpush1.msra.mxu0 %v2165
  %2167 = vmatprep.subr.mxu0 0.0
  %v2168 = vand.u32 %v1866, 4294901760
  %v2169 = vsub.f32 %v1866, %v2168
  %v2170 = vand.u32 %v2169, 4294901760
  %v2171 = vsub.f32 %v2169, %v2170
  %v2172 = vand.u32 %v2171, 4294901760
  %2173 = vmatpush1.msra.mxu0 %v2172
  %2174 = vmatprep.subr.mxu0 0.0
  %v2175 = vand.u32 %v1867, 4294901760
  %v2176 = vsub.f32 %v1867, %v2175
  %v2177 = vand.u32 %v2176, 4294901760
  %v2178 = vsub.f32 %v2176, %v2177
  %v2179 = vand.u32 %v2178, 4294901760
  %2180 = vmatpush1.msra.mxu0 %v2179
  %2181 = vmatprep.subr.mxu0 0.0
  %v2182 = vand.u32 %v1868, 4294901760
  %v2183 = vsub.f32 %v1868, %v2182
  %v2184 = vand.u32 %v2183, 4294901760
  %v2185 = vsub.f32 %v2183, %v2184
  %v2186 = vand.u32 %v2185, 4294901760
  %2187 = vmatpush1.msra.mxu0 %v2186
  %2188 = vmatprep.subr.mxu0 0.0
  %v2189 = vand.u32 %v1869, 4294901760
  %v2190 = vsub.f32 %v1869, %v2189
  %v2191 = vand.u32 %v2190, 4294901760
  %v2192 = vsub.f32 %v2190, %v2191
  %v2193 = vand.u32 %v2192, 4294901760
  %2194 = vmatpush1.msra.mxu0 %v2193
  %2195 = vmatprep.subr.mxu0 0.0
  %v2196 = vand.u32 %v1870, 4294901760
  %v2197 = vsub.f32 %v1870, %v2196
  %v2198 = vand.u32 %v2197, 4294901760
  %v2199 = vsub.f32 %v2197, %v2198
  %v2200 = vand.u32 %v2199, 4294901760
  %2201 = vmatpush1.msra.mxu0 %v2200
  %2202 = vmatprep.subr.mxu0 0.0
  %v2203 = vand.u32 %v1871, 4294901760
  %v2204 = vsub.f32 %v1871, %v2203
  %v2205 = vand.u32 %v2204, 4294901760
  %v2206 = vsub.f32 %v2204, %v2205
  %v2207 = vand.u32 %v2206, 4294901760
  %2208 = vmatpush1.msra.mxu0 %v2207
  %2209 = vmatprep.subr.mxu0 0.0
  %v2210 = vand.u32 %v1872, 4294901760
  %v2211 = vsub.f32 %v1872, %v2210
  %v2212 = vand.u32 %v2211, 4294901760
  %v2213 = vsub.f32 %v2211, %v2212
  %v2214 = vand.u32 %v2213, 4294901760
  %2215 = vmatpush1.msra.mxu0 %v2214
  %2216 = vmatprep.subr.mxu0 0.0
  %v2217 = vand.u32 %v1873, 4294901760
  %v2218 = vsub.f32 %v1873, %v2217
  %v2219 = vand.u32 %v2218, 4294901760
  %v2220 = vsub.f32 %v2218, %v2219
  %v2221 = vand.u32 %v2220, 4294901760
  %2222 = vmatpush1.msra.mxu0 %v2221
  %2223 = vmatprep.subr.mxu0 0.0
  %v2224 = vand.u32 %v1874, 4294901760
  %v2225 = vsub.f32 %v1874, %v2224
  %v2226 = vand.u32 %v2225, 4294901760
  %v2227 = vsub.f32 %v2225, %v2226
  %v2228 = vand.u32 %v2227, 4294901760
  %2229 = vmatpush1.msra.mxu0 %v2228
  %2230 = vmatprep.subr.mxu0 0.0
  %v2231 = vand.u32 %v1875, 4294901760
  %v2232 = vsub.f32 %v1875, %v2231
  %v2233 = vand.u32 %v2232, 4294901760
  %v2234 = vsub.f32 %v2232, %v2233
  %v2235 = vand.u32 %v2234, 4294901760
  %2236 = vmatpush1.msra.mxu0 %v2235
  %2237 = vmatprep.subr.mxu0 0.0
  %v2238 = vand.u32 %v1876, 4294901760
  %v2239 = vsub.f32 %v1876, %v2238
  %v2240 = vand.u32 %v2239, 4294901760
  %v2241 = vsub.f32 %v2239, %v2240
  %v2242 = vand.u32 %v2241, 4294901760
  %2243 = vmatpush1.msra.mxu0 %v2242
  %2244 = vmatprep.subr.mxu0 0.0
  %v2245 = vand.u32 %v1877, 4294901760
  %v2246 = vsub.f32 %v1877, %v2245
  %v2247 = vand.u32 %v2246, 4294901760
  %v2248 = vsub.f32 %v2246, %v2247
  %v2249 = vand.u32 %v2248, 4294901760
  %2250 = vmatpush1.msra.mxu0 %v2249
  %2251 = vmatprep.subr.mxu0 0.0
  %v2252 = vand.u32 %v1878, 4294901760
  %v2253 = vsub.f32 %v1878, %v2252
  %v2254 = vand.u32 %v2253, 4294901760
  %v2255 = vsub.f32 %v2253, %v2254
  %v2256 = vand.u32 %v2255, 4294901760
  %2257 = vmatpush1.msra.mxu0 %v2256
  %2258 = vmatprep.subr.mxu0 0.0
  %v2259 = vand.u32 %v1879, 4294901760
  %v2260 = vsub.f32 %v1879, %v2259
  %v2261 = vand.u32 %v2260, 4294901760
  %v2262 = vsub.f32 %v2260, %v2261
  %v2263 = vand.u32 %v2262, 4294901760
  %2264 = vmatpush1.msra.mxu0 %v2263
  %2265 = vmatprep.subr.mxu0 0.0
  %v2266 = vand.u32 %v1880, 4294901760
  %v2267 = vsub.f32 %v1880, %v2266
  %v2268 = vand.u32 %v2267, 4294901760
  %v2269 = vsub.f32 %v2267, %v2268
  %v2270 = vand.u32 %v2269, 4294901760
  %2271 = vmatpush1.msra.mxu0 %v2270
  %2272 = vmatprep.subr.mxu0 0.0
  %v2273 = vand.u32 %v1881, 4294901760
  %v2274 = vsub.f32 %v1881, %v2273
  %v2275 = vand.u32 %v2274, 4294901760
  %v2276 = vsub.f32 %v2274, %v2275
  %v2277 = vand.u32 %v2276, 4294901760
  %2278 = vmatpush1.msra.mxu0 %v2277
  %2279 = vmatprep.subr.mxu0 0.0
  %v2280 = vand.u32 %v1882, 4294901760
  %v2281 = vsub.f32 %v1882, %v2280
  %v2282 = vand.u32 %v2281, 4294901760
  %v2283 = vsub.f32 %v2281, %v2282
  %v2284 = vand.u32 %v2283, 4294901760
  %2285 = vmatpush1.msra.mxu0 %v2284
  %2286 = vmatprep.subr.mxu0 0.0
  %v2287 = vand.u32 %v1883, 4294901760
  %v2288 = vsub.f32 %v1883, %v2287
  %v2289 = vand.u32 %v2288, 4294901760
  %v2290 = vsub.f32 %v2288, %v2289
  %v2291 = vand.u32 %v2290, 4294901760
  %2292 = vmatpush1.msra.mxu0 %v2291
  %2293 = vmatprep.subr.mxu0 0.0
  %v2294 = vand.u32 %v1884, 4294901760
  %v2295 = vsub.f32 %v1884, %v2294
  %v2296 = vand.u32 %v2295, 4294901760
  %v2297 = vsub.f32 %v2295, %v2296
  %v2298 = vand.u32 %v2297, 4294901760
  %2299 = vmatpush1.msra.mxu0 %v2298
  %v2300 = vand.u32 %v1799, 4294901760
  %2301 = vmatprep.mubr.f32.mxu0 %v2300
  %v2302 = vand.u32 %v1792, 4294901760
  %2303 = vmatmul.mubr.f32.gmra.mrb[0].mxu0 %v2302
  %v2304 = vpop.f32.mrb[0].mxu0
  %v2305 = vadd.f32 %v2058, %v2304
  %v2306 = vpop.f32.mrb[0].mxu0
  %v2307 = vand.u32 %v1815, 4294901760
  %2308 = vmatprep.mubr.f32.mxu0 %v2307
  %v2309 = vand.u32 %v1809, 4294901760
  %2310 = vmatmul.mubr.f32.gmra.mrb[0].mxu0 %v2309
  %v2311 = vpop.f32.mrb[0].mxu0
  %v2312 = vadd.f32 %v2073, %v2311
  %v2313 = vpop.f32.mrb[0].mxu0
  %2314 = vdwg.mxu0
  %2315 = vmatprep.subr.mxu0 0.0
  %v2316 = vand.u32 %v1853, 4294901760
  %v2317 = vsub.f32 %v1853, %v2316
  %2318 = vmatpush1.msra.mxu0 %v2317
  %2319 = vmatprep.subr.mxu0 0.0
  %v2320 = vand.u32 %v1854, 4294901760
  %v2321 = vsub.f32 %v1854, %v2320
  %2322 = vmatpush1.msra.mxu0 %v2321
  %2323 = vmatprep.subr.mxu0 0.0
  %v2324 = vand.u32 %v1855, 4294901760
  %v2325 = vsub.f32 %v1855, %v2324
  %2326 = vmatpush1.msra.mxu0 %v2325
  %2327 = vmatprep.subr.mxu0 0.0
  %v2328 = vand.u32 %v1856, 4294901760
  %v2329 = vsub.f32 %v1856, %v2328
  %2330 = vmatpush1.msra.mxu0 %v2329
  %2331 = vmatprep.subr.mxu0 0.0
  %v2332 = vand.u32 %v1857, 4294901760
  %v2333 = vsub.f32 %v1857, %v2332
  %2334 = vmatpush1.msra.mxu0 %v2333
  %2335 = vmatprep.subr.mxu0 0.0
  %v2336 = vand.u32 %v1858, 4294901760
  %v2337 = vsub.f32 %v1858, %v2336
  %2338 = vmatpush1.msra.mxu0 %v2337
  %2339 = vmatprep.subr.mxu0 0.0
  %v2340 = vand.u32 %v1859, 4294901760
  %v2341 = vsub.f32 %v1859, %v2340
  %2342 = vmatpush1.msra.mxu0 %v2341
  %2343 = vmatprep.subr.mxu0 0.0
  %v2344 = vand.u32 %v1860, 4294901760
  %v2345 = vsub.f32 %v1860, %v2344
  %2346 = vmatpush1.msra.mxu0 %v2345
  %2347 = vmatprep.subr.mxu0 0.0
  %v2348 = vand.u32 %v1861, 4294901760
  %v2349 = vsub.f32 %v1861, %v2348
  %2350 = vmatpush1.msra.mxu0 %v2349
  %2351 = vmatprep.subr.mxu0 0.0
  %v2352 = vand.u32 %v1862, 4294901760
  %v2353 = vsub.f32 %v1862, %v2352
  %2354 = vmatpush1.msra.mxu0 %v2353
  %2355 = vmatprep.subr.mxu0 0.0
  %v2356 = vand.u32 %v1863, 4294901760
  %v2357 = vsub.f32 %v1863, %v2356
  %2358 = vmatpush1.msra.mxu0 %v2357
  %2359 = vmatprep.subr.mxu0 0.0
  %v2360 = vand.u32 %v1864, 4294901760
  %v2361 = vsub.f32 %v1864, %v2360
  %2362 = vmatpush1.msra.mxu0 %v2361
  %2363 = vmatprep.subr.mxu0 0.0
  %v2364 = vand.u32 %v1865, 4294901760
  %v2365 = vsub.f32 %v1865, %v2364
  %2366 = vmatpush1.msra.mxu0 %v2365
  %2367 = vmatprep.subr.mxu0 0.0
  %v2368 = vand.u32 %v1866, 4294901760
  %v2369 = vsub.f32 %v1866, %v2368
  %2370 = vmatpush1.msra.mxu0 %v2369
  %2371 = vmatprep.subr.mxu0 0.0
  %v2372 = vand.u32 %v1867, 4294901760
  %v2373 = vsub.f32 %v1867, %v2372
  %2374 = vmatpush1.msra.mxu0 %v2373
  %2375 = vmatprep.subr.mxu0 0.0
  %v2376 = vand.u32 %v1868, 4294901760
  %v2377 = vsub.f32 %v1868, %v2376
  %2378 = vmatpush1.msra.mxu0 %v2377
  %2379 = vmatprep.subr.mxu0 0.0
  %v2380 = vand.u32 %v1869, 4294901760
  %v2381 = vsub.f32 %v1869, %v2380
  %2382 = vmatpush1.msra.mxu0 %v2381
  %2383 = vmatprep.subr.mxu0 0.0
  %v2384 = vand.u32 %v1870, 4294901760
  %v2385 = vsub.f32 %v1870, %v2384
  %2386 = vmatpush1.msra.mxu0 %v2385
  %2387 = vmatprep.subr.mxu0 0.0
  %v2388 = vand.u32 %v1871, 4294901760
  %v2389 = vsub.f32 %v1871, %v2388
  %2390 = vmatpush1.msra.mxu0 %v2389
  %2391 = vmatprep.subr.mxu0 0.0
  %v2392 = vand.u32 %v1872, 4294901760
  %v2393 = vsub.f32 %v1872, %v2392
  %2394 = vmatpush1.msra.mxu0 %v2393
  %2395 = vmatprep.subr.mxu0 0.0
  %v2396 = vand.u32 %v1873, 4294901760
  %v2397 = vsub.f32 %v1873, %v2396
  %2398 = vmatpush1.msra.mxu0 %v2397
  %2399 = vmatprep.subr.mxu0 0.0
  %v2400 = vand.u32 %v1874, 4294901760
  %v2401 = vsub.f32 %v1874, %v2400
  %2402 = vmatpush1.msra.mxu0 %v2401
  %2403 = vmatprep.subr.mxu0 0.0
  %v2404 = vand.u32 %v1875, 4294901760
  %v2405 = vsub.f32 %v1875, %v2404
  %2406 = vmatpush1.msra.mxu0 %v2405
  %2407 = vmatprep.subr.mxu0 0.0
  %v2408 = vand.u32 %v1876, 4294901760
  %v2409 = vsub.f32 %v1876, %v2408
  %2410 = vmatpush1.msra.mxu0 %v2409
  %2411 = vmatprep.subr.mxu0 0.0
  %v2412 = vand.u32 %v1877, 4294901760
  %v2413 = vsub.f32 %v1877, %v2412
  %2414 = vmatpush1.msra.mxu0 %v2413
  %2415 = vmatprep.subr.mxu0 0.0
  %v2416 = vand.u32 %v1878, 4294901760
  %v2417 = vsub.f32 %v1878, %v2416
  %2418 = vmatpush1.msra.mxu0 %v2417
  %2419 = vmatprep.subr.mxu0 0.0
  %v2420 = vand.u32 %v1879, 4294901760
  %v2421 = vsub.f32 %v1879, %v2420
  %2422 = vmatpush1.msra.mxu0 %v2421
  %2423 = vmatprep.subr.mxu0 0.0
  %v2424 = vand.u32 %v1880, 4294901760
  %v2425 = vsub.f32 %v1880, %v2424
  %2426 = vmatpush1.msra.mxu0 %v2425
  %2427 = vmatprep.subr.mxu0 0.0
  %v2428 = vand.u32 %v1881, 4294901760
  %v2429 = vsub.f32 %v1881, %v2428
  %2430 = vmatpush1.msra.mxu0 %v2429
  %2431 = vmatprep.subr.mxu0 0.0
  %v2432 = vand.u32 %v1882, 4294901760
  %v2433 = vsub.f32 %v1882, %v2432
  %2434 = vmatpush1.msra.mxu0 %v2433
  %2435 = vmatprep.subr.mxu0 0.0
  %v2436 = vand.u32 %v1883, 4294901760
  %v2437 = vsub.f32 %v1883, %v2436
  %2438 = vmatpush1.msra.mxu0 %v2437
  %2439 = vmatprep.subr.mxu0 0.0
  %v2440 = vand.u32 %v1884, 4294901760
  %v2441 = vsub.f32 %v1884, %v2440
  %2442 = vmatpush1.msra.mxu0 %v2441
  %v2443 = vand.u32 %v1799, 4294901760
  %v2444 = vsub.f32 %v1799, %v2443
  %2445 = vmatprep.mubr.f32.mxu0 %v2444
  %v2446 = vand.u32 %v1792, 4294901760
  %v2447 = vsub.f32 %v1792, %v2446
  %2448 = vmatmul.mubr.f32.gmra.mrb[0].mxu0 %v2447
  %v2449 = vpop.f32.mrb[0].mxu0
  %v2450 = vadd.f32 %v2305, %v2449
  %v2451 = vpop.f32.mrb[0].mxu0
  %v2452 = vand.u32 %v1815, 4294901760
  %v2453 = vsub.f32 %v1815, %v2452
  %2454 = vmatprep.mubr.f32.mxu0 %v2453
  %v2455 = vand.u32 %v1809, 4294901760
  %v2456 = vsub.f32 %v1809, %v2455
  %2457 = vmatmul.mubr.f32.gmra.mrb[0].mxu0 %v2456
  %v2458 = vpop.f32.mrb[0].mxu0
  %v2459 = vadd.f32 %v2312, %v2458
  %v2460 = vpop.f32.mrb[0].mxu0
  %2461 = vdwg.mxu0
  %2462 = vmatprep.subr.mxu0 0.0
  %v2463 = vand.u32 %v1853, 4294901760
  %2464 = vmatpush1.msra.mxu0 %v2463
  %2465 = vmatprep.subr.mxu0 0.0
  %v2466 = vand.u32 %v1854, 4294901760
  %2467 = vmatpush1.msra.mxu0 %v2466
  %2468 = vmatprep.subr.mxu0 0.0
  %v2469 = vand.u32 %v1855, 4294901760
  %2470 = vmatpush1.msra.mxu0 %v2469
  %2471 = vmatprep.subr.mxu0 0.0
  %v2472 = vand.u32 %v1856, 4294901760
  %2473 = vmatpush1.msra.mxu0 %v2472
  %2474 = vmatprep.subr.mxu0 0.0
  %v2475 = vand.u32 %v1857, 4294901760
  %2476 = vmatpush1.msra.mxu0 %v2475
  %2477 = vmatprep.subr.mxu0 0.0
  %v2478 = vand.u32 %v1858, 4294901760
  %2479 = vmatpush1.msra.mxu0 %v2478
  %2480 = vmatprep.subr.mxu0 0.0
  %v2481 = vand.u32 %v1859, 4294901760
  %2482 = vmatpush1.msra.mxu0 %v2481
  %2483 = vmatprep.subr.mxu0 0.0
  %v2484 = vand.u32 %v1860, 4294901760
  %2485 = vmatpush1.msra.mxu0 %v2484
  %2486 = vmatprep.subr.mxu0 0.0
  %v2487 = vand.u32 %v1861, 4294901760
  %2488 = vmatpush1.msra.mxu0 %v2487
  %2489 = vmatprep.subr.mxu0 0.0
  %v2490 = vand.u32 %v1862, 4294901760
  %2491 = vmatpush1.msra.mxu0 %v2490
  %2492 = vmatprep.subr.mxu0 0.0
  %v2493 = vand.u32 %v1863, 4294901760
  %2494 = vmatpush1.msra.mxu0 %v2493
  %2495 = vmatprep.subr.mxu0 0.0
  %v2496 = vand.u32 %v1864, 4294901760
  %2497 = vmatpush1.msra.mxu0 %v2496
  %2498 = vmatprep.subr.mxu0 0.0
  %v2499 = vand.u32 %v1865, 4294901760
  %2500 = vmatpush1.msra.mxu0 %v2499
  %2501 = vmatprep.subr.mxu0 0.0
  %v2502 = vand.u32 %v1866, 4294901760
  %2503 = vmatpush1.msra.mxu0 %v2502
  %2504 = vmatprep.subr.mxu0 0.0
  %v2505 = vand.u32 %v1867, 4294901760
  %2506 = vmatpush1.msra.mxu0 %v2505
  %2507 = vmatprep.subr.mxu0 0.0
  %v2508 = vand.u32 %v1868, 4294901760
  %2509 = vmatpush1.msra.mxu0 %v2508
  %2510 = vmatprep.subr.mxu0 0.0
  %v2511 = vand.u32 %v1869, 4294901760
  %2512 = vmatpush1.msra.mxu0 %v2511
  %2513 = vmatprep.subr.mxu0 0.0
  %v2514 = vand.u32 %v1870, 4294901760
  %2515 = vmatpush1.msra.mxu0 %v2514
  %2516 = vmatprep.subr.mxu0 0.0
  %v2517 = vand.u32 %v1871, 4294901760
  %2518 = vmatpush1.msra.mxu0 %v2517
  %2519 = vmatprep.subr.mxu0 0.0
  %v2520 = vand.u32 %v1872, 4294901760
  %2521 = vmatpush1.msra.mxu0 %v2520
  %2522 = vmatprep.subr.mxu0 0.0
  %v2523 = vand.u32 %v1873, 4294901760
  %2524 = vmatpush1.msra.mxu0 %v2523
  %2525 = vmatprep.subr.mxu0 0.0
  %v2526 = vand.u32 %v1874, 4294901760
  %2527 = vmatpush1.msra.mxu0 %v2526
  %2528 = vmatprep.subr.mxu0 0.0
  %v2529 = vand.u32 %v1875, 4294901760
  %2530 = vmatpush1.msra.mxu0 %v2529
  %2531 = vmatprep.subr.mxu0 0.0
  %v2532 = vand.u32 %v1876, 4294901760
  %2533 = vmatpush1.msra.mxu0 %v2532
  %2534 = vmatprep.subr.mxu0 0.0
  %v2535 = vand.u32 %v1877, 4294901760
  %2536 = vmatpush1.msra.mxu0 %v2535
  %2537 = vmatprep.subr.mxu0 0.0
  %v2538 = vand.u32 %v1878, 4294901760
  %2539 = vmatpush1.msra.mxu0 %v2538
  %2540 = vmatprep.subr.mxu0 0.0
  %v2541 = vand.u32 %v1879, 4294901760
  %2542 = vmatpush1.msra.mxu0 %v2541
  %2543 = vmatprep.subr.mxu0 0.0
  %v2544 = vand.u32 %v1880, 4294901760
  %2545 = vmatpush1.msra.mxu0 %v2544
  %2546 = vmatprep.subr.mxu0 0.0
  %v2547 = vand.u32 %v1881, 4294901760
  %2548 = vmatpush1.msra.mxu0 %v2547
  %2549 = vmatprep.subr.mxu0 0.0
  %v2550 = vand.u32 %v1882, 4294901760
  %2551 = vmatpush1.msra.mxu0 %v2550
  %2552 = vmatprep.subr.mxu0 0.0
  %v2553 = vand.u32 %v1883, 4294901760
  %2554 = vmatpush1.msra.mxu0 %v2553
  %2555 = vmatprep.subr.mxu0 0.0
  %v2556 = vand.u32 %v1884, 4294901760
  %2557 = vmatpush1.msra.mxu0 %v2556
  %v2558 = vand.u32 %v1799, 4294901760
  %v2559 = vsub.f32 %v1799, %v2558
  %v2560 = vand.u32 %v2559, 4294901760
  %2561 = vmatprep.mubr.f32.mxu0 %v2560
  %v2562 = vand.u32 %v1792, 4294901760
  %v2563 = vsub.f32 %v1792, %v2562
  %v2564 = vand.u32 %v2563, 4294901760
  %2565 = vmatmul.mubr.f32.gmra.mrb[0].mxu0 %v2564
  %v2566 = vpop.f32.mrb[0].mxu0
  %v2567 = vadd.f32 %v2450, %v2566
  %v2568 = vpop.f32.mrb[0].mxu0
  %v2569 = vand.u32 %v1815, 4294901760
  %v2570 = vsub.f32 %v1815, %v2569
  %v2571 = vand.u32 %v2570, 4294901760
  %2572 = vmatprep.mubr.f32.mxu0 %v2571
  %v2573 = vand.u32 %v1809, 4294901760
  %v2574 = vsub.f32 %v1809, %v2573
  %v2575 = vand.u32 %v2574, 4294901760
  %2576 = vmatmul.mubr.f32.gmra.mrb[0].mxu0 %v2575
  %v2577 = vpop.f32.mrb[0].mxu0
  %v2578 = vadd.f32 %v2459, %v2577
  %v2579 = vpop.f32.mrb[0].mxu0
  %2580 = vdwg.mxu0
  %2581 = vmatprep.subr.mxu0 0.0
  %v2582 = vand.u32 %v1853, 4294901760
  %v2583 = vsub.f32 %v1853, %v2582
  %v2584 = vand.u32 %v2583, 4294901760
  %2585 = vmatpush1.msra.mxu0 %v2584
  %2586 = vmatprep.subr.mxu0 0.0
  %v2587 = vand.u32 %v1854, 4294901760
  %v2588 = vsub.f32 %v1854, %v2587
  %v2589 = vand.u32 %v2588, 4294901760
  %2590 = vmatpush1.msra.mxu0 %v2589
  %2591 = vmatprep.subr.mxu0 0.0
  %v2592 = vand.u32 %v1855, 4294901760
  %v2593 = vsub.f32 %v1855, %v2592
  %v2594 = vand.u32 %v2593, 4294901760
  %2595 = vmatpush1.msra.mxu0 %v2594
  %2596 = vmatprep.subr.mxu0 0.0
  %v2597 = vand.u32 %v1856, 4294901760
  %v2598 = vsub.f32 %v1856, %v2597
  %v2599 = vand.u32 %v2598, 4294901760
  %2600 = vmatpush1.msra.mxu0 %v2599
  %2601 = vmatprep.subr.mxu0 0.0
  %v2602 = vand.u32 %v1857, 4294901760
  %v2603 = vsub.f32 %v1857, %v2602
  %v2604 = vand.u32 %v2603, 4294901760
  %2605 = vmatpush1.msra.mxu0 %v2604
  %2606 = vmatprep.subr.mxu0 0.0
  %v2607 = vand.u32 %v1858, 4294901760
  %v2608 = vsub.f32 %v1858, %v2607
  %v2609 = vand.u32 %v2608, 4294901760
  %2610 = vmatpush1.msra.mxu0 %v2609
  %2611 = vmatprep.subr.mxu0 0.0
  %v2612 = vand.u32 %v1859, 4294901760
  %v2613 = vsub.f32 %v1859, %v2612
  %v2614 = vand.u32 %v2613, 4294901760
  %2615 = vmatpush1.msra.mxu0 %v2614
  %2616 = vmatprep.subr.mxu0 0.0
  %v2617 = vand.u32 %v1860, 4294901760
  %v2618 = vsub.f32 %v1860, %v2617
  %v2619 = vand.u32 %v2618, 4294901760
  %2620 = vmatpush1.msra.mxu0 %v2619
  %2621 = vmatprep.subr.mxu0 0.0
  %v2622 = vand.u32 %v1861, 4294901760
  %v2623 = vsub.f32 %v1861, %v2622
  %v2624 = vand.u32 %v2623, 4294901760
  %2625 = vmatpush1.msra.mxu0 %v2624
  %2626 = vmatprep.subr.mxu0 0.0
  %v2627 = vand.u32 %v1862, 4294901760
  %v2628 = vsub.f32 %v1862, %v2627
  %v2629 = vand.u32 %v2628, 4294901760
  %2630 = vmatpush1.msra.mxu0 %v2629
  %2631 = vmatprep.subr.mxu0 0.0
  %v2632 = vand.u32 %v1863, 4294901760
  %v2633 = vsub.f32 %v1863, %v2632
  %v2634 = vand.u32 %v2633, 4294901760
  %2635 = vmatpush1.msra.mxu0 %v2634
  %2636 = vmatprep.subr.mxu0 0.0
  %v2637 = vand.u32 %v1864, 4294901760
  %v2638 = vsub.f32 %v1864, %v2637
  %v2639 = vand.u32 %v2638, 4294901760
  %2640 = vmatpush1.msra.mxu0 %v2639
  %2641 = vmatprep.subr.mxu0 0.0
  %v2642 = vand.u32 %v1865, 4294901760
  %v2643 = vsub.f32 %v1865, %v2642
  %v2644 = vand.u32 %v2643, 4294901760
  %2645 = vmatpush1.msra.mxu0 %v2644
  %2646 = vmatprep.subr.mxu0 0.0
  %v2647 = vand.u32 %v1866, 4294901760
  %v2648 = vsub.f32 %v1866, %v2647
  %v2649 = vand.u32 %v2648, 4294901760
  %2650 = vmatpush1.msra.mxu0 %v2649
  %2651 = vmatprep.subr.mxu0 0.0
  %v2652 = vand.u32 %v1867, 4294901760
  %v2653 = vsub.f32 %v1867, %v2652
  %v2654 = vand.u32 %v2653, 4294901760
  %2655 = vmatpush1.msra.mxu0 %v2654
  %2656 = vmatprep.subr.mxu0 0.0
  %v2657 = vand.u32 %v1868, 4294901760
  %v2658 = vsub.f32 %v1868, %v2657
  %v2659 = vand.u32 %v2658, 4294901760
  %2660 = vmatpush1.msra.mxu0 %v2659
  %2661 = vmatprep.subr.mxu0 0.0
  %v2662 = vand.u32 %v1869, 4294901760
  %v2663 = vsub.f32 %v1869, %v2662
  %v2664 = vand.u32 %v2663, 4294901760
  %2665 = vmatpush1.msra.mxu0 %v2664
  %2666 = vmatprep.subr.mxu0 0.0
  %v2667 = vand.u32 %v1870, 4294901760
  %v2668 = vsub.f32 %v1870, %v2667
  %v2669 = vand.u32 %v2668, 4294901760
  %2670 = vmatpush1.msra.mxu0 %v2669
  %2671 = vmatprep.subr.mxu0 0.0
  %v2672 = vand.u32 %v1871, 4294901760
  %v2673 = vsub.f32 %v1871, %v2672
  %v2674 = vand.u32 %v2673, 4294901760
  %2675 = vmatpush1.msra.mxu0 %v2674
  %2676 = vmatprep.subr.mxu0 0.0
  %v2677 = vand.u32 %v1872, 4294901760
  %v2678 = vsub.f32 %v1872, %v2677
  %v2679 = vand.u32 %v2678, 4294901760
  %2680 = vmatpush1.msra.mxu0 %v2679
  %2681 = vmatprep.subr.mxu0 0.0
  %v2682 = vand.u32 %v1873, 4294901760
  %v2683 = vsub.f32 %v1873, %v2682
  %v2684 = vand.u32 %v2683, 4294901760
  %2685 = vmatpush1.msra.mxu0 %v2684
  %2686 = vmatprep.subr.mxu0 0.0
  %v2687 = vand.u32 %v1874, 4294901760
  %v2688 = vsub.f32 %v1874, %v2687
  %v2689 = vand.u32 %v2688, 4294901760
  %2690 = vmatpush1.msra.mxu0 %v2689
  %2691 = vmatprep.subr.mxu0 0.0
  %v2692 = vand.u32 %v1875, 4294901760
  %v2693 = vsub.f32 %v1875, %v2692
  %v2694 = vand.u32 %v2693, 4294901760
  %2695 = vmatpush1.msra.mxu0 %v2694
  %2696 = vmatprep.subr.mxu0 0.0
  %v2697 = vand.u32 %v1876, 4294901760
  %v2698 = vsub.f32 %v1876, %v2697
  %v2699 = vand.u32 %v2698, 4294901760
  %2700 = vmatpush1.msra.mxu0 %v2699
  %2701 = vmatprep.subr.mxu0 0.0
  %v2702 = vand.u32 %v1877, 4294901760
  %v2703 = vsub.f32 %v1877, %v2702
  %v2704 = vand.u32 %v2703, 4294901760
  %2705 = vmatpush1.msra.mxu0 %v2704
  %2706 = vmatprep.subr.mxu0 0.0
  %v2707 = vand.u32 %v1878, 4294901760
  %v2708 = vsub.f32 %v1878, %v2707
  %v2709 = vand.u32 %v2708, 4294901760
  %2710 = vmatpush1.msra.mxu0 %v2709
  %2711 = vmatprep.subr.mxu0 0.0
  %v2712 = vand.u32 %v1879, 4294901760
  %v2713 = vsub.f32 %v1879, %v2712
  %v2714 = vand.u32 %v2713, 4294901760
  %2715 = vmatpush1.msra.mxu0 %v2714
  %2716 = vmatprep.subr.mxu0 0.0
  %v2717 = vand.u32 %v1880, 4294901760
  %v2718 = vsub.f32 %v1880, %v2717
  %v2719 = vand.u32 %v2718, 4294901760
  %2720 = vmatpush1.msra.mxu0 %v2719
  %2721 = vmatprep.subr.mxu0 0.0
  %v2722 = vand.u32 %v1881, 4294901760
  %v2723 = vsub.f32 %v1881, %v2722
  %v2724 = vand.u32 %v2723, 4294901760
  %2725 = vmatpush1.msra.mxu0 %v2724
  %2726 = vmatprep.subr.mxu0 0.0
  %v2727 = vand.u32 %v1882, 4294901760
  %v2728 = vsub.f32 %v1882, %v2727
  %v2729 = vand.u32 %v2728, 4294901760
  %2730 = vmatpush1.msra.mxu0 %v2729
  %2731 = vmatprep.subr.mxu0 0.0
  %v2732 = vand.u32 %v1883, 4294901760
  %v2733 = vsub.f32 %v1883, %v2732
  %v2734 = vand.u32 %v2733, 4294901760
  %2735 = vmatpush1.msra.mxu0 %v2734
  %2736 = vmatprep.subr.mxu0 0.0
  %v2737 = vand.u32 %v1884, 4294901760
  %v2738 = vsub.f32 %v1884, %v2737
  %v2739 = vand.u32 %v2738, 4294901760
  %2740 = vmatpush1.msra.mxu0 %v2739
  %v2741 = vand.u32 %v1799, 4294901760
  %2742 = vmatprep.mubr.f32.mxu0 %v2741
  %v2743 = vand.u32 %v1792, 4294901760
  %2744 = vmatmul.mubr.f32.gmra.mrb[0].mxu0 %v2743
  %v2745 = vpop.f32.mrb[0].mxu0
  %v2746 = vadd.f32 %v2567, %v2745
  %v2747 = vpop.f32.mrb[0].mxu0
  %v2748 = vand.u32 %v1815, 4294901760
  %2749 = vmatprep.mubr.f32.mxu0 %v2748
  %v2750 = vand.u32 %v1809, 4294901760
  %2751 = vmatmul.mubr.f32.gmra.mrb[0].mxu0 %v2750
  %v2752 = vpop.f32.mrb[0].mxu0
  %v2753 = vadd.f32 %v2578, %v2752
  %v2754 = vpop.f32.mrb[0].mxu0
  %2755 = vdwg.mxu0
  %2756 = vmatprep.subr.mxu0 0.0
  %v2757 = vand.u32 %v1853, 4294901760
  %2758 = vmatpush1.msra.mxu0 %v2757
  %2759 = vmatprep.subr.mxu0 0.0
  %v2760 = vand.u32 %v1854, 4294901760
  %2761 = vmatpush1.msra.mxu0 %v2760
  %2762 = vmatprep.subr.mxu0 0.0
  %v2763 = vand.u32 %v1855, 4294901760
  %2764 = vmatpush1.msra.mxu0 %v2763
  %2765 = vmatprep.subr.mxu0 0.0
  %v2766 = vand.u32 %v1856, 4294901760
  %2767 = vmatpush1.msra.mxu0 %v2766
  %2768 = vmatprep.subr.mxu0 0.0
  %v2769 = vand.u32 %v1857, 4294901760
  %2770 = vmatpush1.msra.mxu0 %v2769
  %2771 = vmatprep.subr.mxu0 0.0
  %v2772 = vand.u32 %v1858, 4294901760
  %2773 = vmatpush1.msra.mxu0 %v2772
  %2774 = vmatprep.subr.mxu0 0.0
  %v2775 = vand.u32 %v1859, 4294901760
  %2776 = vmatpush1.msra.mxu0 %v2775
  %2777 = vmatprep.subr.mxu0 0.0
  %v2778 = vand.u32 %v1860, 4294901760
  %2779 = vmatpush1.msra.mxu0 %v2778
  %2780 = vmatprep.subr.mxu0 0.0
  %v2781 = vand.u32 %v1861, 4294901760
  %2782 = vmatpush1.msra.mxu0 %v2781
  %2783 = vmatprep.subr.mxu0 0.0
  %v2784 = vand.u32 %v1862, 4294901760
  %2785 = vmatpush1.msra.mxu0 %v2784
  %2786 = vmatprep.subr.mxu0 0.0
  %v2787 = vand.u32 %v1863, 4294901760
  %2788 = vmatpush1.msra.mxu0 %v2787
  %2789 = vmatprep.subr.mxu0 0.0
  %v2790 = vand.u32 %v1864, 4294901760
  %2791 = vmatpush1.msra.mxu0 %v2790
  %2792 = vmatprep.subr.mxu0 0.0
  %v2793 = vand.u32 %v1865, 4294901760
  %2794 = vmatpush1.msra.mxu0 %v2793
  %2795 = vmatprep.subr.mxu0 0.0
  %v2796 = vand.u32 %v1866, 4294901760
  %2797 = vmatpush1.msra.mxu0 %v2796
  %2798 = vmatprep.subr.mxu0 0.0
  %v2799 = vand.u32 %v1867, 4294901760
  %2800 = vmatpush1.msra.mxu0 %v2799
  %2801 = vmatprep.subr.mxu0 0.0
  %v2802 = vand.u32 %v1868, 4294901760
  %2803 = vmatpush1.msra.mxu0 %v2802
  %2804 = vmatprep.subr.mxu0 0.0
  %v2805 = vand.u32 %v1869, 4294901760
  %2806 = vmatpush1.msra.mxu0 %v2805
  %2807 = vmatprep.subr.mxu0 0.0
  %v2808 = vand.u32 %v1870, 4294901760
  %2809 = vmatpush1.msra.mxu0 %v2808
  %2810 = vmatprep.subr.mxu0 0.0
  %v2811 = vand.u32 %v1871, 4294901760
  %2812 = vmatpush1.msra.mxu0 %v2811
  %2813 = vmatprep.subr.mxu0 0.0
  %v2814 = vand.u32 %v1872, 4294901760
  %2815 = vmatpush1.msra.mxu0 %v2814
  %2816 = vmatprep.subr.mxu0 0.0
  %v2817 = vand.u32 %v1873, 4294901760
  %2818 = vmatpush1.msra.mxu0 %v2817
  %2819 = vmatprep.subr.mxu0 0.0
  %v2820 = vand.u32 %v1874, 4294901760
  %2821 = vmatpush1.msra.mxu0 %v2820
  %2822 = vmatprep.subr.mxu0 0.0
  %v2823 = vand.u32 %v1875, 4294901760
  %2824 = vmatpush1.msra.mxu0 %v2823
  %2825 = vmatprep.subr.mxu0 0.0
  %v2826 = vand.u32 %v1876, 4294901760
  %2827 = vmatpush1.msra.mxu0 %v2826
  %2828 = vmatprep.subr.mxu0 0.0
  %v2829 = vand.u32 %v1877, 4294901760
  %2830 = vmatpush1.msra.mxu0 %v2829
  %2831 = vmatprep.subr.mxu0 0.0
  %v2832 = vand.u32 %v1878, 4294901760
  %2833 = vmatpush1.msra.mxu0 %v2832
  %2834 = vmatprep.subr.mxu0 0.0
  %v2835 = vand.u32 %v1879, 4294901760
  %2836 = vmatpush1.msra.mxu0 %v2835
  %2837 = vmatprep.subr.mxu0 0.0
  %v2838 = vand.u32 %v1880, 4294901760
  %2839 = vmatpush1.msra.mxu0 %v2838
  %2840 = vmatprep.subr.mxu0 0.0
  %v2841 = vand.u32 %v1881, 4294901760
  %2842 = vmatpush1.msra.mxu0 %v2841
  %2843 = vmatprep.subr.mxu0 0.0
  %v2844 = vand.u32 %v1882, 4294901760
  %2845 = vmatpush1.msra.mxu0 %v2844
  %2846 = vmatprep.subr.mxu0 0.0
  %v2847 = vand.u32 %v1883, 4294901760
  %2848 = vmatpush1.msra.mxu0 %v2847
  %2849 = vmatprep.subr.mxu0 0.0
  %v2850 = vand.u32 %v1884, 4294901760
  %2851 = vmatpush1.msra.mxu0 %v2850
  %v2852 = vand.u32 %v1799, 4294901760
  %2853 = vmatprep.mubr.f32.mxu0 %v2852
  %v2854 = vand.u32 %v1792, 4294901760
  %2855 = vmatmul.mubr.f32.gmra.mrb[0].mxu0 %v2854
  %v2856 = vpop.f32.mrb[0].mxu0
  %v2857 = vadd.f32 %v2746, %v2856
  %v2858 = vpop.f32.mrb[0].mxu0
  %v2859 = vand.u32 %v1815, 4294901760
  %2860 = vmatprep.mubr.f32.mxu0 %v2859
  %v2861 = vand.u32 %v1809, 4294901760
  %2862 = vmatmul.mubr.f32.gmra.mrb[0].mxu0 %v2861
  %v2863 = vpop.f32.mrb[0].mxu0
  %v2864 = vadd.f32 %v2753, %v2863
  %v2865 = vpop.f32.mrb[0].mxu0
  %2866 = vdwg.mxu0
  %2867 = vmatprep.subr.mxu0 0.0
  %v2868 = vand.u32 %v1885, 4294901760
  %2869 = vmatpush1.msra.mxu0 %v2868
  %2870 = vmatprep.subr.mxu0 0.0
  %v2871 = vand.u32 %v1886, 4294901760
  %2872 = vmatpush1.msra.mxu0 %v2871
  %2873 = vmatprep.subr.mxu0 0.0
  %v2874 = vand.u32 %v1887, 4294901760
  %2875 = vmatpush1.msra.mxu0 %v2874
  %2876 = vmatprep.subr.mxu0 0.0
  %v2877 = vand.u32 %v1888, 4294901760
  %2878 = vmatpush1.msra.mxu0 %v2877
  %2879 = vmatprep.subr.mxu0 0.0
  %v2880 = vand.u32 %v1889, 4294901760
  %2881 = vmatpush1.msra.mxu0 %v2880
  %2882 = vmatprep.subr.mxu0 0.0
  %v2883 = vand.u32 %v1890, 4294901760
  %2884 = vmatpush1.msra.mxu0 %v2883
  %2885 = vmatprep.subr.mxu0 0.0
  %v2886 = vand.u32 %v1891, 4294901760
  %2887 = vmatpush1.msra.mxu0 %v2886
  %2888 = vmatprep.subr.mxu0 0.0
  %v2889 = vand.u32 %v1892, 4294901760
  %2890 = vmatpush1.msra.mxu0 %v2889
  %2891 = vmatprep.subr.mxu0 0.0
  %v2892 = vand.u32 %v1893, 4294901760
  %2893 = vmatpush1.msra.mxu0 %v2892
  %2894 = vmatprep.subr.mxu0 0.0
  %v2895 = vand.u32 %v1894, 4294901760
  %2896 = vmatpush1.msra.mxu0 %v2895
  %2897 = vmatprep.subr.mxu0 0.0
  %v2898 = vand.u32 %v1895, 4294901760
  %2899 = vmatpush1.msra.mxu0 %v2898
  %2900 = vmatprep.subr.mxu0 0.0
  %v2901 = vand.u32 %v1896, 4294901760
  %2902 = vmatpush1.msra.mxu0 %v2901
  %2903 = vmatprep.subr.mxu0 0.0
  %v2904 = vand.u32 %v1897, 4294901760
  %2905 = vmatpush1.msra.mxu0 %v2904
  %2906 = vmatprep.subr.mxu0 0.0
  %v2907 = vand.u32 %v1898, 4294901760
  %2908 = vmatpush1.msra.mxu0 %v2907
  %2909 = vmatprep.subr.mxu0 0.0
  %v2910 = vand.u32 %v1899, 4294901760
  %2911 = vmatpush1.msra.mxu0 %v2910
  %2912 = vmatprep.subr.mxu0 0.0
  %v2913 = vand.u32 %v1900, 4294901760
  %2914 = vmatpush1.msra.mxu0 %v2913
  %2915 = vmatprep.subr.mxu0 0.0
  %v2916 = vand.u32 %v1901, 4294901760
  %2917 = vmatpush1.msra.mxu0 %v2916
  %2918 = vmatprep.subr.mxu0 0.0
  %v2919 = vand.u32 %v1902, 4294901760
  %2920 = vmatpush1.msra.mxu0 %v2919
  %2921 = vmatprep.subr.mxu0 0.0
  %v2922 = vand.u32 %v1903, 4294901760
  %2923 = vmatpush1.msra.mxu0 %v2922
  %2924 = vmatprep.subr.mxu0 0.0
  %v2925 = vand.u32 %v1904, 4294901760
  %2926 = vmatpush1.msra.mxu0 %v2925
  %2927 = vmatprep.subr.mxu0 0.0
  %v2928 = vand.u32 %v1905, 4294901760
  %2929 = vmatpush1.msra.mxu0 %v2928
  %2930 = vmatprep.subr.mxu0 0.0
  %v2931 = vand.u32 %v1906, 4294901760
  %2932 = vmatpush1.msra.mxu0 %v2931
  %2933 = vmatprep.subr.mxu0 0.0
  %v2934 = vand.u32 %v1907, 4294901760
  %2935 = vmatpush1.msra.mxu0 %v2934
  %2936 = vmatprep.subr.mxu0 0.0
  %v2937 = vand.u32 %v1908, 4294901760
  %2938 = vmatpush1.msra.mxu0 %v2937
  %2939 = vmatprep.subr.mxu0 0.0
  %v2940 = vand.u32 %v1909, 4294901760
  %2941 = vmatpush1.msra.mxu0 %v2940
  %2942 = vmatprep.subr.mxu0 0.0
  %v2943 = vand.u32 %v1910, 4294901760
  %2944 = vmatpush1.msra.mxu0 %v2943
  %2945 = vmatprep.subr.mxu0 0.0
  %v2946 = vand.u32 %v1911, 4294901760
  %2947 = vmatpush1.msra.mxu0 %v2946
  %2948 = vmatprep.subr.mxu0 0.0
  %v2949 = vand.u32 %v1912, 4294901760
  %2950 = vmatpush1.msra.mxu0 %v2949
  %2951 = vmatprep.subr.mxu0 0.0
  %v2952 = vand.u32 %v1913, 4294901760
  %2953 = vmatpush1.msra.mxu0 %v2952
  %2954 = vmatprep.subr.mxu0 0.0
  %v2955 = vand.u32 %v1914, 4294901760
  %2956 = vmatpush1.msra.mxu0 %v2955
  %2957 = vmatprep.subr.mxu0 0.0
  %v2958 = vand.u32 %v1915, 4294901760
  %2959 = vmatpush1.msra.mxu0 %v2958
  %2960 = vmatprep.subr.mxu0 0.0
  %v2961 = vand.u32 %v1916, 4294901760
  %2962 = vmatpush1.msra.mxu0 %v2961
  %v2963 = vand.u32 %v1826, 4294901760
  %v2964 = vsub.f32 %v1826, %v2963
  %v2965 = vand.u32 %v2964, 4294901760
  %v2966 = vsub.f32 %v2964, %v2965
  %v2967 = vand.u32 %v2966, 4294901760
  %2968 = vmatprep.mubr.f32.mxu0 %v2967
  %v2969 = vand.u32 %v1804, 4294901760
  %v2970 = vsub.f32 %v1804, %v2969
  %v2971 = vand.u32 %v2970, 4294901760
  %v2972 = vsub.f32 %v2970, %v2971
  %v2973 = vand.u32 %v2972, 4294901760
  %2974 = vmatmul.mubr.f32.gmra.mrb[0].mxu0 %v2973
  %v2975 = vpop.f32.mrb[0].mxu0
  %v2976 = vadd.f32 %v2857, %v2975
  %v2977 = vpop.f32.mrb[0].mxu0
  %v2978 = vand.u32 %v1841, 4294901760
  %v2979 = vsub.f32 %v1841, %v2978
  %v2980 = vand.u32 %v2979, 4294901760
  %v2981 = vsub.f32 %v2979, %v2980
  %v2982 = vand.u32 %v2981, 4294901760
  %2983 = vmatprep.mubr.f32.mxu0 %v2982
  %v2984 = vand.u32 %v1819, 4294901760
  %v2985 = vsub.f32 %v1819, %v2984
  %v2986 = vand.u32 %v2985, 4294901760
  %v2987 = vsub.f32 %v2985, %v2986
  %v2988 = vand.u32 %v2987, 4294901760
  %2989 = vmatmul.mubr.f32.gmra.mrb[0].mxu0 %v2988
  %v2990 = vpop.f32.mrb[0].mxu0
  %v2991 = vadd.f32 %v2864, %v2990
  %v2992 = vpop.f32.mrb[0].mxu0
  %2993 = vdwg.mxu0
  %2994 = vmatprep.subr.mxu0 0.0
  %v2995 = vand.u32 %v1885, 4294901760
  %v2996 = vsub.f32 %v1885, %v2995
  %v2997 = vand.u32 %v2996, 4294901760
  %v2998 = vsub.f32 %v2996, %v2997
  %v2999 = vand.u32 %v2998, 4294901760
  %3000 = vmatpush1.msra.mxu0 %v2999
  %3001 = vmatprep.subr.mxu0 0.0
  %v3002 = vand.u32 %v1886, 4294901760
  %v3003 = vsub.f32 %v1886, %v3002
  %v3004 = vand.u32 %v3003, 4294901760
  %v3005 = vsub.f32 %v3003, %v3004
  %v3006 = vand.u32 %v3005, 4294901760
  %3007 = vmatpush1.msra.mxu0 %v3006
  %3008 = vmatprep.subr.mxu0 0.0
  %v3009 = vand.u32 %v1887, 4294901760
  %v3010 = vsub.f32 %v1887, %v3009
  %v3011 = vand.u32 %v3010, 4294901760
  %v3012 = vsub.f32 %v3010, %v3011
  %v3013 = vand.u32 %v3012, 4294901760
  %3014 = vmatpush1.msra.mxu0 %v3013
  %3015 = vmatprep.subr.mxu0 0.0
  %v3016 = vand.u32 %v1888, 4294901760
  %v3017 = vsub.f32 %v1888, %v3016
  %v3018 = vand.u32 %v3017, 4294901760
  %v3019 = vsub.f32 %v3017, %v3018
  %v3020 = vand.u32 %v3019, 4294901760
  %3021 = vmatpush1.msra.mxu0 %v3020
  %3022 = vmatprep.subr.mxu0 0.0
  %v3023 = vand.u32 %v1889, 4294901760
  %v3024 = vsub.f32 %v1889, %v3023
  %v3025 = vand.u32 %v3024, 4294901760
  %v3026 = vsub.f32 %v3024, %v3025
  %v3027 = vand.u32 %v3026, 4294901760
  %3028 = vmatpush1.msra.mxu0 %v3027
  %3029 = vmatprep.subr.mxu0 0.0
  %v3030 = vand.u32 %v1890, 4294901760
  %v3031 = vsub.f32 %v1890, %v3030
  %v3032 = vand.u32 %v3031, 4294901760
  %v3033 = vsub.f32 %v3031, %v3032
  %v3034 = vand.u32 %v3033, 4294901760
  %3035 = vmatpush1.msra.mxu0 %v3034
  %3036 = vmatprep.subr.mxu0 0.0
  %v3037 = vand.u32 %v1891, 4294901760
  %v3038 = vsub.f32 %v1891, %v3037
  %v3039 = vand.u32 %v3038, 4294901760
  %v3040 = vsub.f32 %v3038, %v3039
  %v3041 = vand.u32 %v3040, 4294901760
  %3042 = vmatpush1.msra.mxu0 %v3041
  %3043 = vmatprep.subr.mxu0 0.0
  %v3044 = vand.u32 %v1892, 4294901760
  %v3045 = vsub.f32 %v1892, %v3044
  %v3046 = vand.u32 %v3045, 4294901760
  %v3047 = vsub.f32 %v3045, %v3046
  %v3048 = vand.u32 %v3047, 4294901760
  %3049 = vmatpush1.msra.mxu0 %v3048
  %3050 = vmatprep.subr.mxu0 0.0
  %v3051 = vand.u32 %v1893, 4294901760
  %v3052 = vsub.f32 %v1893, %v3051
  %v3053 = vand.u32 %v3052, 4294901760
  %v3054 = vsub.f32 %v3052, %v3053
  %v3055 = vand.u32 %v3054, 4294901760
  %3056 = vmatpush1.msra.mxu0 %v3055
  %3057 = vmatprep.subr.mxu0 0.0
  %v3058 = vand.u32 %v1894, 4294901760
  %v3059 = vsub.f32 %v1894, %v3058
  %v3060 = vand.u32 %v3059, 4294901760
  %v3061 = vsub.f32 %v3059, %v3060
  %v3062 = vand.u32 %v3061, 4294901760
  %3063 = vmatpush1.msra.mxu0 %v3062
  %3064 = vmatprep.subr.mxu0 0.0
  %v3065 = vand.u32 %v1895, 4294901760
  %v3066 = vsub.f32 %v1895, %v3065
  %v3067 = vand.u32 %v3066, 4294901760
  %v3068 = vsub.f32 %v3066, %v3067
  %v3069 = vand.u32 %v3068, 4294901760
  %3070 = vmatpush1.msra.mxu0 %v3069
  %3071 = vmatprep.subr.mxu0 0.0
  %v3072 = vand.u32 %v1896, 4294901760
  %v3073 = vsub.f32 %v1896, %v3072
  %v3074 = vand.u32 %v3073, 4294901760
  %v3075 = vsub.f32 %v3073, %v3074
  %v3076 = vand.u32 %v3075, 4294901760
  %3077 = vmatpush1.msra.mxu0 %v3076
  %3078 = vmatprep.subr.mxu0 0.0
  %v3079 = vand.u32 %v1897, 4294901760
  %v3080 = vsub.f32 %v1897, %v3079
  %v3081 = vand.u32 %v3080, 4294901760
  %v3082 = vsub.f32 %v3080, %v3081
  %v3083 = vand.u32 %v3082, 4294901760
  %3084 = vmatpush1.msra.mxu0 %v3083
  %3085 = vmatprep.subr.mxu0 0.0
  %v3086 = vand.u32 %v1898, 4294901760
  %v3087 = vsub.f32 %v1898, %v3086
  %v3088 = vand.u32 %v3087, 4294901760
  %v3089 = vsub.f32 %v3087, %v3088
  %v3090 = vand.u32 %v3089, 4294901760
  %3091 = vmatpush1.msra.mxu0 %v3090
  %3092 = vmatprep.subr.mxu0 0.0
  %v3093 = vand.u32 %v1899, 4294901760
  %v3094 = vsub.f32 %v1899, %v3093
  %v3095 = vand.u32 %v3094, 4294901760
  %v3096 = vsub.f32 %v3094, %v3095
  %v3097 = vand.u32 %v3096, 4294901760
  %3098 = vmatpush1.msra.mxu0 %v3097
  %3099 = vmatprep.subr.mxu0 0.0
  %v3100 = vand.u32 %v1900, 4294901760
  %v3101 = vsub.f32 %v1900, %v3100
  %v3102 = vand.u32 %v3101, 4294901760
  %v3103 = vsub.f32 %v3101, %v3102
  %v3104 = vand.u32 %v3103, 4294901760
  %3105 = vmatpush1.msra.mxu0 %v3104
  %3106 = vmatprep.subr.mxu0 0.0
  %v3107 = vand.u32 %v1901, 4294901760
  %v3108 = vsub.f32 %v1901, %v3107
  %v3109 = vand.u32 %v3108, 4294901760
  %v3110 = vsub.f32 %v3108, %v3109
  %v3111 = vand.u32 %v3110, 4294901760
  %3112 = vmatpush1.msra.mxu0 %v3111
  %3113 = vmatprep.subr.mxu0 0.0
  %v3114 = vand.u32 %v1902, 4294901760
  %v3115 = vsub.f32 %v1902, %v3114
  %v3116 = vand.u32 %v3115, 4294901760
  %v3117 = vsub.f32 %v3115, %v3116
  %v3118 = vand.u32 %v3117, 4294901760
  %3119 = vmatpush1.msra.mxu0 %v3118
  %3120 = vmatprep.subr.mxu0 0.0
  %v3121 = vand.u32 %v1903, 4294901760
  %v3122 = vsub.f32 %v1903, %v3121
  %v3123 = vand.u32 %v3122, 4294901760
  %v3124 = vsub.f32 %v3122, %v3123
  %v3125 = vand.u32 %v3124, 4294901760
  %3126 = vmatpush1.msra.mxu0 %v3125
  %3127 = vmatprep.subr.mxu0 0.0
  %v3128 = vand.u32 %v1904, 4294901760
  %v3129 = vsub.f32 %v1904, %v3128
  %v3130 = vand.u32 %v3129, 4294901760
  %v3131 = vsub.f32 %v3129, %v3130
  %v3132 = vand.u32 %v3131, 4294901760
  %3133 = vmatpush1.msra.mxu0 %v3132
  %3134 = vmatprep.subr.mxu0 0.0
  %v3135 = vand.u32 %v1905, 4294901760
  %v3136 = vsub.f32 %v1905, %v3135
  %v3137 = vand.u32 %v3136, 4294901760
  %v3138 = vsub.f32 %v3136, %v3137
  %v3139 = vand.u32 %v3138, 4294901760
  %3140 = vmatpush1.msra.mxu0 %v3139
  %3141 = vmatprep.subr.mxu0 0.0
  %v3142 = vand.u32 %v1906, 4294901760
  %v3143 = vsub.f32 %v1906, %v3142
  %v3144 = vand.u32 %v3143, 4294901760
  %v3145 = vsub.f32 %v3143, %v3144
  %v3146 = vand.u32 %v3145, 4294901760
  %3147 = vmatpush1.msra.mxu0 %v3146
  %3148 = vmatprep.subr.mxu0 0.0
  %v3149 = vand.u32 %v1907, 4294901760
  %v3150 = vsub.f32 %v1907, %v3149
  %v3151 = vand.u32 %v3150, 4294901760
  %v3152 = vsub.f32 %v3150, %v3151
  %v3153 = vand.u32 %v3152, 4294901760
  %3154 = vmatpush1.msra.mxu0 %v3153
  %3155 = vmatprep.subr.mxu0 0.0
  %v3156 = vand.u32 %v1908, 4294901760
  %v3157 = vsub.f32 %v1908, %v3156
  %v3158 = vand.u32 %v3157, 4294901760
  %v3159 = vsub.f32 %v3157, %v3158
  %v3160 = vand.u32 %v3159, 4294901760
  %3161 = vmatpush1.msra.mxu0 %v3160
  %3162 = vmatprep.subr.mxu0 0.0
  %v3163 = vand.u32 %v1909, 4294901760
  %v3164 = vsub.f32 %v1909, %v3163
  %v3165 = vand.u32 %v3164, 4294901760
  %v3166 = vsub.f32 %v3164, %v3165
  %v3167 = vand.u32 %v3166, 4294901760
  %3168 = vmatpush1.msra.mxu0 %v3167
  %3169 = vmatprep.subr.mxu0 0.0
  %v3170 = vand.u32 %v1910, 4294901760
  %v3171 = vsub.f32 %v1910, %v3170
  %v3172 = vand.u32 %v3171, 4294901760
  %v3173 = vsub.f32 %v3171, %v3172
  %v3174 = vand.u32 %v3173, 4294901760
  %3175 = vmatpush1.msra.mxu0 %v3174
  %3176 = vmatprep.subr.mxu0 0.0
  %v3177 = vand.u32 %v1911, 4294901760
  %v3178 = vsub.f32 %v1911, %v3177
  %v3179 = vand.u32 %v3178, 4294901760
  %v3180 = vsub.f32 %v3178, %v3179
  %v3181 = vand.u32 %v3180, 4294901760
  %3182 = vmatpush1.msra.mxu0 %v3181
  %3183 = vmatprep.subr.mxu0 0.0
  %v3184 = vand.u32 %v1912, 4294901760
  %v3185 = vsub.f32 %v1912, %v3184
  %v3186 = vand.u32 %v3185, 4294901760
  %v3187 = vsub.f32 %v3185, %v3186
  %v3188 = vand.u32 %v3187, 4294901760
  %3189 = vmatpush1.msra.mxu0 %v3188
  %3190 = vmatprep.subr.mxu0 0.0
  %v3191 = vand.u32 %v1913, 4294901760
  %v3192 = vsub.f32 %v1913, %v3191
  %v3193 = vand.u32 %v3192, 4294901760
  %v3194 = vsub.f32 %v3192, %v3193
  %v3195 = vand.u32 %v3194, 4294901760
  %3196 = vmatpush1.msra.mxu0 %v3195
  %3197 = vmatprep.subr.mxu0 0.0
  %v3198 = vand.u32 %v1914, 4294901760
  %v3199 = vsub.f32 %v1914, %v3198
  %v3200 = vand.u32 %v3199, 4294901760
  %v3201 = vsub.f32 %v3199, %v3200
  %v3202 = vand.u32 %v3201, 4294901760
  %3203 = vmatpush1.msra.mxu0 %v3202
  %3204 = vmatprep.subr.mxu0 0.0
  %v3205 = vand.u32 %v1915, 4294901760
  %v3206 = vsub.f32 %v1915, %v3205
  %v3207 = vand.u32 %v3206, 4294901760
  %v3208 = vsub.f32 %v3206, %v3207
  %v3209 = vand.u32 %v3208, 4294901760
  %3210 = vmatpush1.msra.mxu0 %v3209
  %3211 = vmatprep.subr.mxu0 0.0
  %v3212 = vand.u32 %v1916, 4294901760
  %v3213 = vsub.f32 %v1916, %v3212
  %v3214 = vand.u32 %v3213, 4294901760
  %v3215 = vsub.f32 %v3213, %v3214
  %v3216 = vand.u32 %v3215, 4294901760
  %3217 = vmatpush1.msra.mxu0 %v3216
  %v3218 = vand.u32 %v1826, 4294901760
  %3219 = vmatprep.mubr.f32.mxu0 %v3218
  %v3220 = vand.u32 %v1804, 4294901760
  %3221 = vmatmul.mubr.f32.gmra.mrb[0].mxu0 %v3220
  %v3222 = vpop.f32.mrb[0].mxu0
  %v3223 = vadd.f32 %v2976, %v3222
  %v3224 = vpop.f32.mrb[0].mxu0
  %v3225 = vand.u32 %v1841, 4294901760
  %3226 = vmatprep.mubr.f32.mxu0 %v3225
  %v3227 = vand.u32 %v1819, 4294901760
  %3228 = vmatmul.mubr.f32.gmra.mrb[0].mxu0 %v3227
  %v3229 = vpop.f32.mrb[0].mxu0
  %v3230 = vadd.f32 %v2991, %v3229
  %v3231 = vpop.f32.mrb[0].mxu0
  %3232 = vdwg.mxu0
  %3233 = vmatprep.subr.mxu0 0.0
  %v3234 = vand.u32 %v1885, 4294901760
  %v3235 = vsub.f32 %v1885, %v3234
  %3236 = vmatpush1.msra.mxu0 %v3235
  %3237 = vmatprep.subr.mxu0 0.0
  %v3238 = vand.u32 %v1886, 4294901760
  %v3239 = vsub.f32 %v1886, %v3238
  %3240 = vmatpush1.msra.mxu0 %v3239
  %3241 = vmatprep.subr.mxu0 0.0
  %v3242 = vand.u32 %v1887, 4294901760
  %v3243 = vsub.f32 %v1887, %v3242
  %3244 = vmatpush1.msra.mxu0 %v3243
  %3245 = vmatprep.subr.mxu0 0.0
  %v3246 = vand.u32 %v1888, 4294901760
  %v3247 = vsub.f32 %v1888, %v3246
  %3248 = vmatpush1.msra.mxu0 %v3247
  %3249 = vmatprep.subr.mxu0 0.0
  %v3250 = vand.u32 %v1889, 4294901760
  %v3251 = vsub.f32 %v1889, %v3250
  %3252 = vmatpush1.msra.mxu0 %v3251
  %3253 = vmatprep.subr.mxu0 0.0
  %v3254 = vand.u32 %v1890, 4294901760
  %v3255 = vsub.f32 %v1890, %v3254
  %3256 = vmatpush1.msra.mxu0 %v3255
  %3257 = vmatprep.subr.mxu0 0.0
  %v3258 = vand.u32 %v1891, 4294901760
  %v3259 = vsub.f32 %v1891, %v3258
  %3260 = vmatpush1.msra.mxu0 %v3259
  %3261 = vmatprep.subr.mxu0 0.0
  %v3262 = vand.u32 %v1892, 4294901760
  %v3263 = vsub.f32 %v1892, %v3262
  %3264 = vmatpush1.msra.mxu0 %v3263
  %3265 = vmatprep.subr.mxu0 0.0
  %v3266 = vand.u32 %v1893, 4294901760
  %v3267 = vsub.f32 %v1893, %v3266
  %3268 = vmatpush1.msra.mxu0 %v3267
  %3269 = vmatprep.subr.mxu0 0.0
  %v3270 = vand.u32 %v1894, 4294901760
  %v3271 = vsub.f32 %v1894, %v3270
  %3272 = vmatpush1.msra.mxu0 %v3271
  %3273 = vmatprep.subr.mxu0 0.0
  %v3274 = vand.u32 %v1895, 4294901760
  %v3275 = vsub.f32 %v1895, %v3274
  %3276 = vmatpush1.msra.mxu0 %v3275
  %3277 = vmatprep.subr.mxu0 0.0
  %v3278 = vand.u32 %v1896, 4294901760
  %v3279 = vsub.f32 %v1896, %v3278
  %3280 = vmatpush1.msra.mxu0 %v3279
  %3281 = vmatprep.subr.mxu0 0.0
  %v3282 = vand.u32 %v1897, 4294901760
  %v3283 = vsub.f32 %v1897, %v3282
  %3284 = vmatpush1.msra.mxu0 %v3283
  %3285 = vmatprep.subr.mxu0 0.0
  %v3286 = vand.u32 %v1898, 4294901760
  %v3287 = vsub.f32 %v1898, %v3286
  %3288 = vmatpush1.msra.mxu0 %v3287
  %3289 = vmatprep.subr.mxu0 0.0
  %v3290 = vand.u32 %v1899, 4294901760
  %v3291 = vsub.f32 %v1899, %v3290
  %3292 = vmatpush1.msra.mxu0 %v3291
  %3293 = vmatprep.subr.mxu0 0.0
  %v3294 = vand.u32 %v1900, 4294901760
  %v3295 = vsub.f32 %v1900, %v3294
  %3296 = vmatpush1.msra.mxu0 %v3295
  %3297 = vmatprep.subr.mxu0 0.0
  %v3298 = vand.u32 %v1901, 4294901760
  %v3299 = vsub.f32 %v1901, %v3298
  %3300 = vmatpush1.msra.mxu0 %v3299
  %3301 = vmatprep.subr.mxu0 0.0
  %v3302 = vand.u32 %v1902, 4294901760
  %v3303 = vsub.f32 %v1902, %v3302
  %3304 = vmatpush1.msra.mxu0 %v3303
  %3305 = vmatprep.subr.mxu0 0.0
  %v3306 = vand.u32 %v1903, 4294901760
  %v3307 = vsub.f32 %v1903, %v3306
  %3308 = vmatpush1.msra.mxu0 %v3307
  %3309 = vmatprep.subr.mxu0 0.0
  %v3310 = vand.u32 %v1904, 4294901760
  %v3311 = vsub.f32 %v1904, %v3310
  %3312 = vmatpush1.msra.mxu0 %v3311
  %3313 = vmatprep.subr.mxu0 0.0
  %v3314 = vand.u32 %v1905, 4294901760
  %v3315 = vsub.f32 %v1905, %v3314
  %3316 = vmatpush1.msra.mxu0 %v3315
  %3317 = vmatprep.subr.mxu0 0.0
  %v3318 = vand.u32 %v1906, 4294901760
  %v3319 = vsub.f32 %v1906, %v3318
  %3320 = vmatpush1.msra.mxu0 %v3319
  %3321 = vmatprep.subr.mxu0 0.0
  %v3322 = vand.u32 %v1907, 4294901760
  %v3323 = vsub.f32 %v1907, %v3322
  %3324 = vmatpush1.msra.mxu0 %v3323
  %3325 = vmatprep.subr.mxu0 0.0
  %v3326 = vand.u32 %v1908, 4294901760
  %v3327 = vsub.f32 %v1908, %v3326
  %3328 = vmatpush1.msra.mxu0 %v3327
  %3329 = vmatprep.subr.mxu0 0.0
  %v3330 = vand.u32 %v1909, 4294901760
  %v3331 = vsub.f32 %v1909, %v3330
  %3332 = vmatpush1.msra.mxu0 %v3331
  %3333 = vmatprep.subr.mxu0 0.0
  %v3334 = vand.u32 %v1910, 4294901760
  %v3335 = vsub.f32 %v1910, %v3334
  %3336 = vmatpush1.msra.mxu0 %v3335
  %3337 = vmatprep.subr.mxu0 0.0
  %v3338 = vand.u32 %v1911, 4294901760
  %v3339 = vsub.f32 %v1911, %v3338
  %3340 = vmatpush1.msra.mxu0 %v3339
  %3341 = vmatprep.subr.mxu0 0.0
  %v3342 = vand.u32 %v1912, 4294901760
  %v3343 = vsub.f32 %v1912, %v3342
  %3344 = vmatpush1.msra.mxu0 %v3343
  %3345 = vmatprep.subr.mxu0 0.0
  %v3346 = vand.u32 %v1913, 4294901760
  %v3347 = vsub.f32 %v1913, %v3346
  %3348 = vmatpush1.msra.mxu0 %v3347
  %3349 = vmatprep.subr.mxu0 0.0
  %v3350 = vand.u32 %v1914, 4294901760
  %v3351 = vsub.f32 %v1914, %v3350
  %3352 = vmatpush1.msra.mxu0 %v3351
  %3353 = vmatprep.subr.mxu0 0.0
  %v3354 = vand.u32 %v1915, 4294901760
  %v3355 = vsub.f32 %v1915, %v3354
  %3356 = vmatpush1.msra.mxu0 %v3355
  %3357 = vmatprep.subr.mxu0 0.0
  %v3358 = vand.u32 %v1916, 4294901760
  %v3359 = vsub.f32 %v1916, %v3358
  %3360 = vmatpush1.msra.mxu0 %v3359
  %v3361 = vand.u32 %v1826, 4294901760
  %v3362 = vsub.f32 %v1826, %v3361
  %3363 = vmatprep.mubr.f32.mxu0 %v3362
  %v3364 = vand.u32 %v1804, 4294901760
  %v3365 = vsub.f32 %v1804, %v3364
  %3366 = vmatmul.mubr.f32.gmra.mrb[0].mxu0 %v3365
  %v3367 = vpop.f32.mrb[0].mxu0
  %v3368 = vadd.f32 %v3223, %v3367
  %v3369 = vpop.f32.mrb[0].mxu0
  %v3370 = vand.u32 %v1841, 4294901760
  %v3371 = vsub.f32 %v1841, %v3370
  %3372 = vmatprep.mubr.f32.mxu0 %v3371
  %v3373 = vand.u32 %v1819, 4294901760
  %v3374 = vsub.f32 %v1819, %v3373
  %3375 = vmatmul.mubr.f32.gmra.mrb[0].mxu0 %v3374
  %v3376 = vpop.f32.mrb[0].mxu0
  %v3377 = vadd.f32 %v3230, %v3376
  %v3378 = vpop.f32.mrb[0].mxu0
  %3379 = vdwg.mxu0
  %3380 = vmatprep.subr.mxu0 0.0
  %v3381 = vand.u32 %v1885, 4294901760
  %3382 = vmatpush1.msra.mxu0 %v3381
  %3383 = vmatprep.subr.mxu0 0.0
  %v3384 = vand.u32 %v1886, 4294901760
  %3385 = vmatpush1.msra.mxu0 %v3384
  %3386 = vmatprep.subr.mxu0 0.0
  %v3387 = vand.u32 %v1887, 4294901760
  %3388 = vmatpush1.msra.mxu0 %v3387
  %3389 = vmatprep.subr.mxu0 0.0
  %v3390 = vand.u32 %v1888, 4294901760
  %3391 = vmatpush1.msra.mxu0 %v3390
  %3392 = vmatprep.subr.mxu0 0.0
  %v3393 = vand.u32 %v1889, 4294901760
  %3394 = vmatpush1.msra.mxu0 %v3393
  %3395 = vmatprep.subr.mxu0 0.0
  %v3396 = vand.u32 %v1890, 4294901760
  %3397 = vmatpush1.msra.mxu0 %v3396
  %3398 = vmatprep.subr.mxu0 0.0
  %v3399 = vand.u32 %v1891, 4294901760
  %3400 = vmatpush1.msra.mxu0 %v3399
  %3401 = vmatprep.subr.mxu0 0.0
  %v3402 = vand.u32 %v1892, 4294901760
  %3403 = vmatpush1.msra.mxu0 %v3402
  %3404 = vmatprep.subr.mxu0 0.0
  %v3405 = vand.u32 %v1893, 4294901760
  %3406 = vmatpush1.msra.mxu0 %v3405
  %3407 = vmatprep.subr.mxu0 0.0
  %v3408 = vand.u32 %v1894, 4294901760
  %3409 = vmatpush1.msra.mxu0 %v3408
  %3410 = vmatprep.subr.mxu0 0.0
  %v3411 = vand.u32 %v1895, 4294901760
  %3412 = vmatpush1.msra.mxu0 %v3411
  %3413 = vmatprep.subr.mxu0 0.0
  %v3414 = vand.u32 %v1896, 4294901760
  %3415 = vmatpush1.msra.mxu0 %v3414
  %3416 = vmatprep.subr.mxu0 0.0
  %v3417 = vand.u32 %v1897, 4294901760
  %3418 = vmatpush1.msra.mxu0 %v3417
  %3419 = vmatprep.subr.mxu0 0.0
  %v3420 = vand.u32 %v1898, 4294901760
  %3421 = vmatpush1.msra.mxu0 %v3420
  %3422 = vmatprep.subr.mxu0 0.0
  %v3423 = vand.u32 %v1899, 4294901760
  %3424 = vmatpush1.msra.mxu0 %v3423
  %3425 = vmatprep.subr.mxu0 0.0
  %v3426 = vand.u32 %v1900, 4294901760
  %3427 = vmatpush1.msra.mxu0 %v3426
  %3428 = vmatprep.subr.mxu0 0.0
  %v3429 = vand.u32 %v1901, 4294901760
  %3430 = vmatpush1.msra.mxu0 %v3429
  %3431 = vmatprep.subr.mxu0 0.0
  %v3432 = vand.u32 %v1902, 4294901760
  %3433 = vmatpush1.msra.mxu0 %v3432
  %3434 = vmatprep.subr.mxu0 0.0
  %v3435 = vand.u32 %v1903, 4294901760
  %3436 = vmatpush1.msra.mxu0 %v3435
  %3437 = vmatprep.subr.mxu0 0.0
  %v3438 = vand.u32 %v1904, 4294901760
  %3439 = vmatpush1.msra.mxu0 %v3438
  %3440 = vmatprep.subr.mxu0 0.0
  %v3441 = vand.u32 %v1905, 4294901760
  %3442 = vmatpush1.msra.mxu0 %v3441
  %3443 = vmatprep.subr.mxu0 0.0
  %v3444 = vand.u32 %v1906, 4294901760
  %3445 = vmatpush1.msra.mxu0 %v3444
  %3446 = vmatprep.subr.mxu0 0.0
  %v3447 = vand.u32 %v1907, 4294901760
  %3448 = vmatpush1.msra.mxu0 %v3447
  %3449 = vmatprep.subr.mxu0 0.0
  %v3450 = vand.u32 %v1908, 4294901760
  %3451 = vmatpush1.msra.mxu0 %v3450
  %3452 = vmatprep.subr.mxu0 0.0
  %v3453 = vand.u32 %v1909, 4294901760
  %3454 = vmatpush1.msra.mxu0 %v3453
  %3455 = vmatprep.subr.mxu0 0.0
  %v3456 = vand.u32 %v1910, 4294901760
  %3457 = vmatpush1.msra.mxu0 %v3456
  %3458 = vmatprep.subr.mxu0 0.0
  %v3459 = vand.u32 %v1911, 4294901760
  %3460 = vmatpush1.msra.mxu0 %v3459
  %3461 = vmatprep.subr.mxu0 0.0
  %v3462 = vand.u32 %v1912, 4294901760
  %3463 = vmatpush1.msra.mxu0 %v3462
  %3464 = vmatprep.subr.mxu0 0.0
  %v3465 = vand.u32 %v1913, 4294901760
  %3466 = vmatpush1.msra.mxu0 %v3465
  %3467 = vmatprep.subr.mxu0 0.0
  %v3468 = vand.u32 %v1914, 4294901760
  %3469 = vmatpush1.msra.mxu0 %v3468
  %3470 = vmatprep.subr.mxu0 0.0
  %v3471 = vand.u32 %v1915, 4294901760
  %3472 = vmatpush1.msra.mxu0 %v3471
  %3473 = vmatprep.subr.mxu0 0.0
  %v3474 = vand.u32 %v1916, 4294901760
  %3475 = vmatpush1.msra.mxu0 %v3474
  %v3476 = vand.u32 %v1826, 4294901760
  %v3477 = vsub.f32 %v1826, %v3476
  %v3478 = vand.u32 %v3477, 4294901760
  %3479 = vmatprep.mubr.f32.mxu0 %v3478
  %v3480 = vand.u32 %v1804, 4294901760
  %v3481 = vsub.f32 %v1804, %v3480
  %v3482 = vand.u32 %v3481, 4294901760
  %3483 = vmatmul.mubr.f32.gmra.mrb[0].mxu0 %v3482
  %v3484 = vpop.f32.mrb[0].mxu0
  %v3485 = vadd.f32 %v3368, %v3484
  %v3486 = vpop.f32.mrb[0].mxu0
  %v3487 = vand.u32 %v1841, 4294901760
  %v3488 = vsub.f32 %v1841, %v3487
  %v3489 = vand.u32 %v3488, 4294901760
  %3490 = vmatprep.mubr.f32.mxu0 %v3489
  %v3491 = vand.u32 %v1819, 4294901760
  %v3492 = vsub.f32 %v1819, %v3491
  %v3493 = vand.u32 %v3492, 4294901760
  %3494 = vmatmul.mubr.f32.gmra.mrb[0].mxu0 %v3493
  %v3495 = vpop.f32.mrb[0].mxu0
  %v3496 = vadd.f32 %v3377, %v3495
  %v3497 = vpop.f32.mrb[0].mxu0
  %3498 = vdwg.mxu0
  %3499 = vmatprep.subr.mxu0 0.0
  %v3500 = vand.u32 %v1885, 4294901760
  %v3501 = vsub.f32 %v1885, %v3500
  %v3502 = vand.u32 %v3501, 4294901760
  %3503 = vmatpush1.msra.mxu0 %v3502
  %3504 = vmatprep.subr.mxu0 0.0
  %v3505 = vand.u32 %v1886, 4294901760
  %v3506 = vsub.f32 %v1886, %v3505
  %v3507 = vand.u32 %v3506, 4294901760
  %3508 = vmatpush1.msra.mxu0 %v3507
  %3509 = vmatprep.subr.mxu0 0.0
  %v3510 = vand.u32 %v1887, 4294901760
  %v3511 = vsub.f32 %v1887, %v3510
  %v3512 = vand.u32 %v3511, 4294901760
  %3513 = vmatpush1.msra.mxu0 %v3512
  %3514 = vmatprep.subr.mxu0 0.0
  %v3515 = vand.u32 %v1888, 4294901760
  %v3516 = vsub.f32 %v1888, %v3515
  %v3517 = vand.u32 %v3516, 4294901760
  %3518 = vmatpush1.msra.mxu0 %v3517
  %3519 = vmatprep.subr.mxu0 0.0
  %v3520 = vand.u32 %v1889, 4294901760
  %v3521 = vsub.f32 %v1889, %v3520
  %v3522 = vand.u32 %v3521, 4294901760
  %3523 = vmatpush1.msra.mxu0 %v3522
  %3524 = vmatprep.subr.mxu0 0.0
  %v3525 = vand.u32 %v1890, 4294901760
  %v3526 = vsub.f32 %v1890, %v3525
  %v3527 = vand.u32 %v3526, 4294901760
  %3528 = vmatpush1.msra.mxu0 %v3527
  %3529 = vmatprep.subr.mxu0 0.0
  %v3530 = vand.u32 %v1891, 4294901760
  %v3531 = vsub.f32 %v1891, %v3530
  %v3532 = vand.u32 %v3531, 4294901760
  %3533 = vmatpush1.msra.mxu0 %v3532
  %3534 = vmatprep.subr.mxu0 0.0
  %v3535 = vand.u32 %v1892, 4294901760
  %v3536 = vsub.f32 %v1892, %v3535
  %v3537 = vand.u32 %v3536, 4294901760
  %3538 = vmatpush1.msra.mxu0 %v3537
  %3539 = vmatprep.subr.mxu0 0.0
  %v3540 = vand.u32 %v1893, 4294901760
  %v3541 = vsub.f32 %v1893, %v3540
  %v3542 = vand.u32 %v3541, 4294901760
  %3543 = vmatpush1.msra.mxu0 %v3542
  %3544 = vmatprep.subr.mxu0 0.0
  %v3545 = vand.u32 %v1894, 4294901760
  %v3546 = vsub.f32 %v1894, %v3545
  %v3547 = vand.u32 %v3546, 4294901760
  %3548 = vmatpush1.msra.mxu0 %v3547
  %3549 = vmatprep.subr.mxu0 0.0
  %v3550 = vand.u32 %v1895, 4294901760
  %v3551 = vsub.f32 %v1895, %v3550
  %v3552 = vand.u32 %v3551, 4294901760
  %3553 = vmatpush1.msra.mxu0 %v3552
  %3554 = vmatprep.subr.mxu0 0.0
  %v3555 = vand.u32 %v1896, 4294901760
  %v3556 = vsub.f32 %v1896, %v3555
  %v3557 = vand.u32 %v3556, 4294901760
  %3558 = vmatpush1.msra.mxu0 %v3557
  %3559 = vmatprep.subr.mxu0 0.0
  %v3560 = vand.u32 %v1897, 4294901760
  %v3561 = vsub.f32 %v1897, %v3560
  %v3562 = vand.u32 %v3561, 4294901760
  %3563 = vmatpush1.msra.mxu0 %v3562
  %3564 = vmatprep.subr.mxu0 0.0
  %v3565 = vand.u32 %v1898, 4294901760
  %v3566 = vsub.f32 %v1898, %v3565
  %v3567 = vand.u32 %v3566, 4294901760
  %3568 = vmatpush1.msra.mxu0 %v3567
  %3569 = vmatprep.subr.mxu0 0.0
  %v3570 = vand.u32 %v1899, 4294901760
  %v3571 = vsub.f32 %v1899, %v3570
  %v3572 = vand.u32 %v3571, 4294901760
  %3573 = vmatpush1.msra.mxu0 %v3572
  %3574 = vmatprep.subr.mxu0 0.0
  %v3575 = vand.u32 %v1900, 4294901760
  %v3576 = vsub.f32 %v1900, %v3575
  %v3577 = vand.u32 %v3576, 4294901760
  %3578 = vmatpush1.msra.mxu0 %v3577
  %3579 = vmatprep.subr.mxu0 0.0
  %v3580 = vand.u32 %v1901, 4294901760
  %v3581 = vsub.f32 %v1901, %v3580
  %v3582 = vand.u32 %v3581, 4294901760
  %3583 = vmatpush1.msra.mxu0 %v3582
  %3584 = vmatprep.subr.mxu0 0.0
  %v3585 = vand.u32 %v1902, 4294901760
  %v3586 = vsub.f32 %v1902, %v3585
  %v3587 = vand.u32 %v3586, 4294901760
  %3588 = vmatpush1.msra.mxu0 %v3587
  %3589 = vmatprep.subr.mxu0 0.0
  %v3590 = vand.u32 %v1903, 4294901760
  %v3591 = vsub.f32 %v1903, %v3590
  %v3592 = vand.u32 %v3591, 4294901760
  %3593 = vmatpush1.msra.mxu0 %v3592
  %3594 = vmatprep.subr.mxu0 0.0
  %v3595 = vand.u32 %v1904, 4294901760
  %v3596 = vsub.f32 %v1904, %v3595
  %v3597 = vand.u32 %v3596, 4294901760
  %3598 = vmatpush1.msra.mxu0 %v3597
  %3599 = vmatprep.subr.mxu0 0.0
  %v3600 = vand.u32 %v1905, 4294901760
  %v3601 = vsub.f32 %v1905, %v3600
  %v3602 = vand.u32 %v3601, 4294901760
  %3603 = vmatpush1.msra.mxu0 %v3602
  %3604 = vmatprep.subr.mxu0 0.0
  %v3605 = vand.u32 %v1906, 4294901760
  %v3606 = vsub.f32 %v1906, %v3605
  %v3607 = vand.u32 %v3606, 4294901760
  %3608 = vmatpush1.msra.mxu0 %v3607
  %3609 = vmatprep.subr.mxu0 0.0
  %v3610 = vand.u32 %v1907, 4294901760
  %v3611 = vsub.f32 %v1907, %v3610
  %v3612 = vand.u32 %v3611, 4294901760
  %3613 = vmatpush1.msra.mxu0 %v3612
  %3614 = vmatprep.subr.mxu0 0.0
  %v3615 = vand.u32 %v1908, 4294901760
  %v3616 = vsub.f32 %v1908, %v3615
  %v3617 = vand.u32 %v3616, 4294901760
  %3618 = vmatpush1.msra.mxu0 %v3617
  %3619 = vmatprep.subr.mxu0 0.0
  %v3620 = vand.u32 %v1909, 4294901760
  %v3621 = vsub.f32 %v1909, %v3620
  %v3622 = vand.u32 %v3621, 4294901760
  %3623 = vmatpush1.msra.mxu0 %v3622
  %3624 = vmatprep.subr.mxu0 0.0
  %v3625 = vand.u32 %v1910, 4294901760
  %v3626 = vsub.f32 %v1910, %v3625
  %v3627 = vand.u32 %v3626, 4294901760
  %3628 = vmatpush1.msra.mxu0 %v3627
  %3629 = vmatprep.subr.mxu0 0.0
  %v3630 = vand.u32 %v1911, 4294901760
  %v3631 = vsub.f32 %v1911, %v3630
  %v3632 = vand.u32 %v3631, 4294901760
  %3633 = vmatpush1.msra.mxu0 %v3632
  %3634 = vmatprep.subr.mxu0 0.0
  %v3635 = vand.u32 %v1912, 4294901760
  %v3636 = vsub.f32 %v1912, %v3635
  %v3637 = vand.u32 %v3636, 4294901760
  %3638 = vmatpush1.msra.mxu0 %v3637
  %3639 = vmatprep.subr.mxu0 0.0
  %v3640 = vand.u32 %v1913, 4294901760
  %v3641 = vsub.f32 %v1913, %v3640
  %v3642 = vand.u32 %v3641, 4294901760
  %3643 = vmatpush1.msra.mxu0 %v3642
  %3644 = vmatprep.subr.mxu0 0.0
  %v3645 = vand.u32 %v1914, 4294901760
  %v3646 = vsub.f32 %v1914, %v3645
  %v3647 = vand.u32 %v3646, 4294901760
  %3648 = vmatpush1.msra.mxu0 %v3647
  %3649 = vmatprep.subr.mxu0 0.0
  %v3650 = vand.u32 %v1915, 4294901760
  %v3651 = vsub.f32 %v1915, %v3650
  %v3652 = vand.u32 %v3651, 4294901760
  %3653 = vmatpush1.msra.mxu0 %v3652
  %3654 = vmatprep.subr.mxu0 0.0
  %v3655 = vand.u32 %v1916, 4294901760
  %v3656 = vsub.f32 %v1916, %v3655
  %v3657 = vand.u32 %v3656, 4294901760
  %3658 = vmatpush1.msra.mxu0 %v3657
  %v3659 = vand.u32 %v1826, 4294901760
  %3660 = vmatprep.mubr.f32.mxu0 %v3659
  %v3661 = vand.u32 %v1804, 4294901760
  %3662 = vmatmul.mubr.f32.gmra.mrb[0].mxu0 %v3661
  %v3663 = vpop.f32.mrb[0].mxu0
  %v3664 = vadd.f32 %v3485, %v3663
  %v3665 = vpop.f32.mrb[0].mxu0
  %v3666 = vand.u32 %v1841, 4294901760
  %3667 = vmatprep.mubr.f32.mxu0 %v3666
  %v3668 = vand.u32 %v1819, 4294901760
  %3669 = vmatmul.mubr.f32.gmra.mrb[0].mxu0 %v3668
  %v3670 = vpop.f32.mrb[0].mxu0
  %v3671 = vadd.f32 %v3496, %v3670
  %v3672 = vpop.f32.mrb[0].mxu0
  %3673 = vdwg.mxu0
  %3674 = vmatprep.subr.mxu0 0.0
  %v3675 = vand.u32 %v1885, 4294901760
  %3676 = vmatpush1.msra.mxu0 %v3675
  %3677 = vmatprep.subr.mxu0 0.0
  %v3678 = vand.u32 %v1886, 4294901760
  %3679 = vmatpush1.msra.mxu0 %v3678
  %3680 = vmatprep.subr.mxu0 0.0
  %v3681 = vand.u32 %v1887, 4294901760
  %3682 = vmatpush1.msra.mxu0 %v3681
  %3683 = vmatprep.subr.mxu0 0.0
  %v3684 = vand.u32 %v1888, 4294901760
  %3685 = vmatpush1.msra.mxu0 %v3684
  %3686 = vmatprep.subr.mxu0 0.0
  %v3687 = vand.u32 %v1889, 4294901760
  %3688 = vmatpush1.msra.mxu0 %v3687
  %3689 = vmatprep.subr.mxu0 0.0
  %v3690 = vand.u32 %v1890, 4294901760
  %3691 = vmatpush1.msra.mxu0 %v3690
  %3692 = vmatprep.subr.mxu0 0.0
  %v3693 = vand.u32 %v1891, 4294901760
  %3694 = vmatpush1.msra.mxu0 %v3693
  %3695 = vmatprep.subr.mxu0 0.0
  %v3696 = vand.u32 %v1892, 4294901760
  %3697 = vmatpush1.msra.mxu0 %v3696
  %3698 = vmatprep.subr.mxu0 0.0
  %v3699 = vand.u32 %v1893, 4294901760
  %3700 = vmatpush1.msra.mxu0 %v3699
  %3701 = vmatprep.subr.mxu0 0.0
  %v3702 = vand.u32 %v1894, 4294901760
  %3703 = vmatpush1.msra.mxu0 %v3702
  %3704 = vmatprep.subr.mxu0 0.0
  %v3705 = vand.u32 %v1895, 4294901760
  %3706 = vmatpush1.msra.mxu0 %v3705
  %3707 = vmatprep.subr.mxu0 0.0
  %v3708 = vand.u32 %v1896, 4294901760
  %3709 = vmatpush1.msra.mxu0 %v3708
  %3710 = vmatprep.subr.mxu0 0.0
  %v3711 = vand.u32 %v1897, 4294901760
  %3712 = vmatpush1.msra.mxu0 %v3711
  %3713 = vmatprep.subr.mxu0 0.0
  %v3714 = vand.u32 %v1898, 4294901760
  %3715 = vmatpush1.msra.mxu0 %v3714
  %3716 = vmatprep.subr.mxu0 0.0
  %v3717 = vand.u32 %v1899, 4294901760
  %3718 = vmatpush1.msra.mxu0 %v3717
  %3719 = vmatprep.subr.mxu0 0.0
  %v3720 = vand.u32 %v1900, 4294901760
  %3721 = vmatpush1.msra.mxu0 %v3720
  %3722 = vmatprep.subr.mxu0 0.0
  %v3723 = vand.u32 %v1901, 4294901760
  %3724 = vmatpush1.msra.mxu0 %v3723
  %3725 = vmatprep.subr.mxu0 0.0
  %v3726 = vand.u32 %v1902, 4294901760
  %3727 = vmatpush1.msra.mxu0 %v3726
  %3728 = vmatprep.subr.mxu0 0.0
  %v3729 = vand.u32 %v1903, 4294901760
  %3730 = vmatpush1.msra.mxu0 %v3729
  %3731 = vmatprep.subr.mxu0 0.0
  %v3732 = vand.u32 %v1904, 4294901760
  %3733 = vmatpush1.msra.mxu0 %v3732
  %3734 = vmatprep.subr.mxu0 0.0
  %v3735 = vand.u32 %v1905, 4294901760
  %3736 = vmatpush1.msra.mxu0 %v3735
  %3737 = vmatprep.subr.mxu0 0.0
  %v3738 = vand.u32 %v1906, 4294901760
  %3739 = vmatpush1.msra.mxu0 %v3738
  %3740 = vmatprep.subr.mxu0 0.0
  %v3741 = vand.u32 %v1907, 4294901760
  %3742 = vmatpush1.msra.mxu0 %v3741
  %3743 = vmatprep.subr.mxu0 0.0
  %v3744 = vand.u32 %v1908, 4294901760
  %3745 = vmatpush1.msra.mxu0 %v3744
  %3746 = vmatprep.subr.mxu0 0.0
  %v3747 = vand.u32 %v1909, 4294901760
  %3748 = vmatpush1.msra.mxu0 %v3747
  %3749 = vmatprep.subr.mxu0 0.0
  %v3750 = vand.u32 %v1910, 4294901760
  %3751 = vmatpush1.msra.mxu0 %v3750
  %3752 = vmatprep.subr.mxu0 0.0
  %v3753 = vand.u32 %v1911, 4294901760
  %3754 = vmatpush1.msra.mxu0 %v3753
  %3755 = vmatprep.subr.mxu0 0.0
  %v3756 = vand.u32 %v1912, 4294901760
  %3757 = vmatpush1.msra.mxu0 %v3756
  %3758 = vmatprep.subr.mxu0 0.0
  %v3759 = vand.u32 %v1913, 4294901760
  %3760 = vmatpush1.msra.mxu0 %v3759
  %3761 = vmatprep.subr.mxu0 0.0
  %v3762 = vand.u32 %v1914, 4294901760
  %3763 = vmatpush1.msra.mxu0 %v3762
  %3764 = vmatprep.subr.mxu0 0.0
  %v3765 = vand.u32 %v1915, 4294901760
  %3766 = vmatpush1.msra.mxu0 %v3765
  %3767 = vmatprep.subr.mxu0 0.0
  %v3768 = vand.u32 %v1916, 4294901760
  %3769 = vmatpush1.msra.mxu0 %v3768
  %v3770 = vand.u32 %v1826, 4294901760
  %3771 = vmatprep.mubr.f32.mxu0 %v3770
  %v3772 = vand.u32 %v1804, 4294901760
  %3773 = vmatmul.mubr.f32.gmra.mrb[0].mxu0 %v3772
  %v3774 = vpop.f32.mrb[0].mxu0
  %v3775 = vadd.f32 %v3664, %v3774
  %v3776 = vpop.f32.mrb[0].mxu0
  %v3777 = vand.u32 %v1841, 4294901760
  %3778 = vmatprep.mubr.f32.mxu0 %v3777
  %v3779 = vand.u32 %v1819, 4294901760
  %3780 = vmatmul.mubr.f32.gmra.mrb[0].mxu0 %v3779
  %v3781 = vpop.f32.mrb[0].mxu0
  %v3782 = vadd.f32 %v3671, %v3781
  %v3783 = vpop.f32.mrb[0].mxu0
  %3784 = vdwg.mxu0
  %3785 = vmatprep.subr.mxu0 0.0
  %v3786 = vand.u32 %v1917, 4294901760
  %3787 = vmatpush1.msra.mxu0 %v3786
  %3788 = vmatprep.subr.mxu0 0.0
  %v3789 = vand.u32 %v1918, 4294901760
  %3790 = vmatpush1.msra.mxu0 %v3789
  %3791 = vmatprep.subr.mxu0 0.0
  %v3792 = vand.u32 %v1919, 4294901760
  %3793 = vmatpush1.msra.mxu0 %v3792
  %3794 = vmatprep.subr.mxu0 0.0
  %v3795 = vand.u32 %v1920, 4294901760
  %3796 = vmatpush1.msra.mxu0 %v3795
  %3797 = vmatprep.subr.mxu0 0.0
  %v3798 = vand.u32 %v1921, 4294901760
  %3799 = vmatpush1.msra.mxu0 %v3798
  %3800 = vmatprep.subr.mxu0 0.0
  %v3801 = vand.u32 %v1922, 4294901760
  %3802 = vmatpush1.msra.mxu0 %v3801
  %3803 = vmatprep.subr.mxu0 0.0
  %v3804 = vand.u32 %v1923, 4294901760
  %3805 = vmatpush1.msra.mxu0 %v3804
  %3806 = vmatprep.subr.mxu0 0.0
  %v3807 = vand.u32 %v1924, 4294901760
  %3808 = vmatpush1.msra.mxu0 %v3807
  %3809 = vmatprep.subr.mxu0 0.0
  %v3810 = vand.u32 %v1925, 4294901760
  %3811 = vmatpush1.msra.mxu0 %v3810
  %3812 = vmatprep.subr.mxu0 0.0
  %v3813 = vand.u32 %v1926, 4294901760
  %3814 = vmatpush1.msra.mxu0 %v3813
  %3815 = vmatprep.subr.mxu0 0.0
  %v3816 = vand.u32 %v1927, 4294901760
  %3817 = vmatpush1.msra.mxu0 %v3816
  %3818 = vmatprep.subr.mxu0 0.0
  %v3819 = vand.u32 %v1928, 4294901760
  %3820 = vmatpush1.msra.mxu0 %v3819
  %3821 = vmatprep.subr.mxu0 0.0
  %v3822 = vand.u32 %v1929, 4294901760
  %3823 = vmatpush1.msra.mxu0 %v3822
  %3824 = vmatprep.subr.mxu0 0.0
  %v3825 = vand.u32 %v1930, 4294901760
  %3826 = vmatpush1.msra.mxu0 %v3825
  %3827 = vmatprep.subr.mxu0 0.0
  %v3828 = vand.u32 %v1931, 4294901760
  %3829 = vmatpush1.msra.mxu0 %v3828
  %3830 = vmatprep.subr.mxu0 0.0
  %v3831 = vand.u32 %v1932, 4294901760
  %3832 = vmatpush1.msra.mxu0 %v3831
  %3833 = vmatprep.subr.mxu0 0.0
  %v3834 = vand.u32 %v1933, 4294901760
  %3835 = vmatpush1.msra.mxu0 %v3834
  %3836 = vmatprep.subr.mxu0 0.0
  %v3837 = vand.u32 %v1934, 4294901760
  %3838 = vmatpush1.msra.mxu0 %v3837
  %3839 = vmatprep.subr.mxu0 0.0
  %v3840 = vand.u32 %v1935, 4294901760
  %3841 = vmatpush1.msra.mxu0 %v3840
  %3842 = vmatprep.subr.mxu0 0.0
  %v3843 = vand.u32 %v1936, 4294901760
  %3844 = vmatpush1.msra.mxu0 %v3843
  %3845 = vmatprep.subr.mxu0 0.0
  %v3846 = vand.u32 %v1937, 4294901760
  %3847 = vmatpush1.msra.mxu0 %v3846
  %3848 = vmatprep.subr.mxu0 0.0
  %v3849 = vand.u32 %v1938, 4294901760
  %3850 = vmatpush1.msra.mxu0 %v3849
  %3851 = vmatprep.subr.mxu0 0.0
  %v3852 = vand.u32 %v1939, 4294901760
  %3853 = vmatpush1.msra.mxu0 %v3852
  %3854 = vmatprep.subr.mxu0 0.0
  %v3855 = vand.u32 %v1940, 4294901760
  %3856 = vmatpush1.msra.mxu0 %v3855
  %3857 = vmatprep.subr.mxu0 0.0
  %v3858 = vand.u32 %v1941, 4294901760
  %3859 = vmatpush1.msra.mxu0 %v3858
  %3860 = vmatprep.subr.mxu0 0.0
  %v3861 = vand.u32 %v1942, 4294901760
  %3862 = vmatpush1.msra.mxu0 %v3861
  %3863 = vmatprep.subr.mxu0 0.0
  %v3864 = vand.u32 %v1943, 4294901760
  %3865 = vmatpush1.msra.mxu0 %v3864
  %3866 = vmatprep.subr.mxu0 0.0
  %v3867 = vand.u32 %v1944, 4294901760
  %3868 = vmatpush1.msra.mxu0 %v3867
  %3869 = vmatprep.subr.mxu0 0.0
  %v3870 = vand.u32 %v1945, 4294901760
  %3871 = vmatpush1.msra.mxu0 %v3870
  %3872 = vmatprep.subr.mxu0 0.0
  %v3873 = vand.u32 %v1946, 4294901760
  %3874 = vmatpush1.msra.mxu0 %v3873
  %3875 = vmatprep.subr.mxu0 0.0
  %v3876 = vand.u32 %v1947, 4294901760
  %3877 = vmatpush1.msra.mxu0 %v3876
  %3878 = vmatprep.subr.mxu0 0.0
  %v3879 = vand.u32 %v1948, 4294901760
  %3880 = vmatpush1.msra.mxu0 %v3879
  %v3881 = vand.u32 %v1836, 4294901760
  %v3882 = vsub.f32 %v1836, %v3881
  %v3883 = vand.u32 %v3882, 4294901760
  %v3884 = vsub.f32 %v3882, %v3883
  %v3885 = vand.u32 %v3884, 4294901760
  %3886 = vmatprep.mubr.f32.mxu0 %v3885
  %v3887 = vand.u32 %v1832, 4294901760
  %v3888 = vsub.f32 %v1832, %v3887
  %v3889 = vand.u32 %v3888, 4294901760
  %v3890 = vsub.f32 %v3888, %v3889
  %v3891 = vand.u32 %v3890, 4294901760
  %3892 = vmatmul.mubr.f32.gmra.mrb[0].mxu0 %v3891
  %v3893 = vpop.f32.mrb[0].mxu0
  %v3894 = vadd.f32 %v3775, %v3893
  %v3895 = vpop.f32.mrb[0].mxu0
  %v3896 = vand.u32 %v1851, 4294901760
  %v3897 = vsub.f32 %v1851, %v3896
  %v3898 = vand.u32 %v3897, 4294901760
  %v3899 = vsub.f32 %v3897, %v3898
  %v3900 = vand.u32 %v3899, 4294901760
  %3901 = vmatprep.mubr.f32.mxu0 %v3900
  %v3902 = vand.u32 %v1847, 4294901760
  %v3903 = vsub.f32 %v1847, %v3902
  %v3904 = vand.u32 %v3903, 4294901760
  %v3905 = vsub.f32 %v3903, %v3904
  %v3906 = vand.u32 %v3905, 4294901760
  %3907 = vmatmul.mubr.f32.gmra.mrb[0].mxu0 %v3906
  %v3908 = vpop.f32.mrb[0].mxu0
  %v3909 = vadd.f32 %v3782, %v3908
  %v3910 = vpop.f32.mrb[0].mxu0
  %3911 = vdwg.mxu0
  %3912 = vmatprep.subr.mxu0 0.0
  %v3913 = vand.u32 %v1917, 4294901760
  %v3914 = vsub.f32 %v1917, %v3913
  %v3915 = vand.u32 %v3914, 4294901760
  %v3916 = vsub.f32 %v3914, %v3915
  %v3917 = vand.u32 %v3916, 4294901760
  %3918 = vmatpush1.msra.mxu0 %v3917
  %3919 = vmatprep.subr.mxu0 0.0
  %v3920 = vand.u32 %v1918, 4294901760
  %v3921 = vsub.f32 %v1918, %v3920
  %v3922 = vand.u32 %v3921, 4294901760
  %v3923 = vsub.f32 %v3921, %v3922
  %v3924 = vand.u32 %v3923, 4294901760
  %3925 = vmatpush1.msra.mxu0 %v3924
  %3926 = vmatprep.subr.mxu0 0.0
  %v3927 = vand.u32 %v1919, 4294901760
  %v3928 = vsub.f32 %v1919, %v3927
  %v3929 = vand.u32 %v3928, 4294901760
  %v3930 = vsub.f32 %v3928, %v3929
  %v3931 = vand.u32 %v3930, 4294901760
  %3932 = vmatpush1.msra.mxu0 %v3931
  %3933 = vmatprep.subr.mxu0 0.0
  %v3934 = vand.u32 %v1920, 4294901760
  %v3935 = vsub.f32 %v1920, %v3934
  %v3936 = vand.u32 %v3935, 4294901760
  %v3937 = vsub.f32 %v3935, %v3936
  %v3938 = vand.u32 %v3937, 4294901760
  %3939 = vmatpush1.msra.mxu0 %v3938
  %3940 = vmatprep.subr.mxu0 0.0
  %v3941 = vand.u32 %v1921, 4294901760
  %v3942 = vsub.f32 %v1921, %v3941
  %v3943 = vand.u32 %v3942, 4294901760
  %v3944 = vsub.f32 %v3942, %v3943
  %v3945 = vand.u32 %v3944, 4294901760
  %3946 = vmatpush1.msra.mxu0 %v3945
  %3947 = vmatprep.subr.mxu0 0.0
  %v3948 = vand.u32 %v1922, 4294901760
  %v3949 = vsub.f32 %v1922, %v3948
  %v3950 = vand.u32 %v3949, 4294901760
  %v3951 = vsub.f32 %v3949, %v3950
  %v3952 = vand.u32 %v3951, 4294901760
  %3953 = vmatpush1.msra.mxu0 %v3952
  %3954 = vmatprep.subr.mxu0 0.0
  %v3955 = vand.u32 %v1923, 4294901760
  %v3956 = vsub.f32 %v1923, %v3955
  %v3957 = vand.u32 %v3956, 4294901760
  %v3958 = vsub.f32 %v3956, %v3957
  %v3959 = vand.u32 %v3958, 4294901760
  %3960 = vmatpush1.msra.mxu0 %v3959
  %3961 = vmatprep.subr.mxu0 0.0
  %v3962 = vand.u32 %v1924, 4294901760
  %v3963 = vsub.f32 %v1924, %v3962
  %v3964 = vand.u32 %v3963, 4294901760
  %v3965 = vsub.f32 %v3963, %v3964
  %v3966 = vand.u32 %v3965, 4294901760
  %3967 = vmatpush1.msra.mxu0 %v3966
  %3968 = vmatprep.subr.mxu0 0.0
  %v3969 = vand.u32 %v1925, 4294901760
  %v3970 = vsub.f32 %v1925, %v3969
  %v3971 = vand.u32 %v3970, 4294901760
  %v3972 = vsub.f32 %v3970, %v3971
  %v3973 = vand.u32 %v3972, 4294901760
  %3974 = vmatpush1.msra.mxu0 %v3973
  %3975 = vmatprep.subr.mxu0 0.0
  %v3976 = vand.u32 %v1926, 4294901760
  %v3977 = vsub.f32 %v1926, %v3976
  %v3978 = vand.u32 %v3977, 4294901760
  %v3979 = vsub.f32 %v3977, %v3978
  %v3980 = vand.u32 %v3979, 4294901760
  %3981 = vmatpush1.msra.mxu0 %v3980
  %3982 = vmatprep.subr.mxu0 0.0
  %v3983 = vand.u32 %v1927, 4294901760
  %v3984 = vsub.f32 %v1927, %v3983
  %v3985 = vand.u32 %v3984, 4294901760
  %v3986 = vsub.f32 %v3984, %v3985
  %v3987 = vand.u32 %v3986, 4294901760
  %3988 = vmatpush1.msra.mxu0 %v3987
  %3989 = vmatprep.subr.mxu0 0.0
  %v3990 = vand.u32 %v1928, 4294901760
  %v3991 = vsub.f32 %v1928, %v3990
  %v3992 = vand.u32 %v3991, 4294901760
  %v3993 = vsub.f32 %v3991, %v3992
  %v3994 = vand.u32 %v3993, 4294901760
  %3995 = vmatpush1.msra.mxu0 %v3994
  %3996 = vmatprep.subr.mxu0 0.0
  %v3997 = vand.u32 %v1929, 4294901760
  %v3998 = vsub.f32 %v1929, %v3997
  %v3999 = vand.u32 %v3998, 4294901760
  %v4000 = vsub.f32 %v3998, %v3999
  %v4001 = vand.u32 %v4000, 4294901760
  %4002 = vmatpush1.msra.mxu0 %v4001
  %4003 = vmatprep.subr.mxu0 0.0
  %v4004 = vand.u32 %v1930, 4294901760
  %v4005 = vsub.f32 %v1930, %v4004
  %v4006 = vand.u32 %v4005, 4294901760
  %v4007 = vsub.f32 %v4005, %v4006
  %v4008 = vand.u32 %v4007, 4294901760
  %4009 = vmatpush1.msra.mxu0 %v4008
  %4010 = vmatprep.subr.mxu0 0.0
  %v4011 = vand.u32 %v1931, 4294901760
  %v4012 = vsub.f32 %v1931, %v4011
  %v4013 = vand.u32 %v4012, 4294901760
  %v4014 = vsub.f32 %v4012, %v4013
  %v4015 = vand.u32 %v4014, 4294901760
  %4016 = vmatpush1.msra.mxu0 %v4015
  %4017 = vmatprep.subr.mxu0 0.0
  %v4018 = vand.u32 %v1932, 4294901760
  %v4019 = vsub.f32 %v1932, %v4018
  %v4020 = vand.u32 %v4019, 4294901760
  %v4021 = vsub.f32 %v4019, %v4020
  %v4022 = vand.u32 %v4021, 4294901760
  %4023 = vmatpush1.msra.mxu0 %v4022
  %4024 = vmatprep.subr.mxu0 0.0
  %v4025 = vand.u32 %v1933, 4294901760
  %v4026 = vsub.f32 %v1933, %v4025
  %v4027 = vand.u32 %v4026, 4294901760
  %v4028 = vsub.f32 %v4026, %v4027
  %v4029 = vand.u32 %v4028, 4294901760
  %4030 = vmatpush1.msra.mxu0 %v4029
  %4031 = vmatprep.subr.mxu0 0.0
  %v4032 = vand.u32 %v1934, 4294901760
  %v4033 = vsub.f32 %v1934, %v4032
  %v4034 = vand.u32 %v4033, 4294901760
  %v4035 = vsub.f32 %v4033, %v4034
  %v4036 = vand.u32 %v4035, 4294901760
  %4037 = vmatpush1.msra.mxu0 %v4036
  %4038 = vmatprep.subr.mxu0 0.0
  %v4039 = vand.u32 %v1935, 4294901760
  %v4040 = vsub.f32 %v1935, %v4039
  %v4041 = vand.u32 %v4040, 4294901760
  %v4042 = vsub.f32 %v4040, %v4041
  %v4043 = vand.u32 %v4042, 4294901760
  %4044 = vmatpush1.msra.mxu0 %v4043
  %4045 = vmatprep.subr.mxu0 0.0
  %v4046 = vand.u32 %v1936, 4294901760
  %v4047 = vsub.f32 %v1936, %v4046
  %v4048 = vand.u32 %v4047, 4294901760
  %v4049 = vsub.f32 %v4047, %v4048
  %v4050 = vand.u32 %v4049, 4294901760
  %4051 = vmatpush1.msra.mxu0 %v4050
  %4052 = vmatprep.subr.mxu0 0.0
  %v4053 = vand.u32 %v1937, 4294901760
  %v4054 = vsub.f32 %v1937, %v4053
  %v4055 = vand.u32 %v4054, 4294901760
  %v4056 = vsub.f32 %v4054, %v4055
  %v4057 = vand.u32 %v4056, 4294901760
  %4058 = vmatpush1.msra.mxu0 %v4057
  %4059 = vmatprep.subr.mxu0 0.0
  %v4060 = vand.u32 %v1938, 4294901760
  %v4061 = vsub.f32 %v1938, %v4060
  %v4062 = vand.u32 %v4061, 4294901760
  %v4063 = vsub.f32 %v4061, %v4062
  %v4064 = vand.u32 %v4063, 4294901760
  %4065 = vmatpush1.msra.mxu0 %v4064
  %4066 = vmatprep.subr.mxu0 0.0
  %v4067 = vand.u32 %v1939, 4294901760
  %v4068 = vsub.f32 %v1939, %v4067
  %v4069 = vand.u32 %v4068, 4294901760
  %v4070 = vsub.f32 %v4068, %v4069
  %v4071 = vand.u32 %v4070, 4294901760
  %4072 = vmatpush1.msra.mxu0 %v4071
  %4073 = vmatprep.subr.mxu0 0.0
  %v4074 = vand.u32 %v1940, 4294901760
  %v4075 = vsub.f32 %v1940, %v4074
  %v4076 = vand.u32 %v4075, 4294901760
  %v4077 = vsub.f32 %v4075, %v4076
  %v4078 = vand.u32 %v4077, 4294901760
  %4079 = vmatpush1.msra.mxu0 %v4078
  %4080 = vmatprep.subr.mxu0 0.0
  %v4081 = vand.u32 %v1941, 4294901760
  %v4082 = vsub.f32 %v1941, %v4081
  %v4083 = vand.u32 %v4082, 4294901760
  %v4084 = vsub.f32 %v4082, %v4083
  %v4085 = vand.u32 %v4084, 4294901760
  %4086 = vmatpush1.msra.mxu0 %v4085
  %4087 = vmatprep.subr.mxu0 0.0
  %v4088 = vand.u32 %v1942, 4294901760
  %v4089 = vsub.f32 %v1942, %v4088
  %v4090 = vand.u32 %v4089, 4294901760
  %v4091 = vsub.f32 %v4089, %v4090
  %v4092 = vand.u32 %v4091, 4294901760
  %4093 = vmatpush1.msra.mxu0 %v4092
  %4094 = vmatprep.subr.mxu0 0.0
  %v4095 = vand.u32 %v1943, 4294901760
  %v4096 = vsub.f32 %v1943, %v4095
  %v4097 = vand.u32 %v4096, 4294901760
  %v4098 = vsub.f32 %v4096, %v4097
  %v4099 = vand.u32 %v4098, 4294901760
  %4100 = vmatpush1.msra.mxu0 %v4099
  %4101 = vmatprep.subr.mxu0 0.0
  %v4102 = vand.u32 %v1944, 4294901760
  %v4103 = vsub.f32 %v1944, %v4102
  %v4104 = vand.u32 %v4103, 4294901760
  %v4105 = vsub.f32 %v4103, %v4104
  %v4106 = vand.u32 %v4105, 4294901760
  %4107 = vmatpush1.msra.mxu0 %v4106
  %4108 = vmatprep.subr.mxu0 0.0
  %v4109 = vand.u32 %v1945, 4294901760
  %v4110 = vsub.f32 %v1945, %v4109
  %v4111 = vand.u32 %v4110, 4294901760
  %v4112 = vsub.f32 %v4110, %v4111
  %v4113 = vand.u32 %v4112, 4294901760
  %4114 = vmatpush1.msra.mxu0 %v4113
  %4115 = vmatprep.subr.mxu0 0.0
  %v4116 = vand.u32 %v1946, 4294901760
  %v4117 = vsub.f32 %v1946, %v4116
  %v4118 = vand.u32 %v4117, 4294901760
  %v4119 = vsub.f32 %v4117, %v4118
  %v4120 = vand.u32 %v4119, 4294901760
  %4121 = vmatpush1.msra.mxu0 %v4120
  %4122 = vmatprep.subr.mxu0 0.0
  %v4123 = vand.u32 %v1947, 4294901760
  %v4124 = vsub.f32 %v1947, %v4123
  %v4125 = vand.u32 %v4124, 4294901760
  %v4126 = vsub.f32 %v4124, %v4125
  %v4127 = vand.u32 %v4126, 4294901760
  %4128 = vmatpush1.msra.mxu0 %v4127
  %4129 = vmatprep.subr.mxu0 0.0
  %v4130 = vand.u32 %v1948, 4294901760
  %v4131 = vsub.f32 %v1948, %v4130
  %v4132 = vand.u32 %v4131, 4294901760
  %v4133 = vsub.f32 %v4131, %v4132
  %v4134 = vand.u32 %v4133, 4294901760
  %4135 = vmatpush1.msra.mxu0 %v4134
  %v4136 = vand.u32 %v1836, 4294901760
  %4137 = vmatprep.mubr.f32.mxu0 %v4136
  %v4138 = vand.u32 %v1832, 4294901760
  %4139 = vmatmul.mubr.f32.gmra.mrb[0].mxu0 %v4138
  %v4140 = vpop.f32.mrb[0].mxu0
  %v4141 = vadd.f32 %v3894, %v4140
  %v4142 = vpop.f32.mrb[0].mxu0
  %v4143 = vand.u32 %v1851, 4294901760
  %4144 = vmatprep.mubr.f32.mxu0 %v4143
  %v4145 = vand.u32 %v1847, 4294901760
  %4146 = vmatmul.mubr.f32.gmra.mrb[0].mxu0 %v4145
  %v4147 = vpop.f32.mrb[0].mxu0
  %v4148 = vadd.f32 %v3909, %v4147
  %v4149 = vpop.f32.mrb[0].mxu0
  %4150 = vdwg.mxu0
  %4151 = vmatprep.subr.mxu0 0.0
  %v4152 = vand.u32 %v1917, 4294901760
  %v4153 = vsub.f32 %v1917, %v4152
  %4154 = vmatpush1.msra.mxu0 %v4153
  %4155 = vmatprep.subr.mxu0 0.0
  %v4156 = vand.u32 %v1918, 4294901760
  %v4157 = vsub.f32 %v1918, %v4156
  %4158 = vmatpush1.msra.mxu0 %v4157
  %4159 = vmatprep.subr.mxu0 0.0
  %v4160 = vand.u32 %v1919, 4294901760
  %v4161 = vsub.f32 %v1919, %v4160
  %4162 = vmatpush1.msra.mxu0 %v4161
  %4163 = vmatprep.subr.mxu0 0.0
  %v4164 = vand.u32 %v1920, 4294901760
  %v4165 = vsub.f32 %v1920, %v4164
  %4166 = vmatpush1.msra.mxu0 %v4165
  %4167 = vmatprep.subr.mxu0 0.0
  %v4168 = vand.u32 %v1921, 4294901760
  %v4169 = vsub.f32 %v1921, %v4168
  %4170 = vmatpush1.msra.mxu0 %v4169
  %4171 = vmatprep.subr.mxu0 0.0
  %v4172 = vand.u32 %v1922, 4294901760
  %v4173 = vsub.f32 %v1922, %v4172
  %4174 = vmatpush1.msra.mxu0 %v4173
  %4175 = vmatprep.subr.mxu0 0.0
  %v4176 = vand.u32 %v1923, 4294901760
  %v4177 = vsub.f32 %v1923, %v4176
  %4178 = vmatpush1.msra.mxu0 %v4177
  %4179 = vmatprep.subr.mxu0 0.0
  %v4180 = vand.u32 %v1924, 4294901760
  %v4181 = vsub.f32 %v1924, %v4180
  %4182 = vmatpush1.msra.mxu0 %v4181
  %4183 = vmatprep.subr.mxu0 0.0
  %v4184 = vand.u32 %v1925, 4294901760
  %v4185 = vsub.f32 %v1925, %v4184
  %4186 = vmatpush1.msra.mxu0 %v4185
  %4187 = vmatprep.subr.mxu0 0.0
  %v4188 = vand.u32 %v1926, 4294901760
  %v4189 = vsub.f32 %v1926, %v4188
  %4190 = vmatpush1.msra.mxu0 %v4189
  %4191 = vmatprep.subr.mxu0 0.0
  %v4192 = vand.u32 %v1927, 4294901760
  %v4193 = vsub.f32 %v1927, %v4192
  %4194 = vmatpush1.msra.mxu0 %v4193
  %4195 = vmatprep.subr.mxu0 0.0
  %v4196 = vand.u32 %v1928, 4294901760
  %v4197 = vsub.f32 %v1928, %v4196
  %4198 = vmatpush1.msra.mxu0 %v4197
  %4199 = vmatprep.subr.mxu0 0.0
  %v4200 = vand.u32 %v1929, 4294901760
  %v4201 = vsub.f32 %v1929, %v4200
  %4202 = vmatpush1.msra.mxu0 %v4201
  %4203 = vmatprep.subr.mxu0 0.0
  %v4204 = vand.u32 %v1930, 4294901760
  %v4205 = vsub.f32 %v1930, %v4204
  %4206 = vmatpush1.msra.mxu0 %v4205
  %4207 = vmatprep.subr.mxu0 0.0
  %v4208 = vand.u32 %v1931, 4294901760
  %v4209 = vsub.f32 %v1931, %v4208
  %4210 = vmatpush1.msra.mxu0 %v4209
  %4211 = vmatprep.subr.mxu0 0.0
  %v4212 = vand.u32 %v1932, 4294901760
  %v4213 = vsub.f32 %v1932, %v4212
  %4214 = vmatpush1.msra.mxu0 %v4213
  %4215 = vmatprep.subr.mxu0 0.0
  %v4216 = vand.u32 %v1933, 4294901760
  %v4217 = vsub.f32 %v1933, %v4216
  %4218 = vmatpush1.msra.mxu0 %v4217
  %4219 = vmatprep.subr.mxu0 0.0
  %v4220 = vand.u32 %v1934, 4294901760
  %v4221 = vsub.f32 %v1934, %v4220
  %4222 = vmatpush1.msra.mxu0 %v4221
  %4223 = vmatprep.subr.mxu0 0.0
  %v4224 = vand.u32 %v1935, 4294901760
  %v4225 = vsub.f32 %v1935, %v4224
  %4226 = vmatpush1.msra.mxu0 %v4225
  %4227 = vmatprep.subr.mxu0 0.0
  %v4228 = vand.u32 %v1936, 4294901760
  %v4229 = vsub.f32 %v1936, %v4228
  %4230 = vmatpush1.msra.mxu0 %v4229
  %4231 = vmatprep.subr.mxu0 0.0
  %v4232 = vand.u32 %v1937, 4294901760
  %v4233 = vsub.f32 %v1937, %v4232
  %4234 = vmatpush1.msra.mxu0 %v4233
  %4235 = vmatprep.subr.mxu0 0.0
  %v4236 = vand.u32 %v1938, 4294901760
  %v4237 = vsub.f32 %v1938, %v4236
  %4238 = vmatpush1.msra.mxu0 %v4237
  %4239 = vmatprep.subr.mxu0 0.0
  %v4240 = vand.u32 %v1939, 4294901760
  %v4241 = vsub.f32 %v1939, %v4240
  %4242 = vmatpush1.msra.mxu0 %v4241
  %4243 = vmatprep.subr.mxu0 0.0
  %v4244 = vand.u32 %v1940, 4294901760
  %v4245 = vsub.f32 %v1940, %v4244
  %4246 = vmatpush1.msra.mxu0 %v4245
  %4247 = vmatprep.subr.mxu0 0.0
  %v4248 = vand.u32 %v1941, 4294901760
  %v4249 = vsub.f32 %v1941, %v4248
  %4250 = vmatpush1.msra.mxu0 %v4249
  %4251 = vmatprep.subr.mxu0 0.0
  %v4252 = vand.u32 %v1942, 4294901760
  %v4253 = vsub.f32 %v1942, %v4252
  %4254 = vmatpush1.msra.mxu0 %v4253
  %4255 = vmatprep.subr.mxu0 0.0
  %v4256 = vand.u32 %v1943, 4294901760
  %v4257 = vsub.f32 %v1943, %v4256
  %4258 = vmatpush1.msra.mxu0 %v4257
  %4259 = vmatprep.subr.mxu0 0.0
  %v4260 = vand.u32 %v1944, 4294901760
  %v4261 = vsub.f32 %v1944, %v4260
  %4262 = vmatpush1.msra.mxu0 %v4261
  %4263 = vmatprep.subr.mxu0 0.0
  %v4264 = vand.u32 %v1945, 4294901760
  %v4265 = vsub.f32 %v1945, %v4264
  %4266 = vmatpush1.msra.mxu0 %v4265
  %4267 = vmatprep.subr.mxu0 0.0
  %v4268 = vand.u32 %v1946, 4294901760
  %v4269 = vsub.f32 %v1946, %v4268
  %4270 = vmatpush1.msra.mxu0 %v4269
  %4271 = vmatprep.subr.mxu0 0.0
  %v4272 = vand.u32 %v1947, 4294901760
  %v4273 = vsub.f32 %v1947, %v4272
  %4274 = vmatpush1.msra.mxu0 %v4273
  %4275 = vmatprep.subr.mxu0 0.0
  %v4276 = vand.u32 %v1948, 4294901760
  %v4277 = vsub.f32 %v1948, %v4276
  %4278 = vmatpush1.msra.mxu0 %v4277
  %v4279 = vand.u32 %v1836, 4294901760
  %v4280 = vsub.f32 %v1836, %v4279
  %4281 = vmatprep.mubr.f32.mxu0 %v4280
  %v4282 = vand.u32 %v1832, 4294901760
  %v4283 = vsub.f32 %v1832, %v4282
  %4284 = vmatmul.mubr.f32.gmra.mrb[0].mxu0 %v4283
  %v4285 = vpop.f32.mrb[0].mxu0
  %v4286 = vadd.f32 %v4141, %v4285
  %v4287 = vpop.f32.mrb[0].mxu0
  %v4288 = vand.u32 %v1851, 4294901760
  %v4289 = vsub.f32 %v1851, %v4288
  %4290 = vmatprep.mubr.f32.mxu0 %v4289
  %v4291 = vand.u32 %v1847, 4294901760
  %v4292 = vsub.f32 %v1847, %v4291
  %4293 = vmatmul.mubr.f32.gmra.mrb[0].mxu0 %v4292
  %v4294 = vpop.f32.mrb[0].mxu0
  %v4295 = vadd.f32 %v4148, %v4294
  %v4296 = vpop.f32.mrb[0].mxu0
  %4297 = vdwg.mxu0
  %4298 = vmatprep.subr.mxu0 0.0
  %v4299 = vand.u32 %v1917, 4294901760
  %4300 = vmatpush1.msra.mxu0 %v4299
  %4301 = vmatprep.subr.mxu0 0.0
  %v4302 = vand.u32 %v1918, 4294901760
  %4303 = vmatpush1.msra.mxu0 %v4302
  %4304 = vmatprep.subr.mxu0 0.0
  %v4305 = vand.u32 %v1919, 4294901760
  %4306 = vmatpush1.msra.mxu0 %v4305
  %4307 = vmatprep.subr.mxu0 0.0
  %v4308 = vand.u32 %v1920, 4294901760
  %4309 = vmatpush1.msra.mxu0 %v4308
  %4310 = vmatprep.subr.mxu0 0.0
  %v4311 = vand.u32 %v1921, 4294901760
  %4312 = vmatpush1.msra.mxu0 %v4311
  %4313 = vmatprep.subr.mxu0 0.0
  %v4314 = vand.u32 %v1922, 4294901760
  %4315 = vmatpush1.msra.mxu0 %v4314
  %4316 = vmatprep.subr.mxu0 0.0
  %v4317 = vand.u32 %v1923, 4294901760
  %4318 = vmatpush1.msra.mxu0 %v4317
  %4319 = vmatprep.subr.mxu0 0.0
  %v4320 = vand.u32 %v1924, 4294901760
  %4321 = vmatpush1.msra.mxu0 %v4320
  %4322 = vmatprep.subr.mxu0 0.0
  %v4323 = vand.u32 %v1925, 4294901760
  %4324 = vmatpush1.msra.mxu0 %v4323
  %4325 = vmatprep.subr.mxu0 0.0
  %v4326 = vand.u32 %v1926, 4294901760
  %4327 = vmatpush1.msra.mxu0 %v4326
  %4328 = vmatprep.subr.mxu0 0.0
  %v4329 = vand.u32 %v1927, 4294901760
  %4330 = vmatpush1.msra.mxu0 %v4329
  %4331 = vmatprep.subr.mxu0 0.0
  %v4332 = vand.u32 %v1928, 4294901760
  %4333 = vmatpush1.msra.mxu0 %v4332
  %4334 = vmatprep.subr.mxu0 0.0
  %v4335 = vand.u32 %v1929, 4294901760
  %4336 = vmatpush1.msra.mxu0 %v4335
  %4337 = vmatprep.subr.mxu0 0.0
  %v4338 = vand.u32 %v1930, 4294901760
  %4339 = vmatpush1.msra.mxu0 %v4338
  %4340 = vmatprep.subr.mxu0 0.0
  %v4341 = vand.u32 %v1931, 4294901760
  %4342 = vmatpush1.msra.mxu0 %v4341
  %4343 = vmatprep.subr.mxu0 0.0
  %v4344 = vand.u32 %v1932, 4294901760
  %4345 = vmatpush1.msra.mxu0 %v4344
  %4346 = vmatprep.subr.mxu0 0.0
  %v4347 = vand.u32 %v1933, 4294901760
  %4348 = vmatpush1.msra.mxu0 %v4347
  %4349 = vmatprep.subr.mxu0 0.0
  %v4350 = vand.u32 %v1934, 4294901760
  %4351 = vmatpush1.msra.mxu0 %v4350
  %4352 = vmatprep.subr.mxu0 0.0
  %v4353 = vand.u32 %v1935, 4294901760
  %4354 = vmatpush1.msra.mxu0 %v4353
  %4355 = vmatprep.subr.mxu0 0.0
  %v4356 = vand.u32 %v1936, 4294901760
  %4357 = vmatpush1.msra.mxu0 %v4356
  %4358 = vmatprep.subr.mxu0 0.0
  %v4359 = vand.u32 %v1937, 4294901760
  %4360 = vmatpush1.msra.mxu0 %v4359
  %4361 = vmatprep.subr.mxu0 0.0
  %v4362 = vand.u32 %v1938, 4294901760
  %4363 = vmatpush1.msra.mxu0 %v4362
  %4364 = vmatprep.subr.mxu0 0.0
  %v4365 = vand.u32 %v1939, 4294901760
  %4366 = vmatpush1.msra.mxu0 %v4365
  %4367 = vmatprep.subr.mxu0 0.0
  %v4368 = vand.u32 %v1940, 4294901760
  %4369 = vmatpush1.msra.mxu0 %v4368
  %4370 = vmatprep.subr.mxu0 0.0
  %v4371 = vand.u32 %v1941, 4294901760
  %4372 = vmatpush1.msra.mxu0 %v4371
  %4373 = vmatprep.subr.mxu0 0.0
  %v4374 = vand.u32 %v1942, 4294901760
  %4375 = vmatpush1.msra.mxu0 %v4374
  %4376 = vmatprep.subr.mxu0 0.0
  %v4377 = vand.u32 %v1943, 4294901760
  %4378 = vmatpush1.msra.mxu0 %v4377
  %4379 = vmatprep.subr.mxu0 0.0
  %v4380 = vand.u32 %v1944, 4294901760
  %4381 = vmatpush1.msra.mxu0 %v4380
  %4382 = vmatprep.subr.mxu0 0.0
  %v4383 = vand.u32 %v1945, 4294901760
  %4384 = vmatpush1.msra.mxu0 %v4383
  %4385 = vmatprep.subr.mxu0 0.0
  %v4386 = vand.u32 %v1946, 4294901760
  %4387 = vmatpush1.msra.mxu0 %v4386
  %4388 = vmatprep.subr.mxu0 0.0
  %v4389 = vand.u32 %v1947, 4294901760
  %4390 = vmatpush1.msra.mxu0 %v4389
  %4391 = vmatprep.subr.mxu0 0.0
  %v4392 = vand.u32 %v1948, 4294901760
  %4393 = vmatpush1.msra.mxu0 %v4392
  %v4394 = vand.u32 %v1836, 4294901760
  %v4395 = vsub.f32 %v1836, %v4394
  %v4396 = vand.u32 %v4395, 4294901760
  %4397 = vmatprep.mubr.f32.mxu0 %v4396
  %v4398 = vand.u32 %v1832, 4294901760
  %v4399 = vsub.f32 %v1832, %v4398
  %v4400 = vand.u32 %v4399, 4294901760
  %4401 = vmatmul.mubr.f32.gmra.mrb[0].mxu0 %v4400
  %v4402 = vpop.f32.mrb[0].mxu0
  %v4403 = vadd.f32 %v4286, %v4402
  %v4404 = vpop.f32.mrb[0].mxu0
  %v4405 = vand.u32 %v1851, 4294901760
  %v4406 = vsub.f32 %v1851, %v4405
  %v4407 = vand.u32 %v4406, 4294901760
  %4408 = vmatprep.mubr.f32.mxu0 %v4407
  %v4409 = vand.u32 %v1847, 4294901760
  %v4410 = vsub.f32 %v1847, %v4409
  %v4411 = vand.u32 %v4410, 4294901760
  %4412 = vmatmul.mubr.f32.gmra.mrb[0].mxu0 %v4411
  %v4413 = vpop.f32.mrb[0].mxu0
  %v4414 = vadd.f32 %v4295, %v4413
  %v4415 = vpop.f32.mrb[0].mxu0
  %4416 = vdwg.mxu0
  %4417 = vmatprep.subr.mxu0 0.0
  %v4418 = vand.u32 %v1917, 4294901760
  %v4419 = vsub.f32 %v1917, %v4418
  %v4420 = vand.u32 %v4419, 4294901760
  %4421 = vmatpush1.msra.mxu0 %v4420
  %4422 = vmatprep.subr.mxu0 0.0
  %v4423 = vand.u32 %v1918, 4294901760
  %v4424 = vsub.f32 %v1918, %v4423
  %v4425 = vand.u32 %v4424, 4294901760
  %4426 = vmatpush1.msra.mxu0 %v4425
  %4427 = vmatprep.subr.mxu0 0.0
  %v4428 = vand.u32 %v1919, 4294901760
  %v4429 = vsub.f32 %v1919, %v4428
  %v4430 = vand.u32 %v4429, 4294901760
  %4431 = vmatpush1.msra.mxu0 %v4430
  %4432 = vmatprep.subr.mxu0 0.0
  %v4433 = vand.u32 %v1920, 4294901760
  %v4434 = vsub.f32 %v1920, %v4433
  %v4435 = vand.u32 %v4434, 4294901760
  %4436 = vmatpush1.msra.mxu0 %v4435
  %4437 = vmatprep.subr.mxu0 0.0
  %v4438 = vand.u32 %v1921, 4294901760
  %v4439 = vsub.f32 %v1921, %v4438
  %v4440 = vand.u32 %v4439, 4294901760
  %4441 = vmatpush1.msra.mxu0 %v4440
  %4442 = vmatprep.subr.mxu0 0.0
  %v4443 = vand.u32 %v1922, 4294901760
  %v4444 = vsub.f32 %v1922, %v4443
  %v4445 = vand.u32 %v4444, 4294901760
  %4446 = vmatpush1.msra.mxu0 %v4445
  %4447 = vmatprep.subr.mxu0 0.0
  %v4448 = vand.u32 %v1923, 4294901760
  %v4449 = vsub.f32 %v1923, %v4448
  %v4450 = vand.u32 %v4449, 4294901760
  %4451 = vmatpush1.msra.mxu0 %v4450
  %4452 = vmatprep.subr.mxu0 0.0
  %v4453 = vand.u32 %v1924, 4294901760
  %v4454 = vsub.f32 %v1924, %v4453
  %v4455 = vand.u32 %v4454, 4294901760
  %4456 = vmatpush1.msra.mxu0 %v4455
  %4457 = vmatprep.subr.mxu0 0.0
  %v4458 = vand.u32 %v1925, 4294901760
  %v4459 = vsub.f32 %v1925, %v4458
  %v4460 = vand.u32 %v4459, 4294901760
  %4461 = vmatpush1.msra.mxu0 %v4460
  %4462 = vmatprep.subr.mxu0 0.0
  %v4463 = vand.u32 %v1926, 4294901760
  %v4464 = vsub.f32 %v1926, %v4463
  %v4465 = vand.u32 %v4464, 4294901760
  %4466 = vmatpush1.msra.mxu0 %v4465
  %4467 = vmatprep.subr.mxu0 0.0
  %v4468 = vand.u32 %v1927, 4294901760
  %v4469 = vsub.f32 %v1927, %v4468
  %v4470 = vand.u32 %v4469, 4294901760
  %4471 = vmatpush1.msra.mxu0 %v4470
  %4472 = vmatprep.subr.mxu0 0.0
  %v4473 = vand.u32 %v1928, 4294901760
  %v4474 = vsub.f32 %v1928, %v4473
  %v4475 = vand.u32 %v4474, 4294901760
  %4476 = vmatpush1.msra.mxu0 %v4475
  %4477 = vmatprep.subr.mxu0 0.0
  %v4478 = vand.u32 %v1929, 4294901760
  %v4479 = vsub.f32 %v1929, %v4478
  %v4480 = vand.u32 %v4479, 4294901760
  %4481 = vmatpush1.msra.mxu0 %v4480
  %4482 = vmatprep.subr.mxu0 0.0
  %v4483 = vand.u32 %v1930, 4294901760
  %v4484 = vsub.f32 %v1930, %v4483
  %v4485 = vand.u32 %v4484, 4294901760
  %4486 = vmatpush1.msra.mxu0 %v4485
  %4487 = vmatprep.subr.mxu0 0.0
  %v4488 = vand.u32 %v1931, 4294901760
  %v4489 = vsub.f32 %v1931, %v4488
  %v4490 = vand.u32 %v4489, 4294901760
  %4491 = vmatpush1.msra.mxu0 %v4490
  %4492 = vmatprep.subr.mxu0 0.0
  %v4493 = vand.u32 %v1932, 4294901760
  %v4494 = vsub.f32 %v1932, %v4493
  %v4495 = vand.u32 %v4494, 4294901760
  %4496 = vmatpush1.msra.mxu0 %v4495
  %4497 = vmatprep.subr.mxu0 0.0
  %v4498 = vand.u32 %v1933, 4294901760
  %v4499 = vsub.f32 %v1933, %v4498
  %v4500 = vand.u32 %v4499, 4294901760
  %4501 = vmatpush1.msra.mxu0 %v4500
  %4502 = vmatprep.subr.mxu0 0.0
  %v4503 = vand.u32 %v1934, 4294901760
  %v4504 = vsub.f32 %v1934, %v4503
  %v4505 = vand.u32 %v4504, 4294901760
  %4506 = vmatpush1.msra.mxu0 %v4505
  %4507 = vmatprep.subr.mxu0 0.0
  %v4508 = vand.u32 %v1935, 4294901760
  %v4509 = vsub.f32 %v1935, %v4508
  %v4510 = vand.u32 %v4509, 4294901760
  %4511 = vmatpush1.msra.mxu0 %v4510
  %4512 = vmatprep.subr.mxu0 0.0
  %v4513 = vand.u32 %v1936, 4294901760
  %v4514 = vsub.f32 %v1936, %v4513
  %v4515 = vand.u32 %v4514, 4294901760
  %4516 = vmatpush1.msra.mxu0 %v4515
  %4517 = vmatprep.subr.mxu0 0.0
  %v4518 = vand.u32 %v1937, 4294901760
  %v4519 = vsub.f32 %v1937, %v4518
  %v4520 = vand.u32 %v4519, 4294901760
  %4521 = vmatpush1.msra.mxu0 %v4520
  %4522 = vmatprep.subr.mxu0 0.0
  %v4523 = vand.u32 %v1938, 4294901760
  %v4524 = vsub.f32 %v1938, %v4523
  %v4525 = vand.u32 %v4524, 4294901760
  %4526 = vmatpush1.msra.mxu0 %v4525
  %4527 = vmatprep.subr.mxu0 0.0
  %v4528 = vand.u32 %v1939, 4294901760
  %v4529 = vsub.f32 %v1939, %v4528
  %v4530 = vand.u32 %v4529, 4294901760
  %4531 = vmatpush1.msra.mxu0 %v4530
  %4532 = vmatprep.subr.mxu0 0.0
  %v4533 = vand.u32 %v1940, 4294901760
  %v4534 = vsub.f32 %v1940, %v4533
  %v4535 = vand.u32 %v4534, 4294901760
  %4536 = vmatpush1.msra.mxu0 %v4535
  %4537 = vmatprep.subr.mxu0 0.0
  %v4538 = vand.u32 %v1941, 4294901760
  %v4539 = vsub.f32 %v1941, %v4538
  %v4540 = vand.u32 %v4539, 4294901760
  %4541 = vmatpush1.msra.mxu0 %v4540
  %4542 = vmatprep.subr.mxu0 0.0
  %v4543 = vand.u32 %v1942, 4294901760
  %v4544 = vsub.f32 %v1942, %v4543
  %v4545 = vand.u32 %v4544, 4294901760
  %4546 = vmatpush1.msra.mxu0 %v4545
  %4547 = vmatprep.subr.mxu0 0.0
  %v4548 = vand.u32 %v1943, 4294901760
  %v4549 = vsub.f32 %v1943, %v4548
  %v4550 = vand.u32 %v4549, 4294901760
  %4551 = vmatpush1.msra.mxu0 %v4550
  %4552 = vmatprep.subr.mxu0 0.0
  %v4553 = vand.u32 %v1944, 4294901760
  %v4554 = vsub.f32 %v1944, %v4553
  %v4555 = vand.u32 %v4554, 4294901760
  %4556 = vmatpush1.msra.mxu0 %v4555
  %4557 = vmatprep.subr.mxu0 0.0
  %v4558 = vand.u32 %v1945, 4294901760
  %v4559 = vsub.f32 %v1945, %v4558
  %v4560 = vand.u32 %v4559, 4294901760
  %4561 = vmatpush1.msra.mxu0 %v4560
  %4562 = vmatprep.subr.mxu0 0.0
  %v4563 = vand.u32 %v1946, 4294901760
  %v4564 = vsub.f32 %v1946, %v4563
  %v4565 = vand.u32 %v4564, 4294901760
  %4566 = vmatpush1.msra.mxu0 %v4565
  %4567 = vmatprep.subr.mxu0 0.0
  %v4568 = vand.u32 %v1947, 4294901760
  %v4569 = vsub.f32 %v1947, %v4568
  %v4570 = vand.u32 %v4569, 4294901760
  %4571 = vmatpush1.msra.mxu0 %v4570
  %4572 = vmatprep.subr.mxu0 0.0
  %v4573 = vand.u32 %v1948, 4294901760
  %v4574 = vsub.f32 %v1948, %v4573
  %v4575 = vand.u32 %v4574, 4294901760
  %4576 = vmatpush1.msra.mxu0 %v4575
  %v4577 = vand.u32 %v1836, 4294901760
  %4578 = vmatprep.mubr.f32.mxu0 %v4577
  %v4579 = vand.u32 %v1832, 4294901760
  %4580 = vmatmul.mubr.f32.gmra.mrb[0].mxu0 %v4579
  %v4581 = vpop.f32.mrb[0].mxu0
  %v4582 = vadd.f32 %v4403, %v4581
  %v4583 = vpop.f32.mrb[0].mxu0
  %v4584 = vand.u32 %v1851, 4294901760
  %4585 = vmatprep.mubr.f32.mxu0 %v4584
  %v4586 = vand.u32 %v1847, 4294901760
  %4587 = vmatmul.mubr.f32.gmra.mrb[0].mxu0 %v4586
  %v4588 = vpop.f32.mrb[0].mxu0
  %v4589 = vadd.f32 %v4414, %v4588
  %v4590 = vpop.f32.mrb[0].mxu0
  %4591 = vdwg.mxu0
  %4592 = vmatprep.subr.mxu0 0.0
  %v4593 = vand.u32 %v1917, 4294901760
  %4594 = vmatpush1.msra.mxu0 %v4593
  %4595 = vmatprep.subr.mxu0 0.0
  %v4596 = vand.u32 %v1918, 4294901760
  %4597 = vmatpush1.msra.mxu0 %v4596
  %4598 = vmatprep.subr.mxu0 0.0
  %v4599 = vand.u32 %v1919, 4294901760
  %4600 = vmatpush1.msra.mxu0 %v4599
  %4601 = vmatprep.subr.mxu0 0.0
  %v4602 = vand.u32 %v1920, 4294901760
  %4603 = vmatpush1.msra.mxu0 %v4602
  %4604 = vmatprep.subr.mxu0 0.0
  %v4605 = vand.u32 %v1921, 4294901760
  %4606 = vmatpush1.msra.mxu0 %v4605
  %4607 = vmatprep.subr.mxu0 0.0
  %v4608 = vand.u32 %v1922, 4294901760
  %4609 = vmatpush1.msra.mxu0 %v4608
  %4610 = vmatprep.subr.mxu0 0.0
  %v4611 = vand.u32 %v1923, 4294901760
  %4612 = vmatpush1.msra.mxu0 %v4611
  %4613 = vmatprep.subr.mxu0 0.0
  %v4614 = vand.u32 %v1924, 4294901760
  %4615 = vmatpush1.msra.mxu0 %v4614
  %4616 = vmatprep.subr.mxu0 0.0
  %v4617 = vand.u32 %v1925, 4294901760
  %4618 = vmatpush1.msra.mxu0 %v4617
  %4619 = vmatprep.subr.mxu0 0.0
  %v4620 = vand.u32 %v1926, 4294901760
  %4621 = vmatpush1.msra.mxu0 %v4620
  %4622 = vmatprep.subr.mxu0 0.0
  %v4623 = vand.u32 %v1927, 4294901760
  %4624 = vmatpush1.msra.mxu0 %v4623
  %4625 = vmatprep.subr.mxu0 0.0
  %v4626 = vand.u32 %v1928, 4294901760
  %4627 = vmatpush1.msra.mxu0 %v4626
  %4628 = vmatprep.subr.mxu0 0.0
  %v4629 = vand.u32 %v1929, 4294901760
  %4630 = vmatpush1.msra.mxu0 %v4629
  %4631 = vmatprep.subr.mxu0 0.0
  %v4632 = vand.u32 %v1930, 4294901760
  %4633 = vmatpush1.msra.mxu0 %v4632
  %4634 = vmatprep.subr.mxu0 0.0
  %v4635 = vand.u32 %v1931, 4294901760
  %4636 = vmatpush1.msra.mxu0 %v4635
  %4637 = vmatprep.subr.mxu0 0.0
  %v4638 = vand.u32 %v1932, 4294901760
  %4639 = vmatpush1.msra.mxu0 %v4638
  %4640 = vmatprep.subr.mxu0 0.0
  %v4641 = vand.u32 %v1933, 4294901760
  %4642 = vmatpush1.msra.mxu0 %v4641
  %4643 = vmatprep.subr.mxu0 0.0
  %v4644 = vand.u32 %v1934, 4294901760
  %4645 = vmatpush1.msra.mxu0 %v4644
  %4646 = vmatprep.subr.mxu0 0.0
  %v4647 = vand.u32 %v1935, 4294901760
  %4648 = vmatpush1.msra.mxu0 %v4647
  %4649 = vmatprep.subr.mxu0 0.0
  %v4650 = vand.u32 %v1936, 4294901760
  %4651 = vmatpush1.msra.mxu0 %v4650
  %4652 = vmatprep.subr.mxu0 0.0
  %v4653 = vand.u32 %v1937, 4294901760
  %4654 = vmatpush1.msra.mxu0 %v4653
  %4655 = vmatprep.subr.mxu0 0.0
  %v4656 = vand.u32 %v1938, 4294901760
  %4657 = vmatpush1.msra.mxu0 %v4656
  %4658 = vmatprep.subr.mxu0 0.0
  %v4659 = vand.u32 %v1939, 4294901760
  %4660 = vmatpush1.msra.mxu0 %v4659
  %4661 = vmatprep.subr.mxu0 0.0
  %v4662 = vand.u32 %v1940, 4294901760
  %4663 = vmatpush1.msra.mxu0 %v4662
  %4664 = vmatprep.subr.mxu0 0.0
  %v4665 = vand.u32 %v1941, 4294901760
  %4666 = vmatpush1.msra.mxu0 %v4665
  %4667 = vmatprep.subr.mxu0 0.0
  %v4668 = vand.u32 %v1942, 4294901760
  %4669 = vmatpush1.msra.mxu0 %v4668
  %4670 = vmatprep.subr.mxu0 0.0
  %v4671 = vand.u32 %v1943, 4294901760
  %4672 = vmatpush1.msra.mxu0 %v4671
  %4673 = vmatprep.subr.mxu0 0.0
  %v4674 = vand.u32 %v1944, 4294901760
  %4675 = vmatpush1.msra.mxu0 %v4674
  %4676 = vmatprep.subr.mxu0 0.0
  %v4677 = vand.u32 %v1945, 4294901760
  %4678 = vmatpush1.msra.mxu0 %v4677
  %4679 = vmatprep.subr.mxu0 0.0
  %v4680 = vand.u32 %v1946, 4294901760
  %4681 = vmatpush1.msra.mxu0 %v4680
  %4682 = vmatprep.subr.mxu0 0.0
  %v4683 = vand.u32 %v1947, 4294901760
  %4684 = vmatpush1.msra.mxu0 %v4683
  %4685 = vmatprep.subr.mxu0 0.0
  %v4686 = vand.u32 %v1948, 4294901760
  %4687 = vmatpush1.msra.mxu0 %v4686
  %v4688 = vand.u32 %v1836, 4294901760
  %4689 = vmatprep.mubr.f32.mxu0 %v4688
  %v4690 = vand.u32 %v1832, 4294901760
  %4691 = vmatmul.mubr.f32.gmra.mrb[0].mxu0 %v4690
  %v4692 = vpop.f32.mrb[0].mxu0
  %v4693 = vadd.f32 %v4582, %v4692
  %v4694 = vpop.f32.mrb[0].mxu0
  %v4695 = vand.u32 %v1851, 4294901760
  %4696 = vmatprep.mubr.f32.mxu0 %v4695
  %v4697 = vand.u32 %v1847, 4294901760
  %4698 = vmatmul.mubr.f32.gmra.mrb[0].mxu0 %v4697
  %v4699 = vpop.f32.mrb[0].mxu0
  %v4700 = vadd.f32 %v4589, %v4699
  %v4701 = vpop.f32.mrb[0].mxu0
  %4702 = vdwg.mxu0
  %v4703 = vmax.f32 %v4693, 0.0
  %v4704 = vmax.f32 %v4700, 0.0
  %v4705 = vadd.f32 %v4703, %v4704
  %v4706 = vrot.slane %v4705, 4
  %v4707 = vadd.f32 %v4705, %v4706
  %v4708 = vrot.slane %v4707, 2
  %v4709 = vadd.f32 %v4707, %v4708
  %v4710 = vrot.slane %v4709, 1
  %v4711 = vadd.f32 %v4709, %v4710
  %v4712 = vmul.f32 %v4703, %v4703
  %v4713 = vmul.f32 %v4704, %v4704
  %v4714 = vadd.f32 %v4712, %v4713
  %v4715 = vrot.slane %v4714, 4
  %v4716 = vadd.f32 %v4714, %v4715
  %v4717 = vrot.slane %v4716, 2
  %v4718 = vadd.f32 %v4716, %v4717
  %v4719 = vrot.slane %v4718, 1
  %v4720 = vadd.f32 %v4718, %v4719
  %v4721 = vsel %vm662, %v4711, %v4720
  %4722 = vmatprep.subr.mxu0 0.0
  %v4723 = vand.u32 %v29, 4294901760
  %4724 = vmatpush1.msra.mxu0 %v4723
  %4725 = vmatprep.subr.mxu0 0.0
  %v4726 = vand.u32 %v30, 4294901760
  %4727 = vmatpush1.msra.mxu0 %v4726
  %4728 = vmatprep.subr.mxu0 0.0
  %v4729 = vand.u32 %v31, 4294901760
  %4730 = vmatpush1.msra.mxu0 %v4729
  %4731 = vmatprep.subr.mxu0 0.0
  %v4732 = vand.u32 %v32, 4294901760
  %4733 = vmatpush1.msra.mxu0 %v4732
  %4734 = vmatprep.subr.mxu0 0.0
  %v4735 = vand.u32 %v33, 4294901760
  %4736 = vmatpush1.msra.mxu0 %v4735
  %4737 = vmatprep.subr.mxu0 0.0
  %v4738 = vand.u32 %v34, 4294901760
  %4739 = vmatpush1.msra.mxu0 %v4738
  %4740 = vmatprep.subr.mxu0 0.0
  %v4741 = vand.u32 %v35, 4294901760
  %4742 = vmatpush1.msra.mxu0 %v4741
  %4743 = vmatprep.subr.mxu0 0.0
  %v4744 = vand.u32 %v36, 4294901760
  %4745 = vmatpush1.msra.mxu0 %v4744
  %4746 = vmatprep.subr.mxu0 0.0
  %v4747 = vand.u32 %v37, 4294901760
  %4748 = vmatpush1.msra.mxu0 %v4747
  %4749 = vmatprep.subr.mxu0 0.0
  %v4750 = vand.u32 %v38, 4294901760
  %4751 = vmatpush1.msra.mxu0 %v4750
  %4752 = vmatprep.subr.mxu0 0.0
  %v4753 = vand.u32 %v39, 4294901760
  %4754 = vmatpush1.msra.mxu0 %v4753
  %4755 = vmatprep.subr.mxu0 0.0
  %v4756 = vand.u32 %v40, 4294901760
  %4757 = vmatpush1.msra.mxu0 %v4756
  %4758 = vmatprep.subr.mxu0 0.0
  %v4759 = vand.u32 %v41, 4294901760
  %4760 = vmatpush1.msra.mxu0 %v4759
  %4761 = vmatprep.subr.mxu0 0.0
  %v4762 = vand.u32 %v42, 4294901760
  %4763 = vmatpush1.msra.mxu0 %v4762
  %4764 = vmatprep.subr.mxu0 0.0
  %v4765 = vand.u32 %v43, 4294901760
  %4766 = vmatpush1.msra.mxu0 %v4765
  %4767 = vmatprep.subr.mxu0 0.0
  %v4768 = vand.u32 %v44, 4294901760
  %4769 = vmatpush1.msra.mxu0 %v4768
  %4770 = vmatprep.subr.mxu0 0.0
  %4771 = vmatpush1.msra.mxu0 0.0
  %4772 = vmatprep.subr.mxu0 0.0
  %4773 = vmatpush1.msra.mxu0 0.0
  %4774 = vmatprep.subr.mxu0 0.0
  %4775 = vmatpush1.msra.mxu0 0.0
  %4776 = vmatprep.subr.mxu0 0.0
  %4777 = vmatpush1.msra.mxu0 0.0
  %4778 = vmatprep.subr.mxu0 0.0
  %4779 = vmatpush1.msra.mxu0 0.0
  %4780 = vmatprep.subr.mxu0 0.0
  %4781 = vmatpush1.msra.mxu0 0.0
  %4782 = vmatprep.subr.mxu0 0.0
  %4783 = vmatpush1.msra.mxu0 0.0
  %4784 = vmatprep.subr.mxu0 0.0
  %4785 = vmatpush1.msra.mxu0 0.0
  %4786 = vmatprep.subr.mxu0 0.0
  %4787 = vmatpush1.msra.mxu0 0.0
  %4788 = vmatprep.subr.mxu0 0.0
  %4789 = vmatpush1.msra.mxu0 0.0
  %4790 = vmatprep.subr.mxu0 0.0
  %4791 = vmatpush1.msra.mxu0 0.0
  %4792 = vmatprep.subr.mxu0 0.0
  %4793 = vmatpush1.msra.mxu0 0.0
  %4794 = vmatprep.subr.mxu0 0.0
  %4795 = vmatpush1.msra.mxu0 0.0
  %4796 = vmatprep.subr.mxu0 0.0
  %4797 = vmatpush1.msra.mxu0 0.0
  %4798 = vmatprep.subr.mxu0 0.0
  %4799 = vmatpush1.msra.mxu0 0.0
  %4800 = vmatprep.subr.mxu0 0.0
  %4801 = vmatpush1.msra.mxu0 0.0
  %4802 = vmatprep.mubr.f32.mxu0 0.0
  %v4803 = vand.u32 %v4721, 4294901760
  %v4804 = vsub.f32 %v4721, %v4803
  %v4805 = vand.u32 %v4804, 4294901760
  %v4806 = vsub.f32 %v4804, %v4805
  %v4807 = vand.u32 %v4806, 4294901760
  %4808 = vmatmul.mubr.f32.gmra.mrb[0].mxu0 %v4807
  %v4809 = vpop.f32.mrb[0].mxu0
  %v4810 = vadd.f32 0.0, %v4809
  %v4811 = vpop.f32.mrb[0].mxu0
  %4812 = vdwg.mxu0
  %4813 = vmatprep.subr.mxu0 0.0
  %v4814 = vand.u32 %v29, 4294901760
  %v4815 = vsub.f32 %v29, %v4814
  %v4816 = vand.u32 %v4815, 4294901760
  %v4817 = vsub.f32 %v4815, %v4816
  %v4818 = vand.u32 %v4817, 4294901760
  %4819 = vmatpush1.msra.mxu0 %v4818
  %4820 = vmatprep.subr.mxu0 0.0
  %v4821 = vand.u32 %v30, 4294901760
  %v4822 = vsub.f32 %v30, %v4821
  %v4823 = vand.u32 %v4822, 4294901760
  %v4824 = vsub.f32 %v4822, %v4823
  %v4825 = vand.u32 %v4824, 4294901760
  %4826 = vmatpush1.msra.mxu0 %v4825
  %4827 = vmatprep.subr.mxu0 0.0
  %v4828 = vand.u32 %v31, 4294901760
  %v4829 = vsub.f32 %v31, %v4828
  %v4830 = vand.u32 %v4829, 4294901760
  %v4831 = vsub.f32 %v4829, %v4830
  %v4832 = vand.u32 %v4831, 4294901760
  %4833 = vmatpush1.msra.mxu0 %v4832
  %4834 = vmatprep.subr.mxu0 0.0
  %v4835 = vand.u32 %v32, 4294901760
  %v4836 = vsub.f32 %v32, %v4835
  %v4837 = vand.u32 %v4836, 4294901760
  %v4838 = vsub.f32 %v4836, %v4837
  %v4839 = vand.u32 %v4838, 4294901760
  %4840 = vmatpush1.msra.mxu0 %v4839
  %4841 = vmatprep.subr.mxu0 0.0
  %v4842 = vand.u32 %v33, 4294901760
  %v4843 = vsub.f32 %v33, %v4842
  %v4844 = vand.u32 %v4843, 4294901760
  %v4845 = vsub.f32 %v4843, %v4844
  %v4846 = vand.u32 %v4845, 4294901760
  %4847 = vmatpush1.msra.mxu0 %v4846
  %4848 = vmatprep.subr.mxu0 0.0
  %v4849 = vand.u32 %v34, 4294901760
  %v4850 = vsub.f32 %v34, %v4849
  %v4851 = vand.u32 %v4850, 4294901760
  %v4852 = vsub.f32 %v4850, %v4851
  %v4853 = vand.u32 %v4852, 4294901760
  %4854 = vmatpush1.msra.mxu0 %v4853
  %4855 = vmatprep.subr.mxu0 0.0
  %v4856 = vand.u32 %v35, 4294901760
  %v4857 = vsub.f32 %v35, %v4856
  %v4858 = vand.u32 %v4857, 4294901760
  %v4859 = vsub.f32 %v4857, %v4858
  %v4860 = vand.u32 %v4859, 4294901760
  %4861 = vmatpush1.msra.mxu0 %v4860
  %4862 = vmatprep.subr.mxu0 0.0
  %v4863 = vand.u32 %v36, 4294901760
  %v4864 = vsub.f32 %v36, %v4863
  %v4865 = vand.u32 %v4864, 4294901760
  %v4866 = vsub.f32 %v4864, %v4865
  %v4867 = vand.u32 %v4866, 4294901760
  %4868 = vmatpush1.msra.mxu0 %v4867
  %4869 = vmatprep.subr.mxu0 0.0
  %v4870 = vand.u32 %v37, 4294901760
  %v4871 = vsub.f32 %v37, %v4870
  %v4872 = vand.u32 %v4871, 4294901760
  %v4873 = vsub.f32 %v4871, %v4872
  %v4874 = vand.u32 %v4873, 4294901760
  %4875 = vmatpush1.msra.mxu0 %v4874
  %4876 = vmatprep.subr.mxu0 0.0
  %v4877 = vand.u32 %v38, 4294901760
  %v4878 = vsub.f32 %v38, %v4877
  %v4879 = vand.u32 %v4878, 4294901760
  %v4880 = vsub.f32 %v4878, %v4879
  %v4881 = vand.u32 %v4880, 4294901760
  %4882 = vmatpush1.msra.mxu0 %v4881
  %4883 = vmatprep.subr.mxu0 0.0
  %v4884 = vand.u32 %v39, 4294901760
  %v4885 = vsub.f32 %v39, %v4884
  %v4886 = vand.u32 %v4885, 4294901760
  %v4887 = vsub.f32 %v4885, %v4886
  %v4888 = vand.u32 %v4887, 4294901760
  %4889 = vmatpush1.msra.mxu0 %v4888
  %4890 = vmatprep.subr.mxu0 0.0
  %v4891 = vand.u32 %v40, 4294901760
  %v4892 = vsub.f32 %v40, %v4891
  %v4893 = vand.u32 %v4892, 4294901760
  %v4894 = vsub.f32 %v4892, %v4893
  %v4895 = vand.u32 %v4894, 4294901760
  %4896 = vmatpush1.msra.mxu0 %v4895
  %4897 = vmatprep.subr.mxu0 0.0
  %v4898 = vand.u32 %v41, 4294901760
  %v4899 = vsub.f32 %v41, %v4898
  %v4900 = vand.u32 %v4899, 4294901760
  %v4901 = vsub.f32 %v4899, %v4900
  %v4902 = vand.u32 %v4901, 4294901760
  %4903 = vmatpush1.msra.mxu0 %v4902
  %4904 = vmatprep.subr.mxu0 0.0
  %v4905 = vand.u32 %v42, 4294901760
  %v4906 = vsub.f32 %v42, %v4905
  %v4907 = vand.u32 %v4906, 4294901760
  %v4908 = vsub.f32 %v4906, %v4907
  %v4909 = vand.u32 %v4908, 4294901760
  %4910 = vmatpush1.msra.mxu0 %v4909
  %4911 = vmatprep.subr.mxu0 0.0
  %v4912 = vand.u32 %v43, 4294901760
  %v4913 = vsub.f32 %v43, %v4912
  %v4914 = vand.u32 %v4913, 4294901760
  %v4915 = vsub.f32 %v4913, %v4914
  %v4916 = vand.u32 %v4915, 4294901760
  %4917 = vmatpush1.msra.mxu0 %v4916
  %4918 = vmatprep.subr.mxu0 0.0
  %v4919 = vand.u32 %v44, 4294901760
  %v4920 = vsub.f32 %v44, %v4919
  %v4921 = vand.u32 %v4920, 4294901760
  %v4922 = vsub.f32 %v4920, %v4921
  %v4923 = vand.u32 %v4922, 4294901760
  %4924 = vmatpush1.msra.mxu0 %v4923
  %4925 = vmatprep.subr.mxu0 0.0
  %4926 = vmatpush1.msra.mxu0 0.0
  %4927 = vmatprep.subr.mxu0 0.0
  %4928 = vmatpush1.msra.mxu0 0.0
  %4929 = vmatprep.subr.mxu0 0.0
  %4930 = vmatpush1.msra.mxu0 0.0
  %4931 = vmatprep.subr.mxu0 0.0
  %4932 = vmatpush1.msra.mxu0 0.0
  %4933 = vmatprep.subr.mxu0 0.0
  %4934 = vmatpush1.msra.mxu0 0.0
  %4935 = vmatprep.subr.mxu0 0.0
  %4936 = vmatpush1.msra.mxu0 0.0
  %4937 = vmatprep.subr.mxu0 0.0
  %4938 = vmatpush1.msra.mxu0 0.0
  %4939 = vmatprep.subr.mxu0 0.0
  %4940 = vmatpush1.msra.mxu0 0.0
  %4941 = vmatprep.subr.mxu0 0.0
  %4942 = vmatpush1.msra.mxu0 0.0
  %4943 = vmatprep.subr.mxu0 0.0
  %4944 = vmatpush1.msra.mxu0 0.0
  %4945 = vmatprep.subr.mxu0 0.0
  %4946 = vmatpush1.msra.mxu0 0.0
  %4947 = vmatprep.subr.mxu0 0.0
  %4948 = vmatpush1.msra.mxu0 0.0
  %4949 = vmatprep.subr.mxu0 0.0
  %4950 = vmatpush1.msra.mxu0 0.0
  %4951 = vmatprep.subr.mxu0 0.0
  %4952 = vmatpush1.msra.mxu0 0.0
  %4953 = vmatprep.subr.mxu0 0.0
  %4954 = vmatpush1.msra.mxu0 0.0
  %4955 = vmatprep.subr.mxu0 0.0
  %4956 = vmatpush1.msra.mxu0 0.0
  %4957 = vmatprep.mubr.f32.mxu0 0.0
  %v4958 = vand.u32 %v4721, 4294901760
  %4959 = vmatmul.mubr.f32.gmra.mrb[0].mxu0 %v4958
  %v4960 = vpop.f32.mrb[0].mxu0
  %v4961 = vadd.f32 %v4810, %v4960
  %v4962 = vpop.f32.mrb[0].mxu0
  %4963 = vdwg.mxu0
  %4964 = vmatprep.subr.mxu0 0.0
  %v4965 = vand.u32 %v29, 4294901760
  %v4966 = vsub.f32 %v29, %v4965
  %4967 = vmatpush1.msra.mxu0 %v4966
  %4968 = vmatprep.subr.mxu0 0.0
  %v4969 = vand.u32 %v30, 4294901760
  %v4970 = vsub.f32 %v30, %v4969
  %4971 = vmatpush1.msra.mxu0 %v4970
  %4972 = vmatprep.subr.mxu0 0.0
  %v4973 = vand.u32 %v31, 4294901760
  %v4974 = vsub.f32 %v31, %v4973
  %4975 = vmatpush1.msra.mxu0 %v4974
  %4976 = vmatprep.subr.mxu0 0.0
  %v4977 = vand.u32 %v32, 4294901760
  %v4978 = vsub.f32 %v32, %v4977
  %4979 = vmatpush1.msra.mxu0 %v4978
  %4980 = vmatprep.subr.mxu0 0.0
  %v4981 = vand.u32 %v33, 4294901760
  %v4982 = vsub.f32 %v33, %v4981
  %4983 = vmatpush1.msra.mxu0 %v4982
  %4984 = vmatprep.subr.mxu0 0.0
  %v4985 = vand.u32 %v34, 4294901760
  %v4986 = vsub.f32 %v34, %v4985
  %4987 = vmatpush1.msra.mxu0 %v4986
  %4988 = vmatprep.subr.mxu0 0.0
  %v4989 = vand.u32 %v35, 4294901760
  %v4990 = vsub.f32 %v35, %v4989
  %4991 = vmatpush1.msra.mxu0 %v4990
  %4992 = vmatprep.subr.mxu0 0.0
  %v4993 = vand.u32 %v36, 4294901760
  %v4994 = vsub.f32 %v36, %v4993
  %4995 = vmatpush1.msra.mxu0 %v4994
  %4996 = vmatprep.subr.mxu0 0.0
  %v4997 = vand.u32 %v37, 4294901760
  %v4998 = vsub.f32 %v37, %v4997
  %4999 = vmatpush1.msra.mxu0 %v4998
  %5000 = vmatprep.subr.mxu0 0.0
  %v5001 = vand.u32 %v38, 4294901760
  %v5002 = vsub.f32 %v38, %v5001
  %5003 = vmatpush1.msra.mxu0 %v5002
  %5004 = vmatprep.subr.mxu0 0.0
  %v5005 = vand.u32 %v39, 4294901760
  %v5006 = vsub.f32 %v39, %v5005
  %5007 = vmatpush1.msra.mxu0 %v5006
  %5008 = vmatprep.subr.mxu0 0.0
  %v5009 = vand.u32 %v40, 4294901760
  %v5010 = vsub.f32 %v40, %v5009
  %5011 = vmatpush1.msra.mxu0 %v5010
  %5012 = vmatprep.subr.mxu0 0.0
  %v5013 = vand.u32 %v41, 4294901760
  %v5014 = vsub.f32 %v41, %v5013
  %5015 = vmatpush1.msra.mxu0 %v5014
  %5016 = vmatprep.subr.mxu0 0.0
  %v5017 = vand.u32 %v42, 4294901760
  %v5018 = vsub.f32 %v42, %v5017
  %5019 = vmatpush1.msra.mxu0 %v5018
  %5020 = vmatprep.subr.mxu0 0.0
  %v5021 = vand.u32 %v43, 4294901760
  %v5022 = vsub.f32 %v43, %v5021
  %5023 = vmatpush1.msra.mxu0 %v5022
  %5024 = vmatprep.subr.mxu0 0.0
  %v5025 = vand.u32 %v44, 4294901760
  %v5026 = vsub.f32 %v44, %v5025
  %5027 = vmatpush1.msra.mxu0 %v5026
  %5028 = vmatprep.subr.mxu0 0.0
  %5029 = vmatpush1.msra.mxu0 0.0
  %5030 = vmatprep.subr.mxu0 0.0
  %5031 = vmatpush1.msra.mxu0 0.0
  %5032 = vmatprep.subr.mxu0 0.0
  %5033 = vmatpush1.msra.mxu0 0.0
  %5034 = vmatprep.subr.mxu0 0.0
  %5035 = vmatpush1.msra.mxu0 0.0
  %5036 = vmatprep.subr.mxu0 0.0
  %5037 = vmatpush1.msra.mxu0 0.0
  %5038 = vmatprep.subr.mxu0 0.0
  %5039 = vmatpush1.msra.mxu0 0.0
  %5040 = vmatprep.subr.mxu0 0.0
  %5041 = vmatpush1.msra.mxu0 0.0
  %5042 = vmatprep.subr.mxu0 0.0
  %5043 = vmatpush1.msra.mxu0 0.0
  %5044 = vmatprep.subr.mxu0 0.0
  %5045 = vmatpush1.msra.mxu0 0.0
  %5046 = vmatprep.subr.mxu0 0.0
  %5047 = vmatpush1.msra.mxu0 0.0
  %5048 = vmatprep.subr.mxu0 0.0
  %5049 = vmatpush1.msra.mxu0 0.0
  %5050 = vmatprep.subr.mxu0 0.0
  %5051 = vmatpush1.msra.mxu0 0.0
  %5052 = vmatprep.subr.mxu0 0.0
  %5053 = vmatpush1.msra.mxu0 0.0
  %5054 = vmatprep.subr.mxu0 0.0
  %5055 = vmatpush1.msra.mxu0 0.0
  %5056 = vmatprep.subr.mxu0 0.0
  %5057 = vmatpush1.msra.mxu0 0.0
  %5058 = vmatprep.subr.mxu0 0.0
  %5059 = vmatpush1.msra.mxu0 0.0
  %5060 = vmatprep.mubr.f32.mxu0 0.0
  %v5061 = vand.u32 %v4721, 4294901760
  %v5062 = vsub.f32 %v4721, %v5061
  %5063 = vmatmul.mubr.f32.gmra.mrb[0].mxu0 %v5062
  %v5064 = vpop.f32.mrb[0].mxu0
  %v5065 = vadd.f32 %v4961, %v5064
  %v5066 = vpop.f32.mrb[0].mxu0
  %5067 = vdwg.mxu0
  %5068 = vmatprep.subr.mxu0 0.0
  %v5069 = vand.u32 %v29, 4294901760
  %5070 = vmatpush1.msra.mxu0 %v5069
  %5071 = vmatprep.subr.mxu0 0.0
  %v5072 = vand.u32 %v30, 4294901760
  %5073 = vmatpush1.msra.mxu0 %v5072
  %5074 = vmatprep.subr.mxu0 0.0
  %v5075 = vand.u32 %v31, 4294901760
  %5076 = vmatpush1.msra.mxu0 %v5075
  %5077 = vmatprep.subr.mxu0 0.0
  %v5078 = vand.u32 %v32, 4294901760
  %5079 = vmatpush1.msra.mxu0 %v5078
  %5080 = vmatprep.subr.mxu0 0.0
  %v5081 = vand.u32 %v33, 4294901760
  %5082 = vmatpush1.msra.mxu0 %v5081
  %5083 = vmatprep.subr.mxu0 0.0
  %v5084 = vand.u32 %v34, 4294901760
  %5085 = vmatpush1.msra.mxu0 %v5084
  %5086 = vmatprep.subr.mxu0 0.0
  %v5087 = vand.u32 %v35, 4294901760
  %5088 = vmatpush1.msra.mxu0 %v5087
  %5089 = vmatprep.subr.mxu0 0.0
  %v5090 = vand.u32 %v36, 4294901760
  %5091 = vmatpush1.msra.mxu0 %v5090
  %5092 = vmatprep.subr.mxu0 0.0
  %v5093 = vand.u32 %v37, 4294901760
  %5094 = vmatpush1.msra.mxu0 %v5093
  %5095 = vmatprep.subr.mxu0 0.0
  %v5096 = vand.u32 %v38, 4294901760
  %5097 = vmatpush1.msra.mxu0 %v5096
  %5098 = vmatprep.subr.mxu0 0.0
  %v5099 = vand.u32 %v39, 4294901760
  %5100 = vmatpush1.msra.mxu0 %v5099
  %5101 = vmatprep.subr.mxu0 0.0
  %v5102 = vand.u32 %v40, 4294901760
  %5103 = vmatpush1.msra.mxu0 %v5102
  %5104 = vmatprep.subr.mxu0 0.0
  %v5105 = vand.u32 %v41, 4294901760
  %5106 = vmatpush1.msra.mxu0 %v5105
  %5107 = vmatprep.subr.mxu0 0.0
  %v5108 = vand.u32 %v42, 4294901760
  %5109 = vmatpush1.msra.mxu0 %v5108
  %5110 = vmatprep.subr.mxu0 0.0
  %v5111 = vand.u32 %v43, 4294901760
  %5112 = vmatpush1.msra.mxu0 %v5111
  %5113 = vmatprep.subr.mxu0 0.0
  %v5114 = vand.u32 %v44, 4294901760
  %5115 = vmatpush1.msra.mxu0 %v5114
  %5116 = vmatprep.subr.mxu0 0.0
  %5117 = vmatpush1.msra.mxu0 0.0
  %5118 = vmatprep.subr.mxu0 0.0
  %5119 = vmatpush1.msra.mxu0 0.0
  %5120 = vmatprep.subr.mxu0 0.0
  %5121 = vmatpush1.msra.mxu0 0.0
  %5122 = vmatprep.subr.mxu0 0.0
  %5123 = vmatpush1.msra.mxu0 0.0
  %5124 = vmatprep.subr.mxu0 0.0
  %5125 = vmatpush1.msra.mxu0 0.0
  %5126 = vmatprep.subr.mxu0 0.0
  %5127 = vmatpush1.msra.mxu0 0.0
  %5128 = vmatprep.subr.mxu0 0.0
  %5129 = vmatpush1.msra.mxu0 0.0
  %5130 = vmatprep.subr.mxu0 0.0
  %5131 = vmatpush1.msra.mxu0 0.0
  %5132 = vmatprep.subr.mxu0 0.0
  %5133 = vmatpush1.msra.mxu0 0.0
  %5134 = vmatprep.subr.mxu0 0.0
  %5135 = vmatpush1.msra.mxu0 0.0
  %5136 = vmatprep.subr.mxu0 0.0
  %5137 = vmatpush1.msra.mxu0 0.0
  %5138 = vmatprep.subr.mxu0 0.0
  %5139 = vmatpush1.msra.mxu0 0.0
  %5140 = vmatprep.subr.mxu0 0.0
  %5141 = vmatpush1.msra.mxu0 0.0
  %5142 = vmatprep.subr.mxu0 0.0
  %5143 = vmatpush1.msra.mxu0 0.0
  %5144 = vmatprep.subr.mxu0 0.0
  %5145 = vmatpush1.msra.mxu0 0.0
  %5146 = vmatprep.subr.mxu0 0.0
  %5147 = vmatpush1.msra.mxu0 0.0
  %5148 = vmatprep.mubr.f32.mxu0 0.0
  %v5149 = vand.u32 %v4721, 4294901760
  %v5150 = vsub.f32 %v4721, %v5149
  %v5151 = vand.u32 %v5150, 4294901760
  %5152 = vmatmul.mubr.f32.gmra.mrb[0].mxu0 %v5151
  %v5153 = vpop.f32.mrb[0].mxu0
  %v5154 = vadd.f32 %v5065, %v5153
  %v5155 = vpop.f32.mrb[0].mxu0
  %5156 = vdwg.mxu0
  %5157 = vmatprep.subr.mxu0 0.0
  %v5158 = vand.u32 %v29, 4294901760
  %v5159 = vsub.f32 %v29, %v5158
  %v5160 = vand.u32 %v5159, 4294901760
  %5161 = vmatpush1.msra.mxu0 %v5160
  %5162 = vmatprep.subr.mxu0 0.0
  %v5163 = vand.u32 %v30, 4294901760
  %v5164 = vsub.f32 %v30, %v5163
  %v5165 = vand.u32 %v5164, 4294901760
  %5166 = vmatpush1.msra.mxu0 %v5165
  %5167 = vmatprep.subr.mxu0 0.0
  %v5168 = vand.u32 %v31, 4294901760
  %v5169 = vsub.f32 %v31, %v5168
  %v5170 = vand.u32 %v5169, 4294901760
  %5171 = vmatpush1.msra.mxu0 %v5170
  %5172 = vmatprep.subr.mxu0 0.0
  %v5173 = vand.u32 %v32, 4294901760
  %v5174 = vsub.f32 %v32, %v5173
  %v5175 = vand.u32 %v5174, 4294901760
  %5176 = vmatpush1.msra.mxu0 %v5175
  %5177 = vmatprep.subr.mxu0 0.0
  %v5178 = vand.u32 %v33, 4294901760
  %v5179 = vsub.f32 %v33, %v5178
  %v5180 = vand.u32 %v5179, 4294901760
  %5181 = vmatpush1.msra.mxu0 %v5180
  %5182 = vmatprep.subr.mxu0 0.0
  %v5183 = vand.u32 %v34, 4294901760
  %v5184 = vsub.f32 %v34, %v5183
  %v5185 = vand.u32 %v5184, 4294901760
  %5186 = vmatpush1.msra.mxu0 %v5185
  %5187 = vmatprep.subr.mxu0 0.0
  %v5188 = vand.u32 %v35, 4294901760
  %v5189 = vsub.f32 %v35, %v5188
  %v5190 = vand.u32 %v5189, 4294901760
  %5191 = vmatpush1.msra.mxu0 %v5190
  %5192 = vmatprep.subr.mxu0 0.0
  %v5193 = vand.u32 %v36, 4294901760
  %v5194 = vsub.f32 %v36, %v5193
  %v5195 = vand.u32 %v5194, 4294901760
  %5196 = vmatpush1.msra.mxu0 %v5195
  %5197 = vmatprep.subr.mxu0 0.0
  %v5198 = vand.u32 %v37, 4294901760
  %v5199 = vsub.f32 %v37, %v5198
  %v5200 = vand.u32 %v5199, 4294901760
  %5201 = vmatpush1.msra.mxu0 %v5200
  %5202 = vmatprep.subr.mxu0 0.0
  %v5203 = vand.u32 %v38, 4294901760
  %v5204 = vsub.f32 %v38, %v5203
  %v5205 = vand.u32 %v5204, 4294901760
  %5206 = vmatpush1.msra.mxu0 %v5205
  %5207 = vmatprep.subr.mxu0 0.0
  %v5208 = vand.u32 %v39, 4294901760
  %v5209 = vsub.f32 %v39, %v5208
  %v5210 = vand.u32 %v5209, 4294901760
  %5211 = vmatpush1.msra.mxu0 %v5210
  %5212 = vmatprep.subr.mxu0 0.0
  %v5213 = vand.u32 %v40, 4294901760
  %v5214 = vsub.f32 %v40, %v5213
  %v5215 = vand.u32 %v5214, 4294901760
  %5216 = vmatpush1.msra.mxu0 %v5215
  %5217 = vmatprep.subr.mxu0 0.0
  %v5218 = vand.u32 %v41, 4294901760
  %v5219 = vsub.f32 %v41, %v5218
  %v5220 = vand.u32 %v5219, 4294901760
  %5221 = vmatpush1.msra.mxu0 %v5220
  %5222 = vmatprep.subr.mxu0 0.0
  %v5223 = vand.u32 %v42, 4294901760
  %v5224 = vsub.f32 %v42, %v5223
  %v5225 = vand.u32 %v5224, 4294901760
  %5226 = vmatpush1.msra.mxu0 %v5225
  %5227 = vmatprep.subr.mxu0 0.0
  %v5228 = vand.u32 %v43, 4294901760
  %v5229 = vsub.f32 %v43, %v5228
  %v5230 = vand.u32 %v5229, 4294901760
  %5231 = vmatpush1.msra.mxu0 %v5230
  %5232 = vmatprep.subr.mxu0 0.0
  %v5233 = vand.u32 %v44, 4294901760
  %v5234 = vsub.f32 %v44, %v5233
  %v5235 = vand.u32 %v5234, 4294901760
  %5236 = vmatpush1.msra.mxu0 %v5235
  %5237 = vmatprep.subr.mxu0 0.0
  %5238 = vmatpush1.msra.mxu0 0.0
  %5239 = vmatprep.subr.mxu0 0.0
  %5240 = vmatpush1.msra.mxu0 0.0
  %5241 = vmatprep.subr.mxu0 0.0
  %5242 = vmatpush1.msra.mxu0 0.0
  %5243 = vmatprep.subr.mxu0 0.0
  %5244 = vmatpush1.msra.mxu0 0.0
  %5245 = vmatprep.subr.mxu0 0.0
  %5246 = vmatpush1.msra.mxu0 0.0
  %5247 = vmatprep.subr.mxu0 0.0
  %5248 = vmatpush1.msra.mxu0 0.0
  %5249 = vmatprep.subr.mxu0 0.0
  %5250 = vmatpush1.msra.mxu0 0.0
  %5251 = vmatprep.subr.mxu0 0.0
  %5252 = vmatpush1.msra.mxu0 0.0
  %5253 = vmatprep.subr.mxu0 0.0
  %5254 = vmatpush1.msra.mxu0 0.0
  %5255 = vmatprep.subr.mxu0 0.0
  %5256 = vmatpush1.msra.mxu0 0.0
  %5257 = vmatprep.subr.mxu0 0.0
  %5258 = vmatpush1.msra.mxu0 0.0
  %5259 = vmatprep.subr.mxu0 0.0
  %5260 = vmatpush1.msra.mxu0 0.0
  %5261 = vmatprep.subr.mxu0 0.0
  %5262 = vmatpush1.msra.mxu0 0.0
  %5263 = vmatprep.subr.mxu0 0.0
  %5264 = vmatpush1.msra.mxu0 0.0
  %5265 = vmatprep.subr.mxu0 0.0
  %5266 = vmatpush1.msra.mxu0 0.0
  %5267 = vmatprep.subr.mxu0 0.0
  %5268 = vmatpush1.msra.mxu0 0.0
  %5269 = vmatprep.mubr.f32.mxu0 0.0
  %v5270 = vand.u32 %v4721, 4294901760
  %5271 = vmatmul.mubr.f32.gmra.mrb[0].mxu0 %v5270
  %v5272 = vpop.f32.mrb[0].mxu0
  %v5273 = vadd.f32 %v5154, %v5272
  %v5274 = vpop.f32.mrb[0].mxu0
  %5275 = vdwg.mxu0
  %5276 = vmatprep.subr.mxu0 0.0
  %v5277 = vand.u32 %v29, 4294901760
  %5278 = vmatpush1.msra.mxu0 %v5277
  %5279 = vmatprep.subr.mxu0 0.0
  %v5280 = vand.u32 %v30, 4294901760
  %5281 = vmatpush1.msra.mxu0 %v5280
  %5282 = vmatprep.subr.mxu0 0.0
  %v5283 = vand.u32 %v31, 4294901760
  %5284 = vmatpush1.msra.mxu0 %v5283
  %5285 = vmatprep.subr.mxu0 0.0
  %v5286 = vand.u32 %v32, 4294901760
  %5287 = vmatpush1.msra.mxu0 %v5286
  %5288 = vmatprep.subr.mxu0 0.0
  %v5289 = vand.u32 %v33, 4294901760
  %5290 = vmatpush1.msra.mxu0 %v5289
  %5291 = vmatprep.subr.mxu0 0.0
  %v5292 = vand.u32 %v34, 4294901760
  %5293 = vmatpush1.msra.mxu0 %v5292
  %5294 = vmatprep.subr.mxu0 0.0
  %v5295 = vand.u32 %v35, 4294901760
  %5296 = vmatpush1.msra.mxu0 %v5295
  %5297 = vmatprep.subr.mxu0 0.0
  %v5298 = vand.u32 %v36, 4294901760
  %5299 = vmatpush1.msra.mxu0 %v5298
  %5300 = vmatprep.subr.mxu0 0.0
  %v5301 = vand.u32 %v37, 4294901760
  %5302 = vmatpush1.msra.mxu0 %v5301
  %5303 = vmatprep.subr.mxu0 0.0
  %v5304 = vand.u32 %v38, 4294901760
  %5305 = vmatpush1.msra.mxu0 %v5304
  %5306 = vmatprep.subr.mxu0 0.0
  %v5307 = vand.u32 %v39, 4294901760
  %5308 = vmatpush1.msra.mxu0 %v5307
  %5309 = vmatprep.subr.mxu0 0.0
  %v5310 = vand.u32 %v40, 4294901760
  %5311 = vmatpush1.msra.mxu0 %v5310
  %5312 = vmatprep.subr.mxu0 0.0
  %v5313 = vand.u32 %v41, 4294901760
  %5314 = vmatpush1.msra.mxu0 %v5313
  %5315 = vmatprep.subr.mxu0 0.0
  %v5316 = vand.u32 %v42, 4294901760
  %5317 = vmatpush1.msra.mxu0 %v5316
  %5318 = vmatprep.subr.mxu0 0.0
  %v5319 = vand.u32 %v43, 4294901760
  %5320 = vmatpush1.msra.mxu0 %v5319
  %5321 = vmatprep.subr.mxu0 0.0
  %v5322 = vand.u32 %v44, 4294901760
  %5323 = vmatpush1.msra.mxu0 %v5322
  %5324 = vmatprep.subr.mxu0 0.0
  %5325 = vmatpush1.msra.mxu0 0.0
  %5326 = vmatprep.subr.mxu0 0.0
  %5327 = vmatpush1.msra.mxu0 0.0
  %5328 = vmatprep.subr.mxu0 0.0
  %5329 = vmatpush1.msra.mxu0 0.0
  %5330 = vmatprep.subr.mxu0 0.0
  %5331 = vmatpush1.msra.mxu0 0.0
  %5332 = vmatprep.subr.mxu0 0.0
  %5333 = vmatpush1.msra.mxu0 0.0
  %5334 = vmatprep.subr.mxu0 0.0
  %5335 = vmatpush1.msra.mxu0 0.0
  %5336 = vmatprep.subr.mxu0 0.0
  %5337 = vmatpush1.msra.mxu0 0.0
  %5338 = vmatprep.subr.mxu0 0.0
  %5339 = vmatpush1.msra.mxu0 0.0
  %5340 = vmatprep.subr.mxu0 0.0
  %5341 = vmatpush1.msra.mxu0 0.0
  %5342 = vmatprep.subr.mxu0 0.0
  %5343 = vmatpush1.msra.mxu0 0.0
  %5344 = vmatprep.subr.mxu0 0.0
  %5345 = vmatpush1.msra.mxu0 0.0
  %5346 = vmatprep.subr.mxu0 0.0
  %5347 = vmatpush1.msra.mxu0 0.0
  %5348 = vmatprep.subr.mxu0 0.0
  %5349 = vmatpush1.msra.mxu0 0.0
  %5350 = vmatprep.subr.mxu0 0.0
  %5351 = vmatpush1.msra.mxu0 0.0
  %5352 = vmatprep.subr.mxu0 0.0
  %5353 = vmatpush1.msra.mxu0 0.0
  %5354 = vmatprep.subr.mxu0 0.0
  %5355 = vmatpush1.msra.mxu0 0.0
  %5356 = vmatprep.mubr.f32.mxu0 0.0
  %v5357 = vand.u32 %v4721, 4294901760
  %5358 = vmatmul.mubr.f32.gmra.mrb[0].mxu0 %v5357
  %v5359 = vpop.f32.mrb[0].mxu0
  %v5360 = vadd.f32 %v5273, %v5359
  %v5361 = vpop.f32.mrb[0].mxu0
  %5362 = vdwg.mxu0
  %v5363 = vmul.f32 %v5360, 0.001953125
  %v5364 = vmul.f32 %v5363, %v5363
  %v5366 = vrot.slane %v5364, 7
  %v5368 = vsub.f32 %v5363, %v5366
  %v5369 = vadd.f32 %v5368, 1e-05
  %v5370 = vrsqrt.pop %v5369
  %v5372 = vrot.slane %v5370, 7
  %v5374 = vmul.f32 %v46, %v5372
  %v5376 = vrot.slane %v5374, 2
  %v5378 = vmul.f32 %v5363, %v5376
  %v5380 = vrot.slane %v5378, 5
  %v5382 = vsub.f32 %v46, %v5380
  %v5384 = vrot.slane %v5382, 2
  %v5386 = vsel %vm662, %v5376, %v5384
  %v5388 = vsel %vm1323, %v5386, 0
  %5390 = vmatprep.subr.mxu0 0.0
  %v5391 = vand.u32 %v1329, 4294901760
  %5392 = vmatpush1.msra.mxu0 %v5391
  %5393 = vmatprep.subr.mxu0 0.0
  %5394 = vmatpush1.msra.mxu0 0.0
  %5395 = vmatprep.subr.mxu0 0.0
  %5396 = vmatpush1.msra.mxu0 0.0
  %5397 = vmatprep.subr.mxu0 0.0
  %5398 = vmatpush1.msra.mxu0 0.0
  %5399 = vmatprep.subr.mxu0 0.0
  %5400 = vmatpush1.msra.mxu0 0.0
  %5401 = vmatprep.subr.mxu0 0.0
  %5402 = vmatpush1.msra.mxu0 0.0
  %5403 = vmatprep.subr.mxu0 0.0
  %5404 = vmatpush1.msra.mxu0 0.0
  %5405 = vmatprep.subr.mxu0 0.0
  %5406 = vmatpush1.msra.mxu0 0.0
  %5407 = vmatprep.subr.mxu0 0.0
  %5408 = vmatpush1.msra.mxu0 0.0
  %5409 = vmatprep.subr.mxu0 0.0
  %5410 = vmatpush1.msra.mxu0 0.0
  %5411 = vmatprep.subr.mxu0 0.0
  %5412 = vmatpush1.msra.mxu0 0.0
  %5413 = vmatprep.subr.mxu0 0.0
  %5414 = vmatpush1.msra.mxu0 0.0
  %5415 = vmatprep.subr.mxu0 0.0
  %5416 = vmatpush1.msra.mxu0 0.0
  %5417 = vmatprep.subr.mxu0 0.0
  %5418 = vmatpush1.msra.mxu0 0.0
  %5419 = vmatprep.subr.mxu0 0.0
  %5420 = vmatpush1.msra.mxu0 0.0
  %5421 = vmatprep.subr.mxu0 0.0
  %5422 = vmatpush1.msra.mxu0 0.0
  %5423 = vmatprep.subr.mxu0 0.0
  %5424 = vmatpush1.msra.mxu0 0.0
  %5425 = vmatprep.subr.mxu0 0.0
  %5426 = vmatpush1.msra.mxu0 0.0
  %5427 = vmatprep.subr.mxu0 0.0
  %5428 = vmatpush1.msra.mxu0 0.0
  %5429 = vmatprep.subr.mxu0 0.0
  %5430 = vmatpush1.msra.mxu0 0.0
  %5431 = vmatprep.subr.mxu0 0.0
  %5432 = vmatpush1.msra.mxu0 0.0
  %5433 = vmatprep.subr.mxu0 0.0
  %5434 = vmatpush1.msra.mxu0 0.0
  %5435 = vmatprep.subr.mxu0 0.0
  %5436 = vmatpush1.msra.mxu0 0.0
  %5437 = vmatprep.subr.mxu0 0.0
  %5438 = vmatpush1.msra.mxu0 0.0
  %5439 = vmatprep.subr.mxu0 0.0
  %5440 = vmatpush1.msra.mxu0 0.0
  %5441 = vmatprep.subr.mxu0 0.0
  %5442 = vmatpush1.msra.mxu0 0.0
  %5443 = vmatprep.subr.mxu0 0.0
  %5444 = vmatpush1.msra.mxu0 0.0
  %5445 = vmatprep.subr.mxu0 0.0
  %5446 = vmatpush1.msra.mxu0 0.0
  %5447 = vmatprep.subr.mxu0 0.0
  %5448 = vmatpush1.msra.mxu0 0.0
  %5449 = vmatprep.subr.mxu0 0.0
  %5450 = vmatpush1.msra.mxu0 0.0
  %5451 = vmatprep.subr.mxu0 0.0
  %5452 = vmatpush1.msra.mxu0 0.0
  %5453 = vmatprep.subr.mxu0 0.0
  %5454 = vmatpush1.msra.mxu0 0.0
  %5455 = vmatprep.mubr.f32.mxu0 0.0
  %v5456 = vand.u32 %v5388, 4294901760
  %v5457 = vsub.f32 %v5388, %v5456
  %v5458 = vand.u32 %v5457, 4294901760
  %v5459 = vsub.f32 %v5457, %v5458
  %v5460 = vand.u32 %v5459, 4294901760
  %5461 = vmatmul.mubr.f32.gmra.mrb[0].mxu0 %v5460
  %v5462 = vpop.f32.mrb[0].mxu0
  %v5463 = vadd.f32 0.0, %v5462
  %v5464 = vpop.f32.mrb[0].mxu0
  %5465 = vdwg.mxu0
  %5466 = vmatprep.subr.mxu0 0.0
  %v5467 = vand.u32 %v1329, 4294901760
  %v5468 = vsub.f32 %v1329, %v5467
  %v5469 = vand.u32 %v5468, 4294901760
  %v5470 = vsub.f32 %v5468, %v5469
  %v5471 = vand.u32 %v5470, 4294901760
  %5472 = vmatpush1.msra.mxu0 %v5471
  %5473 = vmatprep.subr.mxu0 0.0
  %5474 = vmatpush1.msra.mxu0 0.0
  %5475 = vmatprep.subr.mxu0 0.0
  %5476 = vmatpush1.msra.mxu0 0.0
  %5477 = vmatprep.subr.mxu0 0.0
  %5478 = vmatpush1.msra.mxu0 0.0
  %5479 = vmatprep.subr.mxu0 0.0
  %5480 = vmatpush1.msra.mxu0 0.0
  %5481 = vmatprep.subr.mxu0 0.0
  %5482 = vmatpush1.msra.mxu0 0.0
  %5483 = vmatprep.subr.mxu0 0.0
  %5484 = vmatpush1.msra.mxu0 0.0
  %5485 = vmatprep.subr.mxu0 0.0
  %5486 = vmatpush1.msra.mxu0 0.0
  %5487 = vmatprep.subr.mxu0 0.0
  %5488 = vmatpush1.msra.mxu0 0.0
  %5489 = vmatprep.subr.mxu0 0.0
  %5490 = vmatpush1.msra.mxu0 0.0
  %5491 = vmatprep.subr.mxu0 0.0
  %5492 = vmatpush1.msra.mxu0 0.0
  %5493 = vmatprep.subr.mxu0 0.0
  %5494 = vmatpush1.msra.mxu0 0.0
  %5495 = vmatprep.subr.mxu0 0.0
  %5496 = vmatpush1.msra.mxu0 0.0
  %5497 = vmatprep.subr.mxu0 0.0
  %5498 = vmatpush1.msra.mxu0 0.0
  %5499 = vmatprep.subr.mxu0 0.0
  %5500 = vmatpush1.msra.mxu0 0.0
  %5501 = vmatprep.subr.mxu0 0.0
  %5502 = vmatpush1.msra.mxu0 0.0
  %5503 = vmatprep.subr.mxu0 0.0
  %5504 = vmatpush1.msra.mxu0 0.0
  %5505 = vmatprep.subr.mxu0 0.0
  %5506 = vmatpush1.msra.mxu0 0.0
  %5507 = vmatprep.subr.mxu0 0.0
  %5508 = vmatpush1.msra.mxu0 0.0
  %5509 = vmatprep.subr.mxu0 0.0
  %5510 = vmatpush1.msra.mxu0 0.0
  %5511 = vmatprep.subr.mxu0 0.0
  %5512 = vmatpush1.msra.mxu0 0.0
  %5513 = vmatprep.subr.mxu0 0.0
  %5514 = vmatpush1.msra.mxu0 0.0
  %5515 = vmatprep.subr.mxu0 0.0
  %5516 = vmatpush1.msra.mxu0 0.0
  %5517 = vmatprep.subr.mxu0 0.0
  %5518 = vmatpush1.msra.mxu0 0.0
  %5519 = vmatprep.subr.mxu0 0.0
  %5520 = vmatpush1.msra.mxu0 0.0
  %5521 = vmatprep.subr.mxu0 0.0
  %5522 = vmatpush1.msra.mxu0 0.0
  %5523 = vmatprep.subr.mxu0 0.0
  %5524 = vmatpush1.msra.mxu0 0.0
  %5525 = vmatprep.subr.mxu0 0.0
  %5526 = vmatpush1.msra.mxu0 0.0
  %5527 = vmatprep.subr.mxu0 0.0
  %5528 = vmatpush1.msra.mxu0 0.0
  %5529 = vmatprep.subr.mxu0 0.0
  %5530 = vmatpush1.msra.mxu0 0.0
  %5531 = vmatprep.subr.mxu0 0.0
  %5532 = vmatpush1.msra.mxu0 0.0
  %5533 = vmatprep.subr.mxu0 0.0
  %5534 = vmatpush1.msra.mxu0 0.0
  %5535 = vmatprep.mubr.f32.mxu0 0.0
  %v5536 = vand.u32 %v5388, 4294901760
  %5537 = vmatmul.mubr.f32.gmra.mrb[0].mxu0 %v5536
  %v5538 = vpop.f32.mrb[0].mxu0
  %v5539 = vadd.f32 %v5463, %v5538
  %v5540 = vpop.f32.mrb[0].mxu0
  %5541 = vdwg.mxu0
  %5542 = vmatprep.subr.mxu0 0.0
  %v5543 = vand.u32 %v1329, 4294901760
  %v5544 = vsub.f32 %v1329, %v5543
  %5545 = vmatpush1.msra.mxu0 %v5544
  %5546 = vmatprep.subr.mxu0 0.0
  %5547 = vmatpush1.msra.mxu0 0.0
  %5548 = vmatprep.subr.mxu0 0.0
  %5549 = vmatpush1.msra.mxu0 0.0
  %5550 = vmatprep.subr.mxu0 0.0
  %5551 = vmatpush1.msra.mxu0 0.0
  %5552 = vmatprep.subr.mxu0 0.0
  %5553 = vmatpush1.msra.mxu0 0.0
  %5554 = vmatprep.subr.mxu0 0.0
  %5555 = vmatpush1.msra.mxu0 0.0
  %5556 = vmatprep.subr.mxu0 0.0
  %5557 = vmatpush1.msra.mxu0 0.0
  %5558 = vmatprep.subr.mxu0 0.0
  %5559 = vmatpush1.msra.mxu0 0.0
  %5560 = vmatprep.subr.mxu0 0.0
  %5561 = vmatpush1.msra.mxu0 0.0
  %5562 = vmatprep.subr.mxu0 0.0
  %5563 = vmatpush1.msra.mxu0 0.0
  %5564 = vmatprep.subr.mxu0 0.0
  %5565 = vmatpush1.msra.mxu0 0.0
  %5566 = vmatprep.subr.mxu0 0.0
  %5567 = vmatpush1.msra.mxu0 0.0
  %5568 = vmatprep.subr.mxu0 0.0
  %5569 = vmatpush1.msra.mxu0 0.0
  %5570 = vmatprep.subr.mxu0 0.0
  %5571 = vmatpush1.msra.mxu0 0.0
  %5572 = vmatprep.subr.mxu0 0.0
  %5573 = vmatpush1.msra.mxu0 0.0
  %5574 = vmatprep.subr.mxu0 0.0
  %5575 = vmatpush1.msra.mxu0 0.0
  %5576 = vmatprep.subr.mxu0 0.0
  %5577 = vmatpush1.msra.mxu0 0.0
  %5578 = vmatprep.subr.mxu0 0.0
  %5579 = vmatpush1.msra.mxu0 0.0
  %5580 = vmatprep.subr.mxu0 0.0
  %5581 = vmatpush1.msra.mxu0 0.0
  %5582 = vmatprep.subr.mxu0 0.0
  %5583 = vmatpush1.msra.mxu0 0.0
  %5584 = vmatprep.subr.mxu0 0.0
  %5585 = vmatpush1.msra.mxu0 0.0
  %5586 = vmatprep.subr.mxu0 0.0
  %5587 = vmatpush1.msra.mxu0 0.0
  %5588 = vmatprep.subr.mxu0 0.0
  %5589 = vmatpush1.msra.mxu0 0.0
  %5590 = vmatprep.subr.mxu0 0.0
  %5591 = vmatpush1.msra.mxu0 0.0
  %5592 = vmatprep.subr.mxu0 0.0
  %5593 = vmatpush1.msra.mxu0 0.0
  %5594 = vmatprep.subr.mxu0 0.0
  %5595 = vmatpush1.msra.mxu0 0.0
  %5596 = vmatprep.subr.mxu0 0.0
  %5597 = vmatpush1.msra.mxu0 0.0
  %5598 = vmatprep.subr.mxu0 0.0
  %5599 = vmatpush1.msra.mxu0 0.0
  %5600 = vmatprep.subr.mxu0 0.0
  %5601 = vmatpush1.msra.mxu0 0.0
  %5602 = vmatprep.subr.mxu0 0.0
  %5603 = vmatpush1.msra.mxu0 0.0
  %5604 = vmatprep.subr.mxu0 0.0
  %5605 = vmatpush1.msra.mxu0 0.0
  %5606 = vmatprep.subr.mxu0 0.0
  %5607 = vmatpush1.msra.mxu0 0.0
  %5608 = vmatprep.mubr.f32.mxu0 0.0
  %v5609 = vand.u32 %v5388, 4294901760
  %v5610 = vsub.f32 %v5388, %v5609
  %5611 = vmatmul.mubr.f32.gmra.mrb[0].mxu0 %v5610
  %v5612 = vpop.f32.mrb[0].mxu0
  %v5613 = vadd.f32 %v5539, %v5612
  %v5614 = vpop.f32.mrb[0].mxu0
  %5615 = vdwg.mxu0
  %5616 = vmatprep.subr.mxu0 0.0
  %v5617 = vand.u32 %v1329, 4294901760
  %5618 = vmatpush1.msra.mxu0 %v5617
  %5619 = vmatprep.subr.mxu0 0.0
  %5620 = vmatpush1.msra.mxu0 0.0
  %5621 = vmatprep.subr.mxu0 0.0
  %5622 = vmatpush1.msra.mxu0 0.0
  %5623 = vmatprep.subr.mxu0 0.0
  %5624 = vmatpush1.msra.mxu0 0.0
  %5625 = vmatprep.subr.mxu0 0.0
  %5626 = vmatpush1.msra.mxu0 0.0
  %5627 = vmatprep.subr.mxu0 0.0
  %5628 = vmatpush1.msra.mxu0 0.0
  %5629 = vmatprep.subr.mxu0 0.0
  %5630 = vmatpush1.msra.mxu0 0.0
  %5631 = vmatprep.subr.mxu0 0.0
  %5632 = vmatpush1.msra.mxu0 0.0
  %5633 = vmatprep.subr.mxu0 0.0
  %5634 = vmatpush1.msra.mxu0 0.0
  %5635 = vmatprep.subr.mxu0 0.0
  %5636 = vmatpush1.msra.mxu0 0.0
  %5637 = vmatprep.subr.mxu0 0.0
  %5638 = vmatpush1.msra.mxu0 0.0
  %5639 = vmatprep.subr.mxu0 0.0
  %5640 = vmatpush1.msra.mxu0 0.0
  %5641 = vmatprep.subr.mxu0 0.0
  %5642 = vmatpush1.msra.mxu0 0.0
  %5643 = vmatprep.subr.mxu0 0.0
  %5644 = vmatpush1.msra.mxu0 0.0
  %5645 = vmatprep.subr.mxu0 0.0
  %5646 = vmatpush1.msra.mxu0 0.0
  %5647 = vmatprep.subr.mxu0 0.0
  %5648 = vmatpush1.msra.mxu0 0.0
  %5649 = vmatprep.subr.mxu0 0.0
  %5650 = vmatpush1.msra.mxu0 0.0
  %5651 = vmatprep.subr.mxu0 0.0
  %5652 = vmatpush1.msra.mxu0 0.0
  %5653 = vmatprep.subr.mxu0 0.0
  %5654 = vmatpush1.msra.mxu0 0.0
  %5655 = vmatprep.subr.mxu0 0.0
  %5656 = vmatpush1.msra.mxu0 0.0
  %5657 = vmatprep.subr.mxu0 0.0
  %5658 = vmatpush1.msra.mxu0 0.0
  %5659 = vmatprep.subr.mxu0 0.0
  %5660 = vmatpush1.msra.mxu0 0.0
  %5661 = vmatprep.subr.mxu0 0.0
  %5662 = vmatpush1.msra.mxu0 0.0
  %5663 = vmatprep.subr.mxu0 0.0
  %5664 = vmatpush1.msra.mxu0 0.0
  %5665 = vmatprep.subr.mxu0 0.0
  %5666 = vmatpush1.msra.mxu0 0.0
  %5667 = vmatprep.subr.mxu0 0.0
  %5668 = vmatpush1.msra.mxu0 0.0
  %5669 = vmatprep.subr.mxu0 0.0
  %5670 = vmatpush1.msra.mxu0 0.0
  %5671 = vmatprep.subr.mxu0 0.0
  %5672 = vmatpush1.msra.mxu0 0.0
  %5673 = vmatprep.subr.mxu0 0.0
  %5674 = vmatpush1.msra.mxu0 0.0
  %5675 = vmatprep.subr.mxu0 0.0
  %5676 = vmatpush1.msra.mxu0 0.0
  %5677 = vmatprep.subr.mxu0 0.0
  %5678 = vmatpush1.msra.mxu0 0.0
  %5679 = vmatprep.subr.mxu0 0.0
  %5680 = vmatpush1.msra.mxu0 0.0
  %5681 = vmatprep.mubr.f32.mxu0 0.0
  %v5682 = vand.u32 %v5388, 4294901760
  %v5683 = vsub.f32 %v5388, %v5682
  %v5684 = vand.u32 %v5683, 4294901760
  %5685 = vmatmul.mubr.f32.gmra.mrb[0].mxu0 %v5684
  %v5686 = vpop.f32.mrb[0].mxu0
  %v5687 = vadd.f32 %v5613, %v5686
  %v5688 = vpop.f32.mrb[0].mxu0
  %5689 = vdwg.mxu0
  %5690 = vmatprep.subr.mxu0 0.0
  %v5691 = vand.u32 %v1329, 4294901760
  %v5692 = vsub.f32 %v1329, %v5691
  %v5693 = vand.u32 %v5692, 4294901760
  %5694 = vmatpush1.msra.mxu0 %v5693
  %5695 = vmatprep.subr.mxu0 0.0
  %5696 = vmatpush1.msra.mxu0 0.0
  %5697 = vmatprep.subr.mxu0 0.0
  %5698 = vmatpush1.msra.mxu0 0.0
  %5699 = vmatprep.subr.mxu0 0.0
  %5700 = vmatpush1.msra.mxu0 0.0
  %5701 = vmatprep.subr.mxu0 0.0
  %5702 = vmatpush1.msra.mxu0 0.0
  %5703 = vmatprep.subr.mxu0 0.0
  %5704 = vmatpush1.msra.mxu0 0.0
  %5705 = vmatprep.subr.mxu0 0.0
  %5706 = vmatpush1.msra.mxu0 0.0
  %5707 = vmatprep.subr.mxu0 0.0
  %5708 = vmatpush1.msra.mxu0 0.0
  %5709 = vmatprep.subr.mxu0 0.0
  %5710 = vmatpush1.msra.mxu0 0.0
  %5711 = vmatprep.subr.mxu0 0.0
  %5712 = vmatpush1.msra.mxu0 0.0
  %5713 = vmatprep.subr.mxu0 0.0
  %5714 = vmatpush1.msra.mxu0 0.0
  %5715 = vmatprep.subr.mxu0 0.0
  %5716 = vmatpush1.msra.mxu0 0.0
  %5717 = vmatprep.subr.mxu0 0.0
  %5718 = vmatpush1.msra.mxu0 0.0
  %5719 = vmatprep.subr.mxu0 0.0
  %5720 = vmatpush1.msra.mxu0 0.0
  %5721 = vmatprep.subr.mxu0 0.0
  %5722 = vmatpush1.msra.mxu0 0.0
  %5723 = vmatprep.subr.mxu0 0.0
  %5724 = vmatpush1.msra.mxu0 0.0
  %5725 = vmatprep.subr.mxu0 0.0
  %5726 = vmatpush1.msra.mxu0 0.0
  %5727 = vmatprep.subr.mxu0 0.0
  %5728 = vmatpush1.msra.mxu0 0.0
  %5729 = vmatprep.subr.mxu0 0.0
  %5730 = vmatpush1.msra.mxu0 0.0
  %5731 = vmatprep.subr.mxu0 0.0
  %5732 = vmatpush1.msra.mxu0 0.0
  %5733 = vmatprep.subr.mxu0 0.0
  %5734 = vmatpush1.msra.mxu0 0.0
  %5735 = vmatprep.subr.mxu0 0.0
  %5736 = vmatpush1.msra.mxu0 0.0
  %5737 = vmatprep.subr.mxu0 0.0
  %5738 = vmatpush1.msra.mxu0 0.0
  %5739 = vmatprep.subr.mxu0 0.0
  %5740 = vmatpush1.msra.mxu0 0.0
  %5741 = vmatprep.subr.mxu0 0.0
  %5742 = vmatpush1.msra.mxu0 0.0
  %5743 = vmatprep.subr.mxu0 0.0
  %5744 = vmatpush1.msra.mxu0 0.0
  %5745 = vmatprep.subr.mxu0 0.0
  %5746 = vmatpush1.msra.mxu0 0.0
  %5747 = vmatprep.subr.mxu0 0.0
  %5748 = vmatpush1.msra.mxu0 0.0
  %5749 = vmatprep.subr.mxu0 0.0
  %5750 = vmatpush1.msra.mxu0 0.0
  %5751 = vmatprep.subr.mxu0 0.0
  %5752 = vmatpush1.msra.mxu0 0.0
  %5753 = vmatprep.subr.mxu0 0.0
  %5754 = vmatpush1.msra.mxu0 0.0
  %5755 = vmatprep.subr.mxu0 0.0
  %5756 = vmatpush1.msra.mxu0 0.0
  %5757 = vmatprep.mubr.f32.mxu0 0.0
  %v5758 = vand.u32 %v5388, 4294901760
  %5759 = vmatmul.mubr.f32.gmra.mrb[0].mxu0 %v5758
  %v5760 = vpop.f32.mrb[0].mxu0
  %v5761 = vadd.f32 %v5687, %v5760
  %v5762 = vpop.f32.mrb[0].mxu0
  %5763 = vdwg.mxu0
  %5764 = vmatprep.subr.mxu0 0.0
  %v5765 = vand.u32 %v1329, 4294901760
  %5766 = vmatpush1.msra.mxu0 %v5765
  %5767 = vmatprep.subr.mxu0 0.0
  %5768 = vmatpush1.msra.mxu0 0.0
  %5769 = vmatprep.subr.mxu0 0.0
  %5770 = vmatpush1.msra.mxu0 0.0
  %5771 = vmatprep.subr.mxu0 0.0
  %5772 = vmatpush1.msra.mxu0 0.0
  %5773 = vmatprep.subr.mxu0 0.0
  %5774 = vmatpush1.msra.mxu0 0.0
  %5775 = vmatprep.subr.mxu0 0.0
  %5776 = vmatpush1.msra.mxu0 0.0
  %5777 = vmatprep.subr.mxu0 0.0
  %5778 = vmatpush1.msra.mxu0 0.0
  %5779 = vmatprep.subr.mxu0 0.0
  %5780 = vmatpush1.msra.mxu0 0.0
  %5781 = vmatprep.subr.mxu0 0.0
  %5782 = vmatpush1.msra.mxu0 0.0
  %5783 = vmatprep.subr.mxu0 0.0
  %5784 = vmatpush1.msra.mxu0 0.0
  %5785 = vmatprep.subr.mxu0 0.0
  %5786 = vmatpush1.msra.mxu0 0.0
  %5787 = vmatprep.subr.mxu0 0.0
  %5788 = vmatpush1.msra.mxu0 0.0
  %5789 = vmatprep.subr.mxu0 0.0
  %5790 = vmatpush1.msra.mxu0 0.0
  %5791 = vmatprep.subr.mxu0 0.0
  %5792 = vmatpush1.msra.mxu0 0.0
  %5793 = vmatprep.subr.mxu0 0.0
  %5794 = vmatpush1.msra.mxu0 0.0
  %5795 = vmatprep.subr.mxu0 0.0
  %5796 = vmatpush1.msra.mxu0 0.0
  %5797 = vmatprep.subr.mxu0 0.0
  %5798 = vmatpush1.msra.mxu0 0.0
  %5799 = vmatprep.subr.mxu0 0.0
  %5800 = vmatpush1.msra.mxu0 0.0
  %5801 = vmatprep.subr.mxu0 0.0
  %5802 = vmatpush1.msra.mxu0 0.0
  %5803 = vmatprep.subr.mxu0 0.0
  %5804 = vmatpush1.msra.mxu0 0.0
  %5805 = vmatprep.subr.mxu0 0.0
  %5806 = vmatpush1.msra.mxu0 0.0
  %5807 = vmatprep.subr.mxu0 0.0
  %5808 = vmatpush1.msra.mxu0 0.0
  %5809 = vmatprep.subr.mxu0 0.0
  %5810 = vmatpush1.msra.mxu0 0.0
  %5811 = vmatprep.subr.mxu0 0.0
  %5812 = vmatpush1.msra.mxu0 0.0
  %5813 = vmatprep.subr.mxu0 0.0
  %5814 = vmatpush1.msra.mxu0 0.0
  %5815 = vmatprep.subr.mxu0 0.0
  %5816 = vmatpush1.msra.mxu0 0.0
  %5817 = vmatprep.subr.mxu0 0.0
  %5818 = vmatpush1.msra.mxu0 0.0
  %5819 = vmatprep.subr.mxu0 0.0
  %5820 = vmatpush1.msra.mxu0 0.0
  %5821 = vmatprep.subr.mxu0 0.0
  %5822 = vmatpush1.msra.mxu0 0.0
  %5823 = vmatprep.subr.mxu0 0.0
  %5824 = vmatpush1.msra.mxu0 0.0
  %5825 = vmatprep.subr.mxu0 0.0
  %5826 = vmatpush1.msra.mxu0 0.0
  %5827 = vmatprep.subr.mxu0 0.0
  %5828 = vmatpush1.msra.mxu0 0.0
  %5829 = vmatprep.mubr.f32.mxu0 0.0
  %v5830 = vand.u32 %v5388, 4294901760
  %5831 = vmatmul.mubr.f32.gmra.mrb[0].mxu0 %v5830
  %v5832 = vpop.f32.mrb[0].mxu0
  %v5833 = vadd.f32 %v5761, %v5832
  %v5834 = vpop.f32.mrb[0].mxu0
  %5835 = vdwg.mxu0
  %v5836 = vlaneseq
  %v5837 = vshrl.u32 %v5836, 7
  %v5838 = vsub.s32 0, %v5837
  %v5839 = vrot.slane %v5833, %v5838
  %v5840 = vmul.f32 %v4703, %v5839
  %v5841 = vmul.f32 %v4704, %v5839
  %v5842 = vlaneseq
  %v5843 = vshrl.u32 %v5842, 7
  %v5844 = vsub.s32 1, %v5843
  %v5845 = vrot.slane %v5833, %v5844
  %v5846 = vadd.f32 %v5840, %v5845
  %v5847 = vadd.f32 %v5841, %v5845
  %v5849 = vrot.slane %v5846, 7
  %v5851 = vsel %vm662, 0.0, %v5849
  %v5852 = vsel %vm662, %v5849, 0.0
  %v5855 = vrot.slane %v5851, 1
  %v5856 = vrot.slane %v5852, 1
  %v5857 = vsel %vm1796, %v5855, %v5856
  %v5859 = vrot.slane %v5851, 2
  %v5860 = vrot.slane %v5852, 2
  %v5861 = vsel %vm1801, %v5859, %v5860
  %v5864 = vrot.slane %v5847, 7
  %v5866 = vsel %vm662, 0.0, %v5864
  %v5867 = vsel %vm662, %v5864, 0.0
  %v5870 = vrot.slane %v5866, 1
  %v5871 = vrot.slane %v5867, 1
  %v5872 = vsel %vm1796, %v5870, %v5871
  %v5874 = vrot.slane %v5866, 2
  %v5875 = vrot.slane %v5867, 2
  %v5876 = vsel %vm1801, %v5874, %v5875
  %v5878 = vld [vmem:[%s4] sm:$0xff]
  %v5879 = vld [vmem:[%s4 + $0x8] sm:$0xff]
  %v5880 = vld [vmem:[%s4 + $0x10] sm:$0xff]
  %v5881 = vld [vmem:[%s4 + $0x18] sm:$0xff]
  %v5882 = vld [vmem:[%s4 + $0x20] sm:$0xff]
  %v5883 = vld [vmem:[%s4 + $0x28] sm:$0xff]
  %v5884 = vld [vmem:[%s4 + $0x30] sm:$0xff]
  %v5885 = vld [vmem:[%s4 + $0x38] sm:$0xff]
  %v5886 = vld [vmem:[%s4 + $0x40] sm:$0xff]
  %v5887 = vld [vmem:[%s4 + $0x48] sm:$0xff]
  %v5888 = vld [vmem:[%s4 + $0x50] sm:$0xff]
  %v5889 = vld [vmem:[%s4 + $0x58] sm:$0xff]
  %v5890 = vld [vmem:[%s4 + $0x60] sm:$0xff]
  %v5891 = vld [vmem:[%s4 + $0x68] sm:$0xff]
  %v5892 = vld [vmem:[%s4 + $0x70] sm:$0xff]
  %v5893 = vld [vmem:[%s4 + $0x78] sm:$0xff]
  %v5894 = vld [vmem:[%s4 + $0x80] sm:$0xff]
  %v5895 = vld [vmem:[%s4 + $0x88] sm:$0xff]
  %v5896 = vld [vmem:[%s4 + $0x90] sm:$0xff]
  %v5897 = vld [vmem:[%s4 + $0x98] sm:$0xff]
  %v5898 = vld [vmem:[%s4 + $0xa0] sm:$0xff]
  %v5899 = vld [vmem:[%s4 + $0xa8] sm:$0xff]
  %v5900 = vld [vmem:[%s4 + $0xb0] sm:$0xff]
  %v5901 = vld [vmem:[%s4 + $0xb8] sm:$0xff]
  %v5902 = vld [vmem:[%s4 + $0xc0] sm:$0xff]
  %v5903 = vld [vmem:[%s4 + $0xc8] sm:$0xff]
  %v5904 = vld [vmem:[%s4 + $0xd0] sm:$0xff]
  %v5905 = vld [vmem:[%s4 + $0xd8] sm:$0xff]
  %v5906 = vld [vmem:[%s4 + $0xe0] sm:$0xff]
  %v5907 = vld [vmem:[%s4 + $0xe8] sm:$0xff]
  %v5908 = vld [vmem:[%s4 + $0xf0] sm:$0xff]
  %v5909 = vld [vmem:[%s4 + $0xf8] sm:$0xff]
  %v5910 = vld [vmem:[%s4 + $0x100] sm:$0xff]
  %v5911 = vld [vmem:[%s4 + $0x108] sm:$0xff]
  %v5912 = vld [vmem:[%s4 + $0x110] sm:$0xff]
  %v5913 = vld [vmem:[%s4 + $0x118] sm:$0xff]
  %v5914 = vld [vmem:[%s4 + $0x120] sm:$0xff]
  %v5915 = vld [vmem:[%s4 + $0x128] sm:$0xff]
  %v5916 = vld [vmem:[%s4 + $0x130] sm:$0xff]
  %v5917 = vld [vmem:[%s4 + $0x138] sm:$0xff]
  %v5918 = vld [vmem:[%s4 + $0x140] sm:$0xff]
  %v5919 = vld [vmem:[%s4 + $0x148] sm:$0xff]
  %v5920 = vld [vmem:[%s4 + $0x150] sm:$0xff]
  %v5921 = vld [vmem:[%s4 + $0x158] sm:$0xff]
  %v5922 = vld [vmem:[%s4 + $0x160] sm:$0xff]
  %v5923 = vld [vmem:[%s4 + $0x168] sm:$0xff]
  %v5924 = vld [vmem:[%s4 + $0x170] sm:$0xff]
  %v5925 = vld [vmem:[%s4 + $0x178] sm:$0xff]
  %5926 = vmatprep.subr.mxu0 0.0
  %v5927 = vand.u32 %v5878, 4294901760
  %5928 = vmatpush1.msra.mxu0 %v5927
  %5929 = vmatprep.subr.mxu0 0.0
  %v5930 = vand.u32 %v5879, 4294901760
  %5931 = vmatpush1.msra.mxu0 %v5930
  %5932 = vmatprep.subr.mxu0 0.0
  %v5933 = vand.u32 %v5880, 4294901760
  %5934 = vmatpush1.msra.mxu0 %v5933
  %5935 = vmatprep.subr.mxu0 0.0
  %v5936 = vand.u32 %v5881, 4294901760
  %5937 = vmatpush1.msra.mxu0 %v5936
  %5938 = vmatprep.subr.mxu0 0.0
  %v5939 = vand.u32 %v5882, 4294901760
  %5940 = vmatpush1.msra.mxu0 %v5939
  %5941 = vmatprep.subr.mxu0 0.0
  %v5942 = vand.u32 %v5883, 4294901760
  %5943 = vmatpush1.msra.mxu0 %v5942
  %5944 = vmatprep.subr.mxu0 0.0
  %v5945 = vand.u32 %v5884, 4294901760
  %5946 = vmatpush1.msra.mxu0 %v5945
  %5947 = vmatprep.subr.mxu0 0.0
  %v5948 = vand.u32 %v5885, 4294901760
  %5949 = vmatpush1.msra.mxu0 %v5948
  %5950 = vmatprep.subr.mxu0 0.0
  %v5951 = vand.u32 %v5886, 4294901760
  %5952 = vmatpush1.msra.mxu0 %v5951
  %5953 = vmatprep.subr.mxu0 0.0
  %v5954 = vand.u32 %v5887, 4294901760
  %5955 = vmatpush1.msra.mxu0 %v5954
  %5956 = vmatprep.subr.mxu0 0.0
  %v5957 = vand.u32 %v5888, 4294901760
  %5958 = vmatpush1.msra.mxu0 %v5957
  %5959 = vmatprep.subr.mxu0 0.0
  %v5960 = vand.u32 %v5889, 4294901760
  %5961 = vmatpush1.msra.mxu0 %v5960
  %5962 = vmatprep.subr.mxu0 0.0
  %v5963 = vand.u32 %v5890, 4294901760
  %5964 = vmatpush1.msra.mxu0 %v5963
  %5965 = vmatprep.subr.mxu0 0.0
  %v5966 = vand.u32 %v5891, 4294901760
  %5967 = vmatpush1.msra.mxu0 %v5966
  %5968 = vmatprep.subr.mxu0 0.0
  %v5969 = vand.u32 %v5892, 4294901760
  %5970 = vmatpush1.msra.mxu0 %v5969
  %5971 = vmatprep.subr.mxu0 0.0
  %v5972 = vand.u32 %v5893, 4294901760
  %5973 = vmatpush1.msra.mxu0 %v5972
  %5974 = vmatprep.subr.mxu0 0.0
  %v5975 = vand.u32 %v5894, 4294901760
  %5976 = vmatpush1.msra.mxu0 %v5975
  %5977 = vmatprep.subr.mxu0 0.0
  %v5978 = vand.u32 %v5895, 4294901760
  %5979 = vmatpush1.msra.mxu0 %v5978
  %5980 = vmatprep.subr.mxu0 0.0
  %v5981 = vand.u32 %v5896, 4294901760
  %5982 = vmatpush1.msra.mxu0 %v5981
  %5983 = vmatprep.subr.mxu0 0.0
  %v5984 = vand.u32 %v5897, 4294901760
  %5985 = vmatpush1.msra.mxu0 %v5984
  %5986 = vmatprep.subr.mxu0 0.0
  %v5987 = vand.u32 %v5898, 4294901760
  %5988 = vmatpush1.msra.mxu0 %v5987
  %5989 = vmatprep.subr.mxu0 0.0
  %v5990 = vand.u32 %v5899, 4294901760
  %5991 = vmatpush1.msra.mxu0 %v5990
  %5992 = vmatprep.subr.mxu0 0.0
  %v5993 = vand.u32 %v5900, 4294901760
  %5994 = vmatpush1.msra.mxu0 %v5993
  %5995 = vmatprep.subr.mxu0 0.0
  %v5996 = vand.u32 %v5901, 4294901760
  %5997 = vmatpush1.msra.mxu0 %v5996
  %5998 = vmatprep.subr.mxu0 0.0
  %v5999 = vand.u32 %v5902, 4294901760
  %6000 = vmatpush1.msra.mxu0 %v5999
  %6001 = vmatprep.subr.mxu0 0.0
  %v6002 = vand.u32 %v5903, 4294901760
  %6003 = vmatpush1.msra.mxu0 %v6002
  %6004 = vmatprep.subr.mxu0 0.0
  %v6005 = vand.u32 %v5904, 4294901760
  %6006 = vmatpush1.msra.mxu0 %v6005
  %6007 = vmatprep.subr.mxu0 0.0
  %v6008 = vand.u32 %v5905, 4294901760
  %6009 = vmatpush1.msra.mxu0 %v6008
  %6010 = vmatprep.subr.mxu0 0.0
  %v6011 = vand.u32 %v5906, 4294901760
  %6012 = vmatpush1.msra.mxu0 %v6011
  %6013 = vmatprep.subr.mxu0 0.0
  %v6014 = vand.u32 %v5907, 4294901760
  %6015 = vmatpush1.msra.mxu0 %v6014
  %6016 = vmatprep.subr.mxu0 0.0
  %v6017 = vand.u32 %v5908, 4294901760
  %6018 = vmatpush1.msra.mxu0 %v6017
  %6019 = vmatprep.subr.mxu0 0.0
  %v6020 = vand.u32 %v5909, 4294901760
  %6021 = vmatpush1.msra.mxu0 %v6020
  %v6022 = vand.u32 %v5857, 4294901760
  %v6023 = vsub.f32 %v5857, %v6022
  %v6024 = vand.u32 %v6023, 4294901760
  %v6025 = vsub.f32 %v6023, %v6024
  %v6026 = vand.u32 %v6025, 4294901760
  %6027 = vmatprep.mubr.f32.mxu0 %v6026
  %v6028 = vand.u32 %v5851, 4294901760
  %v6029 = vsub.f32 %v5851, %v6028
  %v6030 = vand.u32 %v6029, 4294901760
  %v6031 = vsub.f32 %v6029, %v6030
  %v6032 = vand.u32 %v6031, 4294901760
  %6033 = vmatmul.mubr.f32.gmra.mrb[0].mxu0 %v6032
  %v6034 = vpop.f32.mrb[0].mxu0
  %v6035 = vadd.f32 0.0, %v6034
  %v6036 = vpop.f32.mrb[0].mxu0
  %v6037 = vand.u32 %v5872, 4294901760
  %v6038 = vsub.f32 %v5872, %v6037
  %v6039 = vand.u32 %v6038, 4294901760
  %v6040 = vsub.f32 %v6038, %v6039
  %v6041 = vand.u32 %v6040, 4294901760
  %6042 = vmatprep.mubr.f32.mxu0 %v6041
  %v6043 = vand.u32 %v5866, 4294901760
  %v6044 = vsub.f32 %v5866, %v6043
  %v6045 = vand.u32 %v6044, 4294901760
  %v6046 = vsub.f32 %v6044, %v6045
  %v6047 = vand.u32 %v6046, 4294901760
  %6048 = vmatmul.mubr.f32.gmra.mrb[0].mxu0 %v6047
  %v6049 = vpop.f32.mrb[0].mxu0
  %v6050 = vadd.f32 0.0, %v6049
  %v6051 = vpop.f32.mrb[0].mxu0
  %6052 = vdwg.mxu0
  %6053 = vmatprep.subr.mxu0 0.0
  %v6054 = vand.u32 %v5878, 4294901760
  %v6055 = vsub.f32 %v5878, %v6054
  %v6056 = vand.u32 %v6055, 4294901760
  %v6057 = vsub.f32 %v6055, %v6056
  %v6058 = vand.u32 %v6057, 4294901760
  %6059 = vmatpush1.msra.mxu0 %v6058
  %6060 = vmatprep.subr.mxu0 0.0
  %v6061 = vand.u32 %v5879, 4294901760
  %v6062 = vsub.f32 %v5879, %v6061
  %v6063 = vand.u32 %v6062, 4294901760
  %v6064 = vsub.f32 %v6062, %v6063
  %v6065 = vand.u32 %v6064, 4294901760
  %6066 = vmatpush1.msra.mxu0 %v6065
  %6067 = vmatprep.subr.mxu0 0.0
  %v6068 = vand.u32 %v5880, 4294901760
  %v6069 = vsub.f32 %v5880, %v6068
  %v6070 = vand.u32 %v6069, 4294901760
  %v6071 = vsub.f32 %v6069, %v6070
  %v6072 = vand.u32 %v6071, 4294901760
  %6073 = vmatpush1.msra.mxu0 %v6072
  %6074 = vmatprep.subr.mxu0 0.0
  %v6075 = vand.u32 %v5881, 4294901760
  %v6076 = vsub.f32 %v5881, %v6075
  %v6077 = vand.u32 %v6076, 4294901760
  %v6078 = vsub.f32 %v6076, %v6077
  %v6079 = vand.u32 %v6078, 4294901760
  %6080 = vmatpush1.msra.mxu0 %v6079
  %6081 = vmatprep.subr.mxu0 0.0
  %v6082 = vand.u32 %v5882, 4294901760
  %v6083 = vsub.f32 %v5882, %v6082
  %v6084 = vand.u32 %v6083, 4294901760
  %v6085 = vsub.f32 %v6083, %v6084
  %v6086 = vand.u32 %v6085, 4294901760
  %6087 = vmatpush1.msra.mxu0 %v6086
  %6088 = vmatprep.subr.mxu0 0.0
  %v6089 = vand.u32 %v5883, 4294901760
  %v6090 = vsub.f32 %v5883, %v6089
  %v6091 = vand.u32 %v6090, 4294901760
  %v6092 = vsub.f32 %v6090, %v6091
  %v6093 = vand.u32 %v6092, 4294901760
  %6094 = vmatpush1.msra.mxu0 %v6093
  %6095 = vmatprep.subr.mxu0 0.0
  %v6096 = vand.u32 %v5884, 4294901760
  %v6097 = vsub.f32 %v5884, %v6096
  %v6098 = vand.u32 %v6097, 4294901760
  %v6099 = vsub.f32 %v6097, %v6098
  %v6100 = vand.u32 %v6099, 4294901760
  %6101 = vmatpush1.msra.mxu0 %v6100
  %6102 = vmatprep.subr.mxu0 0.0
  %v6103 = vand.u32 %v5885, 4294901760
  %v6104 = vsub.f32 %v5885, %v6103
  %v6105 = vand.u32 %v6104, 4294901760
  %v6106 = vsub.f32 %v6104, %v6105
  %v6107 = vand.u32 %v6106, 4294901760
  %6108 = vmatpush1.msra.mxu0 %v6107
  %6109 = vmatprep.subr.mxu0 0.0
  %v6110 = vand.u32 %v5886, 4294901760
  %v6111 = vsub.f32 %v5886, %v6110
  %v6112 = vand.u32 %v6111, 4294901760
  %v6113 = vsub.f32 %v6111, %v6112
  %v6114 = vand.u32 %v6113, 4294901760
  %6115 = vmatpush1.msra.mxu0 %v6114
  %6116 = vmatprep.subr.mxu0 0.0
  %v6117 = vand.u32 %v5887, 4294901760
  %v6118 = vsub.f32 %v5887, %v6117
  %v6119 = vand.u32 %v6118, 4294901760
  %v6120 = vsub.f32 %v6118, %v6119
  %v6121 = vand.u32 %v6120, 4294901760
  %6122 = vmatpush1.msra.mxu0 %v6121
  %6123 = vmatprep.subr.mxu0 0.0
  %v6124 = vand.u32 %v5888, 4294901760
  %v6125 = vsub.f32 %v5888, %v6124
  %v6126 = vand.u32 %v6125, 4294901760
  %v6127 = vsub.f32 %v6125, %v6126
  %v6128 = vand.u32 %v6127, 4294901760
  %6129 = vmatpush1.msra.mxu0 %v6128
  %6130 = vmatprep.subr.mxu0 0.0
  %v6131 = vand.u32 %v5889, 4294901760
  %v6132 = vsub.f32 %v5889, %v6131
  %v6133 = vand.u32 %v6132, 4294901760
  %v6134 = vsub.f32 %v6132, %v6133
  %v6135 = vand.u32 %v6134, 4294901760
  %6136 = vmatpush1.msra.mxu0 %v6135
  %6137 = vmatprep.subr.mxu0 0.0
  %v6138 = vand.u32 %v5890, 4294901760
  %v6139 = vsub.f32 %v5890, %v6138
  %v6140 = vand.u32 %v6139, 4294901760
  %v6141 = vsub.f32 %v6139, %v6140
  %v6142 = vand.u32 %v6141, 4294901760
  %6143 = vmatpush1.msra.mxu0 %v6142
  %6144 = vmatprep.subr.mxu0 0.0
  %v6145 = vand.u32 %v5891, 4294901760
  %v6146 = vsub.f32 %v5891, %v6145
  %v6147 = vand.u32 %v6146, 4294901760
  %v6148 = vsub.f32 %v6146, %v6147
  %v6149 = vand.u32 %v6148, 4294901760
  %6150 = vmatpush1.msra.mxu0 %v6149
  %6151 = vmatprep.subr.mxu0 0.0
  %v6152 = vand.u32 %v5892, 4294901760
  %v6153 = vsub.f32 %v5892, %v6152
  %v6154 = vand.u32 %v6153, 4294901760
  %v6155 = vsub.f32 %v6153, %v6154
  %v6156 = vand.u32 %v6155, 4294901760
  %6157 = vmatpush1.msra.mxu0 %v6156
  %6158 = vmatprep.subr.mxu0 0.0
  %v6159 = vand.u32 %v5893, 4294901760
  %v6160 = vsub.f32 %v5893, %v6159
  %v6161 = vand.u32 %v6160, 4294901760
  %v6162 = vsub.f32 %v6160, %v6161
  %v6163 = vand.u32 %v6162, 4294901760
  %6164 = vmatpush1.msra.mxu0 %v6163
  %6165 = vmatprep.subr.mxu0 0.0
  %v6166 = vand.u32 %v5894, 4294901760
  %v6167 = vsub.f32 %v5894, %v6166
  %v6168 = vand.u32 %v6167, 4294901760
  %v6169 = vsub.f32 %v6167, %v6168
  %v6170 = vand.u32 %v6169, 4294901760
  %6171 = vmatpush1.msra.mxu0 %v6170
  %6172 = vmatprep.subr.mxu0 0.0
  %v6173 = vand.u32 %v5895, 4294901760
  %v6174 = vsub.f32 %v5895, %v6173
  %v6175 = vand.u32 %v6174, 4294901760
  %v6176 = vsub.f32 %v6174, %v6175
  %v6177 = vand.u32 %v6176, 4294901760
  %6178 = vmatpush1.msra.mxu0 %v6177
  %6179 = vmatprep.subr.mxu0 0.0
  %v6180 = vand.u32 %v5896, 4294901760
  %v6181 = vsub.f32 %v5896, %v6180
  %v6182 = vand.u32 %v6181, 4294901760
  %v6183 = vsub.f32 %v6181, %v6182
  %v6184 = vand.u32 %v6183, 4294901760
  %6185 = vmatpush1.msra.mxu0 %v6184
  %6186 = vmatprep.subr.mxu0 0.0
  %v6187 = vand.u32 %v5897, 4294901760
  %v6188 = vsub.f32 %v5897, %v6187
  %v6189 = vand.u32 %v6188, 4294901760
  %v6190 = vsub.f32 %v6188, %v6189
  %v6191 = vand.u32 %v6190, 4294901760
  %6192 = vmatpush1.msra.mxu0 %v6191
  %6193 = vmatprep.subr.mxu0 0.0
  %v6194 = vand.u32 %v5898, 4294901760
  %v6195 = vsub.f32 %v5898, %v6194
  %v6196 = vand.u32 %v6195, 4294901760
  %v6197 = vsub.f32 %v6195, %v6196
  %v6198 = vand.u32 %v6197, 4294901760
  %6199 = vmatpush1.msra.mxu0 %v6198
  %6200 = vmatprep.subr.mxu0 0.0
  %v6201 = vand.u32 %v5899, 4294901760
  %v6202 = vsub.f32 %v5899, %v6201
  %v6203 = vand.u32 %v6202, 4294901760
  %v6204 = vsub.f32 %v6202, %v6203
  %v6205 = vand.u32 %v6204, 4294901760
  %6206 = vmatpush1.msra.mxu0 %v6205
  %6207 = vmatprep.subr.mxu0 0.0
  %v6208 = vand.u32 %v5900, 4294901760
  %v6209 = vsub.f32 %v5900, %v6208
  %v6210 = vand.u32 %v6209, 4294901760
  %v6211 = vsub.f32 %v6209, %v6210
  %v6212 = vand.u32 %v6211, 4294901760
  %6213 = vmatpush1.msra.mxu0 %v6212
  %6214 = vmatprep.subr.mxu0 0.0
  %v6215 = vand.u32 %v5901, 4294901760
  %v6216 = vsub.f32 %v5901, %v6215
  %v6217 = vand.u32 %v6216, 4294901760
  %v6218 = vsub.f32 %v6216, %v6217
  %v6219 = vand.u32 %v6218, 4294901760
  %6220 = vmatpush1.msra.mxu0 %v6219
  %6221 = vmatprep.subr.mxu0 0.0
  %v6222 = vand.u32 %v5902, 4294901760
  %v6223 = vsub.f32 %v5902, %v6222
  %v6224 = vand.u32 %v6223, 4294901760
  %v6225 = vsub.f32 %v6223, %v6224
  %v6226 = vand.u32 %v6225, 4294901760
  %6227 = vmatpush1.msra.mxu0 %v6226
  %6228 = vmatprep.subr.mxu0 0.0
  %v6229 = vand.u32 %v5903, 4294901760
  %v6230 = vsub.f32 %v5903, %v6229
  %v6231 = vand.u32 %v6230, 4294901760
  %v6232 = vsub.f32 %v6230, %v6231
  %v6233 = vand.u32 %v6232, 4294901760
  %6234 = vmatpush1.msra.mxu0 %v6233
  %6235 = vmatprep.subr.mxu0 0.0
  %v6236 = vand.u32 %v5904, 4294901760
  %v6237 = vsub.f32 %v5904, %v6236
  %v6238 = vand.u32 %v6237, 4294901760
  %v6239 = vsub.f32 %v6237, %v6238
  %v6240 = vand.u32 %v6239, 4294901760
  %6241 = vmatpush1.msra.mxu0 %v6240
  %6242 = vmatprep.subr.mxu0 0.0
  %v6243 = vand.u32 %v5905, 4294901760
  %v6244 = vsub.f32 %v5905, %v6243
  %v6245 = vand.u32 %v6244, 4294901760
  %v6246 = vsub.f32 %v6244, %v6245
  %v6247 = vand.u32 %v6246, 4294901760
  %6248 = vmatpush1.msra.mxu0 %v6247
  %6249 = vmatprep.subr.mxu0 0.0
  %v6250 = vand.u32 %v5906, 4294901760
  %v6251 = vsub.f32 %v5906, %v6250
  %v6252 = vand.u32 %v6251, 4294901760
  %v6253 = vsub.f32 %v6251, %v6252
  %v6254 = vand.u32 %v6253, 4294901760
  %6255 = vmatpush1.msra.mxu0 %v6254
  %6256 = vmatprep.subr.mxu0 0.0
  %v6257 = vand.u32 %v5907, 4294901760
  %v6258 = vsub.f32 %v5907, %v6257
  %v6259 = vand.u32 %v6258, 4294901760
  %v6260 = vsub.f32 %v6258, %v6259
  %v6261 = vand.u32 %v6260, 4294901760
  %6262 = vmatpush1.msra.mxu0 %v6261
  %6263 = vmatprep.subr.mxu0 0.0
  %v6264 = vand.u32 %v5908, 4294901760
  %v6265 = vsub.f32 %v5908, %v6264
  %v6266 = vand.u32 %v6265, 4294901760
  %v6267 = vsub.f32 %v6265, %v6266
  %v6268 = vand.u32 %v6267, 4294901760
  %6269 = vmatpush1.msra.mxu0 %v6268
  %6270 = vmatprep.subr.mxu0 0.0
  %v6271 = vand.u32 %v5909, 4294901760
  %v6272 = vsub.f32 %v5909, %v6271
  %v6273 = vand.u32 %v6272, 4294901760
  %v6274 = vsub.f32 %v6272, %v6273
  %v6275 = vand.u32 %v6274, 4294901760
  %6276 = vmatpush1.msra.mxu0 %v6275
  %v6277 = vand.u32 %v5857, 4294901760
  %6278 = vmatprep.mubr.f32.mxu0 %v6277
  %v6279 = vand.u32 %v5851, 4294901760
  %6280 = vmatmul.mubr.f32.gmra.mrb[0].mxu0 %v6279
  %v6281 = vpop.f32.mrb[0].mxu0
  %v6282 = vadd.f32 %v6035, %v6281
  %v6283 = vpop.f32.mrb[0].mxu0
  %v6284 = vand.u32 %v5872, 4294901760
  %6285 = vmatprep.mubr.f32.mxu0 %v6284
  %v6286 = vand.u32 %v5866, 4294901760
  %6287 = vmatmul.mubr.f32.gmra.mrb[0].mxu0 %v6286
  %v6288 = vpop.f32.mrb[0].mxu0
  %v6289 = vadd.f32 %v6050, %v6288
  %v6290 = vpop.f32.mrb[0].mxu0
  %6291 = vdwg.mxu0
  %6292 = vmatprep.subr.mxu0 0.0
  %v6293 = vand.u32 %v5878, 4294901760
  %v6294 = vsub.f32 %v5878, %v6293
  %6295 = vmatpush1.msra.mxu0 %v6294
  %6296 = vmatprep.subr.mxu0 0.0
  %v6297 = vand.u32 %v5879, 4294901760
  %v6298 = vsub.f32 %v5879, %v6297
  %6299 = vmatpush1.msra.mxu0 %v6298
  %6300 = vmatprep.subr.mxu0 0.0
  %v6301 = vand.u32 %v5880, 4294901760
  %v6302 = vsub.f32 %v5880, %v6301
  %6303 = vmatpush1.msra.mxu0 %v6302
  %6304 = vmatprep.subr.mxu0 0.0
  %v6305 = vand.u32 %v5881, 4294901760
  %v6306 = vsub.f32 %v5881, %v6305
  %6307 = vmatpush1.msra.mxu0 %v6306
  %6308 = vmatprep.subr.mxu0 0.0
  %v6309 = vand.u32 %v5882, 4294901760
  %v6310 = vsub.f32 %v5882, %v6309
  %6311 = vmatpush1.msra.mxu0 %v6310
  %6312 = vmatprep.subr.mxu0 0.0
  %v6313 = vand.u32 %v5883, 4294901760
  %v6314 = vsub.f32 %v5883, %v6313
  %6315 = vmatpush1.msra.mxu0 %v6314
  %6316 = vmatprep.subr.mxu0 0.0
  %v6317 = vand.u32 %v5884, 4294901760
  %v6318 = vsub.f32 %v5884, %v6317
  %6319 = vmatpush1.msra.mxu0 %v6318
  %6320 = vmatprep.subr.mxu0 0.0
  %v6321 = vand.u32 %v5885, 4294901760
  %v6322 = vsub.f32 %v5885, %v6321
  %6323 = vmatpush1.msra.mxu0 %v6322
  %6324 = vmatprep.subr.mxu0 0.0
  %v6325 = vand.u32 %v5886, 4294901760
  %v6326 = vsub.f32 %v5886, %v6325
  %6327 = vmatpush1.msra.mxu0 %v6326
  %6328 = vmatprep.subr.mxu0 0.0
  %v6329 = vand.u32 %v5887, 4294901760
  %v6330 = vsub.f32 %v5887, %v6329
  %6331 = vmatpush1.msra.mxu0 %v6330
  %6332 = vmatprep.subr.mxu0 0.0
  %v6333 = vand.u32 %v5888, 4294901760
  %v6334 = vsub.f32 %v5888, %v6333
  %6335 = vmatpush1.msra.mxu0 %v6334
  %6336 = vmatprep.subr.mxu0 0.0
  %v6337 = vand.u32 %v5889, 4294901760
  %v6338 = vsub.f32 %v5889, %v6337
  %6339 = vmatpush1.msra.mxu0 %v6338
  %6340 = vmatprep.subr.mxu0 0.0
  %v6341 = vand.u32 %v5890, 4294901760
  %v6342 = vsub.f32 %v5890, %v6341
  %6343 = vmatpush1.msra.mxu0 %v6342
  %6344 = vmatprep.subr.mxu0 0.0
  %v6345 = vand.u32 %v5891, 4294901760
  %v6346 = vsub.f32 %v5891, %v6345
  %6347 = vmatpush1.msra.mxu0 %v6346
  %6348 = vmatprep.subr.mxu0 0.0
  %v6349 = vand.u32 %v5892, 4294901760
  %v6350 = vsub.f32 %v5892, %v6349
  %6351 = vmatpush1.msra.mxu0 %v6350
  %6352 = vmatprep.subr.mxu0 0.0
  %v6353 = vand.u32 %v5893, 4294901760
  %v6354 = vsub.f32 %v5893, %v6353
  %6355 = vmatpush1.msra.mxu0 %v6354
  %6356 = vmatprep.subr.mxu0 0.0
  %v6357 = vand.u32 %v5894, 4294901760
  %v6358 = vsub.f32 %v5894, %v6357
  %6359 = vmatpush1.msra.mxu0 %v6358
  %6360 = vmatprep.subr.mxu0 0.0
  %v6361 = vand.u32 %v5895, 4294901760
  %v6362 = vsub.f32 %v5895, %v6361
  %6363 = vmatpush1.msra.mxu0 %v6362
  %6364 = vmatprep.subr.mxu0 0.0
  %v6365 = vand.u32 %v5896, 4294901760
  %v6366 = vsub.f32 %v5896, %v6365
  %6367 = vmatpush1.msra.mxu0 %v6366
  %6368 = vmatprep.subr.mxu0 0.0
  %v6369 = vand.u32 %v5897, 4294901760
  %v6370 = vsub.f32 %v5897, %v6369
  %6371 = vmatpush1.msra.mxu0 %v6370
  %6372 = vmatprep.subr.mxu0 0.0
  %v6373 = vand.u32 %v5898, 4294901760
  %v6374 = vsub.f32 %v5898, %v6373
  %6375 = vmatpush1.msra.mxu0 %v6374
  %6376 = vmatprep.subr.mxu0 0.0
  %v6377 = vand.u32 %v5899, 4294901760
  %v6378 = vsub.f32 %v5899, %v6377
  %6379 = vmatpush1.msra.mxu0 %v6378
  %6380 = vmatprep.subr.mxu0 0.0
  %v6381 = vand.u32 %v5900, 4294901760
  %v6382 = vsub.f32 %v5900, %v6381
  %6383 = vmatpush1.msra.mxu0 %v6382
  %6384 = vmatprep.subr.mxu0 0.0
  %v6385 = vand.u32 %v5901, 4294901760
  %v6386 = vsub.f32 %v5901, %v6385
  %6387 = vmatpush1.msra.mxu0 %v6386
  %6388 = vmatprep.subr.mxu0 0.0
  %v6389 = vand.u32 %v5902, 4294901760
  %v6390 = vsub.f32 %v5902, %v6389
  %6391 = vmatpush1.msra.mxu0 %v6390
  %6392 = vmatprep.subr.mxu0 0.0
  %v6393 = vand.u32 %v5903, 4294901760
  %v6394 = vsub.f32 %v5903, %v6393
  %6395 = vmatpush1.msra.mxu0 %v6394
  %6396 = vmatprep.subr.mxu0 0.0
  %v6397 = vand.u32 %v5904, 4294901760
  %v6398 = vsub.f32 %v5904, %v6397
  %6399 = vmatpush1.msra.mxu0 %v6398
  %6400 = vmatprep.subr.mxu0 0.0
  %v6401 = vand.u32 %v5905, 4294901760
  %v6402 = vsub.f32 %v5905, %v6401
  %6403 = vmatpush1.msra.mxu0 %v6402
  %6404 = vmatprep.subr.mxu0 0.0
  %v6405 = vand.u32 %v5906, 4294901760
  %v6406 = vsub.f32 %v5906, %v6405
  %6407 = vmatpush1.msra.mxu0 %v6406
  %6408 = vmatprep.subr.mxu0 0.0
  %v6409 = vand.u32 %v5907, 4294901760
  %v6410 = vsub.f32 %v5907, %v6409
  %6411 = vmatpush1.msra.mxu0 %v6410
  %6412 = vmatprep.subr.mxu0 0.0
  %v6413 = vand.u32 %v5908, 4294901760
  %v6414 = vsub.f32 %v5908, %v6413
  %6415 = vmatpush1.msra.mxu0 %v6414
  %6416 = vmatprep.subr.mxu0 0.0
  %v6417 = vand.u32 %v5909, 4294901760
  %v6418 = vsub.f32 %v5909, %v6417
  %6419 = vmatpush1.msra.mxu0 %v6418
  %v6420 = vand.u32 %v5857, 4294901760
  %v6421 = vsub.f32 %v5857, %v6420
  %6422 = vmatprep.mubr.f32.mxu0 %v6421
  %v6423 = vand.u32 %v5851, 4294901760
  %v6424 = vsub.f32 %v5851, %v6423
  %6425 = vmatmul.mubr.f32.gmra.mrb[0].mxu0 %v6424
  %v6426 = vpop.f32.mrb[0].mxu0
  %v6427 = vadd.f32 %v6282, %v6426
  %v6428 = vpop.f32.mrb[0].mxu0
  %v6429 = vand.u32 %v5872, 4294901760
  %v6430 = vsub.f32 %v5872, %v6429
  %6431 = vmatprep.mubr.f32.mxu0 %v6430
  %v6432 = vand.u32 %v5866, 4294901760
  %v6433 = vsub.f32 %v5866, %v6432
  %6434 = vmatmul.mubr.f32.gmra.mrb[0].mxu0 %v6433
  %v6435 = vpop.f32.mrb[0].mxu0
  %v6436 = vadd.f32 %v6289, %v6435
  %v6437 = vpop.f32.mrb[0].mxu0
  %6438 = vdwg.mxu0
  %6439 = vmatprep.subr.mxu0 0.0
  %v6440 = vand.u32 %v5878, 4294901760
  %6441 = vmatpush1.msra.mxu0 %v6440
  %6442 = vmatprep.subr.mxu0 0.0
  %v6443 = vand.u32 %v5879, 4294901760
  %6444 = vmatpush1.msra.mxu0 %v6443
  %6445 = vmatprep.subr.mxu0 0.0
  %v6446 = vand.u32 %v5880, 4294901760
  %6447 = vmatpush1.msra.mxu0 %v6446
  %6448 = vmatprep.subr.mxu0 0.0
  %v6449 = vand.u32 %v5881, 4294901760
  %6450 = vmatpush1.msra.mxu0 %v6449
  %6451 = vmatprep.subr.mxu0 0.0
  %v6452 = vand.u32 %v5882, 4294901760
  %6453 = vmatpush1.msra.mxu0 %v6452
  %6454 = vmatprep.subr.mxu0 0.0
  %v6455 = vand.u32 %v5883, 4294901760
  %6456 = vmatpush1.msra.mxu0 %v6455
  %6457 = vmatprep.subr.mxu0 0.0
  %v6458 = vand.u32 %v5884, 4294901760
  %6459 = vmatpush1.msra.mxu0 %v6458
  %6460 = vmatprep.subr.mxu0 0.0
  %v6461 = vand.u32 %v5885, 4294901760
  %6462 = vmatpush1.msra.mxu0 %v6461
  %6463 = vmatprep.subr.mxu0 0.0
  %v6464 = vand.u32 %v5886, 4294901760
  %6465 = vmatpush1.msra.mxu0 %v6464
  %6466 = vmatprep.subr.mxu0 0.0
  %v6467 = vand.u32 %v5887, 4294901760
  %6468 = vmatpush1.msra.mxu0 %v6467
  %6469 = vmatprep.subr.mxu0 0.0
  %v6470 = vand.u32 %v5888, 4294901760
  %6471 = vmatpush1.msra.mxu0 %v6470
  %6472 = vmatprep.subr.mxu0 0.0
  %v6473 = vand.u32 %v5889, 4294901760
  %6474 = vmatpush1.msra.mxu0 %v6473
  %6475 = vmatprep.subr.mxu0 0.0
  %v6476 = vand.u32 %v5890, 4294901760
  %6477 = vmatpush1.msra.mxu0 %v6476
  %6478 = vmatprep.subr.mxu0 0.0
  %v6479 = vand.u32 %v5891, 4294901760
  %6480 = vmatpush1.msra.mxu0 %v6479
  %6481 = vmatprep.subr.mxu0 0.0
  %v6482 = vand.u32 %v5892, 4294901760
  %6483 = vmatpush1.msra.mxu0 %v6482
  %6484 = vmatprep.subr.mxu0 0.0
  %v6485 = vand.u32 %v5893, 4294901760
  %6486 = vmatpush1.msra.mxu0 %v6485
  %6487 = vmatprep.subr.mxu0 0.0
  %v6488 = vand.u32 %v5894, 4294901760
  %6489 = vmatpush1.msra.mxu0 %v6488
  %6490 = vmatprep.subr.mxu0 0.0
  %v6491 = vand.u32 %v5895, 4294901760
  %6492 = vmatpush1.msra.mxu0 %v6491
  %6493 = vmatprep.subr.mxu0 0.0
  %v6494 = vand.u32 %v5896, 4294901760
  %6495 = vmatpush1.msra.mxu0 %v6494
  %6496 = vmatprep.subr.mxu0 0.0
  %v6497 = vand.u32 %v5897, 4294901760
  %6498 = vmatpush1.msra.mxu0 %v6497
  %6499 = vmatprep.subr.mxu0 0.0
  %v6500 = vand.u32 %v5898, 4294901760
  %6501 = vmatpush1.msra.mxu0 %v6500
  %6502 = vmatprep.subr.mxu0 0.0
  %v6503 = vand.u32 %v5899, 4294901760
  %6504 = vmatpush1.msra.mxu0 %v6503
  %6505 = vmatprep.subr.mxu0 0.0
  %v6506 = vand.u32 %v5900, 4294901760
  %6507 = vmatpush1.msra.mxu0 %v6506
  %6508 = vmatprep.subr.mxu0 0.0
  %v6509 = vand.u32 %v5901, 4294901760
  %6510 = vmatpush1.msra.mxu0 %v6509
  %6511 = vmatprep.subr.mxu0 0.0
  %v6512 = vand.u32 %v5902, 4294901760
  %6513 = vmatpush1.msra.mxu0 %v6512
  %6514 = vmatprep.subr.mxu0 0.0
  %v6515 = vand.u32 %v5903, 4294901760
  %6516 = vmatpush1.msra.mxu0 %v6515
  %6517 = vmatprep.subr.mxu0 0.0
  %v6518 = vand.u32 %v5904, 4294901760
  %6519 = vmatpush1.msra.mxu0 %v6518
  %6520 = vmatprep.subr.mxu0 0.0
  %v6521 = vand.u32 %v5905, 4294901760
  %6522 = vmatpush1.msra.mxu0 %v6521
  %6523 = vmatprep.subr.mxu0 0.0
  %v6524 = vand.u32 %v5906, 4294901760
  %6525 = vmatpush1.msra.mxu0 %v6524
  %6526 = vmatprep.subr.mxu0 0.0
  %v6527 = vand.u32 %v5907, 4294901760
  %6528 = vmatpush1.msra.mxu0 %v6527
  %6529 = vmatprep.subr.mxu0 0.0
  %v6530 = vand.u32 %v5908, 4294901760
  %6531 = vmatpush1.msra.mxu0 %v6530
  %6532 = vmatprep.subr.mxu0 0.0
  %v6533 = vand.u32 %v5909, 4294901760
  %6534 = vmatpush1.msra.mxu0 %v6533
  %v6535 = vand.u32 %v5857, 4294901760
  %v6536 = vsub.f32 %v5857, %v6535
  %v6537 = vand.u32 %v6536, 4294901760
  %6538 = vmatprep.mubr.f32.mxu0 %v6537
  %v6539 = vand.u32 %v5851, 4294901760
  %v6540 = vsub.f32 %v5851, %v6539
  %v6541 = vand.u32 %v6540, 4294901760
  %6542 = vmatmul.mubr.f32.gmra.mrb[0].mxu0 %v6541
  %v6543 = vpop.f32.mrb[0].mxu0
  %v6544 = vadd.f32 %v6427, %v6543
  %v6545 = vpop.f32.mrb[0].mxu0
  %v6546 = vand.u32 %v5872, 4294901760
  %v6547 = vsub.f32 %v5872, %v6546
  %v6548 = vand.u32 %v6547, 4294901760
  %6549 = vmatprep.mubr.f32.mxu0 %v6548
  %v6550 = vand.u32 %v5866, 4294901760
  %v6551 = vsub.f32 %v5866, %v6550
  %v6552 = vand.u32 %v6551, 4294901760
  %6553 = vmatmul.mubr.f32.gmra.mrb[0].mxu0 %v6552
  %v6554 = vpop.f32.mrb[0].mxu0
  %v6555 = vadd.f32 %v6436, %v6554
  %v6556 = vpop.f32.mrb[0].mxu0
  %6557 = vdwg.mxu0
  %6558 = vmatprep.subr.mxu0 0.0
  %v6559 = vand.u32 %v5878, 4294901760
  %v6560 = vsub.f32 %v5878, %v6559
  %v6561 = vand.u32 %v6560, 4294901760
  %6562 = vmatpush1.msra.mxu0 %v6561
  %6563 = vmatprep.subr.mxu0 0.0
  %v6564 = vand.u32 %v5879, 4294901760
  %v6565 = vsub.f32 %v5879, %v6564
  %v6566 = vand.u32 %v6565, 4294901760
  %6567 = vmatpush1.msra.mxu0 %v6566
  %6568 = vmatprep.subr.mxu0 0.0
  %v6569 = vand.u32 %v5880, 4294901760
  %v6570 = vsub.f32 %v5880, %v6569
  %v6571 = vand.u32 %v6570, 4294901760
  %6572 = vmatpush1.msra.mxu0 %v6571
  %6573 = vmatprep.subr.mxu0 0.0
  %v6574 = vand.u32 %v5881, 4294901760
  %v6575 = vsub.f32 %v5881, %v6574
  %v6576 = vand.u32 %v6575, 4294901760
  %6577 = vmatpush1.msra.mxu0 %v6576
  %6578 = vmatprep.subr.mxu0 0.0
  %v6579 = vand.u32 %v5882, 4294901760
  %v6580 = vsub.f32 %v5882, %v6579
  %v6581 = vand.u32 %v6580, 4294901760
  %6582 = vmatpush1.msra.mxu0 %v6581
  %6583 = vmatprep.subr.mxu0 0.0
  %v6584 = vand.u32 %v5883, 4294901760
  %v6585 = vsub.f32 %v5883, %v6584
  %v6586 = vand.u32 %v6585, 4294901760
  %6587 = vmatpush1.msra.mxu0 %v6586
  %6588 = vmatprep.subr.mxu0 0.0
  %v6589 = vand.u32 %v5884, 4294901760
  %v6590 = vsub.f32 %v5884, %v6589
  %v6591 = vand.u32 %v6590, 4294901760
  %6592 = vmatpush1.msra.mxu0 %v6591
  %6593 = vmatprep.subr.mxu0 0.0
  %v6594 = vand.u32 %v5885, 4294901760
  %v6595 = vsub.f32 %v5885, %v6594
  %v6596 = vand.u32 %v6595, 4294901760
  %6597 = vmatpush1.msra.mxu0 %v6596
  %6598 = vmatprep.subr.mxu0 0.0
  %v6599 = vand.u32 %v5886, 4294901760
  %v6600 = vsub.f32 %v5886, %v6599
  %v6601 = vand.u32 %v6600, 4294901760
  %6602 = vmatpush1.msra.mxu0 %v6601
  %6603 = vmatprep.subr.mxu0 0.0
  %v6604 = vand.u32 %v5887, 4294901760
  %v6605 = vsub.f32 %v5887, %v6604
  %v6606 = vand.u32 %v6605, 4294901760
  %6607 = vmatpush1.msra.mxu0 %v6606
  %6608 = vmatprep.subr.mxu0 0.0
  %v6609 = vand.u32 %v5888, 4294901760
  %v6610 = vsub.f32 %v5888, %v6609
  %v6611 = vand.u32 %v6610, 4294901760
  %6612 = vmatpush1.msra.mxu0 %v6611
  %6613 = vmatprep.subr.mxu0 0.0
  %v6614 = vand.u32 %v5889, 4294901760
  %v6615 = vsub.f32 %v5889, %v6614
  %v6616 = vand.u32 %v6615, 4294901760
  %6617 = vmatpush1.msra.mxu0 %v6616
  %6618 = vmatprep.subr.mxu0 0.0
  %v6619 = vand.u32 %v5890, 4294901760
  %v6620 = vsub.f32 %v5890, %v6619
  %v6621 = vand.u32 %v6620, 4294901760
  %6622 = vmatpush1.msra.mxu0 %v6621
  %6623 = vmatprep.subr.mxu0 0.0
  %v6624 = vand.u32 %v5891, 4294901760
  %v6625 = vsub.f32 %v5891, %v6624
  %v6626 = vand.u32 %v6625, 4294901760
  %6627 = vmatpush1.msra.mxu0 %v6626
  %6628 = vmatprep.subr.mxu0 0.0
  %v6629 = vand.u32 %v5892, 4294901760
  %v6630 = vsub.f32 %v5892, %v6629
  %v6631 = vand.u32 %v6630, 4294901760
  %6632 = vmatpush1.msra.mxu0 %v6631
  %6633 = vmatprep.subr.mxu0 0.0
  %v6634 = vand.u32 %v5893, 4294901760
  %v6635 = vsub.f32 %v5893, %v6634
  %v6636 = vand.u32 %v6635, 4294901760
  %6637 = vmatpush1.msra.mxu0 %v6636
  %6638 = vmatprep.subr.mxu0 0.0
  %v6639 = vand.u32 %v5894, 4294901760
  %v6640 = vsub.f32 %v5894, %v6639
  %v6641 = vand.u32 %v6640, 4294901760
  %6642 = vmatpush1.msra.mxu0 %v6641
  %6643 = vmatprep.subr.mxu0 0.0
  %v6644 = vand.u32 %v5895, 4294901760
  %v6645 = vsub.f32 %v5895, %v6644
  %v6646 = vand.u32 %v6645, 4294901760
  %6647 = vmatpush1.msra.mxu0 %v6646
  %6648 = vmatprep.subr.mxu0 0.0
  %v6649 = vand.u32 %v5896, 4294901760
  %v6650 = vsub.f32 %v5896, %v6649
  %v6651 = vand.u32 %v6650, 4294901760
  %6652 = vmatpush1.msra.mxu0 %v6651
  %6653 = vmatprep.subr.mxu0 0.0
  %v6654 = vand.u32 %v5897, 4294901760
  %v6655 = vsub.f32 %v5897, %v6654
  %v6656 = vand.u32 %v6655, 4294901760
  %6657 = vmatpush1.msra.mxu0 %v6656
  %6658 = vmatprep.subr.mxu0 0.0
  %v6659 = vand.u32 %v5898, 4294901760
  %v6660 = vsub.f32 %v5898, %v6659
  %v6661 = vand.u32 %v6660, 4294901760
  %6662 = vmatpush1.msra.mxu0 %v6661
  %6663 = vmatprep.subr.mxu0 0.0
  %v6664 = vand.u32 %v5899, 4294901760
  %v6665 = vsub.f32 %v5899, %v6664
  %v6666 = vand.u32 %v6665, 4294901760
  %6667 = vmatpush1.msra.mxu0 %v6666
  %6668 = vmatprep.subr.mxu0 0.0
  %v6669 = vand.u32 %v5900, 4294901760
  %v6670 = vsub.f32 %v5900, %v6669
  %v6671 = vand.u32 %v6670, 4294901760
  %6672 = vmatpush1.msra.mxu0 %v6671
  %6673 = vmatprep.subr.mxu0 0.0
  %v6674 = vand.u32 %v5901, 4294901760
  %v6675 = vsub.f32 %v5901, %v6674
  %v6676 = vand.u32 %v6675, 4294901760
  %6677 = vmatpush1.msra.mxu0 %v6676
  %6678 = vmatprep.subr.mxu0 0.0
  %v6679 = vand.u32 %v5902, 4294901760
  %v6680 = vsub.f32 %v5902, %v6679
  %v6681 = vand.u32 %v6680, 4294901760
  %6682 = vmatpush1.msra.mxu0 %v6681
  %6683 = vmatprep.subr.mxu0 0.0
  %v6684 = vand.u32 %v5903, 4294901760
  %v6685 = vsub.f32 %v5903, %v6684
  %v6686 = vand.u32 %v6685, 4294901760
  %6687 = vmatpush1.msra.mxu0 %v6686
  %6688 = vmatprep.subr.mxu0 0.0
  %v6689 = vand.u32 %v5904, 4294901760
  %v6690 = vsub.f32 %v5904, %v6689
  %v6691 = vand.u32 %v6690, 4294901760
  %6692 = vmatpush1.msra.mxu0 %v6691
  %6693 = vmatprep.subr.mxu0 0.0
  %v6694 = vand.u32 %v5905, 4294901760
  %v6695 = vsub.f32 %v5905, %v6694
  %v6696 = vand.u32 %v6695, 4294901760
  %6697 = vmatpush1.msra.mxu0 %v6696
  %6698 = vmatprep.subr.mxu0 0.0
  %v6699 = vand.u32 %v5906, 4294901760
  %v6700 = vsub.f32 %v5906, %v6699
  %v6701 = vand.u32 %v6700, 4294901760
  %6702 = vmatpush1.msra.mxu0 %v6701
  %6703 = vmatprep.subr.mxu0 0.0
  %v6704 = vand.u32 %v5907, 4294901760
  %v6705 = vsub.f32 %v5907, %v6704
  %v6706 = vand.u32 %v6705, 4294901760
  %6707 = vmatpush1.msra.mxu0 %v6706
  %6708 = vmatprep.subr.mxu0 0.0
  %v6709 = vand.u32 %v5908, 4294901760
  %v6710 = vsub.f32 %v5908, %v6709
  %v6711 = vand.u32 %v6710, 4294901760
  %6712 = vmatpush1.msra.mxu0 %v6711
  %6713 = vmatprep.subr.mxu0 0.0
  %v6714 = vand.u32 %v5909, 4294901760
  %v6715 = vsub.f32 %v5909, %v6714
  %v6716 = vand.u32 %v6715, 4294901760
  %6717 = vmatpush1.msra.mxu0 %v6716
  %v6718 = vand.u32 %v5857, 4294901760
  %6719 = vmatprep.mubr.f32.mxu0 %v6718
  %v6720 = vand.u32 %v5851, 4294901760
  %6721 = vmatmul.mubr.f32.gmra.mrb[0].mxu0 %v6720
  %v6722 = vpop.f32.mrb[0].mxu0
  %v6723 = vadd.f32 %v6544, %v6722
  %v6724 = vpop.f32.mrb[0].mxu0
  %v6725 = vand.u32 %v5872, 4294901760
  %6726 = vmatprep.mubr.f32.mxu0 %v6725
  %v6727 = vand.u32 %v5866, 4294901760
  %6728 = vmatmul.mubr.f32.gmra.mrb[0].mxu0 %v6727
  %v6729 = vpop.f32.mrb[0].mxu0
  %v6730 = vadd.f32 %v6555, %v6729
  %v6731 = vpop.f32.mrb[0].mxu0
  %6732 = vdwg.mxu0
  %6733 = vmatprep.subr.mxu0 0.0
  %v6734 = vand.u32 %v5878, 4294901760
  %6735 = vmatpush1.msra.mxu0 %v6734
  %6736 = vmatprep.subr.mxu0 0.0
  %v6737 = vand.u32 %v5879, 4294901760
  %6738 = vmatpush1.msra.mxu0 %v6737
  %6739 = vmatprep.subr.mxu0 0.0
  %v6740 = vand.u32 %v5880, 4294901760
  %6741 = vmatpush1.msra.mxu0 %v6740
  %6742 = vmatprep.subr.mxu0 0.0
  %v6743 = vand.u32 %v5881, 4294901760
  %6744 = vmatpush1.msra.mxu0 %v6743
  %6745 = vmatprep.subr.mxu0 0.0
  %v6746 = vand.u32 %v5882, 4294901760
  %6747 = vmatpush1.msra.mxu0 %v6746
  %6748 = vmatprep.subr.mxu0 0.0
  %v6749 = vand.u32 %v5883, 4294901760
  %6750 = vmatpush1.msra.mxu0 %v6749
  %6751 = vmatprep.subr.mxu0 0.0
  %v6752 = vand.u32 %v5884, 4294901760
  %6753 = vmatpush1.msra.mxu0 %v6752
  %6754 = vmatprep.subr.mxu0 0.0
  %v6755 = vand.u32 %v5885, 4294901760
  %6756 = vmatpush1.msra.mxu0 %v6755
  %6757 = vmatprep.subr.mxu0 0.0
  %v6758 = vand.u32 %v5886, 4294901760
  %6759 = vmatpush1.msra.mxu0 %v6758
  %6760 = vmatprep.subr.mxu0 0.0
  %v6761 = vand.u32 %v5887, 4294901760
  %6762 = vmatpush1.msra.mxu0 %v6761
  %6763 = vmatprep.subr.mxu0 0.0
  %v6764 = vand.u32 %v5888, 4294901760
  %6765 = vmatpush1.msra.mxu0 %v6764
  %6766 = vmatprep.subr.mxu0 0.0
  %v6767 = vand.u32 %v5889, 4294901760
  %6768 = vmatpush1.msra.mxu0 %v6767
  %6769 = vmatprep.subr.mxu0 0.0
  %v6770 = vand.u32 %v5890, 4294901760
  %6771 = vmatpush1.msra.mxu0 %v6770
  %6772 = vmatprep.subr.mxu0 0.0
  %v6773 = vand.u32 %v5891, 4294901760
  %6774 = vmatpush1.msra.mxu0 %v6773
  %6775 = vmatprep.subr.mxu0 0.0
  %v6776 = vand.u32 %v5892, 4294901760
  %6777 = vmatpush1.msra.mxu0 %v6776
  %6778 = vmatprep.subr.mxu0 0.0
  %v6779 = vand.u32 %v5893, 4294901760
  %6780 = vmatpush1.msra.mxu0 %v6779
  %6781 = vmatprep.subr.mxu0 0.0
  %v6782 = vand.u32 %v5894, 4294901760
  %6783 = vmatpush1.msra.mxu0 %v6782
  %6784 = vmatprep.subr.mxu0 0.0
  %v6785 = vand.u32 %v5895, 4294901760
  %6786 = vmatpush1.msra.mxu0 %v6785
  %6787 = vmatprep.subr.mxu0 0.0
  %v6788 = vand.u32 %v5896, 4294901760
  %6789 = vmatpush1.msra.mxu0 %v6788
  %6790 = vmatprep.subr.mxu0 0.0
  %v6791 = vand.u32 %v5897, 4294901760
  %6792 = vmatpush1.msra.mxu0 %v6791
  %6793 = vmatprep.subr.mxu0 0.0
  %v6794 = vand.u32 %v5898, 4294901760
  %6795 = vmatpush1.msra.mxu0 %v6794
  %6796 = vmatprep.subr.mxu0 0.0
  %v6797 = vand.u32 %v5899, 4294901760
  %6798 = vmatpush1.msra.mxu0 %v6797
  %6799 = vmatprep.subr.mxu0 0.0
  %v6800 = vand.u32 %v5900, 4294901760
  %6801 = vmatpush1.msra.mxu0 %v6800
  %6802 = vmatprep.subr.mxu0 0.0
  %v6803 = vand.u32 %v5901, 4294901760
  %6804 = vmatpush1.msra.mxu0 %v6803
  %6805 = vmatprep.subr.mxu0 0.0
  %v6806 = vand.u32 %v5902, 4294901760
  %6807 = vmatpush1.msra.mxu0 %v6806
  %6808 = vmatprep.subr.mxu0 0.0
  %v6809 = vand.u32 %v5903, 4294901760
  %6810 = vmatpush1.msra.mxu0 %v6809
  %6811 = vmatprep.subr.mxu0 0.0
  %v6812 = vand.u32 %v5904, 4294901760
  %6813 = vmatpush1.msra.mxu0 %v6812
  %6814 = vmatprep.subr.mxu0 0.0
  %v6815 = vand.u32 %v5905, 4294901760
  %6816 = vmatpush1.msra.mxu0 %v6815
  %6817 = vmatprep.subr.mxu0 0.0
  %v6818 = vand.u32 %v5906, 4294901760
  %6819 = vmatpush1.msra.mxu0 %v6818
  %6820 = vmatprep.subr.mxu0 0.0
  %v6821 = vand.u32 %v5907, 4294901760
  %6822 = vmatpush1.msra.mxu0 %v6821
  %6823 = vmatprep.subr.mxu0 0.0
  %v6824 = vand.u32 %v5908, 4294901760
  %6825 = vmatpush1.msra.mxu0 %v6824
  %6826 = vmatprep.subr.mxu0 0.0
  %v6827 = vand.u32 %v5909, 4294901760
  %6828 = vmatpush1.msra.mxu0 %v6827
  %v6829 = vand.u32 %v5857, 4294901760
  %6830 = vmatprep.mubr.f32.mxu0 %v6829
  %v6831 = vand.u32 %v5851, 4294901760
  %6832 = vmatmul.mubr.f32.gmra.mrb[0].mxu0 %v6831
  %v6833 = vpop.f32.mrb[0].mxu0
  %v6834 = vadd.f32 %v6723, %v6833
  %v6835 = vpop.f32.mrb[0].mxu0
  %v6836 = vand.u32 %v5872, 4294901760
  %6837 = vmatprep.mubr.f32.mxu0 %v6836
  %v6838 = vand.u32 %v5866, 4294901760
  %6839 = vmatmul.mubr.f32.gmra.mrb[0].mxu0 %v6838
  %v6840 = vpop.f32.mrb[0].mxu0
  %v6841 = vadd.f32 %v6730, %v6840
  %v6842 = vpop.f32.mrb[0].mxu0
  %6843 = vdwg.mxu0
  %6844 = vmatprep.subr.mxu0 0.0
  %v6845 = vand.u32 %v5910, 4294901760
  %6846 = vmatpush1.msra.mxu0 %v6845
  %6847 = vmatprep.subr.mxu0 0.0
  %v6848 = vand.u32 %v5911, 4294901760
  %6849 = vmatpush1.msra.mxu0 %v6848
  %6850 = vmatprep.subr.mxu0 0.0
  %v6851 = vand.u32 %v5912, 4294901760
  %6852 = vmatpush1.msra.mxu0 %v6851
  %6853 = vmatprep.subr.mxu0 0.0
  %v6854 = vand.u32 %v5913, 4294901760
  %6855 = vmatpush1.msra.mxu0 %v6854
  %6856 = vmatprep.subr.mxu0 0.0
  %v6857 = vand.u32 %v5914, 4294901760
  %6858 = vmatpush1.msra.mxu0 %v6857
  %6859 = vmatprep.subr.mxu0 0.0
  %v6860 = vand.u32 %v5915, 4294901760
  %6861 = vmatpush1.msra.mxu0 %v6860
  %6862 = vmatprep.subr.mxu0 0.0
  %v6863 = vand.u32 %v5916, 4294901760
  %6864 = vmatpush1.msra.mxu0 %v6863
  %6865 = vmatprep.subr.mxu0 0.0
  %v6866 = vand.u32 %v5917, 4294901760
  %6867 = vmatpush1.msra.mxu0 %v6866
  %6868 = vmatprep.subr.mxu0 0.0
  %v6869 = vand.u32 %v5918, 4294901760
  %6870 = vmatpush1.msra.mxu0 %v6869
  %6871 = vmatprep.subr.mxu0 0.0
  %v6872 = vand.u32 %v5919, 4294901760
  %6873 = vmatpush1.msra.mxu0 %v6872
  %6874 = vmatprep.subr.mxu0 0.0
  %v6875 = vand.u32 %v5920, 4294901760
  %6876 = vmatpush1.msra.mxu0 %v6875
  %6877 = vmatprep.subr.mxu0 0.0
  %v6878 = vand.u32 %v5921, 4294901760
  %6879 = vmatpush1.msra.mxu0 %v6878
  %6880 = vmatprep.subr.mxu0 0.0
  %v6881 = vand.u32 %v5922, 4294901760
  %6882 = vmatpush1.msra.mxu0 %v6881
  %6883 = vmatprep.subr.mxu0 0.0
  %v6884 = vand.u32 %v5923, 4294901760
  %6885 = vmatpush1.msra.mxu0 %v6884
  %6886 = vmatprep.subr.mxu0 0.0
  %v6887 = vand.u32 %v5924, 4294901760
  %6888 = vmatpush1.msra.mxu0 %v6887
  %6889 = vmatprep.subr.mxu0 0.0
  %v6890 = vand.u32 %v5925, 4294901760
  %6891 = vmatpush1.msra.mxu0 %v6890
  %6892 = vmatprep.subr.mxu0 0.0
  %6893 = vmatpush1.msra.mxu0 0.0
  %6894 = vmatprep.subr.mxu0 0.0
  %6895 = vmatpush1.msra.mxu0 0.0
  %6896 = vmatprep.subr.mxu0 0.0
  %6897 = vmatpush1.msra.mxu0 0.0
  %6898 = vmatprep.subr.mxu0 0.0
  %6899 = vmatpush1.msra.mxu0 0.0
  %6900 = vmatprep.subr.mxu0 0.0
  %6901 = vmatpush1.msra.mxu0 0.0
  %6902 = vmatprep.subr.mxu0 0.0
  %6903 = vmatpush1.msra.mxu0 0.0
  %6904 = vmatprep.subr.mxu0 0.0
  %6905 = vmatpush1.msra.mxu0 0.0
  %6906 = vmatprep.subr.mxu0 0.0
  %6907 = vmatpush1.msra.mxu0 0.0
  %6908 = vmatprep.subr.mxu0 0.0
  %6909 = vmatpush1.msra.mxu0 0.0
  %6910 = vmatprep.subr.mxu0 0.0
  %6911 = vmatpush1.msra.mxu0 0.0
  %6912 = vmatprep.subr.mxu0 0.0
  %6913 = vmatpush1.msra.mxu0 0.0
  %6914 = vmatprep.subr.mxu0 0.0
  %6915 = vmatpush1.msra.mxu0 0.0
  %6916 = vmatprep.subr.mxu0 0.0
  %6917 = vmatpush1.msra.mxu0 0.0
  %6918 = vmatprep.subr.mxu0 0.0
  %6919 = vmatpush1.msra.mxu0 0.0
  %6920 = vmatprep.subr.mxu0 0.0
  %6921 = vmatpush1.msra.mxu0 0.0
  %6922 = vmatprep.subr.mxu0 0.0
  %6923 = vmatpush1.msra.mxu0 0.0
  %6924 = vmatprep.mubr.f32.mxu0 0.0
  %v6925 = vand.u32 %v5861, 4294901760
  %v6926 = vsub.f32 %v5861, %v6925
  %v6927 = vand.u32 %v6926, 4294901760
  %v6928 = vsub.f32 %v6926, %v6927
  %v6929 = vand.u32 %v6928, 4294901760
  %6930 = vmatmul.mubr.f32.gmra.mrb[0].mxu0 %v6929
  %v6931 = vpop.f32.mrb[0].mxu0
  %v6932 = vadd.f32 %v6834, %v6931
  %v6933 = vpop.f32.mrb[0].mxu0
  %6934 = vmatprep.mubr.f32.mxu0 0.0
  %v6935 = vand.u32 %v5876, 4294901760
  %v6936 = vsub.f32 %v5876, %v6935
  %v6937 = vand.u32 %v6936, 4294901760
  %v6938 = vsub.f32 %v6936, %v6937
  %v6939 = vand.u32 %v6938, 4294901760
  %6940 = vmatmul.mubr.f32.gmra.mrb[0].mxu0 %v6939
  %v6941 = vpop.f32.mrb[0].mxu0
  %v6942 = vadd.f32 %v6841, %v6941
  %v6943 = vpop.f32.mrb[0].mxu0
  %6944 = vdwg.mxu0
  %6945 = vmatprep.subr.mxu0 0.0
  %v6946 = vand.u32 %v5910, 4294901760
  %v6947 = vsub.f32 %v5910, %v6946
  %v6948 = vand.u32 %v6947, 4294901760
  %v6949 = vsub.f32 %v6947, %v6948
  %v6950 = vand.u32 %v6949, 4294901760
  %6951 = vmatpush1.msra.mxu0 %v6950
  %6952 = vmatprep.subr.mxu0 0.0
  %v6953 = vand.u32 %v5911, 4294901760
  %v6954 = vsub.f32 %v5911, %v6953
  %v6955 = vand.u32 %v6954, 4294901760
  %v6956 = vsub.f32 %v6954, %v6955
  %v6957 = vand.u32 %v6956, 4294901760
  %6958 = vmatpush1.msra.mxu0 %v6957
  %6959 = vmatprep.subr.mxu0 0.0
  %v6960 = vand.u32 %v5912, 4294901760
  %v6961 = vsub.f32 %v5912, %v6960
  %v6962 = vand.u32 %v6961, 4294901760
  %v6963 = vsub.f32 %v6961, %v6962
  %v6964 = vand.u32 %v6963, 4294901760
  %6965 = vmatpush1.msra.mxu0 %v6964
  %6966 = vmatprep.subr.mxu0 0.0
  %v6967 = vand.u32 %v5913, 4294901760
  %v6968 = vsub.f32 %v5913, %v6967
  %v6969 = vand.u32 %v6968, 4294901760
  %v6970 = vsub.f32 %v6968, %v6969
  %v6971 = vand.u32 %v6970, 4294901760
  %6972 = vmatpush1.msra.mxu0 %v6971
  %6973 = vmatprep.subr.mxu0 0.0
  %v6974 = vand.u32 %v5914, 4294901760
  %v6975 = vsub.f32 %v5914, %v6974
  %v6976 = vand.u32 %v6975, 4294901760
  %v6977 = vsub.f32 %v6975, %v6976
  %v6978 = vand.u32 %v6977, 4294901760
  %6979 = vmatpush1.msra.mxu0 %v6978
  %6980 = vmatprep.subr.mxu0 0.0
  %v6981 = vand.u32 %v5915, 4294901760
  %v6982 = vsub.f32 %v5915, %v6981
  %v6983 = vand.u32 %v6982, 4294901760
  %v6984 = vsub.f32 %v6982, %v6983
  %v6985 = vand.u32 %v6984, 4294901760
  %6986 = vmatpush1.msra.mxu0 %v6985
  %6987 = vmatprep.subr.mxu0 0.0
  %v6988 = vand.u32 %v5916, 4294901760
  %v6989 = vsub.f32 %v5916, %v6988
  %v6990 = vand.u32 %v6989, 4294901760
  %v6991 = vsub.f32 %v6989, %v6990
  %v6992 = vand.u32 %v6991, 4294901760
  %6993 = vmatpush1.msra.mxu0 %v6992
  %6994 = vmatprep.subr.mxu0 0.0
  %v6995 = vand.u32 %v5917, 4294901760
  %v6996 = vsub.f32 %v5917, %v6995
  %v6997 = vand.u32 %v6996, 4294901760
  %v6998 = vsub.f32 %v6996, %v6997
  %v6999 = vand.u32 %v6998, 4294901760
  %7000 = vmatpush1.msra.mxu0 %v6999
  %7001 = vmatprep.subr.mxu0 0.0
  %v7002 = vand.u32 %v5918, 4294901760
  %v7003 = vsub.f32 %v5918, %v7002
  %v7004 = vand.u32 %v7003, 4294901760
  %v7005 = vsub.f32 %v7003, %v7004
  %v7006 = vand.u32 %v7005, 4294901760
  %7007 = vmatpush1.msra.mxu0 %v7006
  %7008 = vmatprep.subr.mxu0 0.0
  %v7009 = vand.u32 %v5919, 4294901760
  %v7010 = vsub.f32 %v5919, %v7009
  %v7011 = vand.u32 %v7010, 4294901760
  %v7012 = vsub.f32 %v7010, %v7011
  %v7013 = vand.u32 %v7012, 4294901760
  %7014 = vmatpush1.msra.mxu0 %v7013
  %7015 = vmatprep.subr.mxu0 0.0
  %v7016 = vand.u32 %v5920, 4294901760
  %v7017 = vsub.f32 %v5920, %v7016
  %v7018 = vand.u32 %v7017, 4294901760
  %v7019 = vsub.f32 %v7017, %v7018
  %v7020 = vand.u32 %v7019, 4294901760
  %7021 = vmatpush1.msra.mxu0 %v7020
  %7022 = vmatprep.subr.mxu0 0.0
  %v7023 = vand.u32 %v5921, 4294901760
  %v7024 = vsub.f32 %v5921, %v7023
  %v7025 = vand.u32 %v7024, 4294901760
  %v7026 = vsub.f32 %v7024, %v7025
  %v7027 = vand.u32 %v7026, 4294901760
  %7028 = vmatpush1.msra.mxu0 %v7027
  %7029 = vmatprep.subr.mxu0 0.0
  %v7030 = vand.u32 %v5922, 4294901760
  %v7031 = vsub.f32 %v5922, %v7030
  %v7032 = vand.u32 %v7031, 4294901760
  %v7033 = vsub.f32 %v7031, %v7032
  %v7034 = vand.u32 %v7033, 4294901760
  %7035 = vmatpush1.msra.mxu0 %v7034
  %7036 = vmatprep.subr.mxu0 0.0
  %v7037 = vand.u32 %v5923, 4294901760
  %v7038 = vsub.f32 %v5923, %v7037
  %v7039 = vand.u32 %v7038, 4294901760
  %v7040 = vsub.f32 %v7038, %v7039
  %v7041 = vand.u32 %v7040, 4294901760
  %7042 = vmatpush1.msra.mxu0 %v7041
  %7043 = vmatprep.subr.mxu0 0.0
  %v7044 = vand.u32 %v5924, 4294901760
  %v7045 = vsub.f32 %v5924, %v7044
  %v7046 = vand.u32 %v7045, 4294901760
  %v7047 = vsub.f32 %v7045, %v7046
  %v7048 = vand.u32 %v7047, 4294901760
  %7049 = vmatpush1.msra.mxu0 %v7048
  %7050 = vmatprep.subr.mxu0 0.0
  %v7051 = vand.u32 %v5925, 4294901760
  %v7052 = vsub.f32 %v5925, %v7051
  %v7053 = vand.u32 %v7052, 4294901760
  %v7054 = vsub.f32 %v7052, %v7053
  %v7055 = vand.u32 %v7054, 4294901760
  %7056 = vmatpush1.msra.mxu0 %v7055
  %7057 = vmatprep.subr.mxu0 0.0
  %7058 = vmatpush1.msra.mxu0 0.0
  %7059 = vmatprep.subr.mxu0 0.0
  %7060 = vmatpush1.msra.mxu0 0.0
  %7061 = vmatprep.subr.mxu0 0.0
  %7062 = vmatpush1.msra.mxu0 0.0
  %7063 = vmatprep.subr.mxu0 0.0
  %7064 = vmatpush1.msra.mxu0 0.0
  %7065 = vmatprep.subr.mxu0 0.0
  %7066 = vmatpush1.msra.mxu0 0.0
  %7067 = vmatprep.subr.mxu0 0.0
  %7068 = vmatpush1.msra.mxu0 0.0
  %7069 = vmatprep.subr.mxu0 0.0
  %7070 = vmatpush1.msra.mxu0 0.0
  %7071 = vmatprep.subr.mxu0 0.0
  %7072 = vmatpush1.msra.mxu0 0.0
  %7073 = vmatprep.subr.mxu0 0.0
  %7074 = vmatpush1.msra.mxu0 0.0
  %7075 = vmatprep.subr.mxu0 0.0
  %7076 = vmatpush1.msra.mxu0 0.0
  %7077 = vmatprep.subr.mxu0 0.0
  %7078 = vmatpush1.msra.mxu0 0.0
  %7079 = vmatprep.subr.mxu0 0.0
  %7080 = vmatpush1.msra.mxu0 0.0
  %7081 = vmatprep.subr.mxu0 0.0
  %7082 = vmatpush1.msra.mxu0 0.0
  %7083 = vmatprep.subr.mxu0 0.0
  %7084 = vmatpush1.msra.mxu0 0.0
  %7085 = vmatprep.subr.mxu0 0.0
  %7086 = vmatpush1.msra.mxu0 0.0
  %7087 = vmatprep.subr.mxu0 0.0
  %7088 = vmatpush1.msra.mxu0 0.0
  %7089 = vmatprep.mubr.f32.mxu0 0.0
  %v7090 = vand.u32 %v5861, 4294901760
  %7091 = vmatmul.mubr.f32.gmra.mrb[0].mxu0 %v7090
  %v7092 = vpop.f32.mrb[0].mxu0
  %v7093 = vadd.f32 %v6932, %v7092
  %v7094 = vpop.f32.mrb[0].mxu0
  %7095 = vmatprep.mubr.f32.mxu0 0.0
  %v7096 = vand.u32 %v5876, 4294901760
  %7097 = vmatmul.mubr.f32.gmra.mrb[0].mxu0 %v7096
  %v7098 = vpop.f32.mrb[0].mxu0
  %v7099 = vadd.f32 %v6942, %v7098
  %v7100 = vpop.f32.mrb[0].mxu0
  %7101 = vdwg.mxu0
  %7102 = vmatprep.subr.mxu0 0.0
  %v7103 = vand.u32 %v5910, 4294901760
  %v7104 = vsub.f32 %v5910, %v7103
  %7105 = vmatpush1.msra.mxu0 %v7104
  %7106 = vmatprep.subr.mxu0 0.0
  %v7107 = vand.u32 %v5911, 4294901760
  %v7108 = vsub.f32 %v5911, %v7107
  %7109 = vmatpush1.msra.mxu0 %v7108
  %7110 = vmatprep.subr.mxu0 0.0
  %v7111 = vand.u32 %v5912, 4294901760
  %v7112 = vsub.f32 %v5912, %v7111
  %7113 = vmatpush1.msra.mxu0 %v7112
  %7114 = vmatprep.subr.mxu0 0.0
  %v7115 = vand.u32 %v5913, 4294901760
  %v7116 = vsub.f32 %v5913, %v7115
  %7117 = vmatpush1.msra.mxu0 %v7116
  %7118 = vmatprep.subr.mxu0 0.0
  %v7119 = vand.u32 %v5914, 4294901760
  %v7120 = vsub.f32 %v5914, %v7119
  %7121 = vmatpush1.msra.mxu0 %v7120
  %7122 = vmatprep.subr.mxu0 0.0
  %v7123 = vand.u32 %v5915, 4294901760
  %v7124 = vsub.f32 %v5915, %v7123
  %7125 = vmatpush1.msra.mxu0 %v7124
  %7126 = vmatprep.subr.mxu0 0.0
  %v7127 = vand.u32 %v5916, 4294901760
  %v7128 = vsub.f32 %v5916, %v7127
  %7129 = vmatpush1.msra.mxu0 %v7128
  %7130 = vmatprep.subr.mxu0 0.0
  %v7131 = vand.u32 %v5917, 4294901760
  %v7132 = vsub.f32 %v5917, %v7131
  %7133 = vmatpush1.msra.mxu0 %v7132
  %7134 = vmatprep.subr.mxu0 0.0
  %v7135 = vand.u32 %v5918, 4294901760
  %v7136 = vsub.f32 %v5918, %v7135
  %7137 = vmatpush1.msra.mxu0 %v7136
  %7138 = vmatprep.subr.mxu0 0.0
  %v7139 = vand.u32 %v5919, 4294901760
  %v7140 = vsub.f32 %v5919, %v7139
  %7141 = vmatpush1.msra.mxu0 %v7140
  %7142 = vmatprep.subr.mxu0 0.0
  %v7143 = vand.u32 %v5920, 4294901760
  %v7144 = vsub.f32 %v5920, %v7143
  %7145 = vmatpush1.msra.mxu0 %v7144
  %7146 = vmatprep.subr.mxu0 0.0
  %v7147 = vand.u32 %v5921, 4294901760
  %v7148 = vsub.f32 %v5921, %v7147
  %7149 = vmatpush1.msra.mxu0 %v7148
  %7150 = vmatprep.subr.mxu0 0.0
  %v7151 = vand.u32 %v5922, 4294901760
  %v7152 = vsub.f32 %v5922, %v7151
  %7153 = vmatpush1.msra.mxu0 %v7152
  %7154 = vmatprep.subr.mxu0 0.0
  %v7155 = vand.u32 %v5923, 4294901760
  %v7156 = vsub.f32 %v5923, %v7155
  %7157 = vmatpush1.msra.mxu0 %v7156
  %7158 = vmatprep.subr.mxu0 0.0
  %v7159 = vand.u32 %v5924, 4294901760
  %v7160 = vsub.f32 %v5924, %v7159
  %7161 = vmatpush1.msra.mxu0 %v7160
  %7162 = vmatprep.subr.mxu0 0.0
  %v7163 = vand.u32 %v5925, 4294901760
  %v7164 = vsub.f32 %v5925, %v7163
  %7165 = vmatpush1.msra.mxu0 %v7164
  %7166 = vmatprep.subr.mxu0 0.0
  %7167 = vmatpush1.msra.mxu0 0.0
  %7168 = vmatprep.subr.mxu0 0.0
  %7169 = vmatpush1.msra.mxu0 0.0
  %7170 = vmatprep.subr.mxu0 0.0
  %7171 = vmatpush1.msra.mxu0 0.0
  %7172 = vmatprep.subr.mxu0 0.0
  %7173 = vmatpush1.msra.mxu0 0.0
  %7174 = vmatprep.subr.mxu0 0.0
  %7175 = vmatpush1.msra.mxu0 0.0
  %7176 = vmatprep.subr.mxu0 0.0
  %7177 = vmatpush1.msra.mxu0 0.0
  %7178 = vmatprep.subr.mxu0 0.0
  %7179 = vmatpush1.msra.mxu0 0.0
  %7180 = vmatprep.subr.mxu0 0.0
  %7181 = vmatpush1.msra.mxu0 0.0
  %7182 = vmatprep.subr.mxu0 0.0
  %7183 = vmatpush1.msra.mxu0 0.0
  %7184 = vmatprep.subr.mxu0 0.0
  %7185 = vmatpush1.msra.mxu0 0.0
  %7186 = vmatprep.subr.mxu0 0.0
  %7187 = vmatpush1.msra.mxu0 0.0
  %7188 = vmatprep.subr.mxu0 0.0
  %7189 = vmatpush1.msra.mxu0 0.0
  %7190 = vmatprep.subr.mxu0 0.0
  %7191 = vmatpush1.msra.mxu0 0.0
  %7192 = vmatprep.subr.mxu0 0.0
  %7193 = vmatpush1.msra.mxu0 0.0
  %7194 = vmatprep.subr.mxu0 0.0
  %7195 = vmatpush1.msra.mxu0 0.0
  %7196 = vmatprep.subr.mxu0 0.0
  %7197 = vmatpush1.msra.mxu0 0.0
  %7198 = vmatprep.mubr.f32.mxu0 0.0
  %v7199 = vand.u32 %v5861, 4294901760
  %v7200 = vsub.f32 %v5861, %v7199
  %7201 = vmatmul.mubr.f32.gmra.mrb[0].mxu0 %v7200
  %v7202 = vpop.f32.mrb[0].mxu0
  %v7203 = vadd.f32 %v7093, %v7202
  %v7204 = vpop.f32.mrb[0].mxu0
  %7205 = vmatprep.mubr.f32.mxu0 0.0
  %v7206 = vand.u32 %v5876, 4294901760
  %v7207 = vsub.f32 %v5876, %v7206
  %7208 = vmatmul.mubr.f32.gmra.mrb[0].mxu0 %v7207
  %v7209 = vpop.f32.mrb[0].mxu0
  %v7210 = vadd.f32 %v7099, %v7209
  %v7211 = vpop.f32.mrb[0].mxu0
  %7212 = vdwg.mxu0
  %7213 = vmatprep.subr.mxu0 0.0
  %v7214 = vand.u32 %v5910, 4294901760
  %7215 = vmatpush1.msra.mxu0 %v7214
  %7216 = vmatprep.subr.mxu0 0.0
  %v7217 = vand.u32 %v5911, 4294901760
  %7218 = vmatpush1.msra.mxu0 %v7217
  %7219 = vmatprep.subr.mxu0 0.0
  %v7220 = vand.u32 %v5912, 4294901760
  %7221 = vmatpush1.msra.mxu0 %v7220
  %7222 = vmatprep.subr.mxu0 0.0
  %v7223 = vand.u32 %v5913, 4294901760
  %7224 = vmatpush1.msra.mxu0 %v7223
  %7225 = vmatprep.subr.mxu0 0.0
  %v7226 = vand.u32 %v5914, 4294901760
  %7227 = vmatpush1.msra.mxu0 %v7226
  %7228 = vmatprep.subr.mxu0 0.0
  %v7229 = vand.u32 %v5915, 4294901760
  %7230 = vmatpush1.msra.mxu0 %v7229
  %7231 = vmatprep.subr.mxu0 0.0
  %v7232 = vand.u32 %v5916, 4294901760
  %7233 = vmatpush1.msra.mxu0 %v7232
  %7234 = vmatprep.subr.mxu0 0.0
  %v7235 = vand.u32 %v5917, 4294901760
  %7236 = vmatpush1.msra.mxu0 %v7235
  %7237 = vmatprep.subr.mxu0 0.0
  %v7238 = vand.u32 %v5918, 4294901760
  %7239 = vmatpush1.msra.mxu0 %v7238
  %7240 = vmatprep.subr.mxu0 0.0
  %v7241 = vand.u32 %v5919, 4294901760
  %7242 = vmatpush1.msra.mxu0 %v7241
  %7243 = vmatprep.subr.mxu0 0.0
  %v7244 = vand.u32 %v5920, 4294901760
  %7245 = vmatpush1.msra.mxu0 %v7244
  %7246 = vmatprep.subr.mxu0 0.0
  %v7247 = vand.u32 %v5921, 4294901760
  %7248 = vmatpush1.msra.mxu0 %v7247
  %7249 = vmatprep.subr.mxu0 0.0
  %v7250 = vand.u32 %v5922, 4294901760
  %7251 = vmatpush1.msra.mxu0 %v7250
  %7252 = vmatprep.subr.mxu0 0.0
  %v7253 = vand.u32 %v5923, 4294901760
  %7254 = vmatpush1.msra.mxu0 %v7253
  %7255 = vmatprep.subr.mxu0 0.0
  %v7256 = vand.u32 %v5924, 4294901760
  %7257 = vmatpush1.msra.mxu0 %v7256
  %7258 = vmatprep.subr.mxu0 0.0
  %v7259 = vand.u32 %v5925, 4294901760
  %7260 = vmatpush1.msra.mxu0 %v7259
  %7261 = vmatprep.subr.mxu0 0.0
  %7262 = vmatpush1.msra.mxu0 0.0
  %7263 = vmatprep.subr.mxu0 0.0
  %7264 = vmatpush1.msra.mxu0 0.0
  %7265 = vmatprep.subr.mxu0 0.0
  %7266 = vmatpush1.msra.mxu0 0.0
  %7267 = vmatprep.subr.mxu0 0.0
  %7268 = vmatpush1.msra.mxu0 0.0
  %7269 = vmatprep.subr.mxu0 0.0
  %7270 = vmatpush1.msra.mxu0 0.0
  %7271 = vmatprep.subr.mxu0 0.0
  %7272 = vmatpush1.msra.mxu0 0.0
  %7273 = vmatprep.subr.mxu0 0.0
  %7274 = vmatpush1.msra.mxu0 0.0
  %7275 = vmatprep.subr.mxu0 0.0
  %7276 = vmatpush1.msra.mxu0 0.0
  %7277 = vmatprep.subr.mxu0 0.0
  %7278 = vmatpush1.msra.mxu0 0.0
  %7279 = vmatprep.subr.mxu0 0.0
  %7280 = vmatpush1.msra.mxu0 0.0
  %7281 = vmatprep.subr.mxu0 0.0
  %7282 = vmatpush1.msra.mxu0 0.0
  %7283 = vmatprep.subr.mxu0 0.0
  %7284 = vmatpush1.msra.mxu0 0.0
  %7285 = vmatprep.subr.mxu0 0.0
  %7286 = vmatpush1.msra.mxu0 0.0
  %7287 = vmatprep.subr.mxu0 0.0
  %7288 = vmatpush1.msra.mxu0 0.0
  %7289 = vmatprep.subr.mxu0 0.0
  %7290 = vmatpush1.msra.mxu0 0.0
  %7291 = vmatprep.subr.mxu0 0.0
  %7292 = vmatpush1.msra.mxu0 0.0
  %7293 = vmatprep.mubr.f32.mxu0 0.0
  %v7294 = vand.u32 %v5861, 4294901760
  %v7295 = vsub.f32 %v5861, %v7294
  %v7296 = vand.u32 %v7295, 4294901760
  %7297 = vmatmul.mubr.f32.gmra.mrb[0].mxu0 %v7296
  %v7298 = vpop.f32.mrb[0].mxu0
  %v7299 = vadd.f32 %v7203, %v7298
  %v7300 = vpop.f32.mrb[0].mxu0
  %7301 = vmatprep.mubr.f32.mxu0 0.0
  %v7302 = vand.u32 %v5876, 4294901760
  %v7303 = vsub.f32 %v5876, %v7302
  %v7304 = vand.u32 %v7303, 4294901760
  %7305 = vmatmul.mubr.f32.gmra.mrb[0].mxu0 %v7304
  %v7306 = vpop.f32.mrb[0].mxu0
  %v7307 = vadd.f32 %v7210, %v7306
  %v7308 = vpop.f32.mrb[0].mxu0
  %7309 = vdwg.mxu0
  %7310 = vmatprep.subr.mxu0 0.0
  %v7311 = vand.u32 %v5910, 4294901760
  %v7312 = vsub.f32 %v5910, %v7311
  %v7313 = vand.u32 %v7312, 4294901760
  %7314 = vmatpush1.msra.mxu0 %v7313
  %7315 = vmatprep.subr.mxu0 0.0
  %v7316 = vand.u32 %v5911, 4294901760
  %v7317 = vsub.f32 %v5911, %v7316
  %v7318 = vand.u32 %v7317, 4294901760
  %7319 = vmatpush1.msra.mxu0 %v7318
  %7320 = vmatprep.subr.mxu0 0.0
  %v7321 = vand.u32 %v5912, 4294901760
  %v7322 = vsub.f32 %v5912, %v7321
  %v7323 = vand.u32 %v7322, 4294901760
  %7324 = vmatpush1.msra.mxu0 %v7323
  %7325 = vmatprep.subr.mxu0 0.0
  %v7326 = vand.u32 %v5913, 4294901760
  %v7327 = vsub.f32 %v5913, %v7326
  %v7328 = vand.u32 %v7327, 4294901760
  %7329 = vmatpush1.msra.mxu0 %v7328
  %7330 = vmatprep.subr.mxu0 0.0
  %v7331 = vand.u32 %v5914, 4294901760
  %v7332 = vsub.f32 %v5914, %v7331
  %v7333 = vand.u32 %v7332, 4294901760
  %7334 = vmatpush1.msra.mxu0 %v7333
  %7335 = vmatprep.subr.mxu0 0.0
  %v7336 = vand.u32 %v5915, 4294901760
  %v7337 = vsub.f32 %v5915, %v7336
  %v7338 = vand.u32 %v7337, 4294901760
  %7339 = vmatpush1.msra.mxu0 %v7338
  %7340 = vmatprep.subr.mxu0 0.0
  %v7341 = vand.u32 %v5916, 4294901760
  %v7342 = vsub.f32 %v5916, %v7341
  %v7343 = vand.u32 %v7342, 4294901760
  %7344 = vmatpush1.msra.mxu0 %v7343
  %7345 = vmatprep.subr.mxu0 0.0
  %v7346 = vand.u32 %v5917, 4294901760
  %v7347 = vsub.f32 %v5917, %v7346
  %v7348 = vand.u32 %v7347, 4294901760
  %7349 = vmatpush1.msra.mxu0 %v7348
  %7350 = vmatprep.subr.mxu0 0.0
  %v7351 = vand.u32 %v5918, 4294901760
  %v7352 = vsub.f32 %v5918, %v7351
  %v7353 = vand.u32 %v7352, 4294901760
  %7354 = vmatpush1.msra.mxu0 %v7353
  %7355 = vmatprep.subr.mxu0 0.0
  %v7356 = vand.u32 %v5919, 4294901760
  %v7357 = vsub.f32 %v5919, %v7356
  %v7358 = vand.u32 %v7357, 4294901760
  %7359 = vmatpush1.msra.mxu0 %v7358
  %7360 = vmatprep.subr.mxu0 0.0
  %v7361 = vand.u32 %v5920, 4294901760
  %v7362 = vsub.f32 %v5920, %v7361
  %v7363 = vand.u32 %v7362, 4294901760
  %7364 = vmatpush1.msra.mxu0 %v7363
  %7365 = vmatprep.subr.mxu0 0.0
  %v7366 = vand.u32 %v5921, 4294901760
  %v7367 = vsub.f32 %v5921, %v7366
  %v7368 = vand.u32 %v7367, 4294901760
  %7369 = vmatpush1.msra.mxu0 %v7368
  %7370 = vmatprep.subr.mxu0 0.0
  %v7371 = vand.u32 %v5922, 4294901760
  %v7372 = vsub.f32 %v5922, %v7371
  %v7373 = vand.u32 %v7372, 4294901760
  %7374 = vmatpush1.msra.mxu0 %v7373
  %7375 = vmatprep.subr.mxu0 0.0
  %v7376 = vand.u32 %v5923, 4294901760
  %v7377 = vsub.f32 %v5923, %v7376
  %v7378 = vand.u32 %v7377, 4294901760
  %7379 = vmatpush1.msra.mxu0 %v7378
  %7380 = vmatprep.subr.mxu0 0.0
  %v7381 = vand.u32 %v5924, 4294901760
  %v7382 = vsub.f32 %v5924, %v7381
  %v7383 = vand.u32 %v7382, 4294901760
  %7384 = vmatpush1.msra.mxu0 %v7383
  %7385 = vmatprep.subr.mxu0 0.0
  %v7386 = vand.u32 %v5925, 4294901760
  %v7387 = vsub.f32 %v5925, %v7386
  %v7388 = vand.u32 %v7387, 4294901760
  %7389 = vmatpush1.msra.mxu0 %v7388
  %7390 = vmatprep.subr.mxu0 0.0
  %7391 = vmatpush1.msra.mxu0 0.0
  %7392 = vmatprep.subr.mxu0 0.0
  %7393 = vmatpush1.msra.mxu0 0.0
  %7394 = vmatprep.subr.mxu0 0.0
  %7395 = vmatpush1.msra.mxu0 0.0
  %7396 = vmatprep.subr.mxu0 0.0
  %7397 = vmatpush1.msra.mxu0 0.0
  %7398 = vmatprep.subr.mxu0 0.0
  %7399 = vmatpush1.msra.mxu0 0.0
  %7400 = vmatprep.subr.mxu0 0.0
  %7401 = vmatpush1.msra.mxu0 0.0
  %7402 = vmatprep.subr.mxu0 0.0
  %7403 = vmatpush1.msra.mxu0 0.0
  %7404 = vmatprep.subr.mxu0 0.0
  %7405 = vmatpush1.msra.mxu0 0.0
  %7406 = vmatprep.subr.mxu0 0.0
  %7407 = vmatpush1.msra.mxu0 0.0
  %7408 = vmatprep.subr.mxu0 0.0
  %7409 = vmatpush1.msra.mxu0 0.0
  %7410 = vmatprep.subr.mxu0 0.0
  %7411 = vmatpush1.msra.mxu0 0.0
  %7412 = vmatprep.subr.mxu0 0.0
  %7413 = vmatpush1.msra.mxu0 0.0
  %7414 = vmatprep.subr.mxu0 0.0
  %7415 = vmatpush1.msra.mxu0 0.0
  %7416 = vmatprep.subr.mxu0 0.0
  %7417 = vmatpush1.msra.mxu0 0.0
  %7418 = vmatprep.subr.mxu0 0.0
  %7419 = vmatpush1.msra.mxu0 0.0
  %7420 = vmatprep.subr.mxu0 0.0
  %7421 = vmatpush1.msra.mxu0 0.0
  %7422 = vmatprep.mubr.f32.mxu0 0.0
  %v7423 = vand.u32 %v5861, 4294901760
  %7424 = vmatmul.mubr.f32.gmra.mrb[0].mxu0 %v7423
  %v7425 = vpop.f32.mrb[0].mxu0
  %v7426 = vadd.f32 %v7299, %v7425
  %v7427 = vpop.f32.mrb[0].mxu0
  %7428 = vmatprep.mubr.f32.mxu0 0.0
  %v7429 = vand.u32 %v5876, 4294901760
  %7430 = vmatmul.mubr.f32.gmra.mrb[0].mxu0 %v7429
  %v7431 = vpop.f32.mrb[0].mxu0
  %v7432 = vadd.f32 %v7307, %v7431
  %v7433 = vpop.f32.mrb[0].mxu0
  %7434 = vdwg.mxu0
  %7435 = vmatprep.subr.mxu0 0.0
  %v7436 = vand.u32 %v5910, 4294901760
  %7437 = vmatpush1.msra.mxu0 %v7436
  %7438 = vmatprep.subr.mxu0 0.0
  %v7439 = vand.u32 %v5911, 4294901760
  %7440 = vmatpush1.msra.mxu0 %v7439
  %7441 = vmatprep.subr.mxu0 0.0
  %v7442 = vand.u32 %v5912, 4294901760
  %7443 = vmatpush1.msra.mxu0 %v7442
  %7444 = vmatprep.subr.mxu0 0.0
  %v7445 = vand.u32 %v5913, 4294901760
  %7446 = vmatpush1.msra.mxu0 %v7445
  %7447 = vmatprep.subr.mxu0 0.0
  %v7448 = vand.u32 %v5914, 4294901760
  %7449 = vmatpush1.msra.mxu0 %v7448
  %7450 = vmatprep.subr.mxu0 0.0
  %v7451 = vand.u32 %v5915, 4294901760
  %7452 = vmatpush1.msra.mxu0 %v7451
  %7453 = vmatprep.subr.mxu0 0.0
  %v7454 = vand.u32 %v5916, 4294901760
  %7455 = vmatpush1.msra.mxu0 %v7454
  %7456 = vmatprep.subr.mxu0 0.0
  %v7457 = vand.u32 %v5917, 4294901760
  %7458 = vmatpush1.msra.mxu0 %v7457
  %7459 = vmatprep.subr.mxu0 0.0
  %v7460 = vand.u32 %v5918, 4294901760
  %7461 = vmatpush1.msra.mxu0 %v7460
  %7462 = vmatprep.subr.mxu0 0.0
  %v7463 = vand.u32 %v5919, 4294901760
  %7464 = vmatpush1.msra.mxu0 %v7463
  %7465 = vmatprep.subr.mxu0 0.0
  %v7466 = vand.u32 %v5920, 4294901760
  %7467 = vmatpush1.msra.mxu0 %v7466
  %7468 = vmatprep.subr.mxu0 0.0
  %v7469 = vand.u32 %v5921, 4294901760
  %7470 = vmatpush1.msra.mxu0 %v7469
  %7471 = vmatprep.subr.mxu0 0.0
  %v7472 = vand.u32 %v5922, 4294901760
  %7473 = vmatpush1.msra.mxu0 %v7472
  %7474 = vmatprep.subr.mxu0 0.0
  %v7475 = vand.u32 %v5923, 4294901760
  %7476 = vmatpush1.msra.mxu0 %v7475
  %7477 = vmatprep.subr.mxu0 0.0
  %v7478 = vand.u32 %v5924, 4294901760
  %7479 = vmatpush1.msra.mxu0 %v7478
  %7480 = vmatprep.subr.mxu0 0.0
  %v7481 = vand.u32 %v5925, 4294901760
  %7482 = vmatpush1.msra.mxu0 %v7481
  %7483 = vmatprep.subr.mxu0 0.0
  %7484 = vmatpush1.msra.mxu0 0.0
  %7485 = vmatprep.subr.mxu0 0.0
  %7486 = vmatpush1.msra.mxu0 0.0
  %7487 = vmatprep.subr.mxu0 0.0
  %7488 = vmatpush1.msra.mxu0 0.0
  %7489 = vmatprep.subr.mxu0 0.0
  %7490 = vmatpush1.msra.mxu0 0.0
  %7491 = vmatprep.subr.mxu0 0.0
  %7492 = vmatpush1.msra.mxu0 0.0
  %7493 = vmatprep.subr.mxu0 0.0
  %7494 = vmatpush1.msra.mxu0 0.0
  %7495 = vmatprep.subr.mxu0 0.0
  %7496 = vmatpush1.msra.mxu0 0.0
  %7497 = vmatprep.subr.mxu0 0.0
  %7498 = vmatpush1.msra.mxu0 0.0
  %7499 = vmatprep.subr.mxu0 0.0
  %7500 = vmatpush1.msra.mxu0 0.0
  %7501 = vmatprep.subr.mxu0 0.0
  %7502 = vmatpush1.msra.mxu0 0.0
  %7503 = vmatprep.subr.mxu0 0.0
  %7504 = vmatpush1.msra.mxu0 0.0
  %7505 = vmatprep.subr.mxu0 0.0
  %7506 = vmatpush1.msra.mxu0 0.0
  %7507 = vmatprep.subr.mxu0 0.0
  %7508 = vmatpush1.msra.mxu0 0.0
  %7509 = vmatprep.subr.mxu0 0.0
  %7510 = vmatpush1.msra.mxu0 0.0
  %7511 = vmatprep.subr.mxu0 0.0
  %7512 = vmatpush1.msra.mxu0 0.0
  %7513 = vmatprep.subr.mxu0 0.0
  %7514 = vmatpush1.msra.mxu0 0.0
  %7515 = vmatprep.mubr.f32.mxu0 0.0
  %v7516 = vand.u32 %v5861, 4294901760
  %7517 = vmatmul.mubr.f32.gmra.mrb[0].mxu0 %v7516
  %v7518 = vpop.f32.mrb[0].mxu0
  %v7519 = vadd.f32 %v7426, %v7518
  %v7520 = vpop.f32.mrb[0].mxu0
  %7521 = vmatprep.mubr.f32.mxu0 0.0
  %v7522 = vand.u32 %v5876, 4294901760
  %7523 = vmatmul.mubr.f32.gmra.mrb[0].mxu0 %v7522
  %v7524 = vpop.f32.mrb[0].mxu0
  %v7525 = vadd.f32 %v7432, %v7524
  %v7526 = vpop.f32.mrb[0].mxu0
  %7527 = vdwg.mxu0
  %v7528 = vmax.f32 %v7519, 0.0
  %v7529 = vmax.f32 %v7525, 0.0
  %v7530 = vadd.f32 %v7528, %v7529
  %v7531 = vrot.slane %v7530, 4
  %v7532 = vadd.f32 %v7530, %v7531
  %v7533 = vrot.slane %v7532, 2
  %v7534 = vadd.f32 %v7532, %v7533
  %v7535 = vrot.slane %v7534, 1
  %v7536 = vadd.f32 %v7534, %v7535
  %v7537 = vmul.f32 %v7528, %v7528
  %v7538 = vmul.f32 %v7529, %v7529
  %v7539 = vadd.f32 %v7537, %v7538
  %v7540 = vrot.slane %v7539, 4
  %v7541 = vadd.f32 %v7539, %v7540
  %v7542 = vrot.slane %v7541, 2
  %v7543 = vadd.f32 %v7541, %v7542
  %v7544 = vrot.slane %v7543, 1
  %v7545 = vadd.f32 %v7543, %v7544
  %v7546 = vsel %vm662, %v7536, %v7545
  %7547 = vmatprep.subr.mxu0 0.0
  %v7548 = vand.u32 %v29, 4294901760
  %7549 = vmatpush1.msra.mxu0 %v7548
  %7550 = vmatprep.subr.mxu0 0.0
  %v7551 = vand.u32 %v30, 4294901760
  %7552 = vmatpush1.msra.mxu0 %v7551
  %7553 = vmatprep.subr.mxu0 0.0
  %v7554 = vand.u32 %v31, 4294901760
  %7555 = vmatpush1.msra.mxu0 %v7554
  %7556 = vmatprep.subr.mxu0 0.0
  %v7557 = vand.u32 %v32, 4294901760
  %7558 = vmatpush1.msra.mxu0 %v7557
  %7559 = vmatprep.subr.mxu0 0.0
  %v7560 = vand.u32 %v33, 4294901760
  %7561 = vmatpush1.msra.mxu0 %v7560
  %7562 = vmatprep.subr.mxu0 0.0
  %v7563 = vand.u32 %v34, 4294901760
  %7564 = vmatpush1.msra.mxu0 %v7563
  %7565 = vmatprep.subr.mxu0 0.0
  %v7566 = vand.u32 %v35, 4294901760
  %7567 = vmatpush1.msra.mxu0 %v7566
  %7568 = vmatprep.subr.mxu0 0.0
  %v7569 = vand.u32 %v36, 4294901760
  %7570 = vmatpush1.msra.mxu0 %v7569
  %7571 = vmatprep.subr.mxu0 0.0
  %v7572 = vand.u32 %v37, 4294901760
  %7573 = vmatpush1.msra.mxu0 %v7572
  %7574 = vmatprep.subr.mxu0 0.0
  %v7575 = vand.u32 %v38, 4294901760
  %7576 = vmatpush1.msra.mxu0 %v7575
  %7577 = vmatprep.subr.mxu0 0.0
  %v7578 = vand.u32 %v39, 4294901760
  %7579 = vmatpush1.msra.mxu0 %v7578
  %7580 = vmatprep.subr.mxu0 0.0
  %v7581 = vand.u32 %v40, 4294901760
  %7582 = vmatpush1.msra.mxu0 %v7581
  %7583 = vmatprep.subr.mxu0 0.0
  %v7584 = vand.u32 %v41, 4294901760
  %7585 = vmatpush1.msra.mxu0 %v7584
  %7586 = vmatprep.subr.mxu0 0.0
  %v7587 = vand.u32 %v42, 4294901760
  %7588 = vmatpush1.msra.mxu0 %v7587
  %7589 = vmatprep.subr.mxu0 0.0
  %v7590 = vand.u32 %v43, 4294901760
  %7591 = vmatpush1.msra.mxu0 %v7590
  %7592 = vmatprep.subr.mxu0 0.0
  %v7593 = vand.u32 %v44, 4294901760
  %7594 = vmatpush1.msra.mxu0 %v7593
  %7595 = vmatprep.subr.mxu0 0.0
  %7596 = vmatpush1.msra.mxu0 0.0
  %7597 = vmatprep.subr.mxu0 0.0
  %7598 = vmatpush1.msra.mxu0 0.0
  %7599 = vmatprep.subr.mxu0 0.0
  %7600 = vmatpush1.msra.mxu0 0.0
  %7601 = vmatprep.subr.mxu0 0.0
  %7602 = vmatpush1.msra.mxu0 0.0
  %7603 = vmatprep.subr.mxu0 0.0
  %7604 = vmatpush1.msra.mxu0 0.0
  %7605 = vmatprep.subr.mxu0 0.0
  %7606 = vmatpush1.msra.mxu0 0.0
  %7607 = vmatprep.subr.mxu0 0.0
  %7608 = vmatpush1.msra.mxu0 0.0
  %7609 = vmatprep.subr.mxu0 0.0
  %7610 = vmatpush1.msra.mxu0 0.0
  %7611 = vmatprep.subr.mxu0 0.0
  %7612 = vmatpush1.msra.mxu0 0.0
  %7613 = vmatprep.subr.mxu0 0.0
  %7614 = vmatpush1.msra.mxu0 0.0
  %7615 = vmatprep.subr.mxu0 0.0
  %7616 = vmatpush1.msra.mxu0 0.0
  %7617 = vmatprep.subr.mxu0 0.0
  %7618 = vmatpush1.msra.mxu0 0.0
  %7619 = vmatprep.subr.mxu0 0.0
  %7620 = vmatpush1.msra.mxu0 0.0
  %7621 = vmatprep.subr.mxu0 0.0
  %7622 = vmatpush1.msra.mxu0 0.0
  %7623 = vmatprep.subr.mxu0 0.0
  %7624 = vmatpush1.msra.mxu0 0.0
  %7625 = vmatprep.subr.mxu0 0.0
  %7626 = vmatpush1.msra.mxu0 0.0
  %7627 = vmatprep.mubr.f32.mxu0 0.0
  %v7628 = vand.u32 %v7546, 4294901760
  %v7629 = vsub.f32 %v7546, %v7628
  %v7630 = vand.u32 %v7629, 4294901760
  %v7631 = vsub.f32 %v7629, %v7630
  %v7632 = vand.u32 %v7631, 4294901760
  %7633 = vmatmul.mubr.f32.gmra.mrb[0].mxu0 %v7632
  %v7634 = vpop.f32.mrb[0].mxu0
  %v7635 = vadd.f32 0.0, %v7634
  %v7636 = vpop.f32.mrb[0].mxu0
  %7637 = vdwg.mxu0
  %7638 = vmatprep.subr.mxu0 0.0
  %v7639 = vand.u32 %v29, 4294901760
  %v7640 = vsub.f32 %v29, %v7639
  %v7641 = vand.u32 %v7640, 4294901760
  %v7642 = vsub.f32 %v7640, %v7641
  %v7643 = vand.u32 %v7642, 4294901760
  %7644 = vmatpush1.msra.mxu0 %v7643
  %7645 = vmatprep.subr.mxu0 0.0
  %v7646 = vand.u32 %v30, 4294901760
  %v7647 = vsub.f32 %v30, %v7646
  %v7648 = vand.u32 %v7647, 4294901760
  %v7649 = vsub.f32 %v7647, %v7648
  %v7650 = vand.u32 %v7649, 4294901760
  %7651 = vmatpush1.msra.mxu0 %v7650
  %7652 = vmatprep.subr.mxu0 0.0
  %v7653 = vand.u32 %v31, 4294901760
  %v7654 = vsub.f32 %v31, %v7653
  %v7655 = vand.u32 %v7654, 4294901760
  %v7656 = vsub.f32 %v7654, %v7655
  %v7657 = vand.u32 %v7656, 4294901760
  %7658 = vmatpush1.msra.mxu0 %v7657
  %7659 = vmatprep.subr.mxu0 0.0
  %v7660 = vand.u32 %v32, 4294901760
  %v7661 = vsub.f32 %v32, %v7660
  %v7662 = vand.u32 %v7661, 4294901760
  %v7663 = vsub.f32 %v7661, %v7662
  %v7664 = vand.u32 %v7663, 4294901760
  %7665 = vmatpush1.msra.mxu0 %v7664
  %7666 = vmatprep.subr.mxu0 0.0
  %v7667 = vand.u32 %v33, 4294901760
  %v7668 = vsub.f32 %v33, %v7667
  %v7669 = vand.u32 %v7668, 4294901760
  %v7670 = vsub.f32 %v7668, %v7669
  %v7671 = vand.u32 %v7670, 4294901760
  %7672 = vmatpush1.msra.mxu0 %v7671
  %7673 = vmatprep.subr.mxu0 0.0
  %v7674 = vand.u32 %v34, 4294901760
  %v7675 = vsub.f32 %v34, %v7674
  %v7676 = vand.u32 %v7675, 4294901760
  %v7677 = vsub.f32 %v7675, %v7676
  %v7678 = vand.u32 %v7677, 4294901760
  %7679 = vmatpush1.msra.mxu0 %v7678
  %7680 = vmatprep.subr.mxu0 0.0
  %v7681 = vand.u32 %v35, 4294901760
  %v7682 = vsub.f32 %v35, %v7681
  %v7683 = vand.u32 %v7682, 4294901760
  %v7684 = vsub.f32 %v7682, %v7683
  %v7685 = vand.u32 %v7684, 4294901760
  %7686 = vmatpush1.msra.mxu0 %v7685
  %7687 = vmatprep.subr.mxu0 0.0
  %v7688 = vand.u32 %v36, 4294901760
  %v7689 = vsub.f32 %v36, %v7688
  %v7690 = vand.u32 %v7689, 4294901760
  %v7691 = vsub.f32 %v7689, %v7690
  %v7692 = vand.u32 %v7691, 4294901760
  %7693 = vmatpush1.msra.mxu0 %v7692
  %7694 = vmatprep.subr.mxu0 0.0
  %v7695 = vand.u32 %v37, 4294901760
  %v7696 = vsub.f32 %v37, %v7695
  %v7697 = vand.u32 %v7696, 4294901760
  %v7698 = vsub.f32 %v7696, %v7697
  %v7699 = vand.u32 %v7698, 4294901760
  %7700 = vmatpush1.msra.mxu0 %v7699
  %7701 = vmatprep.subr.mxu0 0.0
  %v7702 = vand.u32 %v38, 4294901760
  %v7703 = vsub.f32 %v38, %v7702
  %v7704 = vand.u32 %v7703, 4294901760
  %v7705 = vsub.f32 %v7703, %v7704
  %v7706 = vand.u32 %v7705, 4294901760
  %7707 = vmatpush1.msra.mxu0 %v7706
  %7708 = vmatprep.subr.mxu0 0.0
  %v7709 = vand.u32 %v39, 4294901760
  %v7710 = vsub.f32 %v39, %v7709
  %v7711 = vand.u32 %v7710, 4294901760
  %v7712 = vsub.f32 %v7710, %v7711
  %v7713 = vand.u32 %v7712, 4294901760
  %7714 = vmatpush1.msra.mxu0 %v7713
  %7715 = vmatprep.subr.mxu0 0.0
  %v7716 = vand.u32 %v40, 4294901760
  %v7717 = vsub.f32 %v40, %v7716
  %v7718 = vand.u32 %v7717, 4294901760
  %v7719 = vsub.f32 %v7717, %v7718
  %v7720 = vand.u32 %v7719, 4294901760
  %7721 = vmatpush1.msra.mxu0 %v7720
  %7722 = vmatprep.subr.mxu0 0.0
  %v7723 = vand.u32 %v41, 4294901760
  %v7724 = vsub.f32 %v41, %v7723
  %v7725 = vand.u32 %v7724, 4294901760
  %v7726 = vsub.f32 %v7724, %v7725
  %v7727 = vand.u32 %v7726, 4294901760
  %7728 = vmatpush1.msra.mxu0 %v7727
  %7729 = vmatprep.subr.mxu0 0.0
  %v7730 = vand.u32 %v42, 4294901760
  %v7731 = vsub.f32 %v42, %v7730
  %v7732 = vand.u32 %v7731, 4294901760
  %v7733 = vsub.f32 %v7731, %v7732
  %v7734 = vand.u32 %v7733, 4294901760
  %7735 = vmatpush1.msra.mxu0 %v7734
  %7736 = vmatprep.subr.mxu0 0.0
  %v7737 = vand.u32 %v43, 4294901760
  %v7738 = vsub.f32 %v43, %v7737
  %v7739 = vand.u32 %v7738, 4294901760
  %v7740 = vsub.f32 %v7738, %v7739
  %v7741 = vand.u32 %v7740, 4294901760
  %7742 = vmatpush1.msra.mxu0 %v7741
  %7743 = vmatprep.subr.mxu0 0.0
  %v7744 = vand.u32 %v44, 4294901760
  %v7745 = vsub.f32 %v44, %v7744
  %v7746 = vand.u32 %v7745, 4294901760
  %v7747 = vsub.f32 %v7745, %v7746
  %v7748 = vand.u32 %v7747, 4294901760
  %7749 = vmatpush1.msra.mxu0 %v7748
  %7750 = vmatprep.subr.mxu0 0.0
  %7751 = vmatpush1.msra.mxu0 0.0
  %7752 = vmatprep.subr.mxu0 0.0
  %7753 = vmatpush1.msra.mxu0 0.0
  %7754 = vmatprep.subr.mxu0 0.0
  %7755 = vmatpush1.msra.mxu0 0.0
  %7756 = vmatprep.subr.mxu0 0.0
  %7757 = vmatpush1.msra.mxu0 0.0
  %7758 = vmatprep.subr.mxu0 0.0
  %7759 = vmatpush1.msra.mxu0 0.0
  %7760 = vmatprep.subr.mxu0 0.0
  %7761 = vmatpush1.msra.mxu0 0.0
  %7762 = vmatprep.subr.mxu0 0.0
  %7763 = vmatpush1.msra.mxu0 0.0
  %7764 = vmatprep.subr.mxu0 0.0
  %7765 = vmatpush1.msra.mxu0 0.0
  %7766 = vmatprep.subr.mxu0 0.0
  %7767 = vmatpush1.msra.mxu0 0.0
  %7768 = vmatprep.subr.mxu0 0.0
  %7769 = vmatpush1.msra.mxu0 0.0
  %7770 = vmatprep.subr.mxu0 0.0
  %7771 = vmatpush1.msra.mxu0 0.0
  %7772 = vmatprep.subr.mxu0 0.0
  %7773 = vmatpush1.msra.mxu0 0.0
  %7774 = vmatprep.subr.mxu0 0.0
  %7775 = vmatpush1.msra.mxu0 0.0
  %7776 = vmatprep.subr.mxu0 0.0
  %7777 = vmatpush1.msra.mxu0 0.0
  %7778 = vmatprep.subr.mxu0 0.0
  %7779 = vmatpush1.msra.mxu0 0.0
  %7780 = vmatprep.subr.mxu0 0.0
  %7781 = vmatpush1.msra.mxu0 0.0
  %7782 = vmatprep.mubr.f32.mxu0 0.0
  %v7783 = vand.u32 %v7546, 4294901760
  %7784 = vmatmul.mubr.f32.gmra.mrb[0].mxu0 %v7783
  %v7785 = vpop.f32.mrb[0].mxu0
  %v7786 = vadd.f32 %v7635, %v7785
  %v7787 = vpop.f32.mrb[0].mxu0
  %7788 = vdwg.mxu0
  %7789 = vmatprep.subr.mxu0 0.0
  %v7790 = vand.u32 %v29, 4294901760
  %v7791 = vsub.f32 %v29, %v7790
  %7792 = vmatpush1.msra.mxu0 %v7791
  %7793 = vmatprep.subr.mxu0 0.0
  %v7794 = vand.u32 %v30, 4294901760
  %v7795 = vsub.f32 %v30, %v7794
  %7796 = vmatpush1.msra.mxu0 %v7795
  %7797 = vmatprep.subr.mxu0 0.0
  %v7798 = vand.u32 %v31, 4294901760
  %v7799 = vsub.f32 %v31, %v7798
  %7800 = vmatpush1.msra.mxu0 %v7799
  %7801 = vmatprep.subr.mxu0 0.0
  %v7802 = vand.u32 %v32, 4294901760
  %v7803 = vsub.f32 %v32, %v7802
  %7804 = vmatpush1.msra.mxu0 %v7803
  %7805 = vmatprep.subr.mxu0 0.0
  %v7806 = vand.u32 %v33, 4294901760
  %v7807 = vsub.f32 %v33, %v7806
  %7808 = vmatpush1.msra.mxu0 %v7807
  %7809 = vmatprep.subr.mxu0 0.0
  %v7810 = vand.u32 %v34, 4294901760
  %v7811 = vsub.f32 %v34, %v7810
  %7812 = vmatpush1.msra.mxu0 %v7811
  %7813 = vmatprep.subr.mxu0 0.0
  %v7814 = vand.u32 %v35, 4294901760
  %v7815 = vsub.f32 %v35, %v7814
  %7816 = vmatpush1.msra.mxu0 %v7815
  %7817 = vmatprep.subr.mxu0 0.0
  %v7818 = vand.u32 %v36, 4294901760
  %v7819 = vsub.f32 %v36, %v7818
  %7820 = vmatpush1.msra.mxu0 %v7819
  %7821 = vmatprep.subr.mxu0 0.0
  %v7822 = vand.u32 %v37, 4294901760
  %v7823 = vsub.f32 %v37, %v7822
  %7824 = vmatpush1.msra.mxu0 %v7823
  %7825 = vmatprep.subr.mxu0 0.0
  %v7826 = vand.u32 %v38, 4294901760
  %v7827 = vsub.f32 %v38, %v7826
  %7828 = vmatpush1.msra.mxu0 %v7827
  %7829 = vmatprep.subr.mxu0 0.0
  %v7830 = vand.u32 %v39, 4294901760
  %v7831 = vsub.f32 %v39, %v7830
  %7832 = vmatpush1.msra.mxu0 %v7831
  %7833 = vmatprep.subr.mxu0 0.0
  %v7834 = vand.u32 %v40, 4294901760
  %v7835 = vsub.f32 %v40, %v7834
  %7836 = vmatpush1.msra.mxu0 %v7835
  %7837 = vmatprep.subr.mxu0 0.0
  %v7838 = vand.u32 %v41, 4294901760
  %v7839 = vsub.f32 %v41, %v7838
  %7840 = vmatpush1.msra.mxu0 %v7839
  %7841 = vmatprep.subr.mxu0 0.0
  %v7842 = vand.u32 %v42, 4294901760
  %v7843 = vsub.f32 %v42, %v7842
  %7844 = vmatpush1.msra.mxu0 %v7843
  %7845 = vmatprep.subr.mxu0 0.0
  %v7846 = vand.u32 %v43, 4294901760
  %v7847 = vsub.f32 %v43, %v7846
  %7848 = vmatpush1.msra.mxu0 %v7847
  %7849 = vmatprep.subr.mxu0 0.0
  %v7850 = vand.u32 %v44, 4294901760
  %v7851 = vsub.f32 %v44, %v7850
  %7852 = vmatpush1.msra.mxu0 %v7851
  %7853 = vmatprep.subr.mxu0 0.0
  %7854 = vmatpush1.msra.mxu0 0.0
  %7855 = vmatprep.subr.mxu0 0.0
  %7856 = vmatpush1.msra.mxu0 0.0
  %7857 = vmatprep.subr.mxu0 0.0
  %7858 = vmatpush1.msra.mxu0 0.0
  %7859 = vmatprep.subr.mxu0 0.0
  %7860 = vmatpush1.msra.mxu0 0.0
  %7861 = vmatprep.subr.mxu0 0.0
  %7862 = vmatpush1.msra.mxu0 0.0
  %7863 = vmatprep.subr.mxu0 0.0
  %7864 = vmatpush1.msra.mxu0 0.0
  %7865 = vmatprep.subr.mxu0 0.0
  %7866 = vmatpush1.msra.mxu0 0.0
  %7867 = vmatprep.subr.mxu0 0.0
  %7868 = vmatpush1.msra.mxu0 0.0
  %7869 = vmatprep.subr.mxu0 0.0
  %7870 = vmatpush1.msra.mxu0 0.0
  %7871 = vmatprep.subr.mxu0 0.0
  %7872 = vmatpush1.msra.mxu0 0.0
  %7873 = vmatprep.subr.mxu0 0.0
  %7874 = vmatpush1.msra.mxu0 0.0
  %7875 = vmatprep.subr.mxu0 0.0
  %7876 = vmatpush1.msra.mxu0 0.0
  %7877 = vmatprep.subr.mxu0 0.0
  %7878 = vmatpush1.msra.mxu0 0.0
  %7879 = vmatprep.subr.mxu0 0.0
  %7880 = vmatpush1.msra.mxu0 0.0
  %7881 = vmatprep.subr.mxu0 0.0
  %7882 = vmatpush1.msra.mxu0 0.0
  %7883 = vmatprep.subr.mxu0 0.0
  %7884 = vmatpush1.msra.mxu0 0.0
  %7885 = vmatprep.mubr.f32.mxu0 0.0
  %v7886 = vand.u32 %v7546, 4294901760
  %v7887 = vsub.f32 %v7546, %v7886
  %7888 = vmatmul.mubr.f32.gmra.mrb[0].mxu0 %v7887
  %v7889 = vpop.f32.mrb[0].mxu0
  %v7890 = vadd.f32 %v7786, %v7889
  %v7891 = vpop.f32.mrb[0].mxu0
  %7892 = vdwg.mxu0
  %7893 = vmatprep.subr.mxu0 0.0
  %v7894 = vand.u32 %v29, 4294901760
  %7895 = vmatpush1.msra.mxu0 %v7894
  %7896 = vmatprep.subr.mxu0 0.0
  %v7897 = vand.u32 %v30, 4294901760
  %7898 = vmatpush1.msra.mxu0 %v7897
  %7899 = vmatprep.subr.mxu0 0.0
  %v7900 = vand.u32 %v31, 4294901760
  %7901 = vmatpush1.msra.mxu0 %v7900
  %7902 = vmatprep.subr.mxu0 0.0
  %v7903 = vand.u32 %v32, 4294901760
  %7904 = vmatpush1.msra.mxu0 %v7903
  %7905 = vmatprep.subr.mxu0 0.0
  %v7906 = vand.u32 %v33, 4294901760
  %7907 = vmatpush1.msra.mxu0 %v7906
  %7908 = vmatprep.subr.mxu0 0.0
  %v7909 = vand.u32 %v34, 4294901760
  %7910 = vmatpush1.msra.mxu0 %v7909
  %7911 = vmatprep.subr.mxu0 0.0
  %v7912 = vand.u32 %v35, 4294901760
  %7913 = vmatpush1.msra.mxu0 %v7912
  %7914 = vmatprep.subr.mxu0 0.0
  %v7915 = vand.u32 %v36, 4294901760
  %7916 = vmatpush1.msra.mxu0 %v7915
  %7917 = vmatprep.subr.mxu0 0.0
  %v7918 = vand.u32 %v37, 4294901760
  %7919 = vmatpush1.msra.mxu0 %v7918
  %7920 = vmatprep.subr.mxu0 0.0
  %v7921 = vand.u32 %v38, 4294901760
  %7922 = vmatpush1.msra.mxu0 %v7921
  %7923 = vmatprep.subr.mxu0 0.0
  %v7924 = vand.u32 %v39, 4294901760
  %7925 = vmatpush1.msra.mxu0 %v7924
  %7926 = vmatprep.subr.mxu0 0.0
  %v7927 = vand.u32 %v40, 4294901760
  %7928 = vmatpush1.msra.mxu0 %v7927
  %7929 = vmatprep.subr.mxu0 0.0
  %v7930 = vand.u32 %v41, 4294901760
  %7931 = vmatpush1.msra.mxu0 %v7930
  %7932 = vmatprep.subr.mxu0 0.0
  %v7933 = vand.u32 %v42, 4294901760
  %7934 = vmatpush1.msra.mxu0 %v7933
  %7935 = vmatprep.subr.mxu0 0.0
  %v7936 = vand.u32 %v43, 4294901760
  %7937 = vmatpush1.msra.mxu0 %v7936
  %7938 = vmatprep.subr.mxu0 0.0
  %v7939 = vand.u32 %v44, 4294901760
  %7940 = vmatpush1.msra.mxu0 %v7939
  %7941 = vmatprep.subr.mxu0 0.0
  %7942 = vmatpush1.msra.mxu0 0.0
  %7943 = vmatprep.subr.mxu0 0.0
  %7944 = vmatpush1.msra.mxu0 0.0
  %7945 = vmatprep.subr.mxu0 0.0
  %7946 = vmatpush1.msra.mxu0 0.0
  %7947 = vmatprep.subr.mxu0 0.0
  %7948 = vmatpush1.msra.mxu0 0.0
  %7949 = vmatprep.subr.mxu0 0.0
  %7950 = vmatpush1.msra.mxu0 0.0
  %7951 = vmatprep.subr.mxu0 0.0
  %7952 = vmatpush1.msra.mxu0 0.0
  %7953 = vmatprep.subr.mxu0 0.0
  %7954 = vmatpush1.msra.mxu0 0.0
  %7955 = vmatprep.subr.mxu0 0.0
  %7956 = vmatpush1.msra.mxu0 0.0
  %7957 = vmatprep.subr.mxu0 0.0
  %7958 = vmatpush1.msra.mxu0 0.0
  %7959 = vmatprep.subr.mxu0 0.0
  %7960 = vmatpush1.msra.mxu0 0.0
  %7961 = vmatprep.subr.mxu0 0.0
  %7962 = vmatpush1.msra.mxu0 0.0
  %7963 = vmatprep.subr.mxu0 0.0
  %7964 = vmatpush1.msra.mxu0 0.0
  %7965 = vmatprep.subr.mxu0 0.0
  %7966 = vmatpush1.msra.mxu0 0.0
  %7967 = vmatprep.subr.mxu0 0.0
  %7968 = vmatpush1.msra.mxu0 0.0
  %7969 = vmatprep.subr.mxu0 0.0
  %7970 = vmatpush1.msra.mxu0 0.0
  %7971 = vmatprep.subr.mxu0 0.0
  %7972 = vmatpush1.msra.mxu0 0.0
  %7973 = vmatprep.mubr.f32.mxu0 0.0
  %v7974 = vand.u32 %v7546, 4294901760
  %v7975 = vsub.f32 %v7546, %v7974
  %v7976 = vand.u32 %v7975, 4294901760
  %7977 = vmatmul.mubr.f32.gmra.mrb[0].mxu0 %v7976
  %v7978 = vpop.f32.mrb[0].mxu0
  %v7979 = vadd.f32 %v7890, %v7978
  %v7980 = vpop.f32.mrb[0].mxu0
  %7981 = vdwg.mxu0
  %7982 = vmatprep.subr.mxu0 0.0
  %v7983 = vand.u32 %v29, 4294901760
  %v7984 = vsub.f32 %v29, %v7983
  %v7985 = vand.u32 %v7984, 4294901760
  %7986 = vmatpush1.msra.mxu0 %v7985
  %7987 = vmatprep.subr.mxu0 0.0
  %v7988 = vand.u32 %v30, 4294901760
  %v7989 = vsub.f32 %v30, %v7988
  %v7990 = vand.u32 %v7989, 4294901760
  %7991 = vmatpush1.msra.mxu0 %v7990
  %7992 = vmatprep.subr.mxu0 0.0
  %v7993 = vand.u32 %v31, 4294901760
  %v7994 = vsub.f32 %v31, %v7993
  %v7995 = vand.u32 %v7994, 4294901760
  %7996 = vmatpush1.msra.mxu0 %v7995
  %7997 = vmatprep.subr.mxu0 0.0
  %v7998 = vand.u32 %v32, 4294901760
  %v7999 = vsub.f32 %v32, %v7998
  %v8000 = vand.u32 %v7999, 4294901760
  %8001 = vmatpush1.msra.mxu0 %v8000
  %8002 = vmatprep.subr.mxu0 0.0
  %v8003 = vand.u32 %v33, 4294901760
  %v8004 = vsub.f32 %v33, %v8003
  %v8005 = vand.u32 %v8004, 4294901760
  %8006 = vmatpush1.msra.mxu0 %v8005
  %8007 = vmatprep.subr.mxu0 0.0
  %v8008 = vand.u32 %v34, 4294901760
  %v8009 = vsub.f32 %v34, %v8008
  %v8010 = vand.u32 %v8009, 4294901760
  %8011 = vmatpush1.msra.mxu0 %v8010
  %8012 = vmatprep.subr.mxu0 0.0
  %v8013 = vand.u32 %v35, 4294901760
  %v8014 = vsub.f32 %v35, %v8013
  %v8015 = vand.u32 %v8014, 4294901760
  %8016 = vmatpush1.msra.mxu0 %v8015
  %8017 = vmatprep.subr.mxu0 0.0
  %v8018 = vand.u32 %v36, 4294901760
  %v8019 = vsub.f32 %v36, %v8018
  %v8020 = vand.u32 %v8019, 4294901760
  %8021 = vmatpush1.msra.mxu0 %v8020
  %8022 = vmatprep.subr.mxu0 0.0
  %v8023 = vand.u32 %v37, 4294901760
  %v8024 = vsub.f32 %v37, %v8023
  %v8025 = vand.u32 %v8024, 4294901760
  %8026 = vmatpush1.msra.mxu0 %v8025
  %8027 = vmatprep.subr.mxu0 0.0
  %v8028 = vand.u32 %v38, 4294901760
  %v8029 = vsub.f32 %v38, %v8028
  %v8030 = vand.u32 %v8029, 4294901760
  %8031 = vmatpush1.msra.mxu0 %v8030
  %8032 = vmatprep.subr.mxu0 0.0
  %v8033 = vand.u32 %v39, 4294901760
  %v8034 = vsub.f32 %v39, %v8033
  %v8035 = vand.u32 %v8034, 4294901760
  %8036 = vmatpush1.msra.mxu0 %v8035
  %8037 = vmatprep.subr.mxu0 0.0
  %v8038 = vand.u32 %v40, 4294901760
  %v8039 = vsub.f32 %v40, %v8038
  %v8040 = vand.u32 %v8039, 4294901760
  %8041 = vmatpush1.msra.mxu0 %v8040
  %8042 = vmatprep.subr.mxu0 0.0
  %v8043 = vand.u32 %v41, 4294901760
  %v8044 = vsub.f32 %v41, %v8043
  %v8045 = vand.u32 %v8044, 4294901760
  %8046 = vmatpush1.msra.mxu0 %v8045
  %8047 = vmatprep.subr.mxu0 0.0
  %v8048 = vand.u32 %v42, 4294901760
  %v8049 = vsub.f32 %v42, %v8048
  %v8050 = vand.u32 %v8049, 4294901760
  %8051 = vmatpush1.msra.mxu0 %v8050
  %8052 = vmatprep.subr.mxu0 0.0
  %v8053 = vand.u32 %v43, 4294901760
  %v8054 = vsub.f32 %v43, %v8053
  %v8055 = vand.u32 %v8054, 4294901760
  %8056 = vmatpush1.msra.mxu0 %v8055
  %8057 = vmatprep.subr.mxu0 0.0
  %v8058 = vand.u32 %v44, 4294901760
  %v8059 = vsub.f32 %v44, %v8058
  %v8060 = vand.u32 %v8059, 4294901760
  %8061 = vmatpush1.msra.mxu0 %v8060
  %8062 = vmatprep.subr.mxu0 0.0
  %8063 = vmatpush1.msra.mxu0 0.0
  %8064 = vmatprep.subr.mxu0 0.0
  %8065 = vmatpush1.msra.mxu0 0.0
  %8066 = vmatprep.subr.mxu0 0.0
  %8067 = vmatpush1.msra.mxu0 0.0
  %8068 = vmatprep.subr.mxu0 0.0
  %8069 = vmatpush1.msra.mxu0 0.0
  %8070 = vmatprep.subr.mxu0 0.0
  %8071 = vmatpush1.msra.mxu0 0.0
  %8072 = vmatprep.subr.mxu0 0.0
  %8073 = vmatpush1.msra.mxu0 0.0
  %8074 = vmatprep.subr.mxu0 0.0
  %8075 = vmatpush1.msra.mxu0 0.0
  %8076 = vmatprep.subr.mxu0 0.0
  %8077 = vmatpush1.msra.mxu0 0.0
  %8078 = vmatprep.subr.mxu0 0.0
  %8079 = vmatpush1.msra.mxu0 0.0
  %8080 = vmatprep.subr.mxu0 0.0
  %8081 = vmatpush1.msra.mxu0 0.0
  %8082 = vmatprep.subr.mxu0 0.0
  %8083 = vmatpush1.msra.mxu0 0.0
  %8084 = vmatprep.subr.mxu0 0.0
  %8085 = vmatpush1.msra.mxu0 0.0
  %8086 = vmatprep.subr.mxu0 0.0
  %8087 = vmatpush1.msra.mxu0 0.0
  %8088 = vmatprep.subr.mxu0 0.0
  %8089 = vmatpush1.msra.mxu0 0.0
  %8090 = vmatprep.subr.mxu0 0.0
  %8091 = vmatpush1.msra.mxu0 0.0
  %8092 = vmatprep.subr.mxu0 0.0
  %8093 = vmatpush1.msra.mxu0 0.0
  %8094 = vmatprep.mubr.f32.mxu0 0.0
  %v8095 = vand.u32 %v7546, 4294901760
  %8096 = vmatmul.mubr.f32.gmra.mrb[0].mxu0 %v8095
  %v8097 = vpop.f32.mrb[0].mxu0
  %v8098 = vadd.f32 %v7979, %v8097
  %v8099 = vpop.f32.mrb[0].mxu0
  %8100 = vdwg.mxu0
  %8101 = vmatprep.subr.mxu0 0.0
  %v8102 = vand.u32 %v29, 4294901760
  %8103 = vmatpush1.msra.mxu0 %v8102
  %8104 = vmatprep.subr.mxu0 0.0
  %v8105 = vand.u32 %v30, 4294901760
  %8106 = vmatpush1.msra.mxu0 %v8105
  %8107 = vmatprep.subr.mxu0 0.0
  %v8108 = vand.u32 %v31, 4294901760
  %8109 = vmatpush1.msra.mxu0 %v8108
  %8110 = vmatprep.subr.mxu0 0.0
  %v8111 = vand.u32 %v32, 4294901760
  %8112 = vmatpush1.msra.mxu0 %v8111
  %8113 = vmatprep.subr.mxu0 0.0
  %v8114 = vand.u32 %v33, 4294901760
  %8115 = vmatpush1.msra.mxu0 %v8114
  %8116 = vmatprep.subr.mxu0 0.0
  %v8117 = vand.u32 %v34, 4294901760
  %8118 = vmatpush1.msra.mxu0 %v8117
  %8119 = vmatprep.subr.mxu0 0.0
  %v8120 = vand.u32 %v35, 4294901760
  %8121 = vmatpush1.msra.mxu0 %v8120
  %8122 = vmatprep.subr.mxu0 0.0
  %v8123 = vand.u32 %v36, 4294901760
  %8124 = vmatpush1.msra.mxu0 %v8123
  %8125 = vmatprep.subr.mxu0 0.0
  %v8126 = vand.u32 %v37, 4294901760
  %8127 = vmatpush1.msra.mxu0 %v8126
  %8128 = vmatprep.subr.mxu0 0.0
  %v8129 = vand.u32 %v38, 4294901760
  %8130 = vmatpush1.msra.mxu0 %v8129
  %8131 = vmatprep.subr.mxu0 0.0
  %v8132 = vand.u32 %v39, 4294901760
  %8133 = vmatpush1.msra.mxu0 %v8132
  %8134 = vmatprep.subr.mxu0 0.0
  %v8135 = vand.u32 %v40, 4294901760
  %8136 = vmatpush1.msra.mxu0 %v8135
  %8137 = vmatprep.subr.mxu0 0.0
  %v8138 = vand.u32 %v41, 4294901760
  %8139 = vmatpush1.msra.mxu0 %v8138
  %8140 = vmatprep.subr.mxu0 0.0
  %v8141 = vand.u32 %v42, 4294901760
  %8142 = vmatpush1.msra.mxu0 %v8141
  %8143 = vmatprep.subr.mxu0 0.0
  %v8144 = vand.u32 %v43, 4294901760
  %8145 = vmatpush1.msra.mxu0 %v8144
  %8146 = vmatprep.subr.mxu0 0.0
  %v8147 = vand.u32 %v44, 4294901760
  %8148 = vmatpush1.msra.mxu0 %v8147
  %8149 = vmatprep.subr.mxu0 0.0
  %8150 = vmatpush1.msra.mxu0 0.0
  %8151 = vmatprep.subr.mxu0 0.0
  %8152 = vmatpush1.msra.mxu0 0.0
  %8153 = vmatprep.subr.mxu0 0.0
  %8154 = vmatpush1.msra.mxu0 0.0
  %8155 = vmatprep.subr.mxu0 0.0
  %8156 = vmatpush1.msra.mxu0 0.0
  %8157 = vmatprep.subr.mxu0 0.0
  %8158 = vmatpush1.msra.mxu0 0.0
  %8159 = vmatprep.subr.mxu0 0.0
  %8160 = vmatpush1.msra.mxu0 0.0
  %8161 = vmatprep.subr.mxu0 0.0
  %8162 = vmatpush1.msra.mxu0 0.0
  %8163 = vmatprep.subr.mxu0 0.0
  %8164 = vmatpush1.msra.mxu0 0.0
  %8165 = vmatprep.subr.mxu0 0.0
  %8166 = vmatpush1.msra.mxu0 0.0
  %8167 = vmatprep.subr.mxu0 0.0
  %8168 = vmatpush1.msra.mxu0 0.0
  %8169 = vmatprep.subr.mxu0 0.0
  %8170 = vmatpush1.msra.mxu0 0.0
  %8171 = vmatprep.subr.mxu0 0.0
  %8172 = vmatpush1.msra.mxu0 0.0
  %8173 = vmatprep.subr.mxu0 0.0
  %8174 = vmatpush1.msra.mxu0 0.0
  %8175 = vmatprep.subr.mxu0 0.0
  %8176 = vmatpush1.msra.mxu0 0.0
  %8177 = vmatprep.subr.mxu0 0.0
  %8178 = vmatpush1.msra.mxu0 0.0
  %8179 = vmatprep.subr.mxu0 0.0
  %8180 = vmatpush1.msra.mxu0 0.0
  %8181 = vmatprep.mubr.f32.mxu0 0.0
  %v8182 = vand.u32 %v7546, 4294901760
  %8183 = vmatmul.mubr.f32.gmra.mrb[0].mxu0 %v8182
  %v8184 = vpop.f32.mrb[0].mxu0
  %v8185 = vadd.f32 %v8098, %v8184
  %v8186 = vpop.f32.mrb[0].mxu0
  %8187 = vdwg.mxu0
  %v8188 = vmul.f32 %v8185, 0.001953125
  %v8189 = vmul.f32 %v8188, %v8188
  %v8191 = vrot.slane %v8189, 7
  %v8193 = vsub.f32 %v8188, %v8191
  %v8194 = vadd.f32 %v8193, 1e-05
  %v8195 = vrsqrt.pop %v8194
  %v8197 = vrot.slane %v8195, 5
  %v8199 = vmul.f32 %v46, %v8197
  %v8201 = vrot.slane %v8199, 4
  %v8203 = vmul.f32 %v8188, %v8201
  %v8205 = vrot.slane %v8203, 3
  %v8207 = vsub.f32 %v46, %v8205
  %v8209 = vrot.slane %v8207, 4
  %v8211 = vsel %vm662, %v8201, %v8209
  %v8213 = vsel %vm1323, %v8211, 0
  %8215 = vmatprep.subr.mxu0 0.0
  %v8216 = vand.u32 %v1329, 4294901760
  %8217 = vmatpush1.msra.mxu0 %v8216
  %8218 = vmatprep.subr.mxu0 0.0
  %8219 = vmatpush1.msra.mxu0 0.0
  %8220 = vmatprep.subr.mxu0 0.0
  %8221 = vmatpush1.msra.mxu0 0.0
  %8222 = vmatprep.subr.mxu0 0.0
  %8223 = vmatpush1.msra.mxu0 0.0
  %8224 = vmatprep.subr.mxu0 0.0
  %8225 = vmatpush1.msra.mxu0 0.0
  %8226 = vmatprep.subr.mxu0 0.0
  %8227 = vmatpush1.msra.mxu0 0.0
  %8228 = vmatprep.subr.mxu0 0.0
  %8229 = vmatpush1.msra.mxu0 0.0
  %8230 = vmatprep.subr.mxu0 0.0
  %8231 = vmatpush1.msra.mxu0 0.0
  %8232 = vmatprep.subr.mxu0 0.0
  %8233 = vmatpush1.msra.mxu0 0.0
  %8234 = vmatprep.subr.mxu0 0.0
  %8235 = vmatpush1.msra.mxu0 0.0
  %8236 = vmatprep.subr.mxu0 0.0
  %8237 = vmatpush1.msra.mxu0 0.0
  %8238 = vmatprep.subr.mxu0 0.0
  %8239 = vmatpush1.msra.mxu0 0.0
  %8240 = vmatprep.subr.mxu0 0.0
  %8241 = vmatpush1.msra.mxu0 0.0
  %8242 = vmatprep.subr.mxu0 0.0
  %8243 = vmatpush1.msra.mxu0 0.0
  %8244 = vmatprep.subr.mxu0 0.0
  %8245 = vmatpush1.msra.mxu0 0.0
  %8246 = vmatprep.subr.mxu0 0.0
  %8247 = vmatpush1.msra.mxu0 0.0
  %8248 = vmatprep.subr.mxu0 0.0
  %8249 = vmatpush1.msra.mxu0 0.0
  %8250 = vmatprep.subr.mxu0 0.0
  %8251 = vmatpush1.msra.mxu0 0.0
  %8252 = vmatprep.subr.mxu0 0.0
  %8253 = vmatpush1.msra.mxu0 0.0
  %8254 = vmatprep.subr.mxu0 0.0
  %8255 = vmatpush1.msra.mxu0 0.0
  %8256 = vmatprep.subr.mxu0 0.0
  %8257 = vmatpush1.msra.mxu0 0.0
  %8258 = vmatprep.subr.mxu0 0.0
  %8259 = vmatpush1.msra.mxu0 0.0
  %8260 = vmatprep.subr.mxu0 0.0
  %8261 = vmatpush1.msra.mxu0 0.0
  %8262 = vmatprep.subr.mxu0 0.0
  %8263 = vmatpush1.msra.mxu0 0.0
  %8264 = vmatprep.subr.mxu0 0.0
  %8265 = vmatpush1.msra.mxu0 0.0
  %8266 = vmatprep.subr.mxu0 0.0
  %8267 = vmatpush1.msra.mxu0 0.0
  %8268 = vmatprep.subr.mxu0 0.0
  %8269 = vmatpush1.msra.mxu0 0.0
  %8270 = vmatprep.subr.mxu0 0.0
  %8271 = vmatpush1.msra.mxu0 0.0
  %8272 = vmatprep.subr.mxu0 0.0
  %8273 = vmatpush1.msra.mxu0 0.0
  %8274 = vmatprep.subr.mxu0 0.0
  %8275 = vmatpush1.msra.mxu0 0.0
  %8276 = vmatprep.subr.mxu0 0.0
  %8277 = vmatpush1.msra.mxu0 0.0
  %8278 = vmatprep.subr.mxu0 0.0
  %8279 = vmatpush1.msra.mxu0 0.0
  %8280 = vmatprep.mubr.f32.mxu0 0.0
  %v8281 = vand.u32 %v8213, 4294901760
  %v8282 = vsub.f32 %v8213, %v8281
  %v8283 = vand.u32 %v8282, 4294901760
  %v8284 = vsub.f32 %v8282, %v8283
  %v8285 = vand.u32 %v8284, 4294901760
  %8286 = vmatmul.mubr.f32.gmra.mrb[0].mxu0 %v8285
  %v8287 = vpop.f32.mrb[0].mxu0
  %v8288 = vadd.f32 0.0, %v8287
  %v8289 = vpop.f32.mrb[0].mxu0
  %8290 = vdwg.mxu0
  %8291 = vmatprep.subr.mxu0 0.0
  %v8292 = vand.u32 %v1329, 4294901760
  %v8293 = vsub.f32 %v1329, %v8292
  %v8294 = vand.u32 %v8293, 4294901760
  %v8295 = vsub.f32 %v8293, %v8294
  %v8296 = vand.u32 %v8295, 4294901760
  %8297 = vmatpush1.msra.mxu0 %v8296
  %8298 = vmatprep.subr.mxu0 0.0
  %8299 = vmatpush1.msra.mxu0 0.0
  %8300 = vmatprep.subr.mxu0 0.0
  %8301 = vmatpush1.msra.mxu0 0.0
  %8302 = vmatprep.subr.mxu0 0.0
  %8303 = vmatpush1.msra.mxu0 0.0
  %8304 = vmatprep.subr.mxu0 0.0
  %8305 = vmatpush1.msra.mxu0 0.0
  %8306 = vmatprep.subr.mxu0 0.0
  %8307 = vmatpush1.msra.mxu0 0.0
  %8308 = vmatprep.subr.mxu0 0.0
  %8309 = vmatpush1.msra.mxu0 0.0
  %8310 = vmatprep.subr.mxu0 0.0
  %8311 = vmatpush1.msra.mxu0 0.0
  %8312 = vmatprep.subr.mxu0 0.0
  %8313 = vmatpush1.msra.mxu0 0.0
  %8314 = vmatprep.subr.mxu0 0.0
  %8315 = vmatpush1.msra.mxu0 0.0
  %8316 = vmatprep.subr.mxu0 0.0
  %8317 = vmatpush1.msra.mxu0 0.0
  %8318 = vmatprep.subr.mxu0 0.0
  %8319 = vmatpush1.msra.mxu0 0.0
  %8320 = vmatprep.subr.mxu0 0.0
  %8321 = vmatpush1.msra.mxu0 0.0
  %8322 = vmatprep.subr.mxu0 0.0
  %8323 = vmatpush1.msra.mxu0 0.0
  %8324 = vmatprep.subr.mxu0 0.0
  %8325 = vmatpush1.msra.mxu0 0.0
  %8326 = vmatprep.subr.mxu0 0.0
  %8327 = vmatpush1.msra.mxu0 0.0
  %8328 = vmatprep.subr.mxu0 0.0
  %8329 = vmatpush1.msra.mxu0 0.0
  %8330 = vmatprep.subr.mxu0 0.0
  %8331 = vmatpush1.msra.mxu0 0.0
  %8332 = vmatprep.subr.mxu0 0.0
  %8333 = vmatpush1.msra.mxu0 0.0
  %8334 = vmatprep.subr.mxu0 0.0
  %8335 = vmatpush1.msra.mxu0 0.0
  %8336 = vmatprep.subr.mxu0 0.0
  %8337 = vmatpush1.msra.mxu0 0.0
  %8338 = vmatprep.subr.mxu0 0.0
  %8339 = vmatpush1.msra.mxu0 0.0
  %8340 = vmatprep.subr.mxu0 0.0
  %8341 = vmatpush1.msra.mxu0 0.0
  %8342 = vmatprep.subr.mxu0 0.0
  %8343 = vmatpush1.msra.mxu0 0.0
  %8344 = vmatprep.subr.mxu0 0.0
  %8345 = vmatpush1.msra.mxu0 0.0
  %8346 = vmatprep.subr.mxu0 0.0
  %8347 = vmatpush1.msra.mxu0 0.0
  %8348 = vmatprep.subr.mxu0 0.0
  %8349 = vmatpush1.msra.mxu0 0.0
  %8350 = vmatprep.subr.mxu0 0.0
  %8351 = vmatpush1.msra.mxu0 0.0
  %8352 = vmatprep.subr.mxu0 0.0
  %8353 = vmatpush1.msra.mxu0 0.0
  %8354 = vmatprep.subr.mxu0 0.0
  %8355 = vmatpush1.msra.mxu0 0.0
  %8356 = vmatprep.subr.mxu0 0.0
  %8357 = vmatpush1.msra.mxu0 0.0
  %8358 = vmatprep.subr.mxu0 0.0
  %8359 = vmatpush1.msra.mxu0 0.0
  %8360 = vmatprep.mubr.f32.mxu0 0.0
  %v8361 = vand.u32 %v8213, 4294901760
  %8362 = vmatmul.mubr.f32.gmra.mrb[0].mxu0 %v8361
  %v8363 = vpop.f32.mrb[0].mxu0
  %v8364 = vadd.f32 %v8288, %v8363
  %v8365 = vpop.f32.mrb[0].mxu0
  %8366 = vdwg.mxu0
  %8367 = vmatprep.subr.mxu0 0.0
  %v8368 = vand.u32 %v1329, 4294901760
  %v8369 = vsub.f32 %v1329, %v8368
  %8370 = vmatpush1.msra.mxu0 %v8369
  %8371 = vmatprep.subr.mxu0 0.0
  %8372 = vmatpush1.msra.mxu0 0.0
  %8373 = vmatprep.subr.mxu0 0.0
  %8374 = vmatpush1.msra.mxu0 0.0
  %8375 = vmatprep.subr.mxu0 0.0
  %8376 = vmatpush1.msra.mxu0 0.0
  %8377 = vmatprep.subr.mxu0 0.0
  %8378 = vmatpush1.msra.mxu0 0.0
  %8379 = vmatprep.subr.mxu0 0.0
  %8380 = vmatpush1.msra.mxu0 0.0
  %8381 = vmatprep.subr.mxu0 0.0
  %8382 = vmatpush1.msra.mxu0 0.0
  %8383 = vmatprep.subr.mxu0 0.0
  %8384 = vmatpush1.msra.mxu0 0.0
  %8385 = vmatprep.subr.mxu0 0.0
  %8386 = vmatpush1.msra.mxu0 0.0
  %8387 = vmatprep.subr.mxu0 0.0
  %8388 = vmatpush1.msra.mxu0 0.0
  %8389 = vmatprep.subr.mxu0 0.0
  %8390 = vmatpush1.msra.mxu0 0.0
  %8391 = vmatprep.subr.mxu0 0.0
  %8392 = vmatpush1.msra.mxu0 0.0
  %8393 = vmatprep.subr.mxu0 0.0
  %8394 = vmatpush1.msra.mxu0 0.0
  %8395 = vmatprep.subr.mxu0 0.0
  %8396 = vmatpush1.msra.mxu0 0.0
  %8397 = vmatprep.subr.mxu0 0.0
  %8398 = vmatpush1.msra.mxu0 0.0
  %8399 = vmatprep.subr.mxu0 0.0
  %8400 = vmatpush1.msra.mxu0 0.0
  %8401 = vmatprep.subr.mxu0 0.0
  %8402 = vmatpush1.msra.mxu0 0.0
  %8403 = vmatprep.subr.mxu0 0.0
  %8404 = vmatpush1.msra.mxu0 0.0
  %8405 = vmatprep.subr.mxu0 0.0
  %8406 = vmatpush1.msra.mxu0 0.0
  %8407 = vmatprep.subr.mxu0 0.0
  %8408 = vmatpush1.msra.mxu0 0.0
  %8409 = vmatprep.subr.mxu0 0.0
  %8410 = vmatpush1.msra.mxu0 0.0
  %8411 = vmatprep.subr.mxu0 0.0
  %8412 = vmatpush1.msra.mxu0 0.0
  %8413 = vmatprep.subr.mxu0 0.0
  %8414 = vmatpush1.msra.mxu0 0.0
  %8415 = vmatprep.subr.mxu0 0.0
  %8416 = vmatpush1.msra.mxu0 0.0
  %8417 = vmatprep.subr.mxu0 0.0
  %8418 = vmatpush1.msra.mxu0 0.0
  %8419 = vmatprep.subr.mxu0 0.0
  %8420 = vmatpush1.msra.mxu0 0.0
  %8421 = vmatprep.subr.mxu0 0.0
  %8422 = vmatpush1.msra.mxu0 0.0
  %8423 = vmatprep.subr.mxu0 0.0
  %8424 = vmatpush1.msra.mxu0 0.0
  %8425 = vmatprep.subr.mxu0 0.0
  %8426 = vmatpush1.msra.mxu0 0.0
  %8427 = vmatprep.subr.mxu0 0.0
  %8428 = vmatpush1.msra.mxu0 0.0
  %8429 = vmatprep.subr.mxu0 0.0
  %8430 = vmatpush1.msra.mxu0 0.0
  %8431 = vmatprep.subr.mxu0 0.0
  %8432 = vmatpush1.msra.mxu0 0.0
  %8433 = vmatprep.mubr.f32.mxu0 0.0
  %v8434 = vand.u32 %v8213, 4294901760
  %v8435 = vsub.f32 %v8213, %v8434
  %8436 = vmatmul.mubr.f32.gmra.mrb[0].mxu0 %v8435
  %v8437 = vpop.f32.mrb[0].mxu0
  %v8438 = vadd.f32 %v8364, %v8437
  %v8439 = vpop.f32.mrb[0].mxu0
  %8440 = vdwg.mxu0
  %8441 = vmatprep.subr.mxu0 0.0
  %v8442 = vand.u32 %v1329, 4294901760
  %8443 = vmatpush1.msra.mxu0 %v8442
  %8444 = vmatprep.subr.mxu0 0.0
  %8445 = vmatpush1.msra.mxu0 0.0
  %8446 = vmatprep.subr.mxu0 0.0
  %8447 = vmatpush1.msra.mxu0 0.0
  %8448 = vmatprep.subr.mxu0 0.0
  %8449 = vmatpush1.msra.mxu0 0.0
  %8450 = vmatprep.subr.mxu0 0.0
  %8451 = vmatpush1.msra.mxu0 0.0
  %8452 = vmatprep.subr.mxu0 0.0
  %8453 = vmatpush1.msra.mxu0 0.0
  %8454 = vmatprep.subr.mxu0 0.0
  %8455 = vmatpush1.msra.mxu0 0.0
  %8456 = vmatprep.subr.mxu0 0.0
  %8457 = vmatpush1.msra.mxu0 0.0
  %8458 = vmatprep.subr.mxu0 0.0
  %8459 = vmatpush1.msra.mxu0 0.0
  %8460 = vmatprep.subr.mxu0 0.0
  %8461 = vmatpush1.msra.mxu0 0.0
  %8462 = vmatprep.subr.mxu0 0.0
  %8463 = vmatpush1.msra.mxu0 0.0
  %8464 = vmatprep.subr.mxu0 0.0
  %8465 = vmatpush1.msra.mxu0 0.0
  %8466 = vmatprep.subr.mxu0 0.0
  %8467 = vmatpush1.msra.mxu0 0.0
  %8468 = vmatprep.subr.mxu0 0.0
  %8469 = vmatpush1.msra.mxu0 0.0
  %8470 = vmatprep.subr.mxu0 0.0
  %8471 = vmatpush1.msra.mxu0 0.0
  %8472 = vmatprep.subr.mxu0 0.0
  %8473 = vmatpush1.msra.mxu0 0.0
  %8474 = vmatprep.subr.mxu0 0.0
  %8475 = vmatpush1.msra.mxu0 0.0
  %8476 = vmatprep.subr.mxu0 0.0
  %8477 = vmatpush1.msra.mxu0 0.0
  %8478 = vmatprep.subr.mxu0 0.0
  %8479 = vmatpush1.msra.mxu0 0.0
  %8480 = vmatprep.subr.mxu0 0.0
  %8481 = vmatpush1.msra.mxu0 0.0
  %8482 = vmatprep.subr.mxu0 0.0
  %8483 = vmatpush1.msra.mxu0 0.0
  %8484 = vmatprep.subr.mxu0 0.0
  %8485 = vmatpush1.msra.mxu0 0.0
  %8486 = vmatprep.subr.mxu0 0.0
  %8487 = vmatpush1.msra.mxu0 0.0
  %8488 = vmatprep.subr.mxu0 0.0
  %8489 = vmatpush1.msra.mxu0 0.0
  %8490 = vmatprep.subr.mxu0 0.0
  %8491 = vmatpush1.msra.mxu0 0.0
  %8492 = vmatprep.subr.mxu0 0.0
  %8493 = vmatpush1.msra.mxu0 0.0
  %8494 = vmatprep.subr.mxu0 0.0
  %8495 = vmatpush1.msra.mxu0 0.0
  %8496 = vmatprep.subr.mxu0 0.0
  %8497 = vmatpush1.msra.mxu0 0.0
  %8498 = vmatprep.subr.mxu0 0.0
  %8499 = vmatpush1.msra.mxu0 0.0
  %8500 = vmatprep.subr.mxu0 0.0
  %8501 = vmatpush1.msra.mxu0 0.0
  %8502 = vmatprep.subr.mxu0 0.0
  %8503 = vmatpush1.msra.mxu0 0.0
  %8504 = vmatprep.subr.mxu0 0.0
  %8505 = vmatpush1.msra.mxu0 0.0
  %8506 = vmatprep.mubr.f32.mxu0 0.0
  %v8507 = vand.u32 %v8213, 4294901760
  %v8508 = vsub.f32 %v8213, %v8507
  %v8509 = vand.u32 %v8508, 4294901760
  %8510 = vmatmul.mubr.f32.gmra.mrb[0].mxu0 %v8509
  %v8511 = vpop.f32.mrb[0].mxu0
  %v8512 = vadd.f32 %v8438, %v8511
  %v8513 = vpop.f32.mrb[0].mxu0
  %8514 = vdwg.mxu0
  %8515 = vmatprep.subr.mxu0 0.0
  %v8516 = vand.u32 %v1329, 4294901760
  %v8517 = vsub.f32 %v1329, %v8516
  %v8518 = vand.u32 %v8517, 4294901760
  %8519 = vmatpush1.msra.mxu0 %v8518
  %8520 = vmatprep.subr.mxu0 0.0
  %8521 = vmatpush1.msra.mxu0 0.0
  %8522 = vmatprep.subr.mxu0 0.0
  %8523 = vmatpush1.msra.mxu0 0.0
  %8524 = vmatprep.subr.mxu0 0.0
  %8525 = vmatpush1.msra.mxu0 0.0
  %8526 = vmatprep.subr.mxu0 0.0
  %8527 = vmatpush1.msra.mxu0 0.0
  %8528 = vmatprep.subr.mxu0 0.0
  %8529 = vmatpush1.msra.mxu0 0.0
  %8530 = vmatprep.subr.mxu0 0.0
  %8531 = vmatpush1.msra.mxu0 0.0
  %8532 = vmatprep.subr.mxu0 0.0
  %8533 = vmatpush1.msra.mxu0 0.0
  %8534 = vmatprep.subr.mxu0 0.0
  %8535 = vmatpush1.msra.mxu0 0.0
  %8536 = vmatprep.subr.mxu0 0.0
  %8537 = vmatpush1.msra.mxu0 0.0
  %8538 = vmatprep.subr.mxu0 0.0
  %8539 = vmatpush1.msra.mxu0 0.0
  %8540 = vmatprep.subr.mxu0 0.0
  %8541 = vmatpush1.msra.mxu0 0.0
  %8542 = vmatprep.subr.mxu0 0.0
  %8543 = vmatpush1.msra.mxu0 0.0
  %8544 = vmatprep.subr.mxu0 0.0
  %8545 = vmatpush1.msra.mxu0 0.0
  %8546 = vmatprep.subr.mxu0 0.0
  %8547 = vmatpush1.msra.mxu0 0.0
  %8548 = vmatprep.subr.mxu0 0.0
  %8549 = vmatpush1.msra.mxu0 0.0
  %8550 = vmatprep.subr.mxu0 0.0
  %8551 = vmatpush1.msra.mxu0 0.0
  %8552 = vmatprep.subr.mxu0 0.0
  %8553 = vmatpush1.msra.mxu0 0.0
  %8554 = vmatprep.subr.mxu0 0.0
  %8555 = vmatpush1.msra.mxu0 0.0
  %8556 = vmatprep.subr.mxu0 0.0
  %8557 = vmatpush1.msra.mxu0 0.0
  %8558 = vmatprep.subr.mxu0 0.0
  %8559 = vmatpush1.msra.mxu0 0.0
  %8560 = vmatprep.subr.mxu0 0.0
  %8561 = vmatpush1.msra.mxu0 0.0
  %8562 = vmatprep.subr.mxu0 0.0
  %8563 = vmatpush1.msra.mxu0 0.0
  %8564 = vmatprep.subr.mxu0 0.0
  %8565 = vmatpush1.msra.mxu0 0.0
  %8566 = vmatprep.subr.mxu0 0.0
  %8567 = vmatpush1.msra.mxu0 0.0
  %8568 = vmatprep.subr.mxu0 0.0
  %8569 = vmatpush1.msra.mxu0 0.0
  %8570 = vmatprep.subr.mxu0 0.0
  %8571 = vmatpush1.msra.mxu0 0.0
  %8572 = vmatprep.subr.mxu0 0.0
  %8573 = vmatpush1.msra.mxu0 0.0
  %8574 = vmatprep.subr.mxu0 0.0
  %8575 = vmatpush1.msra.mxu0 0.0
  %8576 = vmatprep.subr.mxu0 0.0
  %8577 = vmatpush1.msra.mxu0 0.0
  %8578 = vmatprep.subr.mxu0 0.0
  %8579 = vmatpush1.msra.mxu0 0.0
  %8580 = vmatprep.subr.mxu0 0.0
  %8581 = vmatpush1.msra.mxu0 0.0
  %8582 = vmatprep.mubr.f32.mxu0 0.0
  %v8583 = vand.u32 %v8213, 4294901760
  %8584 = vmatmul.mubr.f32.gmra.mrb[0].mxu0 %v8583
  %v8585 = vpop.f32.mrb[0].mxu0
  %v8586 = vadd.f32 %v8512, %v8585
  %v8587 = vpop.f32.mrb[0].mxu0
  %8588 = vdwg.mxu0
  %8589 = vmatprep.subr.mxu0 0.0
  %v8590 = vand.u32 %v1329, 4294901760
  %8591 = vmatpush1.msra.mxu0 %v8590
  %8592 = vmatprep.subr.mxu0 0.0
  %8593 = vmatpush1.msra.mxu0 0.0
  %8594 = vmatprep.subr.mxu0 0.0
  %8595 = vmatpush1.msra.mxu0 0.0
  %8596 = vmatprep.subr.mxu0 0.0
  %8597 = vmatpush1.msra.mxu0 0.0
  %8598 = vmatprep.subr.mxu0 0.0
  %8599 = vmatpush1.msra.mxu0 0.0
  %8600 = vmatprep.subr.mxu0 0.0
  %8601 = vmatpush1.msra.mxu0 0.0
  %8602 = vmatprep.subr.mxu0 0.0
  %8603 = vmatpush1.msra.mxu0 0.0
  %8604 = vmatprep.subr.mxu0 0.0
  %8605 = vmatpush1.msra.mxu0 0.0
  %8606 = vmatprep.subr.mxu0 0.0
  %8607 = vmatpush1.msra.mxu0 0.0
  %8608 = vmatprep.subr.mxu0 0.0
  %8609 = vmatpush1.msra.mxu0 0.0
  %8610 = vmatprep.subr.mxu0 0.0
  %8611 = vmatpush1.msra.mxu0 0.0
  %8612 = vmatprep.subr.mxu0 0.0
  %8613 = vmatpush1.msra.mxu0 0.0
  %8614 = vmatprep.subr.mxu0 0.0
  %8615 = vmatpush1.msra.mxu0 0.0
  %8616 = vmatprep.subr.mxu0 0.0
  %8617 = vmatpush1.msra.mxu0 0.0
  %8618 = vmatprep.subr.mxu0 0.0
  %8619 = vmatpush1.msra.mxu0 0.0
  %8620 = vmatprep.subr.mxu0 0.0
  %8621 = vmatpush1.msra.mxu0 0.0
  %8622 = vmatprep.subr.mxu0 0.0
  %8623 = vmatpush1.msra.mxu0 0.0
  %8624 = vmatprep.subr.mxu0 0.0
  %8625 = vmatpush1.msra.mxu0 0.0
  %8626 = vmatprep.subr.mxu0 0.0
  %8627 = vmatpush1.msra.mxu0 0.0
  %8628 = vmatprep.subr.mxu0 0.0
  %8629 = vmatpush1.msra.mxu0 0.0
  %8630 = vmatprep.subr.mxu0 0.0
  %8631 = vmatpush1.msra.mxu0 0.0
  %8632 = vmatprep.subr.mxu0 0.0
  %8633 = vmatpush1.msra.mxu0 0.0
  %8634 = vmatprep.subr.mxu0 0.0
  %8635 = vmatpush1.msra.mxu0 0.0
  %8636 = vmatprep.subr.mxu0 0.0
  %8637 = vmatpush1.msra.mxu0 0.0
  %8638 = vmatprep.subr.mxu0 0.0
  %8639 = vmatpush1.msra.mxu0 0.0
  %8640 = vmatprep.subr.mxu0 0.0
  %8641 = vmatpush1.msra.mxu0 0.0
  %8642 = vmatprep.subr.mxu0 0.0
  %8643 = vmatpush1.msra.mxu0 0.0
  %8644 = vmatprep.subr.mxu0 0.0
  %8645 = vmatpush1.msra.mxu0 0.0
  %8646 = vmatprep.subr.mxu0 0.0
  %8647 = vmatpush1.msra.mxu0 0.0
  %8648 = vmatprep.subr.mxu0 0.0
  %8649 = vmatpush1.msra.mxu0 0.0
  %8650 = vmatprep.subr.mxu0 0.0
  %8651 = vmatpush1.msra.mxu0 0.0
  %8652 = vmatprep.subr.mxu0 0.0
  %8653 = vmatpush1.msra.mxu0 0.0
  %8654 = vmatprep.mubr.f32.mxu0 0.0
  %v8655 = vand.u32 %v8213, 4294901760
  %8656 = vmatmul.mubr.f32.gmra.mrb[0].mxu0 %v8655
  %v8657 = vpop.f32.mrb[0].mxu0
  %v8658 = vadd.f32 %v8586, %v8657
  %v8659 = vpop.f32.mrb[0].mxu0
  %8660 = vdwg.mxu0
  %v8661 = vlaneseq
  %v8662 = vshrl.u32 %v8661, 7
  %v8663 = vsub.s32 0, %v8662
  %v8664 = vrot.slane %v8658, %v8663
  %v8665 = vmul.f32 %v7528, %v8664
  %v8666 = vmul.f32 %v7529, %v8664
  %v8667 = vlaneseq
  %v8668 = vshrl.u32 %v8667, 7
  %v8669 = vsub.s32 1, %v8668
  %v8670 = vrot.slane %v8658, %v8669
  %v8671 = vadd.f32 %v8665, %v8670
  %v8672 = vadd.f32 %v8666, %v8670
  %8673 = vst [vmem:[%s8] sm:$0xff] %v8671
  %8674 = vst [vmem:[%s8 + $0x8] sm:$0xff] %v8672
  // Predicated region
  $region34: #{_lambda_.1} parent=0 // pred_check
    _
  $region35: #{_lambda_.1} parent=0 // pred_check_branch
    %8676 = sbr.rel (0) target = $region37
  $region36: #{_lambda_.1} parent=0 // pred_region
    _
  $region37: #{_lambda_.1} parent=0 // pred_fallthru
    _
  // Predicated region
  $region38: #{_lambda_.1} parent=0 // pred_check
    _
  $region39: #{_lambda_.1} parent=0 // pred_check_branch
    %8678 = sbr.rel (0) target = $region41
  $region40: #{_lambda_.1} parent=0 // pred_region
    _
  $region41: #{_lambda_.1} parent=0 // pred_fallthru
    _

</llo_original>
